<compile_context>
chip_gen: v7x
topology: tpu7x:2x2x1
jax: 0.10.0
libtpu: 0.0.40
codegen_flags: <defaults>
</compile_context>

<pallas_src>
import jax
import jax.numpy as jnp
from jax.experimental import pallas as pl
from jax.experimental.pallas import tpu as pltpu

# ---- module hyper-parameters (scaled down but structurally identical) -------
CNN_OUTPUT_SIZE = 128      # original module: 1000
HIDDEN_SIZE = 128          # original module: 1000
NUM_CLASSES = 8            # original: len(VALID_LABELS)
NUM_LSTM_LAYERS = 2
CONV_FILTERS = 128         # proxy CNN channels; 128 keeps matmul outputs lane-dense

assert CNN_OUTPUT_SIZE == HIDDEN_SIZE  # LSTM layer-0 input dim == hidden dim


def im2col3x3(x_nhwc):
    """SAME-padded 3x3 patches: (N,H,W,C) -> (N,H,W,9*C)  (XLA-side)."""
    N, H, W, C = x_nhwc.shape
    pad = jnp.pad(x_nhwc, ((0, 0), (1, 1), (1, 1), (0, 0)))
    patches = [pad[:, i:i + H, j:j + W, :] for i in range(3) for j in range(3)]
    return jnp.concatenate(patches, axis=-1)


# =============================================================================
# Fused kernel: CNN stage + 2-layer LSTM + classifier + softmax
# =============================================================================
def _make_fused_kernel(batch, seq_len, hw):
    B, T = batch, seq_len
    H = HIDDEN_SIZE
    F = CONV_FILTERS
    n = T * B

    def kernel(p_ref, cw_ref, cb_ref, fw_ref, fb_ref,
               wih_ref, whh_ref, lb_ref, clw_ref, clb_ref,
               logit_ref, prob_ref, seq_scr, z_scr):
        # ---------------- CNN stage (per-frame features, time-major rows) ----
        # conv as matmul (n*hw, 9C) x (9C, F) -> f32 accumulate, bias, ReLU
        conv = jnp.dot(p_ref[...], cw_ref[...],
                       preferred_element_type=jnp.float32)
        conv = jnp.maximum(conv + cb_ref[...], 0.0)              # (n*hw, F)

        # global average pool over spatial dim (minor dim stays 128-aligned)
        pooled = jnp.mean(conv.reshape(n, hw, F), axis=1)        # (n, F)

        # FC to CNN_OUTPUT_SIZE features; rows are already time-major (t*B+b)
        feats = (jnp.dot(pooled.astype(jnp.bfloat16), fw_ref[...],
                         preferred_element_type=jnp.float32) + fb_ref[...])

        # ---------------- 2-layer LSTM (unrolled, hoisted input projection) --
        h_last = None
        for layer in range(NUM_LSTM_LAYERS):                     # static unroll
            last_layer = layer == NUM_LSTM_LAYERS - 1
            xin = (feats if layer == 0 else seq_scr[...]).astype(jnp.bfloat16)

            # hoisted input projection: one (T*B, D) x (D, 4H) matmul + bias
            z_scr[...] = (jnp.dot(xin, wih_ref[layer],
                                  preferred_element_type=jnp.float32)
                          + lb_ref[layer])                       # b_ih + b_hh

            w_hh = whh_ref[layer]                                # (H, 4H) bf16
            h = jnp.zeros((B, H), jnp.float32)
            c = jnp.zeros((B, H), jnp.float32)

            for t in range(T):                                   # static unroll
                z = (z_scr[t * B:(t + 1) * B, :]
                     + jnp.dot(h.astype(jnp.bfloat16), w_hh,
                               preferred_element_type=jnp.float32))
                i_g = jax.nn.sigmoid(z[:, 0 * H:1 * H])          # gates in f32
                f_g = jax.nn.sigmoid(z[:, 1 * H:2 * H])
                g_g = jnp.tanh(z[:, 2 * H:3 * H])
                o_g = jax.nn.sigmoid(z[:, 3 * H:4 * H])
                c = f_g * c + i_g * g_g
                h = o_g * jnp.tanh(c)
                if not last_layer:                               # next layer input
                    seq_scr[t * B:(t + 1) * B, :] = h
            h_last = h                                           # lstm_out[:, -1, :]

        # ---------------- classifier (dropout = identity) + softmax ----------
        logits = (jnp.dot(h_last.astype(jnp.bfloat16), clw_ref[...],
                          preferred_element_type=jnp.float32) + clb_ref[...])
        logit_ref[...] = logits
        m = jnp.max(logits, axis=1, keepdims=True)
        e = jnp.exp(logits - m)
        prob_ref[...] = e / jnp.sum(e, axis=1, keepdims=True)

    return kernel


def cnn_lstm_fused(patches, params, *, batch, seq_len, hw):
    """patches: (T*B*hw, 9*C) bf16 in time-major frame order -> (logits, probs)."""
    B, T = batch, seq_len
    H = HIDDEN_SIZE
    NC = NUM_CLASSES
    kernel = _make_fused_kernel(B, T, hw)
    return pl.pallas_call(
        kernel,
        out_shape=(jax.ShapeDtypeStruct((B, NC), jnp.float32),
                   jax.ShapeDtypeStruct((B, NC), jnp.float32)),
        scratch_shapes=[
            pltpu.VMEM((T * B, H), jnp.float32),       # inter-layer hidden sequence
            pltpu.VMEM((T * B, 4 * H), jnp.float32),   # hoisted input projection
        ],
        compiler_params=pltpu.CompilerParams(vmem_limit_bytes=32 << 20),
    )(patches,
      params["conv_w"], params["conv_b"], params["fc_w"], params["fc_b"],
      params["wih"], params["whh"], params["lstm_b"],
      params["cls_w"], params["cls_b"])


# =============================================================================
# Parameters + full forward pass
# =============================================================================
def init_params(key):
    ks = jax.random.split(key, 6)
    H, D, F, C = HIDDEN_SIZE, CNN_OUTPUT_SIZE, CONV_FILTERS, 3

    def w(k, shape, fan):  # bf16 matmul weights (f32 accumulation in-kernel)
        return (jax.random.normal(k, shape, jnp.float32)
                / jnp.sqrt(jnp.float32(fan))).astype(jnp.bfloat16)

    return {
        "conv_w": w(ks[0], (9 * C, F), 9 * C),
        "conv_b": jnp.zeros((1, F), jnp.float32),
        "fc_w":   w(ks[1], (F, D), F),
        "fc_b":   jnp.zeros((1, D), jnp.float32),
        # LSTM: layer 0 input dim == D == H, layer 1 input dim == H
        "wih":    w(ks[2], (NUM_LSTM_LAYERS, D, 4 * H), D),
        "whh":    w(ks[3], (NUM_LSTM_LAYERS, H, 4 * H), H),
        # combined b_ih + b_hh (same arithmetic as PyTorch's two biases)
        "lstm_b": 0.01 * jax.random.normal(ks[4], (NUM_LSTM_LAYERS, 1, 4 * H),
                                           jnp.float32),
        "cls_w":  w(ks[5], (H, NUM_CLASSES), H),
        "cls_b":  jnp.zeros((1, NUM_CLASSES), jnp.float32),
    }


@jax.jit
def cnn_lstm_forward(x, params):
    """x: (B, T, C, H, W) float32 (NCHW frames).  Returns (logits, softmax)."""
    B, T, C, H, W = x.shape
    n = B * T
    # time-major frame order (row = t*B + b) so CNN feature rows feed the LSTM
    # recurrence directly, with no feature-matrix reorder anywhere.
    frames = jnp.transpose(x, (1, 0, 2, 3, 4)).reshape(n, C, H, W)
    frames = jnp.transpose(frames, (0, 2, 3, 1))                   # NHWC
    # bf16 patches: halves the HBM traffic of the 9x-expanded im2col array
    patches = im2col3x3(frames).reshape(n * H * W, 9 * C).astype(jnp.bfloat16)
    return cnn_lstm_fused(patches, params, batch=B, seq_len=T, hw=H * W)


if __name__ == "__main__":
    key = jax.random.PRNGKey(0)
    pkey, xkey = jax.random.split(key)
    params = init_params(pkey)

    B, T, C, H, W = 2, 8, 3, 16, 16
    x = jax.random.normal(xkey, (B, T, C, H, W), jnp.float32)

    logits, probs = cnn_lstm_forward(x, params)
    jax.block_until_ready((logits, probs))

    assert logits.shape == (B, NUM_CLASSES)
    assert probs.shape == (B, NUM_CLASSES)
    assert bool(jnp.allclose(jnp.sum(probs, axis=1), 1.0, atol=1e-5))
    print("KERNEL_OK")
</pallas_src>

<mosaic_0001>
module attributes {stable_mosaic.version = 11 : i64} {
  func.func @kernel(%arg0: memref<4096x27xbf16, #tpu.memory_space<vmem>>, %arg1: memref<27x128xbf16, #tpu.memory_space<vmem>>, %arg2: memref<1x128xf32, #tpu.memory_space<vmem>>, %arg3: memref<128x128xbf16, #tpu.memory_space<vmem>>, %arg4: memref<1x128xf32, #tpu.memory_space<vmem>>, %arg5: memref<2x128x512xbf16, #tpu.memory_space<vmem>>, %arg6: memref<2x128x512xbf16, #tpu.memory_space<vmem>>, %arg7: memref<2x1x512xf32, #tpu.memory_space<vmem>>, %arg8: memref<128x8xbf16, #tpu.memory_space<vmem>>, %arg9: memref<1x8xf32, #tpu.memory_space<vmem>>, %arg10: memref<2x8xf32, #tpu.memory_space<vmem>>, %arg11: memref<2x8xf32, #tpu.memory_space<vmem>>, %arg12: memref<16x128xf32, #tpu.memory_space<vmem>>, %arg13: memref<16x512xf32, #tpu.memory_space<vmem>>) attributes {dimension_semantics = [], scalar_prefetch = 0 : i64, scratch_operands = 2 : i64, tpu.core_type = #tpu.core_type<tc>} {
    %c0 = arith.constant 0 : index
    %c0_0 = arith.constant 0 : index
    %0 = vector.load %arg0[%c0, %c0_0] : memref<4096x27xbf16, #tpu.memory_space<vmem>>, vector<4096x27xbf16>
    %c0_1 = arith.constant 0 : index
    %c0_2 = arith.constant 0 : index
    %1 = vector.load %arg1[%c0_1, %c0_2] : memref<27x128xbf16, #tpu.memory_space<vmem>>, vector<27x128xbf16>
    %cst = arith.constant dense<0.000000e+00> : vector<4096x128xf32>
    %2 = tpu.matmul %0, %1, %cst {dimension_numbers = #tpu.dot_dimension_numbers<[1], [0], [0], [1], [0, 0, 1, 1], [], []>} : vector<4096x27xbf16>, vector<27x128xbf16>, vector<4096x128xf32> -> vector<4096x128xf32>
    %c0_3 = arith.constant 0 : index
    %c0_4 = arith.constant 0 : index
    %3 = vector.load %arg2[%c0_3, %c0_4] : memref<1x128xf32, #tpu.memory_space<vmem>>, vector<1x128xf32>
    %4 = vector.broadcast %3 : vector<1x128xf32> to vector<4096x128xf32>
    %5 = arith.addf %2, %4 : vector<4096x128xf32>
    %cst_5 = arith.constant 0.000000e+00 : f32
    %6 = vector.broadcast %cst_5 : f32 to vector<4096x128xf32>
    %7 = arith.maximumf %5, %6 : vector<4096x128xf32>
    %8 = vector.shape_cast %7 : vector<4096x128xf32> to vector<16x256x128xf32>
    %cst_6 = arith.constant dense<0.000000e+00> : vector<16x128xf32>
    %9 = vector.multi_reduction <add>, %8, %cst_6 [1] : vector<16x256x128xf32> to vector<16x128xf32>
    %cst_7 = arith.constant 2.560000e+02 : f32
    %10 = vector.broadcast %cst_7 : f32 to vector<16x128xf32>
    %11 = arith.divf %9, %10 : vector<16x128xf32>
    %12 = arith.truncf %11 : vector<16x128xf32> to vector<16x128xbf16>
    %c0_8 = arith.constant 0 : index
    %c0_9 = arith.constant 0 : index
    %13 = vector.load %arg3[%c0_8, %c0_9] : memref<128x128xbf16, #tpu.memory_space<vmem>>, vector<128x128xbf16>
    %cst_10 = arith.constant dense<0.000000e+00> : vector<16x128xf32>
    %14 = tpu.matmul %12, %13, %cst_10 {dimension_numbers = #tpu.dot_dimension_numbers<[1], [0], [0], [1], [0, 0, 1, 1], [], []>} : vector<16x128xbf16>, vector<128x128xbf16>, vector<16x128xf32> -> vector<16x128xf32>
    %c0_11 = arith.constant 0 : index
    %c0_12 = arith.constant 0 : index
    %15 = vector.load %arg4[%c0_11, %c0_12] : memref<1x128xf32, #tpu.memory_space<vmem>>, vector<1x128xf32>
    %16 = vector.broadcast %15 : vector<1x128xf32> to vector<16x128xf32>
    %17 = arith.addf %14, %16 : vector<16x128xf32>
    %18 = arith.truncf %17 : vector<16x128xf32> to vector<16x128xbf16>
    %c0_13 = arith.constant 0 : index
    %c0_14 = arith.constant 0 : index
    %c0_15 = arith.constant 0 : index
    %19 = vector.load %arg5[%c0_13, %c0_14, %c0_15] : memref<2x128x512xbf16, #tpu.memory_space<vmem>>, vector<1x128x512xbf16>
    %20 = vector.shape_cast %19 : vector<1x128x512xbf16> to vector<128x512xbf16>
    %cst_16 = arith.constant dense<0.000000e+00> : vector<16x512xf32>
    %21 = tpu.matmul %18, %20, %cst_16 {dimension_numbers = #tpu.dot_dimension_numbers<[1], [0], [0], [1], [0, 0, 1, 1], [], []>} : vector<16x128xbf16>, vector<128x512xbf16>, vector<16x512xf32> -> vector<16x512xf32>
    %c0_17 = arith.constant 0 : index
    %c0_18 = arith.constant 0 : index
    %c0_19 = arith.constant 0 : index
    %22 = vector.load %arg7[%c0_17, %c0_18, %c0_19] : memref<2x1x512xf32, #tpu.memory_space<vmem>>, vector<1x1x512xf32>
    %23 = vector.shape_cast %22 : vector<1x1x512xf32> to vector<1x512xf32>
    %24 = vector.broadcast %23 : vector<1x512xf32> to vector<16x512xf32>
    %25 = arith.addf %21, %24 : vector<16x512xf32>
    %c0_20 = arith.constant 0 : index
    %c0_21 = arith.constant 0 : index
    %26 = vector.load %arg13[%c0_20, %c0_21] : memref<16x512xf32, #tpu.memory_space<vmem>>, vector<16x512xf32>
    tpu.vector_store %arg13[%c0_20, %c0_21], %25 {strides = array<i32>} : memref<16x512xf32, #tpu.memory_space<vmem>>, vector<16x512xf32>,
    %c0_22 = arith.constant 0 : index
    %c0_23 = arith.constant 0 : index
    %c0_24 = arith.constant 0 : index
    %27 = vector.load %arg6[%c0_22, %c0_23, %c0_24] : memref<2x128x512xbf16, #tpu.memory_space<vmem>>, vector<1x128x512xbf16>
    %28 = vector.shape_cast %27 : vector<1x128x512xbf16> to vector<128x512xbf16>
    %cst_25 = arith.constant 0.000000e+00 : f32
    %29 = vector.broadcast %cst_25 : f32 to vector<2x128xf32>
    %cst_26 = arith.constant 0.000000e+00 : f32
    %30 = vector.broadcast %cst_26 : f32 to vector<2x128xf32>
    %c0_27 = arith.constant 0 : index
    %c0_28 = arith.constant 0 : index
    %31 = vector.load %arg13[%c0_27, %c0_28] : memref<16x512xf32, #tpu.memory_space<vmem>>, vector<2x512xf32>
    %32 = arith.truncf %29 : vector<2x128xf32> to vector<2x128xbf16>
    %cst_29 = arith.constant dense<0.000000e+00> : vector<2x512xf32>
    %33 = tpu.matmul %32, %28, %cst_29 {dimension_numbers = #tpu.dot_dimension_numbers<[1], [0], [0], [1], [0, 0, 1, 1], [], []>} : vector<2x128xbf16>, vector<128x512xbf16>, vector<2x512xf32> -> vector<2x512xf32>
    %34 = arith.addf %31, %33 : vector<2x512xf32>
    %35 = vector.extract_strided_slice %34 {offsets = [0, 0], sizes = [2, 128], strides = [1, 1]} : vector<2x512xf32> to vector<2x128xf32>
    %36 = arith.negf %35 : vector<2x128xf32>
    %37 = math.exp %36 : vector<2x128xf32>
    %cst_30 = arith.constant 1.000000e+00 : f32
    %38 = vector.broadcast %cst_30 : f32 to vector<2x128xf32>
    %39 = arith.addf %38, %37 : vector<2x128xf32>
    %40 = arith.divf %38, %39 : vector<2x128xf32>
    %41 = vector.extract_strided_slice %34 {offsets = [0, 128], sizes = [2, 128], strides = [1, 1]} : vector<2x512xf32> to vector<2x128xf32>
    %42 = arith.negf %41 : vector<2x128xf32>
    %43 = math.exp %42 : vector<2x128xf32>
    %cst_31 = arith.constant 1.000000e+00 : f32
    %44 = vector.broadcast %cst_31 : f32 to vector<2x128xf32>
    %45 = arith.addf %44, %43 : vector<2x128xf32>
    %46 = arith.divf %44, %45 : vector<2x128xf32>
    %47 = vector.extract_strided_slice %34 {offsets = [0, 256], sizes = [2, 128], strides = [1, 1]} : vector<2x512xf32> to vector<2x128xf32>
    %48 = math.tanh %47 : vector<2x128xf32>
    %49 = vector.extract_strided_slice %34 {offsets = [0, 384], sizes = [2, 128], strides = [1, 1]} : vector<2x512xf32> to vector<2x128xf32>
    %50 = arith.negf %49 : vector<2x128xf32>
    %51 = math.exp %50 : vector<2x128xf32>
    %cst_32 = arith.constant 1.000000e+00 : f32
    %52 = vector.broadcast %cst_32 : f32 to vector<2x128xf32>
    %53 = arith.addf %52, %51 : vector<2x128xf32>
    %54 = arith.divf %52, %53 : vector<2x128xf32>
    %55 = arith.mulf %46, %30 : vector<2x128xf32>
    %56 = arith.mulf %40, %48 : vector<2x128xf32>
    %57 = arith.addf %55, %56 : vector<2x128xf32>
    %58 = math.tanh %57 : vector<2x128xf32>
    %59 = arith.mulf %54, %58 : vector<2x128xf32>
    %c0_33 = arith.constant 0 : index
    %c0_34 = arith.constant 0 : index
    %60 = vector.load %arg12[%c0_33, %c0_34] : memref<16x128xf32, #tpu.memory_space<vmem>>, vector<2x128xf32>
    tpu.vector_store %arg12[%c0_33, %c0_34], %59 {strides = array<i32>} : memref<16x128xf32, #tpu.memory_space<vmem>>, vector<2x128xf32>,
    %c2 = arith.constant 2 : index
    %c0_35 = arith.constant 0 : index
    %61 = vector.load %arg13[%c2, %c0_35] : memref<16x512xf32, #tpu.memory_space<vmem>>, vector<2x512xf32>
    %62 = arith.truncf %59 : vector<2x128xf32> to vector<2x128xbf16>
    %cst_36 = arith.constant dense<0.000000e+00> : vector<2x512xf32>
    %63 = tpu.matmul %62, %28, %cst_36 {dimension_numbers = #tpu.dot_dimension_numbers<[1], [0], [0], [1], [0, 0, 1, 1], [], []>} : vector<2x128xbf16>, vector<128x512xbf16>, vector<2x512xf32> -> vector<2x512xf32>
    %64 = arith.addf %61, %63 : vector<2x512xf32>
    %65 = vector.extract_strided_slice %64 {offsets = [0, 0], sizes = [2, 128], strides = [1, 1]} : vector<2x512xf32> to vector<2x128xf32>
    %66 = arith.negf %65 : vector<2x128xf32>
    %67 = math.exp %66 : vector<2x128xf32>
    %cst_37 = arith.constant 1.000000e+00 : f32
    %68 = vector.broadcast %cst_37 : f32 to vector<2x128xf32>
    %69 = arith.addf %68, %67 : vector<2x128xf32>
    %70 = arith.divf %68, %69 : vector<2x128xf32>
    %71 = vector.extract_strided_slice %64 {offsets = [0, 128], sizes = [2, 128], strides = [1, 1]} : vector<2x512xf32> to vector<2x128xf32>
    %72 = arith.negf %71 : vector<2x128xf32>
    %73 = math.exp %72 : vector<2x128xf32>
    %cst_38 = arith.constant 1.000000e+00 : f32
    %74 = vector.broadcast %cst_38 : f32 to vector<2x128xf32>
    %75 = arith.addf %74, %73 : vector<2x128xf32>
    %76 = arith.divf %74, %75 : vector<2x128xf32>
    %77 = vector.extract_strided_slice %64 {offsets = [0, 256], sizes = [2, 128], strides = [1, 1]} : vector<2x512xf32> to vector<2x128xf32>
    %78 = math.tanh %77 : vector<2x128xf32>
    %79 = vector.extract_strided_slice %64 {offsets = [0, 384], sizes = [2, 128], strides = [1, 1]} : vector<2x512xf32> to vector<2x128xf32>
    %80 = arith.negf %79 : vector<2x128xf32>
    %81 = math.exp %80 : vector<2x128xf32>
    %cst_39 = arith.constant 1.000000e+00 : f32
    %82 = vector.broadcast %cst_39 : f32 to vector<2x128xf32>
    %83 = arith.addf %82, %81 : vector<2x128xf32>
    %84 = arith.divf %82, %83 : vector<2x128xf32>
    %85 = arith.mulf %76, %57 : vector<2x128xf32>
    %86 = arith.mulf %70, %78 : vector<2x128xf32>
    %87 = arith.addf %85, %86 : vector<2x128xf32>
    %88 = math.tanh %87 : vector<2x128xf32>
    %89 = arith.mulf %84, %88 : vector<2x128xf32>
    %c2_40 = arith.constant 2 : index
    %c0_41 = arith.constant 0 : index
    %90 = vector.load %arg12[%c2_40, %c0_41] : memref<16x128xf32, #tpu.memory_space<vmem>>, vector<2x128xf32>
    tpu.vector_store %arg12[%c2_40, %c0_41], %89 {strides = array<i32>} : memref<16x128xf32, #tpu.memory_space<vmem>>, vector<2x128xf32>,
    %c4 = arith.constant 4 : index
    %c0_42 = arith.constant 0 : index
    %91 = vector.load %arg13[%c4, %c0_42] : memref<16x512xf32, #tpu.memory_space<vmem>>, vector<2x512xf32>
    %92 = arith.truncf %89 : vector<2x128xf32> to vector<2x128xbf16>
    %cst_43 = arith.constant dense<0.000000e+00> : vector<2x512xf32>
    %93 = tpu.matmul %92, %28, %cst_43 {dimension_numbers = #tpu.dot_dimension_numbers<[1], [0], [0], [1], [0, 0, 1, 1], [], []>} : vector<2x128xbf16>, vector<128x512xbf16>, vector<2x512xf32> -> vector<2x512xf32>
    %94 = arith.addf %91, %93 : vector<2x512xf32>
    %95 = vector.extract_strided_slice %94 {offsets = [0, 0], sizes = [2, 128], strides = [1, 1]} : vector<2x512xf32> to vector<2x128xf32>
    %96 = arith.negf %95 : vector<2x128xf32>
    %97 = math.exp %96 : vector<2x128xf32>
    %cst_44 = arith.constant 1.000000e+00 : f32
    %98 = vector.broadcast %cst_44 : f32 to vector<2x128xf32>
    %99 = arith.addf %98, %97 : vector<2x128xf32>
    %100 = arith.divf %98, %99 : vector<2x128xf32>
    %101 = vector.extract_strided_slice %94 {offsets = [0, 128], sizes = [2, 128], strides = [1, 1]} : vector<2x512xf32> to vector<2x128xf32>
    %102 = arith.negf %101 : vector<2x128xf32>
    %103 = math.exp %102 : vector<2x128xf32>
    %cst_45 = arith.constant 1.000000e+00 : f32
    %104 = vector.broadcast %cst_45 : f32 to vector<2x128xf32>
    %105 = arith.addf %104, %103 : vector<2x128xf32>
    %106 = arith.divf %104, %105 : vector<2x128xf32>
    %107 = vector.extract_strided_slice %94 {offsets = [0, 256], sizes = [2, 128], strides = [1, 1]} : vector<2x512xf32> to vector<2x128xf32>
    %108 = math.tanh %107 : vector<2x128xf32>
    %109 = vector.extract_strided_slice %94 {offsets = [0, 384], sizes = [2, 128], strides = [1, 1]} : vector<2x512xf32> to vector<2x128xf32>
    %110 = arith.negf %109 : vector<2x128xf32>
    %111 = math.exp %110 : vector<2x128xf32>
    %cst_46 = arith.constant 1.000000e+00 : f32
    %112 = vector.broadcast %cst_46 : f32 to vector<2x128xf32>
    %113 = arith.addf %112, %111 : vector<2x128xf32>
    %114 = arith.divf %112, %113 : vector<2x128xf32>
    %115 = arith.mulf %106, %87 : vector<2x128xf32>
    %116 = arith.mulf %100, %108 : vector<2x128xf32>
    %117 = arith.addf %115, %116 : vector<2x128xf32>
    %118 = math.tanh %117 : vector<2x128xf32>
    %119 = arith.mulf %114, %118 : vector<2x128xf32>
    %c4_47 = arith.constant 4 : index
    %c0_48 = arith.constant 0 : index
    %120 = vector.load %arg12[%c4_47, %c0_48] : memref<16x128xf32, #tpu.memory_space<vmem>>, vector<2x128xf32>
    tpu.vector_store %arg12[%c4_47, %c0_48], %119 {strides = array<i32>} : memref<16x128xf32, #tpu.memory_space<vmem>>, vector<2x128xf32>,
    %c6 = arith.constant 6 : index
    %c0_49 = arith.constant 0 : index
    %121 = vector.load %arg13[%c6, %c0_49] : memref<16x512xf32, #tpu.memory_space<vmem>>, vector<2x512xf32>
    %122 = arith.truncf %119 : vector<2x128xf32> to vector<2x128xbf16>
    %cst_50 = arith.constant dense<0.000000e+00> : vector<2x512xf32>
    %123 = tpu.matmul %122, %28, %cst_50 {dimension_numbers = #tpu.dot_dimension_numbers<[1], [0], [0], [1], [0, 0, 1, 1], [], []>} : vector<2x128xbf16>, vector<128x512xbf16>, vector<2x512xf32> -> vector<2x512xf32>
    %124 = arith.addf %121, %123 : vector<2x512xf32>
    %125 = vector.extract_strided_slice %124 {offsets = [0, 0], sizes = [2, 128], strides = [1, 1]} : vector<2x512xf32> to vector<2x128xf32>
    %126 = arith.negf %125 : vector<2x128xf32>
    %127 = math.exp %126 : vector<2x128xf32>
    %cst_51 = arith.constant 1.000000e+00 : f32
    %128 = vector.broadcast %cst_51 : f32 to vector<2x128xf32>
    %129 = arith.addf %128, %127 : vector<2x128xf32>
    %130 = arith.divf %128, %129 : vector<2x128xf32>
    %131 = vector.extract_strided_slice %124 {offsets = [0, 128], sizes = [2, 128], strides = [1, 1]} : vector<2x512xf32> to vector<2x128xf32>
    %132 = arith.negf %131 : vector<2x128xf32>
    %133 = math.exp %132 : vector<2x128xf32>
    %cst_52 = arith.constant 1.000000e+00 : f32
    %134 = vector.broadcast %cst_52 : f32 to vector<2x128xf32>
    %135 = arith.addf %134, %133 : vector<2x128xf32>
    %136 = arith.divf %134, %135 : vector<2x128xf32>
    %137 = vector.extract_strided_slice %124 {offsets = [0, 256], sizes = [2, 128], strides = [1, 1]} : vector<2x512xf32> to vector<2x128xf32>
    %138 = math.tanh %137 : vector<2x128xf32>
    %139 = vector.extract_strided_slice %124 {offsets = [0, 384], sizes = [2, 128], strides = [1, 1]} : vector<2x512xf32> to vector<2x128xf32>
    %140 = arith.negf %139 : vector<2x128xf32>
    %141 = math.exp %140 : vector<2x128xf32>
    %cst_53 = arith.constant 1.000000e+00 : f32
    %142 = vector.broadcast %cst_53 : f32 to vector<2x128xf32>
    %143 = arith.addf %142, %141 : vector<2x128xf32>
    %144 = arith.divf %142, %143 : vector<2x128xf32>
    %145 = arith.mulf %136, %117 : vector<2x128xf32>
    %146 = arith.mulf %130, %138 : vector<2x128xf32>
    %147 = arith.addf %145, %146 : vector<2x128xf32>
    %148 = math.tanh %147 : vector<2x128xf32>
    %149 = arith.mulf %144, %148 : vector<2x128xf32>
    %c6_54 = arith.constant 6 : index
    %c0_55 = arith.constant 0 : index
    %150 = vector.load %arg12[%c6_54, %c0_55] : memref<16x128xf32, #tpu.memory_space<vmem>>, vector<2x128xf32>
    tpu.vector_store %arg12[%c6_54, %c0_55], %149 {strides = array<i32>} : memref<16x128xf32, #tpu.memory_space<vmem>>, vector<2x128xf32>,
    %c8 = arith.constant 8 : index
    %c0_56 = arith.constant 0 : index
    %151 = vector.load %arg13[%c8, %c0_56] : memref<16x512xf32, #tpu.memory_space<vmem>>, vector<2x512xf32>
    %152 = arith.truncf %149 : vector<2x128xf32> to vector<2x128xbf16>
    %cst_57 = arith.constant dense<0.000000e+00> : vector<2x512xf32>
    %153 = tpu.matmul %152, %28, %cst_57 {dimension_numbers = #tpu.dot_dimension_numbers<[1], [0], [0], [1], [0, 0, 1, 1], [], []>} : vector<2x128xbf16>, vector<128x512xbf16>, vector<2x512xf32> -> vector<2x512xf32>
    %154 = arith.addf %151, %153 : vector<2x512xf32>
    %155 = vector.extract_strided_slice %154 {offsets = [0, 0], sizes = [2, 128], strides = [1, 1]} : vector<2x512xf32> to vector<2x128xf32>
    %156 = arith.negf %155 : vector<2x128xf32>
    %157 = math.exp %156 : vector<2x128xf32>
    %cst_58 = arith.constant 1.000000e+00 : f32
    %158 = vector.broadcast %cst_58 : f32 to vector<2x128xf32>
    %159 = arith.addf %158, %157 : vector<2x128xf32>
    %160 = arith.divf %158, %159 : vector<2x128xf32>
    %161 = vector.extract_strided_slice %154 {offsets = [0, 128], sizes = [2, 128], strides = [1, 1]} : vector<2x512xf32> to vector<2x128xf32>
    %162 = arith.negf %161 : vector<2x128xf32>
    %163 = math.exp %162 : vector<2x128xf32>
    %cst_59 = arith.constant 1.000000e+00 : f32
    %164 = vector.broadcast %cst_59 : f32 to vector<2x128xf32>
    %165 = arith.addf %164, %163 : vector<2x128xf32>
    %166 = arith.divf %164, %165 : vector<2x128xf32>
    %167 = vector.extract_strided_slice %154 {offsets = [0, 256], sizes = [2, 128], strides = [1, 1]} : vector<2x512xf32> to vector<2x128xf32>
    %168 = math.tanh %167 : vector<2x128xf32>
    %169 = vector.extract_strided_slice %154 {offsets = [0, 384], sizes = [2, 128], strides = [1, 1]} : vector<2x512xf32> to vector<2x128xf32>
    %170 = arith.negf %169 : vector<2x128xf32>
    %171 = math.exp %170 : vector<2x128xf32>
    %cst_60 = arith.constant 1.000000e+00 : f32
    %172 = vector.broadcast %cst_60 : f32 to vector<2x128xf32>
    %173 = arith.addf %172, %171 : vector<2x128xf32>
    %174 = arith.divf %172, %173 : vector<2x128xf32>
    %175 = arith.mulf %166, %147 : vector<2x128xf32>
    %176 = arith.mulf %160, %168 : vector<2x128xf32>
    %177 = arith.addf %175, %176 : vector<2x128xf32>
    %178 = math.tanh %177 : vector<2x128xf32>
    %179 = arith.mulf %174, %178 : vector<2x128xf32>
    %c8_61 = arith.constant 8 : index
    %c0_62 = arith.constant 0 : index
    %180 = vector.load %arg12[%c8_61, %c0_62] : memref<16x128xf32, #tpu.memory_space<vmem>>, vector<2x128xf32>
    tpu.vector_store %arg12[%c8_61, %c0_62], %179 {strides = array<i32>} : memref<16x128xf32, #tpu.memory_space<vmem>>, vector<2x128xf32>,
    %c10 = arith.constant 10 : index
    %c0_63 = arith.constant 0 : index
    %181 = vector.load %arg13[%c10, %c0_63] : memref<16x512xf32, #tpu.memory_space<vmem>>, vector<2x512xf32>
    %182 = arith.truncf %179 : vector<2x128xf32> to vector<2x128xbf16>
    %cst_64 = arith.constant dense<0.000000e+00> : vector<2x512xf32>
    %183 = tpu.matmul %182, %28, %cst_64 {dimension_numbers = #tpu.dot_dimension_numbers<[1], [0], [0], [1], [0, 0, 1, 1], [], []>} : vector<2x128xbf16>, vector<128x512xbf16>, vector<2x512xf32> -> vector<2x512xf32>
    %184 = arith.addf %181, %183 : vector<2x512xf32>
    %185 = vector.extract_strided_slice %184 {offsets = [0, 0], sizes = [2, 128], strides = [1, 1]} : vector<2x512xf32> to vector<2x128xf32>
    %186 = arith.negf %185 : vector<2x128xf32>
    %187 = math.exp %186 : vector<2x128xf32>
    %cst_65 = arith.constant 1.000000e+00 : f32
    %188 = vector.broadcast %cst_65 : f32 to vector<2x128xf32>
    %189 = arith.addf %188, %187 : vector<2x128xf32>
    %190 = arith.divf %188, %189 : vector<2x128xf32>
    %191 = vector.extract_strided_slice %184 {offsets = [0, 128], sizes = [2, 128], strides = [1, 1]} : vector<2x512xf32> to vector<2x128xf32>
    %192 = arith.negf %191 : vector<2x128xf32>
    %193 = math.exp %192 : vector<2x128xf32>
    %cst_66 = arith.constant 1.000000e+00 : f32
    %194 = vector.broadcast %cst_66 : f32 to vector<2x128xf32>
    %195 = arith.addf %194, %193 : vector<2x128xf32>
    %196 = arith.divf %194, %195 : vector<2x128xf32>
    %197 = vector.extract_strided_slice %184 {offsets = [0, 256], sizes = [2, 128], strides = [1, 1]} : vector<2x512xf32> to vector<2x128xf32>
    %198 = math.tanh %197 : vector<2x128xf32>
    %199 = vector.extract_strided_slice %184 {offsets = [0, 384], sizes = [2, 128], strides = [1, 1]} : vector<2x512xf32> to vector<2x128xf32>
    %200 = arith.negf %199 : vector<2x128xf32>
    %201 = math.exp %200 : vector<2x128xf32>
    %cst_67 = arith.constant 1.000000e+00 : f32
    %202 = vector.broadcast %cst_67 : f32 to vector<2x128xf32>
    %203 = arith.addf %202, %201 : vector<2x128xf32>
    %204 = arith.divf %202, %203 : vector<2x128xf32>
    %205 = arith.mulf %196, %177 : vector<2x128xf32>
    %206 = arith.mulf %190, %198 : vector<2x128xf32>
    %207 = arith.addf %205, %206 : vector<2x128xf32>
    %208 = math.tanh %207 : vector<2x128xf32>
    %209 = arith.mulf %204, %208 : vector<2x128xf32>
    %c10_68 = arith.constant 10 : index
    %c0_69 = arith.constant 0 : index
    %210 = vector.load %arg12[%c10_68, %c0_69] : memref<16x128xf32, #tpu.memory_space<vmem>>, vector<2x128xf32>
    tpu.vector_store %arg12[%c10_68, %c0_69], %209 {strides = array<i32>} : memref<16x128xf32, #tpu.memory_space<vmem>>, vector<2x128xf32>,
    %c12 = arith.constant 12 : index
    %c0_70 = arith.constant 0 : index
    %211 = vector.load %arg13[%c12, %c0_70] : memref<16x512xf32, #tpu.memory_space<vmem>>, vector<2x512xf32>
    %212 = arith.truncf %209 : vector<2x128xf32> to vector<2x128xbf16>
    %cst_71 = arith.constant dense<0.000000e+00> : vector<2x512xf32>
    %213 = tpu.matmul %212, %28, %cst_71 {dimension_numbers = #tpu.dot_dimension_numbers<[1], [0], [0], [1], [0, 0, 1, 1], [], []>} : vector<2x128xbf16>, vector<128x512xbf16>, vector<2x512xf32> -> vector<2x512xf32>
    %214 = arith.addf %211, %213 : vector<2x512xf32>
    %215 = vector.extract_strided_slice %214 {offsets = [0, 0], sizes = [2, 128], strides = [1, 1]} : vector<2x512xf32> to vector<2x128xf32>
    %216 = arith.negf %215 : vector<2x128xf32>
    %217 = math.exp %216 : vector<2x128xf32>
    %cst_72 = arith.constant 1.000000e+00 : f32
    %218 = vector.broadcast %cst_72 : f32 to vector<2x128xf32>
    %219 = arith.addf %218, %217 : vector<2x128xf32>
    %220 = arith.divf %218, %219 : vector<2x128xf32>
    %221 = vector.extract_strided_slice %214 {offsets = [0, 128], sizes = [2, 128], strides = [1, 1]} : vector<2x512xf32> to vector<2x128xf32>
    %222 = arith.negf %221 : vector<2x128xf32>
    %223 = math.exp %222 : vector<2x128xf32>
    %cst_73 = arith.constant 1.000000e+00 : f32
    %224 = vector.broadcast %cst_73 : f32 to vector<2x128xf32>
    %225 = arith.addf %224, %223 : vector<2x128xf32>
    %226 = arith.divf %224, %225 : vector<2x128xf32>
    %227 = vector.extract_strided_slice %214 {offsets = [0, 256], sizes = [2, 128], strides = [1, 1]} : vector<2x512xf32> to vector<2x128xf32>
    %228 = math.tanh %227 : vector<2x128xf32>
    %229 = vector.extract_strided_slice %214 {offsets = [0, 384], sizes = [2, 128], strides = [1, 1]} : vector<2x512xf32> to vector<2x128xf32>
    %230 = arith.negf %229 : vector<2x128xf32>
    %231 = math.exp %230 : vector<2x128xf32>
    %cst_74 = arith.constant 1.000000e+00 : f32
    %232 = vector.broadcast %cst_74 : f32 to vector<2x128xf32>
    %233 = arith.addf %232, %231 : vector<2x128xf32>
    %234 = arith.divf %232, %233 : vector<2x128xf32>
    %235 = arith.mulf %226, %207 : vector<2x128xf32>
    %236 = arith.mulf %220, %228 : vector<2x128xf32>
    %237 = arith.addf %235, %236 : vector<2x128xf32>
    %238 = math.tanh %237 : vector<2x128xf32>
    %239 = arith.mulf %234, %238 : vector<2x128xf32>
    %c12_75 = arith.constant 12 : index
    %c0_76 = arith.constant 0 : index
    %240 = vector.load %arg12[%c12_75, %c0_76] : memref<16x128xf32, #tpu.memory_space<vmem>>, vector<2x128xf32>
    tpu.vector_store %arg12[%c12_75, %c0_76], %239 {strides = array<i32>} : memref<16x128xf32, #tpu.memory_space<vmem>>, vector<2x128xf32>,
    %c14 = arith.constant 14 : index
    %c0_77 = arith.constant 0 : index
    %241 = vector.load %arg13[%c14, %c0_77] : memref<16x512xf32, #tpu.memory_space<vmem>>, vector<2x512xf32>
    %242 = arith.truncf %239 : vector<2x128xf32> to vector<2x128xbf16>
    %cst_78 = arith.constant dense<0.000000e+00> : vector<2x512xf32>
    %243 = tpu.matmul %242, %28, %cst_78 {dimension_numbers = #tpu.dot_dimension_numbers<[1], [0], [0], [1], [0, 0, 1, 1], [], []>} : vector<2x128xbf16>, vector<128x512xbf16>, vector<2x512xf32> -> vector<2x512xf32>
    %244 = arith.addf %241, %243 : vector<2x512xf32>
    %245 = vector.extract_strided_slice %244 {offsets = [0, 0], sizes = [2, 128], strides = [1, 1]} : vector<2x512xf32> to vector<2x128xf32>
    %246 = arith.negf %245 : vector<2x128xf32>
    %247 = math.exp %246 : vector<2x128xf32>
    %cst_79 = arith.constant 1.000000e+00 : f32
    %248 = vector.broadcast %cst_79 : f32 to vector<2x128xf32>
    %249 = arith.addf %248, %247 : vector<2x128xf32>
    %250 = arith.divf %248, %249 : vector<2x128xf32>
    %251 = vector.extract_strided_slice %244 {offsets = [0, 128], sizes = [2, 128], strides = [1, 1]} : vector<2x512xf32> to vector<2x128xf32>
    %252 = arith.negf %251 : vector<2x128xf32>
    %253 = math.exp %252 : vector<2x128xf32>
    %cst_80 = arith.constant 1.000000e+00 : f32
    %254 = vector.broadcast %cst_80 : f32 to vector<2x128xf32>
    %255 = arith.addf %254, %253 : vector<2x128xf32>
    %256 = arith.divf %254, %255 : vector<2x128xf32>
    %257 = vector.extract_strided_slice %244 {offsets = [0, 256], sizes = [2, 128], strides = [1, 1]} : vector<2x512xf32> to vector<2x128xf32>
    %258 = math.tanh %257 : vector<2x128xf32>
    %259 = vector.extract_strided_slice %244 {offsets = [0, 384], sizes = [2, 128], strides = [1, 1]} : vector<2x512xf32> to vector<2x128xf32>
    %260 = arith.negf %259 : vector<2x128xf32>
    %261 = math.exp %260 : vector<2x128xf32>
    %cst_81 = arith.constant 1.000000e+00 : f32
    %262 = vector.broadcast %cst_81 : f32 to vector<2x128xf32>
    %263 = arith.addf %262, %261 : vector<2x128xf32>
    %264 = arith.divf %262, %263 : vector<2x128xf32>
    %265 = arith.mulf %256, %237 : vector<2x128xf32>
    %266 = arith.mulf %250, %258 : vector<2x128xf32>
    %267 = arith.addf %265, %266 : vector<2x128xf32>
    %268 = math.tanh %267 : vector<2x128xf32>
    %269 = arith.mulf %264, %268 : vector<2x128xf32>
    %c14_82 = arith.constant 14 : index
    %c0_83 = arith.constant 0 : index
    %270 = vector.load %arg12[%c14_82, %c0_83] : memref<16x128xf32, #tpu.memory_space<vmem>>, vector<2x128xf32>
    tpu.vector_store %arg12[%c14_82, %c0_83], %269 {strides = array<i32>} : memref<16x128xf32, #tpu.memory_space<vmem>>, vector<2x128xf32>,
    %c0_84 = arith.constant 0 : index
    %c0_85 = arith.constant 0 : index
    %271 = vector.load %arg12[%c0_84, %c0_85] : memref<16x128xf32, #tpu.memory_space<vmem>>, vector<16x128xf32>
    %272 = arith.truncf %271 : vector<16x128xf32> to vector<16x128xbf16>
    %c1 = arith.constant 1 : index
    %c0_86 = arith.constant 0 : index
    %c0_87 = arith.constant 0 : index
    %273 = vector.load %arg5[%c1, %c0_86, %c0_87] : memref<2x128x512xbf16, #tpu.memory_space<vmem>>, vector<1x128x512xbf16>
    %274 = vector.shape_cast %273 : vector<1x128x512xbf16> to vector<128x512xbf16>
    %cst_88 = arith.constant dense<0.000000e+00> : vector<16x512xf32>
    %275 = tpu.matmul %272, %274, %cst_88 {dimension_numbers = #tpu.dot_dimension_numbers<[1], [0], [0], [1], [0, 0, 1, 1], [], []>} : vector<16x128xbf16>, vector<128x512xbf16>, vector<16x512xf32> -> vector<16x512xf32>
    %c1_89 = arith.constant 1 : index
    %c0_90 = arith.constant 0 : index
    %c0_91 = arith.constant 0 : index
    %276 = vector.load %arg7[%c1_89, %c0_90, %c0_91] : memref<2x1x512xf32, #tpu.memory_space<vmem>>, vector<1x1x512xf32>
    %277 = vector.shape_cast %276 : vector<1x1x512xf32> to vector<1x512xf32>
    %278 = vector.broadcast %277 : vector<1x512xf32> to vector<16x512xf32>
    %279 = arith.addf %275, %278 : vector<16x512xf32>
    %c0_92 = arith.constant 0 : index
    %c0_93 = arith.constant 0 : index
    %280 = vector.load %arg13[%c0_92, %c0_93] : memref<16x512xf32, #tpu.memory_space<vmem>>, vector<16x512xf32>
    tpu.vector_store %arg13[%c0_92, %c0_93], %279 {strides = array<i32>} : memref<16x512xf32, #tpu.memory_space<vmem>>, vector<16x512xf32>,
    %c1_94 = arith.constant 1 : index
    %c0_95 = arith.constant 0 : index
    %c0_96 = arith.constant 0 : index
    %281 = vector.load %arg6[%c1_94, %c0_95, %c0_96] : memref<2x128x512xbf16, #tpu.memory_space<vmem>>, vector<1x128x512xbf16>
    %282 = vector.shape_cast %281 : vector<1x128x512xbf16> to vector<128x512xbf16>
    %cst_97 = arith.constant 0.000000e+00 : f32
    %283 = vector.broadcast %cst_97 : f32 to vector<2x128xf32>
    %cst_98 = arith.constant 0.000000e+00 : f32
    %284 = vector.broadcast %cst_98 : f32 to vector<2x128xf32>
    %c0_99 = arith.constant 0 : index
    %c0_100 = arith.constant 0 : index
    %285 = vector.load %arg13[%c0_99, %c0_100] : memref<16x512xf32, #tpu.memory_space<vmem>>, vector<2x512xf32>
    %286 = arith.truncf %283 : vector<2x128xf32> to vector<2x128xbf16>
    %cst_101 = arith.constant dense<0.000000e+00> : vector<2x512xf32>
    %287 = tpu.matmul %286, %282, %cst_101 {dimension_numbers = #tpu.dot_dimension_numbers<[1], [0], [0], [1], [0, 0, 1, 1], [], []>} : vector<2x128xbf16>, vector<128x512xbf16>, vector<2x512xf32> -> vector<2x512xf32>
    %288 = arith.addf %285, %287 : vector<2x512xf32>
    %289 = vector.extract_strided_slice %288 {offsets = [0, 0], sizes = [2, 128], strides = [1, 1]} : vector<2x512xf32> to vector<2x128xf32>
    %290 = arith.negf %289 : vector<2x128xf32>
    %291 = math.exp %290 : vector<2x128xf32>
    %cst_102 = arith.constant 1.000000e+00 : f32
    %292 = vector.broadcast %cst_102 : f32 to vector<2x128xf32>
    %293 = arith.addf %292, %291 : vector<2x128xf32>
    %294 = arith.divf %292, %293 : vector<2x128xf32>
    %295 = vector.extract_strided_slice %288 {offsets = [0, 128], sizes = [2, 128], strides = [1, 1]} : vector<2x512xf32> to vector<2x128xf32>
    %296 = arith.negf %295 : vector<2x128xf32>
    %297 = math.exp %296 : vector<2x128xf32>
    %cst_103 = arith.constant 1.000000e+00 : f32
    %298 = vector.broadcast %cst_103 : f32 to vector<2x128xf32>
    %299 = arith.addf %298, %297 : vector<2x128xf32>
    %300 = arith.divf %298, %299 : vector<2x128xf32>
    %301 = vector.extract_strided_slice %288 {offsets = [0, 256], sizes = [2, 128], strides = [1, 1]} : vector<2x512xf32> to vector<2x128xf32>
    %302 = math.tanh %301 : vector<2x128xf32>
    %303 = vector.extract_strided_slice %288 {offsets = [0, 384], sizes = [2, 128], strides = [1, 1]} : vector<2x512xf32> to vector<2x128xf32>
    %304 = arith.negf %303 : vector<2x128xf32>
    %305 = math.exp %304 : vector<2x128xf32>
    %cst_104 = arith.constant 1.000000e+00 : f32
    %306 = vector.broadcast %cst_104 : f32 to vector<2x128xf32>
    %307 = arith.addf %306, %305 : vector<2x128xf32>
    %308 = arith.divf %306, %307 : vector<2x128xf32>
    %309 = arith.mulf %300, %284 : vector<2x128xf32>
    %310 = arith.mulf %294, %302 : vector<2x128xf32>
    %311 = arith.addf %309, %310 : vector<2x128xf32>
    %312 = math.tanh %311 : vector<2x128xf32>
    %313 = arith.mulf %308, %312 : vector<2x128xf32>
    %c2_105 = arith.constant 2 : index
    %c0_106 = arith.constant 0 : index
    %314 = vector.load %arg13[%c2_105, %c0_106] : memref<16x512xf32, #tpu.memory_space<vmem>>, vector<2x512xf32>
    %315 = arith.truncf %313 : vector<2x128xf32> to vector<2x128xbf16>
    %cst_107 = arith.constant dense<0.000000e+00> : vector<2x512xf32>
    %316 = tpu.matmul %315, %282, %cst_107 {dimension_numbers = #tpu.dot_dimension_numbers<[1], [0], [0], [1], [0, 0, 1, 1], [], []>} : vector<2x128xbf16>, vector<128x512xbf16>, vector<2x512xf32> -> vector<2x512xf32>
    %317 = arith.addf %314, %316 : vector<2x512xf32>
    %318 = vector.extract_strided_slice %317 {offsets = [0, 0], sizes = [2, 128], strides = [1, 1]} : vector<2x512xf32> to vector<2x128xf32>
    %319 = arith.negf %318 : vector<2x128xf32>
    %320 = math.exp %319 : vector<2x128xf32>
    %cst_108 = arith.constant 1.000000e+00 : f32
    %321 = vector.broadcast %cst_108 : f32 to vector<2x128xf32>
    %322 = arith.addf %321, %320 : vector<2x128xf32>
    %323 = arith.divf %321, %322 : vector<2x128xf32>
    %324 = vector.extract_strided_slice %317 {offsets = [0, 128], sizes = [2, 128], strides = [1, 1]} : vector<2x512xf32> to vector<2x128xf32>
    %325 = arith.negf %324 : vector<2x128xf32>
    %326 = math.exp %325 : vector<2x128xf32>
    %cst_109 = arith.constant 1.000000e+00 : f32
    %327 = vector.broadcast %cst_109 : f32 to vector<2x128xf32>
    %328 = arith.addf %327, %326 : vector<2x128xf32>
    %329 = arith.divf %327, %328 : vector<2x128xf32>
    %330 = vector.extract_strided_slice %317 {offsets = [0, 256], sizes = [2, 128], strides = [1, 1]} : vector<2x512xf32> to vector<2x128xf32>
    %331 = math.tanh %330 : vector<2x128xf32>
    %332 = vector.extract_strided_slice %317 {offsets = [0, 384], sizes = [2, 128], strides = [1, 1]} : vector<2x512xf32> to vector<2x128xf32>
    %333 = arith.negf %332 : vector<2x128xf32>
    %334 = math.exp %333 : vector<2x128xf32>
    %cst_110 = arith.constant 1.000000e+00 : f32
    %335 = vector.broadcast %cst_110 : f32 to vector<2x128xf32>
    %336 = arith.addf %335, %334 : vector<2x128xf32>
    %337 = arith.divf %335, %336 : vector<2x128xf32>
    %338 = arith.mulf %329, %311 : vector<2x128xf32>
    %339 = arith.mulf %323, %331 : vector<2x128xf32>
    %340 = arith.addf %338, %339 : vector<2x128xf32>
    %341 = math.tanh %340 : vector<2x128xf32>
    %342 = arith.mulf %337, %341 : vector<2x128xf32>
    %c4_111 = arith.constant 4 : index
    %c0_112 = arith.constant 0 : index
    %343 = vector.load %arg13[%c4_111, %c0_112] : memref<16x512xf32, #tpu.memory_space<vmem>>, vector<2x512xf32>
    %344 = arith.truncf %342 : vector<2x128xf32> to vector<2x128xbf16>
    %cst_113 = arith.constant dense<0.000000e+00> : vector<2x512xf32>
    %345 = tpu.matmul %344, %282, %cst_113 {dimension_numbers = #tpu.dot_dimension_numbers<[1], [0], [0], [1], [0, 0, 1, 1], [], []>} : vector<2x128xbf16>, vector<128x512xbf16>, vector<2x512xf32> -> vector<2x512xf32>
    %346 = arith.addf %343, %345 : vector<2x512xf32>
    %347 = vector.extract_strided_slice %346 {offsets = [0, 0], sizes = [2, 128], strides = [1, 1]} : vector<2x512xf32> to vector<2x128xf32>
    %348 = arith.negf %347 : vector<2x128xf32>
    %349 = math.exp %348 : vector<2x128xf32>
    %cst_114 = arith.constant 1.000000e+00 : f32
    %350 = vector.broadcast %cst_114 : f32 to vector<2x128xf32>
    %351 = arith.addf %350, %349 : vector<2x128xf32>
    %352 = arith.divf %350, %351 : vector<2x128xf32>
    %353 = vector.extract_strided_slice %346 {offsets = [0, 128], sizes = [2, 128], strides = [1, 1]} : vector<2x512xf32> to vector<2x128xf32>
    %354 = arith.negf %353 : vector<2x128xf32>
    %355 = math.exp %354 : vector<2x128xf32>
    %cst_115 = arith.constant 1.000000e+00 : f32
    %356 = vector.broadcast %cst_115 : f32 to vector<2x128xf32>
    %357 = arith.addf %356, %355 : vector<2x128xf32>
    %358 = arith.divf %356, %357 : vector<2x128xf32>
    %359 = vector.extract_strided_slice %346 {offsets = [0, 256], sizes = [2, 128], strides = [1, 1]} : vector<2x512xf32> to vector<2x128xf32>
    %360 = math.tanh %359 : vector<2x128xf32>
    %361 = vector.extract_strided_slice %346 {offsets = [0, 384], sizes = [2, 128], strides = [1, 1]} : vector<2x512xf32> to vector<2x128xf32>
    %362 = arith.negf %361 : vector<2x128xf32>
    %363 = math.exp %362 : vector<2x128xf32>
    %cst_116 = arith.constant 1.000000e+00 : f32
    %364 = vector.broadcast %cst_116 : f32 to vector<2x128xf32>
    %365 = arith.addf %364, %363 : vector<2x128xf32>
    %366 = arith.divf %364, %365 : vector<2x128xf32>
    %367 = arith.mulf %358, %340 : vector<2x128xf32>
    %368 = arith.mulf %352, %360 : vector<2x128xf32>
    %369 = arith.addf %367, %368 : vector<2x128xf32>
    %370 = math.tanh %369 : vector<2x128xf32>
    %371 = arith.mulf %366, %370 : vector<2x128xf32>
    %c6_117 = arith.constant 6 : index
    %c0_118 = arith.constant 0 : index
    %372 = vector.load %arg13[%c6_117, %c0_118] : memref<16x512xf32, #tpu.memory_space<vmem>>, vector<2x512xf32>
    %373 = arith.truncf %371 : vector<2x128xf32> to vector<2x128xbf16>
    %cst_119 = arith.constant dense<0.000000e+00> : vector<2x512xf32>
    %374 = tpu.matmul %373, %282, %cst_119 {dimension_numbers = #tpu.dot_dimension_numbers<[1], [0], [0], [1], [0, 0, 1, 1], [], []>} : vector<2x128xbf16>, vector<128x512xbf16>, vector<2x512xf32> -> vector<2x512xf32>
    %375 = arith.addf %372, %374 : vector<2x512xf32>
    %376 = vector.extract_strided_slice %375 {offsets = [0, 0], sizes = [2, 128], strides = [1, 1]} : vector<2x512xf32> to vector<2x128xf32>
    %377 = arith.negf %376 : vector<2x128xf32>
    %378 = math.exp %377 : vector<2x128xf32>
    %cst_120 = arith.constant 1.000000e+00 : f32
    %379 = vector.broadcast %cst_120 : f32 to vector<2x128xf32>
    %380 = arith.addf %379, %378 : vector<2x128xf32>
    %381 = arith.divf %379, %380 : vector<2x128xf32>
    %382 = vector.extract_strided_slice %375 {offsets = [0, 128], sizes = [2, 128], strides = [1, 1]} : vector<2x512xf32> to vector<2x128xf32>
    %383 = arith.negf %382 : vector<2x128xf32>
    %384 = math.exp %383 : vector<2x128xf32>
    %cst_121 = arith.constant 1.000000e+00 : f32
    %385 = vector.broadcast %cst_121 : f32 to vector<2x128xf32>
    %386 = arith.addf %385, %384 : vector<2x128xf32>
    %387 = arith.divf %385, %386 : vector<2x128xf32>
    %388 = vector.extract_strided_slice %375 {offsets = [0, 256], sizes = [2, 128], strides = [1, 1]} : vector<2x512xf32> to vector<2x128xf32>
    %389 = math.tanh %388 : vector<2x128xf32>
    %390 = vector.extract_strided_slice %375 {offsets = [0, 384], sizes = [2, 128], strides = [1, 1]} : vector<2x512xf32> to vector<2x128xf32>
    %391 = arith.negf %390 : vector<2x128xf32>
    %392 = math.exp %391 : vector<2x128xf32>
    %cst_122 = arith.constant 1.000000e+00 : f32
    %393 = vector.broadcast %cst_122 : f32 to vector<2x128xf32>
    %394 = arith.addf %393, %392 : vector<2x128xf32>
    %395 = arith.divf %393, %394 : vector<2x128xf32>
    %396 = arith.mulf %387, %369 : vector<2x128xf32>
    %397 = arith.mulf %381, %389 : vector<2x128xf32>
    %398 = arith.addf %396, %397 : vector<2x128xf32>
    %399 = math.tanh %398 : vector<2x128xf32>
    %400 = arith.mulf %395, %399 : vector<2x128xf32>
    %c8_123 = arith.constant 8 : index
    %c0_124 = arith.constant 0 : index
    %401 = vector.load %arg13[%c8_123, %c0_124] : memref<16x512xf32, #tpu.memory_space<vmem>>, vector<2x512xf32>
    %402 = arith.truncf %400 : vector<2x128xf32> to vector<2x128xbf16>
    %cst_125 = arith.constant dense<0.000000e+00> : vector<2x512xf32>
    %403 = tpu.matmul %402, %282, %cst_125 {dimension_numbers = #tpu.dot_dimension_numbers<[1], [0], [0], [1], [0, 0, 1, 1], [], []>} : vector<2x128xbf16>, vector<128x512xbf16>, vector<2x512xf32> -> vector<2x512xf32>
    %404 = arith.addf %401, %403 : vector<2x512xf32>
    %405 = vector.extract_strided_slice %404 {offsets = [0, 0], sizes = [2, 128], strides = [1, 1]} : vector<2x512xf32> to vector<2x128xf32>
    %406 = arith.negf %405 : vector<2x128xf32>
    %407 = math.exp %406 : vector<2x128xf32>
    %cst_126 = arith.constant 1.000000e+00 : f32
    %408 = vector.broadcast %cst_126 : f32 to vector<2x128xf32>
    %409 = arith.addf %408, %407 : vector<2x128xf32>
    %410 = arith.divf %408, %409 : vector<2x128xf32>
    %411 = vector.extract_strided_slice %404 {offsets = [0, 128], sizes = [2, 128], strides = [1, 1]} : vector<2x512xf32> to vector<2x128xf32>
    %412 = arith.negf %411 : vector<2x128xf32>
    %413 = math.exp %412 : vector<2x128xf32>
    %cst_127 = arith.constant 1.000000e+00 : f32
    %414 = vector.broadcast %cst_127 : f32 to vector<2x128xf32>
    %415 = arith.addf %414, %413 : vector<2x128xf32>
    %416 = arith.divf %414, %415 : vector<2x128xf32>
    %417 = vector.extract_strided_slice %404 {offsets = [0, 256], sizes = [2, 128], strides = [1, 1]} : vector<2x512xf32> to vector<2x128xf32>
    %418 = math.tanh %417 : vector<2x128xf32>
    %419 = vector.extract_strided_slice %404 {offsets = [0, 384], sizes = [2, 128], strides = [1, 1]} : vector<2x512xf32> to vector<2x128xf32>
    %420 = arith.negf %419 : vector<2x128xf32>
    %421 = math.exp %420 : vector<2x128xf32>
    %cst_128 = arith.constant 1.000000e+00 : f32
    %422 = vector.broadcast %cst_128 : f32 to vector<2x128xf32>
    %423 = arith.addf %422, %421 : vector<2x128xf32>
    %424 = arith.divf %422, %423 : vector<2x128xf32>
    %425 = arith.mulf %416, %398 : vector<2x128xf32>
    %426 = arith.mulf %410, %418 : vector<2x128xf32>
    %427 = arith.addf %425, %426 : vector<2x128xf32>
    %428 = math.tanh %427 : vector<2x128xf32>
    %429 = arith.mulf %424, %428 : vector<2x128xf32>
    %c10_129 = arith.constant 10 : index
    %c0_130 = arith.constant 0 : index
    %430 = vector.load %arg13[%c10_129, %c0_130] : memref<16x512xf32, #tpu.memory_space<vmem>>, vector<2x512xf32>
    %431 = arith.truncf %429 : vector<2x128xf32> to vector<2x128xbf16>
    %cst_131 = arith.constant dense<0.000000e+00> : vector<2x512xf32>
    %432 = tpu.matmul %431, %282, %cst_131 {dimension_numbers = #tpu.dot_dimension_numbers<[1], [0], [0], [1], [0, 0, 1, 1], [], []>} : vector<2x128xbf16>, vector<128x512xbf16>, vector<2x512xf32> -> vector<2x512xf32>
    %433 = arith.addf %430, %432 : vector<2x512xf32>
    %434 = vector.extract_strided_slice %433 {offsets = [0, 0], sizes = [2, 128], strides = [1, 1]} : vector<2x512xf32> to vector<2x128xf32>
    %435 = arith.negf %434 : vector<2x128xf32>
    %436 = math.exp %435 : vector<2x128xf32>
    %cst_132 = arith.constant 1.000000e+00 : f32
    %437 = vector.broadcast %cst_132 : f32 to vector<2x128xf32>
    %438 = arith.addf %437, %436 : vector<2x128xf32>
    %439 = arith.divf %437, %438 : vector<2x128xf32>
    %440 = vector.extract_strided_slice %433 {offsets = [0, 128], sizes = [2, 128], strides = [1, 1]} : vector<2x512xf32> to vector<2x128xf32>
    %441 = arith.negf %440 : vector<2x128xf32>
    %442 = math.exp %441 : vector<2x128xf32>
    %cst_133 = arith.constant 1.000000e+00 : f32
    %443 = vector.broadcast %cst_133 : f32 to vector<2x128xf32>
    %444 = arith.addf %443, %442 : vector<2x128xf32>
    %445 = arith.divf %443, %444 : vector<2x128xf32>
    %446 = vector.extract_strided_slice %433 {offsets = [0, 256], sizes = [2, 128], strides = [1, 1]} : vector<2x512xf32> to vector<2x128xf32>
    %447 = math.tanh %446 : vector<2x128xf32>
    %448 = vector.extract_strided_slice %433 {offsets = [0, 384], sizes = [2, 128], strides = [1, 1]} : vector<2x512xf32> to vector<2x128xf32>
    %449 = arith.negf %448 : vector<2x128xf32>
    %450 = math.exp %449 : vector<2x128xf32>
    %cst_134 = arith.constant 1.000000e+00 : f32
    %451 = vector.broadcast %cst_134 : f32 to vector<2x128xf32>
    %452 = arith.addf %451, %450 : vector<2x128xf32>
    %453 = arith.divf %451, %452 : vector<2x128xf32>
    %454 = arith.mulf %445, %427 : vector<2x128xf32>
    %455 = arith.mulf %439, %447 : vector<2x128xf32>
    %456 = arith.addf %454, %455 : vector<2x128xf32>
    %457 = math.tanh %456 : vector<2x128xf32>
    %458 = arith.mulf %453, %457 : vector<2x128xf32>
    %c12_135 = arith.constant 12 : index
    %c0_136 = arith.constant 0 : index
    %459 = vector.load %arg13[%c12_135, %c0_136] : memref<16x512xf32, #tpu.memory_space<vmem>>, vector<2x512xf32>
    %460 = arith.truncf %458 : vector<2x128xf32> to vector<2x128xbf16>
    %cst_137 = arith.constant dense<0.000000e+00> : vector<2x512xf32>
    %461 = tpu.matmul %460, %282, %cst_137 {dimension_numbers = #tpu.dot_dimension_numbers<[1], [0], [0], [1], [0, 0, 1, 1], [], []>} : vector<2x128xbf16>, vector<128x512xbf16>, vector<2x512xf32> -> vector<2x512xf32>
    %462 = arith.addf %459, %461 : vector<2x512xf32>
    %463 = vector.extract_strided_slice %462 {offsets = [0, 0], sizes = [2, 128], strides = [1, 1]} : vector<2x512xf32> to vector<2x128xf32>
    %464 = arith.negf %463 : vector<2x128xf32>
    %465 = math.exp %464 : vector<2x128xf32>
    %cst_138 = arith.constant 1.000000e+00 : f32
    %466 = vector.broadcast %cst_138 : f32 to vector<2x128xf32>
    %467 = arith.addf %466, %465 : vector<2x128xf32>
    %468 = arith.divf %466, %467 : vector<2x128xf32>
    %469 = vector.extract_strided_slice %462 {offsets = [0, 128], sizes = [2, 128], strides = [1, 1]} : vector<2x512xf32> to vector<2x128xf32>
    %470 = arith.negf %469 : vector<2x128xf32>
    %471 = math.exp %470 : vector<2x128xf32>
    %cst_139 = arith.constant 1.000000e+00 : f32
    %472 = vector.broadcast %cst_139 : f32 to vector<2x128xf32>
    %473 = arith.addf %472, %471 : vector<2x128xf32>
    %474 = arith.divf %472, %473 : vector<2x128xf32>
    %475 = vector.extract_strided_slice %462 {offsets = [0, 256], sizes = [2, 128], strides = [1, 1]} : vector<2x512xf32> to vector<2x128xf32>
    %476 = math.tanh %475 : vector<2x128xf32>
    %477 = vector.extract_strided_slice %462 {offsets = [0, 384], sizes = [2, 128], strides = [1, 1]} : vector<2x512xf32> to vector<2x128xf32>
    %478 = arith.negf %477 : vector<2x128xf32>
    %479 = math.exp %478 : vector<2x128xf32>
    %cst_140 = arith.constant 1.000000e+00 : f32
    %480 = vector.broadcast %cst_140 : f32 to vector<2x128xf32>
    %481 = arith.addf %480, %479 : vector<2x128xf32>
    %482 = arith.divf %480, %481 : vector<2x128xf32>
    %483 = arith.mulf %474, %456 : vector<2x128xf32>
    %484 = arith.mulf %468, %476 : vector<2x128xf32>
    %485 = arith.addf %483, %484 : vector<2x128xf32>
    %486 = math.tanh %485 : vector<2x128xf32>
    %487 = arith.mulf %482, %486 : vector<2x128xf32>
    %c14_141 = arith.constant 14 : index
    %c0_142 = arith.constant 0 : index
    %488 = vector.load %arg13[%c14_141, %c0_142] : memref<16x512xf32, #tpu.memory_space<vmem>>, vector<2x512xf32>
    %489 = arith.truncf %487 : vector<2x128xf32> to vector<2x128xbf16>
    %cst_143 = arith.constant dense<0.000000e+00> : vector<2x512xf32>
    %490 = tpu.matmul %489, %282, %cst_143 {dimension_numbers = #tpu.dot_dimension_numbers<[1], [0], [0], [1], [0, 0, 1, 1], [], []>} : vector<2x128xbf16>, vector<128x512xbf16>, vector<2x512xf32> -> vector<2x512xf32>
    %491 = arith.addf %488, %490 : vector<2x512xf32>
    %492 = vector.extract_strided_slice %491 {offsets = [0, 0], sizes = [2, 128], strides = [1, 1]} : vector<2x512xf32> to vector<2x128xf32>
    %493 = arith.negf %492 : vector<2x128xf32>
    %494 = math.exp %493 : vector<2x128xf32>
    %cst_144 = arith.constant 1.000000e+00 : f32
    %495 = vector.broadcast %cst_144 : f32 to vector<2x128xf32>
    %496 = arith.addf %495, %494 : vector<2x128xf32>
    %497 = arith.divf %495, %496 : vector<2x128xf32>
    %498 = vector.extract_strided_slice %491 {offsets = [0, 128], sizes = [2, 128], strides = [1, 1]} : vector<2x512xf32> to vector<2x128xf32>
    %499 = arith.negf %498 : vector<2x128xf32>
    %500 = math.exp %499 : vector<2x128xf32>
    %cst_145 = arith.constant 1.000000e+00 : f32
    %501 = vector.broadcast %cst_145 : f32 to vector<2x128xf32>
    %502 = arith.addf %501, %500 : vector<2x128xf32>
    %503 = arith.divf %501, %502 : vector<2x128xf32>
    %504 = vector.extract_strided_slice %491 {offsets = [0, 256], sizes = [2, 128], strides = [1, 1]} : vector<2x512xf32> to vector<2x128xf32>
    %505 = math.tanh %504 : vector<2x128xf32>
    %506 = vector.extract_strided_slice %491 {offsets = [0, 384], sizes = [2, 128], strides = [1, 1]} : vector<2x512xf32> to vector<2x128xf32>
    %507 = arith.negf %506 : vector<2x128xf32>
    %508 = math.exp %507 : vector<2x128xf32>
    %cst_146 = arith.constant 1.000000e+00 : f32
    %509 = vector.broadcast %cst_146 : f32 to vector<2x128xf32>
    %510 = arith.addf %509, %508 : vector<2x128xf32>
    %511 = arith.divf %509, %510 : vector<2x128xf32>
    %512 = arith.mulf %503, %485 : vector<2x128xf32>
    %513 = arith.mulf %497, %505 : vector<2x128xf32>
    %514 = arith.addf %512, %513 : vector<2x128xf32>
    %515 = math.tanh %514 : vector<2x128xf32>
    %516 = arith.mulf %511, %515 : vector<2x128xf32>
    %517 = arith.truncf %516 : vector<2x128xf32> to vector<2x128xbf16>
    %c0_147 = arith.constant 0 : index
    %c0_148 = arith.constant 0 : index
    %518 = vector.load %arg8[%c0_147, %c0_148] : memref<128x8xbf16, #tpu.memory_space<vmem>>, vector<128x8xbf16>
    %cst_149 = arith.constant dense<0.000000e+00> : vector<2x8xf32>
    %519 = tpu.matmul %517, %518, %cst_149 {dimension_numbers = #tpu.dot_dimension_numbers<[1], [0], [0], [1], [0, 0, 1, 1], [], []>} : vector<2x128xbf16>, vector<128x8xbf16>, vector<2x8xf32> -> vector<2x8xf32>
    %c0_150 = arith.constant 0 : index
    %c0_151 = arith.constant 0 : index
    %520 = vector.load %arg9[%c0_150, %c0_151] : memref<1x8xf32, #tpu.memory_space<vmem>>, vector<1x8xf32>
    %521 = vector.broadcast %520 : vector<1x8xf32> to vector<2x8xf32>
    %522 = arith.addf %519, %521 : vector<2x8xf32>
    %c0_152 = arith.constant 0 : index
    %c0_153 = arith.constant 0 : index
    %523 = vector.load %arg10[%c0_152, %c0_153] : memref<2x8xf32, #tpu.memory_space<vmem>>, vector<2x8xf32>
    tpu.vector_store %arg10[%c0_152, %c0_153], %522 {strides = array<i32>} : memref<2x8xf32, #tpu.memory_space<vmem>>, vector<2x8xf32>,
    %cst_154 = arith.constant dense<0xFF800000> : vector<2xf32>
    %524 = vector.multi_reduction <maximumf>, %522, %cst_154 [1] : vector<2x8xf32> to vector<2xf32>
    %525 = vector.shape_cast %524 : vector<2xf32> to vector<2x1xf32>
    %526 = vector.broadcast %525 : vector<2x1xf32> to vector<2x8xf32>
    %527 = arith.subf %522, %526 : vector<2x8xf32>
    %528 = math.exp %527 : vector<2x8xf32>
    %cst_155 = arith.constant dense<0.000000e+00> : vector<2xf32>
    %529 = vector.multi_reduction <add>, %528, %cst_155 [1] : vector<2x8xf32> to vector<2xf32>
    %530 = vector.shape_cast %529 : vector<2xf32> to vector<2x1xf32>
    %531 = vector.broadcast %530 : vector<2x1xf32> to vector<2x8xf32>
    %532 = arith.divf %528, %531 : vector<2x8xf32>
    %c0_156 = arith.constant 0 : index
    %c0_157 = arith.constant 0 : index
    %533 = vector.load %arg11[%c0_156, %c0_157] : memref<2x8xf32, #tpu.memory_space<vmem>>, vector<2x8xf32>
    tpu.vector_store %arg11[%c0_156, %c0_157], %532 {strides = array<i32>} : memref<2x8xf32, #tpu.memory_space<vmem>>, vector<2x8xf32>,
    return
  }
}

</mosaic_0001>

<llo_original>
// kernel: cnn_lstm_forward.1
$region0: #{cnn_lstm_forward.1}
  #allocation0 [shape = 'u32[]', space=smem, size = 0x4, offset = 0x4, fixed_abs, tag = 'smem constant byte address 0x4 - core index']
  #allocation1 [shape = 'u32[144,128]{1,0:T(1,128)}', space=vmem, size = 0x12000, scoped, tag = 'internal scratch']
  #allocation2 [shape = 'f32[16,128]{1,0:T(8,128)}', space=vmem, size = 0x2000, scoped, tag = 'scratch operand']
  #allocation3 [shape = 'f32[16,512]{1,0:T(8,128)}', space=vmem, size = 0x8000, scoped, tag = 'scratch operand']
  %s0 = inlined_call_operand.vmem [shape: bf16[4096,27], index: 0, kind: input, shape index: {}]
  %s1 = inlined_call_operand.vmem [shape: bf16[27,128], index: 1, kind: input, shape index: {}]
  %s2 = inlined_call_operand.vmem [shape: f32[1,128], index: 2, kind: input, shape index: {}]
  %s3 = inlined_call_operand.vmem [shape: bf16[128,128], index: 3, kind: input, shape index: {}]
  %s4 = inlined_call_operand.vmem [shape: f32[1,128], index: 4, kind: input, shape index: {}]
  %s5 = inlined_call_operand.vmem [shape: bf16[2,128,512], index: 5, kind: input, shape index: {}]
  %s6 = inlined_call_operand.vmem [shape: bf16[2,128,512], index: 6, kind: input, shape index: {}]
  %s7 = inlined_call_operand.vmem [shape: f32[2,1,512], index: 7, kind: input, shape index: {}]
  %s8 = inlined_call_operand.vmem [shape: bf16[128,8], index: 8, kind: input, shape index: {}]
  %s9 = inlined_call_operand.vmem [shape: f32[1,8], index: 9, kind: input, shape index: {}]
  %s10 = inlined_call_operand.hbm [shape: f32[2,8], index: 10, kind: output, shape index: {0}]
  %s11 = inlined_call_operand.hbm [shape: f32[2,8], index: 11, kind: output, shape index: {1}]
  %12 = xla_tuple %s10, %s11
  %s13 = sld [smem:[#allocation0]]
  $region58: #{cnn_lstm_forward.1} parent=0
    _
  %s15 = ssub.s32 1, %s13
  %s16 = scalar_select 0, %s15, %s13
  $region1: #{cnn_lstm_forward.1} parent=0
    #allocation4 [shape = 'u8[1024]{0}', space=vmem, size = 0x400, scoped, tag = 'output window, operand 0, single buffered']
    #allocation5 [shape = 's32[1]{0}', space=sflag, size = 0x4, scoped, tag = 'scoped memory for cnn_lstm_forward.1']
    #allocation6 [shape = 'u8[1024]{0}', space=vmem, size = 0x400, scoped, tag = 'output window, operand 1, single buffered']
    #allocation7 [shape = 's32[1]{0}', space=sflag, size = 0x4, scoped, tag = 'scoped memory for cnn_lstm_forward.1']
    %17 = vsyncpa [#allocation5], 0
    %18 = vsyncpa [#allocation7], 0
    // Predicated region
    $region2: #{cnn_lstm_forward.1} parent=1 // pred_check
      _
    $region3: #{cnn_lstm_forward.1} parent=1 // pred_check_branch
      %20 = sbr.rel (0) target = $region5
    $region4: #{cnn_lstm_forward.1} parent=1 // pred_region
      _
    $region5: #{cnn_lstm_forward.1} parent=1 // pred_fallthru
      _
    // Predicated region
    $region6: #{cnn_lstm_forward.1} parent=1 // pred_check
      _
    $region7: #{cnn_lstm_forward.1} parent=1 // pred_check_branch
      %22 = sbr.rel (0) target = $region9
    $region8: #{cnn_lstm_forward.1} parent=1 // pred_region
      _
    $region9: #{cnn_lstm_forward.1} parent=1 // pred_fallthru
      _
    // Predicated region
    $region10: #{cnn_lstm_forward.1} parent=1 // pred_check
      _
    $region11: #{cnn_lstm_forward.1} parent=1 // pred_check_branch
      %24 = sbr.rel (0) target = $region13
    $region12: #{cnn_lstm_forward.1} parent=1 // pred_region
      _
    $region13: #{cnn_lstm_forward.1} parent=1 // pred_fallthru
      _
    // Predicated region
    $region14: #{cnn_lstm_forward.1} parent=1 // pred_check
      _
    $region15: #{cnn_lstm_forward.1} parent=1 // pred_check_branch
      %26 = sbr.rel (0) target = $region17
    $region16: #{cnn_lstm_forward.1} parent=1 // pred_region
      _
    $region17: #{cnn_lstm_forward.1} parent=1 // pred_fallthru
      _
    // Predicated region
    $region18: #{cnn_lstm_forward.1} parent=1 // pred_check
      _
    $region19: #{cnn_lstm_forward.1} parent=1 // pred_check_branch
      %28 = sbr.rel (0) target = $region21
    $region20: #{cnn_lstm_forward.1} parent=1 // pred_region
      _
    $region21: #{cnn_lstm_forward.1} parent=1 // pred_fallthru
      _
    // Predicated region
    $region22: #{cnn_lstm_forward.1} parent=1 // pred_check
      _
    $region23: #{cnn_lstm_forward.1} parent=1 // pred_check_branch
      %30 = sbr.rel (0) target = $region25
    $region24: #{cnn_lstm_forward.1} parent=1 // pred_region
      _
    $region25: #{cnn_lstm_forward.1} parent=1 // pred_fallthru
      _
    // Predicated region
    $region26: #{cnn_lstm_forward.1} parent=1 // pred_check
      _
    $region27: #{cnn_lstm_forward.1} parent=1 // pred_check_branch
      %32 = sbr.rel (0) target = $region29
    $region28: #{cnn_lstm_forward.1} parent=1 // pred_region
      _
    $region29: #{cnn_lstm_forward.1} parent=1 // pred_fallthru
      _
    // Predicated region
    $region30: #{cnn_lstm_forward.1} parent=1 // pred_check
      _
    $region31: #{cnn_lstm_forward.1} parent=1 // pred_check_branch
      %34 = sbr.rel (0) target = $region33
    $region32: #{cnn_lstm_forward.1} parent=1 // pred_region
      _
    $region33: #{cnn_lstm_forward.1} parent=1 // pred_fallthru
      _
    // Predicated region
    $region34: #{cnn_lstm_forward.1} parent=1 // pred_check
      _
    $region35: #{cnn_lstm_forward.1} parent=1 // pred_check_branch
      %36 = sbr.rel (0) target = $region37
    $region36: #{cnn_lstm_forward.1} parent=1 // pred_region
      _
    $region37: #{cnn_lstm_forward.1} parent=1 // pred_fallthru
      _
    // Predicated region
    $region38: #{cnn_lstm_forward.1} parent=1 // pred_check
      _
    $region39: #{cnn_lstm_forward.1} parent=1 // pred_check_branch
      %38 = sbr.rel (0) target = $region41
    $region40: #{cnn_lstm_forward.1} parent=1 // pred_region
      _
    $region41: #{cnn_lstm_forward.1} parent=1 // pred_fallthru
      _
    %v40 = vld [vmem:[%s0] sm:$0xf]
    %v41 = vld [vmem:[%s0 + $0x4] sm:$0xf]
    %v42 = vld [vmem:[%s0 + $0x8] sm:$0xf]
    %v43 = vld [vmem:[%s0 + $0xc] sm:$0xf]
    %v44 = vld [vmem:[%s0 + $0x10] sm:$0xf]
    %v45 = vld [vmem:[%s0 + $0x14] sm:$0xf]
    %v46 = vld [vmem:[%s0 + $0x18] sm:$0xf]
    %v47 = vld [vmem:[%s0 + $0x1c] sm:$0xf]
    %v48 = vld [vmem:[%s0 + $0x20] sm:$0xf]
    %v49 = vld [vmem:[%s0 + $0x24] sm:$0xf]
    %v50 = vld [vmem:[%s0 + $0x28] sm:$0xf]
    %v51 = vld [vmem:[%s0 + $0x2c] sm:$0xf]
    %v52 = vld [vmem:[%s0 + $0x30] sm:$0xf]
    %v53 = vld [vmem:[%s0 + $0x34] sm:$0xf]
    %v54 = vld [vmem:[%s0 + $0x38] sm:$0xf]
    %v55 = vld [vmem:[%s0 + $0x3c] sm:$0xf]
    %v56 = vld [vmem:[%s0 + $0x40] sm:$0xf]
    %v57 = vld [vmem:[%s0 + $0x44] sm:$0xf]
    %v58 = vld [vmem:[%s0 + $0x48] sm:$0xf]
    %v59 = vld [vmem:[%s0 + $0x4c] sm:$0xf]
    %v60 = vld [vmem:[%s0 + $0x50] sm:$0xf]
    %v61 = vld [vmem:[%s0 + $0x54] sm:$0xf]
    %v62 = vld [vmem:[%s0 + $0x58] sm:$0xf]
    %v63 = vld [vmem:[%s0 + $0x5c] sm:$0xf]
    %v64 = vld [vmem:[%s0 + $0x60] sm:$0xf]
    %v65 = vld [vmem:[%s0 + $0x64] sm:$0xf]
    %v66 = vld [vmem:[%s0 + $0x68] sm:$0xf]
    %v67 = vld [vmem:[%s0 + $0x6c] sm:$0xf]
    %v68 = vld [vmem:[%s0 + $0x70] sm:$0xf]
    %v69 = vld [vmem:[%s0 + $0x74] sm:$0xf]
    %v70 = vld [vmem:[%s0 + $0x78] sm:$0xf]
    %v71 = vld [vmem:[%s0 + $0x7c] sm:$0xf]
    %v72 = vld [vmem:[%s0 + $0x80] sm:$0xf]
    %v73 = vld [vmem:[%s0 + $0x84] sm:$0xf]
    %v74 = vld [vmem:[%s0 + $0x88] sm:$0xf]
    %v75 = vld [vmem:[%s0 + $0x8c] sm:$0xf]
    %v76 = vld [vmem:[%s0 + $0x90] sm:$0xf]
    %v77 = vld [vmem:[%s0 + $0x94] sm:$0xf]
    %v78 = vld [vmem:[%s0 + $0x98] sm:$0xf]
    %v79 = vld [vmem:[%s0 + $0x9c] sm:$0xf]
    %v80 = vld [vmem:[%s0 + $0xa0] sm:$0xf]
    %v81 = vld [vmem:[%s0 + $0xa4] sm:$0xf]
    %v82 = vld [vmem:[%s0 + $0xa8] sm:$0xf]
    %v83 = vld [vmem:[%s0 + $0xac] sm:$0xf]
    %v84 = vld [vmem:[%s0 + $0xb0] sm:$0xf]
    %v85 = vld [vmem:[%s0 + $0xb4] sm:$0xf]
    %v86 = vld [vmem:[%s0 + $0xb8] sm:$0xf]
    %v87 = vld [vmem:[%s0 + $0xbc] sm:$0xf]
    %v88 = vld [vmem:[%s0 + $0xc0] sm:$0xf]
    %v89 = vld [vmem:[%s0 + $0xc4] sm:$0xf]
    %v90 = vld [vmem:[%s0 + $0xc8] sm:$0xf]
    %v91 = vld [vmem:[%s0 + $0xcc] sm:$0xf]
    %v92 = vld [vmem:[%s0 + $0xd0] sm:$0xf]
    %v93 = vld [vmem:[%s0 + $0xd4] sm:$0xf]
    %v94 = vld [vmem:[%s0 + $0xd8] sm:$0xf]
    %v95 = vld [vmem:[%s0 + $0xdc] sm:$0xf]
    %v96 = vld [vmem:[%s0 + $0xe0] sm:$0xf]
    %v97 = vld [vmem:[%s0 + $0xe4] sm:$0xf]
    %v98 = vld [vmem:[%s0 + $0xe8] sm:$0xf]
    %v99 = vld [vmem:[%s0 + $0xec] sm:$0xf]
    %v100 = vld [vmem:[%s0 + $0xf0] sm:$0xf]
    %v101 = vld [vmem:[%s0 + $0xf4] sm:$0xf]
    %v102 = vld [vmem:[%s0 + $0xf8] sm:$0xf]
    %v103 = vld [vmem:[%s0 + $0xfc] sm:$0xf]
    %v104 = vld [vmem:[%s0 + $0x100] sm:$0xf]
    %v105 = vld [vmem:[%s0 + $0x104] sm:$0xf]
    %v106 = vld [vmem:[%s0 + $0x108] sm:$0xf]
    %v107 = vld [vmem:[%s0 + $0x10c] sm:$0xf]
    %v108 = vld [vmem:[%s0 + $0x110] sm:$0xf]
    %v109 = vld [vmem:[%s0 + $0x114] sm:$0xf]
    %v110 = vld [vmem:[%s0 + $0x118] sm:$0xf]
    %v111 = vld [vmem:[%s0 + $0x11c] sm:$0xf]
    %v112 = vld [vmem:[%s0 + $0x120] sm:$0xf]
    %v113 = vld [vmem:[%s0 + $0x124] sm:$0xf]
    %v114 = vld [vmem:[%s0 + $0x128] sm:$0xf]
    %v115 = vld [vmem:[%s0 + $0x12c] sm:$0xf]
    %v116 = vld [vmem:[%s0 + $0x130] sm:$0xf]
    %v117 = vld [vmem:[%s0 + $0x134] sm:$0xf]
    %v118 = vld [vmem:[%s0 + $0x138] sm:$0xf]
    %v119 = vld [vmem:[%s0 + $0x13c] sm:$0xf]
    %v120 = vld [vmem:[%s0 + $0x140] sm:$0xf]
    %v121 = vld [vmem:[%s0 + $0x144] sm:$0xf]
    %v122 = vld [vmem:[%s0 + $0x148] sm:$0xf]
    %v123 = vld [vmem:[%s0 + $0x14c] sm:$0xf]
    %v124 = vld [vmem:[%s0 + $0x150] sm:$0xf]
    %v125 = vld [vmem:[%s0 + $0x154] sm:$0xf]
    %v126 = vld [vmem:[%s0 + $0x158] sm:$0xf]
    %v127 = vld [vmem:[%s0 + $0x15c] sm:$0xf]
    %v128 = vld [vmem:[%s0 + $0x160] sm:$0xf]
    %v129 = vld [vmem:[%s0 + $0x164] sm:$0xf]
    %v130 = vld [vmem:[%s0 + $0x168] sm:$0xf]
    %v131 = vld [vmem:[%s0 + $0x16c] sm:$0xf]
    %v132 = vld [vmem:[%s0 + $0x170] sm:$0xf]
    %v133 = vld [vmem:[%s0 + $0x174] sm:$0xf]
    %v134 = vld [vmem:[%s0 + $0x178] sm:$0xf]
    %v135 = vld [vmem:[%s0 + $0x17c] sm:$0xf]
    %v136 = vld [vmem:[%s0 + $0x180] sm:$0xf]
    %v137 = vld [vmem:[%s0 + $0x184] sm:$0xf]
    %v138 = vld [vmem:[%s0 + $0x188] sm:$0xf]
    %v139 = vld [vmem:[%s0 + $0x18c] sm:$0xf]
    %v140 = vld [vmem:[%s0 + $0x190] sm:$0xf]
    %v141 = vld [vmem:[%s0 + $0x194] sm:$0xf]
    %v142 = vld [vmem:[%s0 + $0x198] sm:$0xf]
    %v143 = vld [vmem:[%s0 + $0x19c] sm:$0xf]
    %v144 = vld [vmem:[%s0 + $0x1a0] sm:$0xf]
    %v145 = vld [vmem:[%s0 + $0x1a4] sm:$0xf]
    %v146 = vld [vmem:[%s0 + $0x1a8] sm:$0xf]
    %v147 = vld [vmem:[%s0 + $0x1ac] sm:$0xf]
    %v148 = vld [vmem:[%s0 + $0x1b0] sm:$0xf]
    %v149 = vld [vmem:[%s0 + $0x1b4] sm:$0xf]
    %v150 = vld [vmem:[%s0 + $0x1b8] sm:$0xf]
    %v151 = vld [vmem:[%s0 + $0x1bc] sm:$0xf]
    %v152 = vld [vmem:[%s0 + $0x1c0] sm:$0xf]
    %v153 = vld [vmem:[%s0 + $0x1c4] sm:$0xf]
    %v154 = vld [vmem:[%s0 + $0x1c8] sm:$0xf]
    %v155 = vld [vmem:[%s0 + $0x1cc] sm:$0xf]
    %v156 = vld [vmem:[%s0 + $0x1d0] sm:$0xf]
    %v157 = vld [vmem:[%s0 + $0x1d4] sm:$0xf]
    %v158 = vld [vmem:[%s0 + $0x1d8] sm:$0xf]
    %v159 = vld [vmem:[%s0 + $0x1dc] sm:$0xf]
    %v160 = vld [vmem:[%s0 + $0x1e0] sm:$0xf]
    %v161 = vld [vmem:[%s0 + $0x1e4] sm:$0xf]
    %v162 = vld [vmem:[%s0 + $0x1e8] sm:$0xf]
    %v163 = vld [vmem:[%s0 + $0x1ec] sm:$0xf]
    %v164 = vld [vmem:[%s0 + $0x1f0] sm:$0xf]
    %v165 = vld [vmem:[%s0 + $0x1f4] sm:$0xf]
    %v166 = vld [vmem:[%s0 + $0x1f8] sm:$0xf]
    %v167 = vld [vmem:[%s0 + $0x1fc] sm:$0xf]
    %v168 = vld [vmem:[%s0 + $0x200] sm:$0xf]
    %v169 = vld [vmem:[%s0 + $0x204] sm:$0xf]
    %v170 = vld [vmem:[%s0 + $0x208] sm:$0xf]
    %v171 = vld [vmem:[%s0 + $0x20c] sm:$0xf]
    %v172 = vld [vmem:[%s0 + $0x210] sm:$0xf]
    %v173 = vld [vmem:[%s0 + $0x214] sm:$0xf]
    %v174 = vld [vmem:[%s0 + $0x218] sm:$0xf]
    %v175 = vld [vmem:[%s0 + $0x21c] sm:$0xf]
    %v176 = vld [vmem:[%s0 + $0x220] sm:$0xf]
    %v177 = vld [vmem:[%s0 + $0x224] sm:$0xf]
    %v178 = vld [vmem:[%s0 + $0x228] sm:$0xf]
    %v179 = vld [vmem:[%s0 + $0x22c] sm:$0xf]
    %v180 = vld [vmem:[%s0 + $0x230] sm:$0xf]
    %v181 = vld [vmem:[%s0 + $0x234] sm:$0xf]
    %v182 = vld [vmem:[%s0 + $0x238] sm:$0xf]
    %v183 = vld [vmem:[%s0 + $0x23c] sm:$0xf]
    %v184 = vld [vmem:[%s0 + $0x240] sm:$0xf]
    %v185 = vld [vmem:[%s0 + $0x244] sm:$0xf]
    %v186 = vld [vmem:[%s0 + $0x248] sm:$0xf]
    %v187 = vld [vmem:[%s0 + $0x24c] sm:$0xf]
    %v188 = vld [vmem:[%s0 + $0x250] sm:$0xf]
    %v189 = vld [vmem:[%s0 + $0x254] sm:$0xf]
    %v190 = vld [vmem:[%s0 + $0x258] sm:$0xf]
    %v191 = vld [vmem:[%s0 + $0x25c] sm:$0xf]
    %v192 = vld [vmem:[%s0 + $0x260] sm:$0xf]
    %v193 = vld [vmem:[%s0 + $0x264] sm:$0xf]
    %v194 = vld [vmem:[%s0 + $0x268] sm:$0xf]
    %v195 = vld [vmem:[%s0 + $0x26c] sm:$0xf]
    %v196 = vld [vmem:[%s0 + $0x270] sm:$0xf]
    %v197 = vld [vmem:[%s0 + $0x274] sm:$0xf]
    %v198 = vld [vmem:[%s0 + $0x278] sm:$0xf]
    %v199 = vld [vmem:[%s0 + $0x27c] sm:$0xf]
    %v200 = vld [vmem:[%s0 + $0x280] sm:$0xf]
    %v201 = vld [vmem:[%s0 + $0x284] sm:$0xf]
    %v202 = vld [vmem:[%s0 + $0x288] sm:$0xf]
    %v203 = vld [vmem:[%s0 + $0x28c] sm:$0xf]
    %v204 = vld [vmem:[%s0 + $0x290] sm:$0xf]
    %v205 = vld [vmem:[%s0 + $0x294] sm:$0xf]
    %v206 = vld [vmem:[%s0 + $0x298] sm:$0xf]
    %v207 = vld [vmem:[%s0 + $0x29c] sm:$0xf]
    %v208 = vld [vmem:[%s0 + $0x2a0] sm:$0xf]
    %v209 = vld [vmem:[%s0 + $0x2a4] sm:$0xf]
    %v210 = vld [vmem:[%s0 + $0x2a8] sm:$0xf]
    %v211 = vld [vmem:[%s0 + $0x2ac] sm:$0xf]
    %v212 = vld [vmem:[%s0 + $0x2b0] sm:$0xf]
    %v213 = vld [vmem:[%s0 + $0x2b4] sm:$0xf]
    %v214 = vld [vmem:[%s0 + $0x2b8] sm:$0xf]
    %v215 = vld [vmem:[%s0 + $0x2bc] sm:$0xf]
    %v216 = vld [vmem:[%s0 + $0x2c0] sm:$0xf]
    %v217 = vld [vmem:[%s0 + $0x2c4] sm:$0xf]
    %v218 = vld [vmem:[%s0 + $0x2c8] sm:$0xf]
    %v219 = vld [vmem:[%s0 + $0x2cc] sm:$0xf]
    %v220 = vld [vmem:[%s0 + $0x2d0] sm:$0xf]
    %v221 = vld [vmem:[%s0 + $0x2d4] sm:$0xf]
    %v222 = vld [vmem:[%s0 + $0x2d8] sm:$0xf]
    %v223 = vld [vmem:[%s0 + $0x2dc] sm:$0xf]
    %v224 = vld [vmem:[%s0 + $0x2e0] sm:$0xf]
    %v225 = vld [vmem:[%s0 + $0x2e4] sm:$0xf]
    %v226 = vld [vmem:[%s0 + $0x2e8] sm:$0xf]
    %v227 = vld [vmem:[%s0 + $0x2ec] sm:$0xf]
    %v228 = vld [vmem:[%s0 + $0x2f0] sm:$0xf]
    %v229 = vld [vmem:[%s0 + $0x2f4] sm:$0xf]
    %v230 = vld [vmem:[%s0 + $0x2f8] sm:$0xf]
    %v231 = vld [vmem:[%s0 + $0x2fc] sm:$0xf]
    %v232 = vld [vmem:[%s0 + $0x300] sm:$0xf]
    %v233 = vld [vmem:[%s0 + $0x304] sm:$0xf]
    %v234 = vld [vmem:[%s0 + $0x308] sm:$0xf]
    %v235 = vld [vmem:[%s0 + $0x30c] sm:$0xf]
    %v236 = vld [vmem:[%s0 + $0x310] sm:$0xf]
    %v237 = vld [vmem:[%s0 + $0x314] sm:$0xf]
    %v238 = vld [vmem:[%s0 + $0x318] sm:$0xf]
    %v239 = vld [vmem:[%s0 + $0x31c] sm:$0xf]
    %v240 = vld [vmem:[%s0 + $0x320] sm:$0xf]
    %v241 = vld [vmem:[%s0 + $0x324] sm:$0xf]
    %v242 = vld [vmem:[%s0 + $0x328] sm:$0xf]
    %v243 = vld [vmem:[%s0 + $0x32c] sm:$0xf]
    %v244 = vld [vmem:[%s0 + $0x330] sm:$0xf]
    %v245 = vld [vmem:[%s0 + $0x334] sm:$0xf]
    %v246 = vld [vmem:[%s0 + $0x338] sm:$0xf]
    %v247 = vld [vmem:[%s0 + $0x33c] sm:$0xf]
    %v248 = vld [vmem:[%s0 + $0x340] sm:$0xf]
    %v249 = vld [vmem:[%s0 + $0x344] sm:$0xf]
    %v250 = vld [vmem:[%s0 + $0x348] sm:$0xf]
    %v251 = vld [vmem:[%s0 + $0x34c] sm:$0xf]
    %v252 = vld [vmem:[%s0 + $0x350] sm:$0xf]
    %v253 = vld [vmem:[%s0 + $0x354] sm:$0xf]
    %v254 = vld [vmem:[%s0 + $0x358] sm:$0xf]
    %v255 = vld [vmem:[%s0 + $0x35c] sm:$0xf]
    %v256 = vld [vmem:[%s0 + $0x360] sm:$0xf]
    %v257 = vld [vmem:[%s0 + $0x364] sm:$0xf]
    %v258 = vld [vmem:[%s0 + $0x368] sm:$0xf]
    %v259 = vld [vmem:[%s0 + $0x36c] sm:$0xf]
    %v260 = vld [vmem:[%s0 + $0x370] sm:$0xf]
    %v261 = vld [vmem:[%s0 + $0x374] sm:$0xf]
    %v262 = vld [vmem:[%s0 + $0x378] sm:$0xf]
    %v263 = vld [vmem:[%s0 + $0x37c] sm:$0xf]
    %v264 = vld [vmem:[%s0 + $0x380] sm:$0xf]
    %v265 = vld [vmem:[%s0 + $0x384] sm:$0xf]
    %v266 = vld [vmem:[%s0 + $0x388] sm:$0xf]
    %v267 = vld [vmem:[%s0 + $0x38c] sm:$0xf]
    %v268 = vld [vmem:[%s0 + $0x390] sm:$0xf]
    %v269 = vld [vmem:[%s0 + $0x394] sm:$0xf]
    %v270 = vld [vmem:[%s0 + $0x398] sm:$0xf]
    %v271 = vld [vmem:[%s0 + $0x39c] sm:$0xf]
    %v272 = vld [vmem:[%s0 + $0x3a0] sm:$0xf]
    %v273 = vld [vmem:[%s0 + $0x3a4] sm:$0xf]
    %v274 = vld [vmem:[%s0 + $0x3a8] sm:$0xf]
    %v275 = vld [vmem:[%s0 + $0x3ac] sm:$0xf]
    %v276 = vld [vmem:[%s0 + $0x3b0] sm:$0xf]
    %v277 = vld [vmem:[%s0 + $0x3b4] sm:$0xf]
    %v278 = vld [vmem:[%s0 + $0x3b8] sm:$0xf]
    %v279 = vld [vmem:[%s0 + $0x3bc] sm:$0xf]
    %v280 = vld [vmem:[%s0 + $0x3c0] sm:$0xf]
    %v281 = vld [vmem:[%s0 + $0x3c4] sm:$0xf]
    %v282 = vld [vmem:[%s0 + $0x3c8] sm:$0xf]
    %v283 = vld [vmem:[%s0 + $0x3cc] sm:$0xf]
    %v284 = vld [vmem:[%s0 + $0x3d0] sm:$0xf]
    %v285 = vld [vmem:[%s0 + $0x3d4] sm:$0xf]
    %v286 = vld [vmem:[%s0 + $0x3d8] sm:$0xf]
    %v287 = vld [vmem:[%s0 + $0x3dc] sm:$0xf]
    %v288 = vld [vmem:[%s0 + $0x3e0] sm:$0xf]
    %v289 = vld [vmem:[%s0 + $0x3e4] sm:$0xf]
    %v290 = vld [vmem:[%s0 + $0x3e8] sm:$0xf]
    %v291 = vld [vmem:[%s0 + $0x3ec] sm:$0xf]
    %v292 = vld [vmem:[%s0 + $0x3f0] sm:$0xf]
    %v293 = vld [vmem:[%s0 + $0x3f4] sm:$0xf]
    %v294 = vld [vmem:[%s0 + $0x3f8] sm:$0xf]
    %v295 = vld [vmem:[%s0 + $0x3fc] sm:$0xf]
    %v296 = vld [vmem:[%s0 + $0x400] sm:$0xf]
    %v297 = vld [vmem:[%s0 + $0x404] sm:$0xf]
    %v298 = vld [vmem:[%s0 + $0x408] sm:$0xf]
    %v299 = vld [vmem:[%s0 + $0x40c] sm:$0xf]
    %v300 = vld [vmem:[%s0 + $0x410] sm:$0xf]
    %v301 = vld [vmem:[%s0 + $0x414] sm:$0xf]
    %v302 = vld [vmem:[%s0 + $0x418] sm:$0xf]
    %v303 = vld [vmem:[%s0 + $0x41c] sm:$0xf]
    %v304 = vld [vmem:[%s0 + $0x420] sm:$0xf]
    %v305 = vld [vmem:[%s0 + $0x424] sm:$0xf]
    %v306 = vld [vmem:[%s0 + $0x428] sm:$0xf]
    %v307 = vld [vmem:[%s0 + $0x42c] sm:$0xf]
    %v308 = vld [vmem:[%s0 + $0x430] sm:$0xf]
    %v309 = vld [vmem:[%s0 + $0x434] sm:$0xf]
    %v310 = vld [vmem:[%s0 + $0x438] sm:$0xf]
    %v311 = vld [vmem:[%s0 + $0x43c] sm:$0xf]
    %v312 = vld [vmem:[%s0 + $0x440] sm:$0xf]
    %v313 = vld [vmem:[%s0 + $0x444] sm:$0xf]
    %v314 = vld [vmem:[%s0 + $0x448] sm:$0xf]
    %v315 = vld [vmem:[%s0 + $0x44c] sm:$0xf]
    %v316 = vld [vmem:[%s0 + $0x450] sm:$0xf]
    %v317 = vld [vmem:[%s0 + $0x454] sm:$0xf]
    %v318 = vld [vmem:[%s0 + $0x458] sm:$0xf]
    %v319 = vld [vmem:[%s0 + $0x45c] sm:$0xf]
    %v320 = vld [vmem:[%s0 + $0x460] sm:$0xf]
    %v321 = vld [vmem:[%s0 + $0x464] sm:$0xf]
    %v322 = vld [vmem:[%s0 + $0x468] sm:$0xf]
    %v323 = vld [vmem:[%s0 + $0x46c] sm:$0xf]
    %v324 = vld [vmem:[%s0 + $0x470] sm:$0xf]
    %v325 = vld [vmem:[%s0 + $0x474] sm:$0xf]
    %v326 = vld [vmem:[%s0 + $0x478] sm:$0xf]
    %v327 = vld [vmem:[%s0 + $0x47c] sm:$0xf]
    %v328 = vld [vmem:[%s0 + $0x480] sm:$0xf]
    %v329 = vld [vmem:[%s0 + $0x484] sm:$0xf]
    %v330 = vld [vmem:[%s0 + $0x488] sm:$0xf]
    %v331 = vld [vmem:[%s0 + $0x48c] sm:$0xf]
    %v332 = vld [vmem:[%s0 + $0x490] sm:$0xf]
    %v333 = vld [vmem:[%s0 + $0x494] sm:$0xf]
    %v334 = vld [vmem:[%s0 + $0x498] sm:$0xf]
    %v335 = vld [vmem:[%s0 + $0x49c] sm:$0xf]
    %v336 = vld [vmem:[%s0 + $0x4a0] sm:$0xf]
    %v337 = vld [vmem:[%s0 + $0x4a4] sm:$0xf]
    %v338 = vld [vmem:[%s0 + $0x4a8] sm:$0xf]
    %v339 = vld [vmem:[%s0 + $0x4ac] sm:$0xf]
    %v340 = vld [vmem:[%s0 + $0x4b0] sm:$0xf]
    %v341 = vld [vmem:[%s0 + $0x4b4] sm:$0xf]
    %v342 = vld [vmem:[%s0 + $0x4b8] sm:$0xf]
    %v343 = vld [vmem:[%s0 + $0x4bc] sm:$0xf]
    %v344 = vld [vmem:[%s0 + $0x4c0] sm:$0xf]
    %v345 = vld [vmem:[%s0 + $0x4c4] sm:$0xf]
    %v346 = vld [vmem:[%s0 + $0x4c8] sm:$0xf]
    %v347 = vld [vmem:[%s0 + $0x4cc] sm:$0xf]
    %v348 = vld [vmem:[%s0 + $0x4d0] sm:$0xf]
    %v349 = vld [vmem:[%s0 + $0x4d4] sm:$0xf]
    %v350 = vld [vmem:[%s0 + $0x4d8] sm:$0xf]
    %v351 = vld [vmem:[%s0 + $0x4dc] sm:$0xf]
    %v352 = vld [vmem:[%s0 + $0x4e0] sm:$0xf]
    %v353 = vld [vmem:[%s0 + $0x4e4] sm:$0xf]
    %v354 = vld [vmem:[%s0 + $0x4e8] sm:$0xf]
    %v355 = vld [vmem:[%s0 + $0x4ec] sm:$0xf]
    %v356 = vld [vmem:[%s0 + $0x4f0] sm:$0xf]
    %v357 = vld [vmem:[%s0 + $0x4f4] sm:$0xf]
    %v358 = vld [vmem:[%s0 + $0x4f8] sm:$0xf]
    %v359 = vld [vmem:[%s0 + $0x4fc] sm:$0xf]
    %v360 = vld [vmem:[%s0 + $0x500] sm:$0xf]
    %v361 = vld [vmem:[%s0 + $0x504] sm:$0xf]
    %v362 = vld [vmem:[%s0 + $0x508] sm:$0xf]
    %v363 = vld [vmem:[%s0 + $0x50c] sm:$0xf]
    %v364 = vld [vmem:[%s0 + $0x510] sm:$0xf]
    %v365 = vld [vmem:[%s0 + $0x514] sm:$0xf]
    %v366 = vld [vmem:[%s0 + $0x518] sm:$0xf]
    %v367 = vld [vmem:[%s0 + $0x51c] sm:$0xf]
    %v368 = vld [vmem:[%s0 + $0x520] sm:$0xf]
    %v369 = vld [vmem:[%s0 + $0x524] sm:$0xf]
    %v370 = vld [vmem:[%s0 + $0x528] sm:$0xf]
    %v371 = vld [vmem:[%s0 + $0x52c] sm:$0xf]
    %v372 = vld [vmem:[%s0 + $0x530] sm:$0xf]
    %v373 = vld [vmem:[%s0 + $0x534] sm:$0xf]
    %v374 = vld [vmem:[%s0 + $0x538] sm:$0xf]
    %v375 = vld [vmem:[%s0 + $0x53c] sm:$0xf]
    %v376 = vld [vmem:[%s0 + $0x540] sm:$0xf]
    %v377 = vld [vmem:[%s0 + $0x544] sm:$0xf]
    %v378 = vld [vmem:[%s0 + $0x548] sm:$0xf]
    %v379 = vld [vmem:[%s0 + $0x54c] sm:$0xf]
    %v380 = vld [vmem:[%s0 + $0x550] sm:$0xf]
    %v381 = vld [vmem:[%s0 + $0x554] sm:$0xf]
    %v382 = vld [vmem:[%s0 + $0x558] sm:$0xf]
    %v383 = vld [vmem:[%s0 + $0x55c] sm:$0xf]
    %v384 = vld [vmem:[%s0 + $0x560] sm:$0xf]
    %v385 = vld [vmem:[%s0 + $0x564] sm:$0xf]
    %v386 = vld [vmem:[%s0 + $0x568] sm:$0xf]
    %v387 = vld [vmem:[%s0 + $0x56c] sm:$0xf]
    %v388 = vld [vmem:[%s0 + $0x570] sm:$0xf]
    %v389 = vld [vmem:[%s0 + $0x574] sm:$0xf]
    %v390 = vld [vmem:[%s0 + $0x578] sm:$0xf]
    %v391 = vld [vmem:[%s0 + $0x57c] sm:$0xf]
    %v392 = vld [vmem:[%s0 + $0x580] sm:$0xf]
    %v393 = vld [vmem:[%s0 + $0x584] sm:$0xf]
    %v394 = vld [vmem:[%s0 + $0x588] sm:$0xf]
    %v395 = vld [vmem:[%s0 + $0x58c] sm:$0xf]
    %v396 = vld [vmem:[%s0 + $0x590] sm:$0xf]
    %v397 = vld [vmem:[%s0 + $0x594] sm:$0xf]
    %v398 = vld [vmem:[%s0 + $0x598] sm:$0xf]
    %v399 = vld [vmem:[%s0 + $0x59c] sm:$0xf]
    %v400 = vld [vmem:[%s0 + $0x5a0] sm:$0xf]
    %v401 = vld [vmem:[%s0 + $0x5a4] sm:$0xf]
    %v402 = vld [vmem:[%s0 + $0x5a8] sm:$0xf]
    %v403 = vld [vmem:[%s0 + $0x5ac] sm:$0xf]
    %v404 = vld [vmem:[%s0 + $0x5b0] sm:$0xf]
    %v405 = vld [vmem:[%s0 + $0x5b4] sm:$0xf]
    %v406 = vld [vmem:[%s0 + $0x5b8] sm:$0xf]
    %v407 = vld [vmem:[%s0 + $0x5bc] sm:$0xf]
    %v408 = vld [vmem:[%s0 + $0x5c0] sm:$0xf]
    %v409 = vld [vmem:[%s0 + $0x5c4] sm:$0xf]
    %v410 = vld [vmem:[%s0 + $0x5c8] sm:$0xf]
    %v411 = vld [vmem:[%s0 + $0x5cc] sm:$0xf]
    %v412 = vld [vmem:[%s0 + $0x5d0] sm:$0xf]
    %v413 = vld [vmem:[%s0 + $0x5d4] sm:$0xf]
    %v414 = vld [vmem:[%s0 + $0x5d8] sm:$0xf]
    %v415 = vld [vmem:[%s0 + $0x5dc] sm:$0xf]
    %v416 = vld [vmem:[%s0 + $0x5e0] sm:$0xf]
    %v417 = vld [vmem:[%s0 + $0x5e4] sm:$0xf]
    %v418 = vld [vmem:[%s0 + $0x5e8] sm:$0xf]
    %v419 = vld [vmem:[%s0 + $0x5ec] sm:$0xf]
    %v420 = vld [vmem:[%s0 + $0x5f0] sm:$0xf]
    %v421 = vld [vmem:[%s0 + $0x5f4] sm:$0xf]
    %v422 = vld [vmem:[%s0 + $0x5f8] sm:$0xf]
    %v423 = vld [vmem:[%s0 + $0x5fc] sm:$0xf]
    %v424 = vld [vmem:[%s0 + $0x600] sm:$0xf]
    %v425 = vld [vmem:[%s0 + $0x604] sm:$0xf]
    %v426 = vld [vmem:[%s0 + $0x608] sm:$0xf]
    %v427 = vld [vmem:[%s0 + $0x60c] sm:$0xf]
    %v428 = vld [vmem:[%s0 + $0x610] sm:$0xf]
    %v429 = vld [vmem:[%s0 + $0x614] sm:$0xf]
    %v430 = vld [vmem:[%s0 + $0x618] sm:$0xf]
    %v431 = vld [vmem:[%s0 + $0x61c] sm:$0xf]
    %v432 = vld [vmem:[%s0 + $0x620] sm:$0xf]
    %v433 = vld [vmem:[%s0 + $0x624] sm:$0xf]
    %v434 = vld [vmem:[%s0 + $0x628] sm:$0xf]
    %v435 = vld [vmem:[%s0 + $0x62c] sm:$0xf]
    %v436 = vld [vmem:[%s0 + $0x630] sm:$0xf]
    %v437 = vld [vmem:[%s0 + $0x634] sm:$0xf]
    %v438 = vld [vmem:[%s0 + $0x638] sm:$0xf]
    %v439 = vld [vmem:[%s0 + $0x63c] sm:$0xf]
    %v440 = vld [vmem:[%s0 + $0x640] sm:$0xf]
    %v441 = vld [vmem:[%s0 + $0x644] sm:$0xf]
    %v442 = vld [vmem:[%s0 + $0x648] sm:$0xf]
    %v443 = vld [vmem:[%s0 + $0x64c] sm:$0xf]
    %v444 = vld [vmem:[%s0 + $0x650] sm:$0xf]
    %v445 = vld [vmem:[%s0 + $0x654] sm:$0xf]
    %v446 = vld [vmem:[%s0 + $0x658] sm:$0xf]
    %v447 = vld [vmem:[%s0 + $0x65c] sm:$0xf]
    %v448 = vld [vmem:[%s0 + $0x660] sm:$0xf]
    %v449 = vld [vmem:[%s0 + $0x664] sm:$0xf]
    %v450 = vld [vmem:[%s0 + $0x668] sm:$0xf]
    %v451 = vld [vmem:[%s0 + $0x66c] sm:$0xf]
    %v452 = vld [vmem:[%s0 + $0x670] sm:$0xf]
    %v453 = vld [vmem:[%s0 + $0x674] sm:$0xf]
    %v454 = vld [vmem:[%s0 + $0x678] sm:$0xf]
    %v455 = vld [vmem:[%s0 + $0x67c] sm:$0xf]
    %v456 = vld [vmem:[%s0 + $0x680] sm:$0xf]
    %v457 = vld [vmem:[%s0 + $0x684] sm:$0xf]
    %v458 = vld [vmem:[%s0 + $0x688] sm:$0xf]
    %v459 = vld [vmem:[%s0 + $0x68c] sm:$0xf]
    %v460 = vld [vmem:[%s0 + $0x690] sm:$0xf]
    %v461 = vld [vmem:[%s0 + $0x694] sm:$0xf]
    %v462 = vld [vmem:[%s0 + $0x698] sm:$0xf]
    %v463 = vld [vmem:[%s0 + $0x69c] sm:$0xf]
    %v464 = vld [vmem:[%s0 + $0x6a0] sm:$0xf]
    %v465 = vld [vmem:[%s0 + $0x6a4] sm:$0xf]
    %v466 = vld [vmem:[%s0 + $0x6a8] sm:$0xf]
    %v467 = vld [vmem:[%s0 + $0x6ac] sm:$0xf]
    %v468 = vld [vmem:[%s0 + $0x6b0] sm:$0xf]
    %v469 = vld [vmem:[%s0 + $0x6b4] sm:$0xf]
    %v470 = vld [vmem:[%s0 + $0x6b8] sm:$0xf]
    %v471 = vld [vmem:[%s0 + $0x6bc] sm:$0xf]
    %v472 = vld [vmem:[%s0 + $0x6c0] sm:$0xf]
    %v473 = vld [vmem:[%s0 + $0x6c4] sm:$0xf]
    %v474 = vld [vmem:[%s0 + $0x6c8] sm:$0xf]
    %v475 = vld [vmem:[%s0 + $0x6cc] sm:$0xf]
    %v476 = vld [vmem:[%s0 + $0x6d0] sm:$0xf]
    %v477 = vld [vmem:[%s0 + $0x6d4] sm:$0xf]
    %v478 = vld [vmem:[%s0 + $0x6d8] sm:$0xf]
    %v479 = vld [vmem:[%s0 + $0x6dc] sm:$0xf]
    %v480 = vld [vmem:[%s0 + $0x6e0] sm:$0xf]
    %v481 = vld [vmem:[%s0 + $0x6e4] sm:$0xf]
    %v482 = vld [vmem:[%s0 + $0x6e8] sm:$0xf]
    %v483 = vld [vmem:[%s0 + $0x6ec] sm:$0xf]
    %v484 = vld [vmem:[%s0 + $0x6f0] sm:$0xf]
    %v485 = vld [vmem:[%s0 + $0x6f4] sm:$0xf]
    %v486 = vld [vmem:[%s0 + $0x6f8] sm:$0xf]
    %v487 = vld [vmem:[%s0 + $0x6fc] sm:$0xf]
    %v488 = vld [vmem:[%s0 + $0x700] sm:$0xf]
    %v489 = vld [vmem:[%s0 + $0x704] sm:$0xf]
    %v490 = vld [vmem:[%s0 + $0x708] sm:$0xf]
    %v491 = vld [vmem:[%s0 + $0x70c] sm:$0xf]
    %v492 = vld [vmem:[%s0 + $0x710] sm:$0xf]
    %v493 = vld [vmem:[%s0 + $0x714] sm:$0xf]
    %v494 = vld [vmem:[%s0 + $0x718] sm:$0xf]
    %v495 = vld [vmem:[%s0 + $0x71c] sm:$0xf]
    %v496 = vld [vmem:[%s0 + $0x720] sm:$0xf]
    %v497 = vld [vmem:[%s0 + $0x724] sm:$0xf]
    %v498 = vld [vmem:[%s0 + $0x728] sm:$0xf]
    %v499 = vld [vmem:[%s0 + $0x72c] sm:$0xf]
    %v500 = vld [vmem:[%s0 + $0x730] sm:$0xf]
    %v501 = vld [vmem:[%s0 + $0x734] sm:$0xf]
    %v502 = vld [vmem:[%s0 + $0x738] sm:$0xf]
    %v503 = vld [vmem:[%s0 + $0x73c] sm:$0xf]
    %v504 = vld [vmem:[%s0 + $0x740] sm:$0xf]
    %v505 = vld [vmem:[%s0 + $0x744] sm:$0xf]
    %v506 = vld [vmem:[%s0 + $0x748] sm:$0xf]
    %v507 = vld [vmem:[%s0 + $0x74c] sm:$0xf]
    %v508 = vld [vmem:[%s0 + $0x750] sm:$0xf]
    %v509 = vld [vmem:[%s0 + $0x754] sm:$0xf]
    %v510 = vld [vmem:[%s0 + $0x758] sm:$0xf]
    %v511 = vld [vmem:[%s0 + $0x75c] sm:$0xf]
    %v512 = vld [vmem:[%s0 + $0x760] sm:$0xf]
    %v513 = vld [vmem:[%s0 + $0x764] sm:$0xf]
    %v514 = vld [vmem:[%s0 + $0x768] sm:$0xf]
    %v515 = vld [vmem:[%s0 + $0x76c] sm:$0xf]
    %v516 = vld [vmem:[%s0 + $0x770] sm:$0xf]
    %v517 = vld [vmem:[%s0 + $0x774] sm:$0xf]
    %v518 = vld [vmem:[%s0 + $0x778] sm:$0xf]
    %v519 = vld [vmem:[%s0 + $0x77c] sm:$0xf]
    %v520 = vld [vmem:[%s0 + $0x780] sm:$0xf]
    %v521 = vld [vmem:[%s0 + $0x784] sm:$0xf]
    %v522 = vld [vmem:[%s0 + $0x788] sm:$0xf]
    %v523 = vld [vmem:[%s0 + $0x78c] sm:$0xf]
    %v524 = vld [vmem:[%s0 + $0x790] sm:$0xf]
    %v525 = vld [vmem:[%s0 + $0x794] sm:$0xf]
    %v526 = vld [vmem:[%s0 + $0x798] sm:$0xf]
    %v527 = vld [vmem:[%s0 + $0x79c] sm:$0xf]
    %v528 = vld [vmem:[%s0 + $0x7a0] sm:$0xf]
    %v529 = vld [vmem:[%s0 + $0x7a4] sm:$0xf]
    %v530 = vld [vmem:[%s0 + $0x7a8] sm:$0xf]
    %v531 = vld [vmem:[%s0 + $0x7ac] sm:$0xf]
    %v532 = vld [vmem:[%s0 + $0x7b0] sm:$0xf]
    %v533 = vld [vmem:[%s0 + $0x7b4] sm:$0xf]
    %v534 = vld [vmem:[%s0 + $0x7b8] sm:$0xf]
    %v535 = vld [vmem:[%s0 + $0x7bc] sm:$0xf]
    %v536 = vld [vmem:[%s0 + $0x7c0] sm:$0xf]
    %v537 = vld [vmem:[%s0 + $0x7c4] sm:$0xf]
    %v538 = vld [vmem:[%s0 + $0x7c8] sm:$0xf]
    %v539 = vld [vmem:[%s0 + $0x7cc] sm:$0xf]
    %v540 = vld [vmem:[%s0 + $0x7d0] sm:$0xf]
    %v541 = vld [vmem:[%s0 + $0x7d4] sm:$0xf]
    %v542 = vld [vmem:[%s0 + $0x7d8] sm:$0xf]
    %v543 = vld [vmem:[%s0 + $0x7dc] sm:$0xf]
    %v544 = vld [vmem:[%s0 + $0x7e0] sm:$0xf]
    %v545 = vld [vmem:[%s0 + $0x7e4] sm:$0xf]
    %v546 = vld [vmem:[%s0 + $0x7e8] sm:$0xf]
    %v547 = vld [vmem:[%s0 + $0x7ec] sm:$0xf]
    %v548 = vld [vmem:[%s0 + $0x7f0] sm:$0xf]
    %v549 = vld [vmem:[%s0 + $0x7f4] sm:$0xf]
    %v550 = vld [vmem:[%s0 + $0x7f8] sm:$0xf]
    %v551 = vld [vmem:[%s0 + $0x7fc] sm:$0xf]
    %v552 = vld [vmem:[%s1] sm:$0xf]
    %v553 = vld [vmem:[%s1 + $0x4] sm:$0xf]
    %v554 = vld [vmem:[%s1 + $0x8] sm:$0xf]
    %v555 = vld [vmem:[%s1 + $0xc] sm:$0x3]
    %v556 = vld [vmem:[%s2] sm:$0x1]
    %v558 = vlaneseq
    %v559 = vshrl.u32 %v558, 7
    %v560 = vsub.s32 0, %v559
    %v561 = vrot.slane %v556, %v560
    %v1075 = vunpack.c.l.b16 %v40
    %v1076 = vunpack.c.l.b16 %v41
    %v1077 = vunpack.c.l.b16 %v42
    %v1078 = vunpack.c.l.b16 %v43
    %v1079 = vunpack.c.l.b16 %v44
    %v1080 = vunpack.c.l.b16 %v45
    %v1081 = vunpack.c.l.b16 %v46
    %v1082 = vunpack.c.l.b16 %v47
    %v1083 = vunpack.c.l.b16 %v48
    %v1084 = vunpack.c.l.b16 %v49
    %v1085 = vunpack.c.l.b16 %v50
    %v1086 = vunpack.c.l.b16 %v51
    %v1087 = vunpack.c.l.b16 %v52
    %v1088 = vunpack.c.l.b16 %v53
    %v1089 = vunpack.c.l.b16 %v54
    %v1090 = vunpack.c.l.b16 %v55
    %v1091 = vunpack.c.l.b16 %v56
    %v1092 = vunpack.c.l.b16 %v57
    %v1093 = vunpack.c.l.b16 %v58
    %v1094 = vunpack.c.l.b16 %v59
    %v1095 = vunpack.c.l.b16 %v60
    %v1096 = vunpack.c.l.b16 %v61
    %v1097 = vunpack.c.l.b16 %v62
    %v1098 = vunpack.c.l.b16 %v63
    %v1099 = vunpack.c.l.b16 %v64
    %v1100 = vunpack.c.l.b16 %v65
    %v1101 = vunpack.c.l.b16 %v66
    %v1102 = vunpack.c.l.b16 %v67
    %v1103 = vunpack.c.l.b16 %v68
    %v1104 = vunpack.c.l.b16 %v69
    %v1105 = vunpack.c.l.b16 %v70
    %v1106 = vunpack.c.l.b16 %v71
    %v1107 = vunpack.c.l.b16 %v72
    %v1108 = vunpack.c.l.b16 %v73
    %v1109 = vunpack.c.l.b16 %v74
    %v1110 = vunpack.c.l.b16 %v75
    %v1111 = vunpack.c.l.b16 %v76
    %v1112 = vunpack.c.l.b16 %v77
    %v1113 = vunpack.c.l.b16 %v78
    %v1114 = vunpack.c.l.b16 %v79
    %v1115 = vunpack.c.l.b16 %v80
    %v1116 = vunpack.c.l.b16 %v81
    %v1117 = vunpack.c.l.b16 %v82
    %v1118 = vunpack.c.l.b16 %v83
    %v1119 = vunpack.c.l.b16 %v84
    %v1120 = vunpack.c.l.b16 %v85
    %v1121 = vunpack.c.l.b16 %v86
    %v1122 = vunpack.c.l.b16 %v87
    %v1123 = vunpack.c.l.b16 %v88
    %v1124 = vunpack.c.l.b16 %v89
    %v1125 = vunpack.c.l.b16 %v90
    %v1126 = vunpack.c.l.b16 %v91
    %v1127 = vunpack.c.l.b16 %v92
    %v1128 = vunpack.c.l.b16 %v93
    %v1129 = vunpack.c.l.b16 %v94
    %v1130 = vunpack.c.l.b16 %v95
    %v1131 = vunpack.c.l.b16 %v96
    %v1132 = vunpack.c.l.b16 %v97
    %v1133 = vunpack.c.l.b16 %v98
    %v1134 = vunpack.c.l.b16 %v99
    %v1135 = vunpack.c.l.b16 %v100
    %v1136 = vunpack.c.l.b16 %v101
    %v1137 = vunpack.c.l.b16 %v102
    %v1138 = vunpack.c.l.b16 %v103
    %v1139 = vunpack.c.l.b16 %v104
    %v1140 = vunpack.c.l.b16 %v105
    %v1141 = vunpack.c.l.b16 %v106
    %v1142 = vunpack.c.l.b16 %v107
    %v1143 = vunpack.c.l.b16 %v108
    %v1144 = vunpack.c.l.b16 %v109
    %v1145 = vunpack.c.l.b16 %v110
    %v1146 = vunpack.c.l.b16 %v111
    %v1147 = vunpack.c.l.b16 %v112
    %v1148 = vunpack.c.l.b16 %v113
    %v1149 = vunpack.c.l.b16 %v114
    %v1150 = vunpack.c.l.b16 %v115
    %v1151 = vunpack.c.l.b16 %v116
    %v1152 = vunpack.c.l.b16 %v117
    %v1153 = vunpack.c.l.b16 %v118
    %v1154 = vunpack.c.l.b16 %v119
    %v1155 = vunpack.c.l.b16 %v120
    %v1156 = vunpack.c.l.b16 %v121
    %v1157 = vunpack.c.l.b16 %v122
    %v1158 = vunpack.c.l.b16 %v123
    %v1159 = vunpack.c.l.b16 %v124
    %v1160 = vunpack.c.l.b16 %v125
    %v1161 = vunpack.c.l.b16 %v126
    %v1162 = vunpack.c.l.b16 %v127
    %v1163 = vunpack.c.l.b16 %v128
    %v1164 = vunpack.c.l.b16 %v129
    %v1165 = vunpack.c.l.b16 %v130
    %v1166 = vunpack.c.l.b16 %v131
    %v1167 = vunpack.c.l.b16 %v132
    %v1168 = vunpack.c.l.b16 %v133
    %v1169 = vunpack.c.l.b16 %v134
    %v1170 = vunpack.c.l.b16 %v135
    %v1171 = vunpack.c.l.b16 %v136
    %v1172 = vunpack.c.l.b16 %v137
    %v1173 = vunpack.c.l.b16 %v138
    %v1174 = vunpack.c.l.b16 %v139
    %v1175 = vunpack.c.l.b16 %v140
    %v1176 = vunpack.c.l.b16 %v141
    %v1177 = vunpack.c.l.b16 %v142
    %v1178 = vunpack.c.l.b16 %v143
    %v1179 = vunpack.c.l.b16 %v144
    %v1180 = vunpack.c.l.b16 %v145
    %v1181 = vunpack.c.l.b16 %v146
    %v1182 = vunpack.c.l.b16 %v147
    %v1183 = vunpack.c.l.b16 %v148
    %v1184 = vunpack.c.l.b16 %v149
    %v1185 = vunpack.c.l.b16 %v150
    %v1186 = vunpack.c.l.b16 %v151
    %v1187 = vunpack.c.l.b16 %v152
    %v1188 = vunpack.c.l.b16 %v153
    %v1189 = vunpack.c.l.b16 %v154
    %v1190 = vunpack.c.l.b16 %v155
    %v1191 = vunpack.c.l.b16 %v156
    %v1192 = vunpack.c.l.b16 %v157
    %v1193 = vunpack.c.l.b16 %v158
    %v1194 = vunpack.c.l.b16 %v159
    %v1195 = vunpack.c.l.b16 %v160
    %v1196 = vunpack.c.l.b16 %v161
    %v1197 = vunpack.c.l.b16 %v162
    %v1198 = vunpack.c.l.b16 %v163
    %v1199 = vunpack.c.l.b16 %v164
    %v1200 = vunpack.c.l.b16 %v165
    %v1201 = vunpack.c.l.b16 %v166
    %v1202 = vunpack.c.l.b16 %v167
    %v1203 = vunpack.c.l.b16 %v168
    %v1204 = vunpack.c.l.b16 %v169
    %v1205 = vunpack.c.l.b16 %v170
    %v1206 = vunpack.c.l.b16 %v171
    %v1207 = vunpack.c.l.b16 %v172
    %v1208 = vunpack.c.l.b16 %v173
    %v1209 = vunpack.c.l.b16 %v174
    %v1210 = vunpack.c.l.b16 %v175
    %v1211 = vunpack.c.l.b16 %v176
    %v1212 = vunpack.c.l.b16 %v177
    %v1213 = vunpack.c.l.b16 %v178
    %v1214 = vunpack.c.l.b16 %v179
    %v1215 = vunpack.c.l.b16 %v180
    %v1216 = vunpack.c.l.b16 %v181
    %v1217 = vunpack.c.l.b16 %v182
    %v1218 = vunpack.c.l.b16 %v183
    %v1219 = vunpack.c.l.b16 %v184
    %v1220 = vunpack.c.l.b16 %v185
    %v1221 = vunpack.c.l.b16 %v186
    %v1222 = vunpack.c.l.b16 %v187
    %v1223 = vunpack.c.l.b16 %v188
    %v1224 = vunpack.c.l.b16 %v189
    %v1225 = vunpack.c.l.b16 %v190
    %v1226 = vunpack.c.l.b16 %v191
    %v1227 = vunpack.c.l.b16 %v192
    %v1228 = vunpack.c.l.b16 %v193
    %v1229 = vunpack.c.l.b16 %v194
    %v1230 = vunpack.c.l.b16 %v195
    %v1231 = vunpack.c.l.b16 %v196
    %v1232 = vunpack.c.l.b16 %v197
    %v1233 = vunpack.c.l.b16 %v198
    %v1234 = vunpack.c.l.b16 %v199
    %v1235 = vunpack.c.l.b16 %v200
    %v1236 = vunpack.c.l.b16 %v201
    %v1237 = vunpack.c.l.b16 %v202
    %v1238 = vunpack.c.l.b16 %v203
    %v1239 = vunpack.c.l.b16 %v204
    %v1240 = vunpack.c.l.b16 %v205
    %v1241 = vunpack.c.l.b16 %v206
    %v1242 = vunpack.c.l.b16 %v207
    %v1243 = vunpack.c.l.b16 %v208
    %v1244 = vunpack.c.l.b16 %v209
    %v1245 = vunpack.c.l.b16 %v210
    %v1246 = vunpack.c.l.b16 %v211
    %v1247 = vunpack.c.l.b16 %v212
    %v1248 = vunpack.c.l.b16 %v213
    %v1249 = vunpack.c.l.b16 %v214
    %v1250 = vunpack.c.l.b16 %v215
    %v1251 = vunpack.c.l.b16 %v216
    %v1252 = vunpack.c.l.b16 %v217
    %v1253 = vunpack.c.l.b16 %v218
    %v1254 = vunpack.c.l.b16 %v219
    %v1255 = vunpack.c.l.b16 %v220
    %v1256 = vunpack.c.l.b16 %v221
    %v1257 = vunpack.c.l.b16 %v222
    %v1258 = vunpack.c.l.b16 %v223
    %v1259 = vunpack.c.l.b16 %v224
    %v1260 = vunpack.c.l.b16 %v225
    %v1261 = vunpack.c.l.b16 %v226
    %v1262 = vunpack.c.l.b16 %v227
    %v1263 = vunpack.c.l.b16 %v228
    %v1264 = vunpack.c.l.b16 %v229
    %v1265 = vunpack.c.l.b16 %v230
    %v1266 = vunpack.c.l.b16 %v231
    %v1267 = vunpack.c.l.b16 %v232
    %v1268 = vunpack.c.l.b16 %v233
    %v1269 = vunpack.c.l.b16 %v234
    %v1270 = vunpack.c.l.b16 %v235
    %v1271 = vunpack.c.l.b16 %v236
    %v1272 = vunpack.c.l.b16 %v237
    %v1273 = vunpack.c.l.b16 %v238
    %v1274 = vunpack.c.l.b16 %v239
    %v1275 = vunpack.c.l.b16 %v240
    %v1276 = vunpack.c.l.b16 %v241
    %v1277 = vunpack.c.l.b16 %v242
    %v1278 = vunpack.c.l.b16 %v243
    %v1279 = vunpack.c.l.b16 %v244
    %v1280 = vunpack.c.l.b16 %v245
    %v1281 = vunpack.c.l.b16 %v246
    %v1282 = vunpack.c.l.b16 %v247
    %v1283 = vunpack.c.l.b16 %v248
    %v1284 = vunpack.c.l.b16 %v249
    %v1285 = vunpack.c.l.b16 %v250
    %v1286 = vunpack.c.l.b16 %v251
    %v1287 = vunpack.c.l.b16 %v252
    %v1288 = vunpack.c.l.b16 %v253
    %v1289 = vunpack.c.l.b16 %v254
    %v1290 = vunpack.c.l.b16 %v255
    %v1291 = vunpack.c.l.b16 %v256
    %v1292 = vunpack.c.l.b16 %v257
    %v1293 = vunpack.c.l.b16 %v258
    %v1294 = vunpack.c.l.b16 %v259
    %v1295 = vunpack.c.l.b16 %v260
    %v1296 = vunpack.c.l.b16 %v261
    %v1297 = vunpack.c.l.b16 %v262
    %v1298 = vunpack.c.l.b16 %v263
    %v1299 = vunpack.c.l.b16 %v264
    %v1300 = vunpack.c.l.b16 %v265
    %v1301 = vunpack.c.l.b16 %v266
    %v1302 = vunpack.c.l.b16 %v267
    %v1303 = vunpack.c.l.b16 %v268
    %v1304 = vunpack.c.l.b16 %v269
    %v1305 = vunpack.c.l.b16 %v270
    %v1306 = vunpack.c.l.b16 %v271
    %v1307 = vunpack.c.l.b16 %v272
    %v1308 = vunpack.c.l.b16 %v273
    %v1309 = vunpack.c.l.b16 %v274
    %v1310 = vunpack.c.l.b16 %v275
    %v1311 = vunpack.c.l.b16 %v276
    %v1312 = vunpack.c.l.b16 %v277
    %v1313 = vunpack.c.l.b16 %v278
    %v1314 = vunpack.c.l.b16 %v279
    %v1315 = vunpack.c.l.b16 %v280
    %v1316 = vunpack.c.l.b16 %v281
    %v1317 = vunpack.c.l.b16 %v282
    %v1318 = vunpack.c.l.b16 %v283
    %v1319 = vunpack.c.l.b16 %v284
    %v1320 = vunpack.c.l.b16 %v285
    %v1321 = vunpack.c.l.b16 %v286
    %v1322 = vunpack.c.l.b16 %v287
    %v1323 = vunpack.c.l.b16 %v288
    %v1324 = vunpack.c.l.b16 %v289
    %v1325 = vunpack.c.l.b16 %v290
    %v1326 = vunpack.c.l.b16 %v291
    %v1327 = vunpack.c.l.b16 %v292
    %v1328 = vunpack.c.l.b16 %v293
    %v1329 = vunpack.c.l.b16 %v294
    %v1330 = vunpack.c.l.b16 %v295
    %v1331 = vunpack.c.l.b16 %v296
    %v1332 = vunpack.c.l.b16 %v297
    %v1333 = vunpack.c.l.b16 %v298
    %v1334 = vunpack.c.l.b16 %v299
    %v1335 = vunpack.c.l.b16 %v300
    %v1336 = vunpack.c.l.b16 %v301
    %v1337 = vunpack.c.l.b16 %v302
    %v1338 = vunpack.c.l.b16 %v303
    %v1339 = vunpack.c.l.b16 %v304
    %v1340 = vunpack.c.l.b16 %v305
    %v1341 = vunpack.c.l.b16 %v306
    %v1342 = vunpack.c.l.b16 %v307
    %v1343 = vunpack.c.l.b16 %v308
    %v1344 = vunpack.c.l.b16 %v309
    %v1345 = vunpack.c.l.b16 %v310
    %v1346 = vunpack.c.l.b16 %v311
    %v1347 = vunpack.c.l.b16 %v312
    %v1348 = vunpack.c.l.b16 %v313
    %v1349 = vunpack.c.l.b16 %v314
    %v1350 = vunpack.c.l.b16 %v315
    %v1351 = vunpack.c.l.b16 %v316
    %v1352 = vunpack.c.l.b16 %v317
    %v1353 = vunpack.c.l.b16 %v318
    %v1354 = vunpack.c.l.b16 %v319
    %v1355 = vunpack.c.l.b16 %v320
    %v1356 = vunpack.c.l.b16 %v321
    %v1357 = vunpack.c.l.b16 %v322
    %v1358 = vunpack.c.l.b16 %v323
    %v1359 = vunpack.c.l.b16 %v324
    %v1360 = vunpack.c.l.b16 %v325
    %v1361 = vunpack.c.l.b16 %v326
    %v1362 = vunpack.c.l.b16 %v327
    %v1363 = vunpack.c.l.b16 %v328
    %v1364 = vunpack.c.l.b16 %v329
    %v1365 = vunpack.c.l.b16 %v330
    %v1366 = vunpack.c.l.b16 %v331
    %v1367 = vunpack.c.l.b16 %v332
    %v1368 = vunpack.c.l.b16 %v333
    %v1369 = vunpack.c.l.b16 %v334
    %v1370 = vunpack.c.l.b16 %v335
    %v1371 = vunpack.c.l.b16 %v336
    %v1372 = vunpack.c.l.b16 %v337
    %v1373 = vunpack.c.l.b16 %v338
    %v1374 = vunpack.c.l.b16 %v339
    %v1375 = vunpack.c.l.b16 %v340
    %v1376 = vunpack.c.l.b16 %v341
    %v1377 = vunpack.c.l.b16 %v342
    %v1378 = vunpack.c.l.b16 %v343
    %v1379 = vunpack.c.l.b16 %v344
    %v1380 = vunpack.c.l.b16 %v345
    %v1381 = vunpack.c.l.b16 %v346
    %v1382 = vunpack.c.l.b16 %v347
    %v1383 = vunpack.c.l.b16 %v348
    %v1384 = vunpack.c.l.b16 %v349
    %v1385 = vunpack.c.l.b16 %v350
    %v1386 = vunpack.c.l.b16 %v351
    %v1387 = vunpack.c.l.b16 %v352
    %v1388 = vunpack.c.l.b16 %v353
    %v1389 = vunpack.c.l.b16 %v354
    %v1390 = vunpack.c.l.b16 %v355
    %v1391 = vunpack.c.l.b16 %v356
    %v1392 = vunpack.c.l.b16 %v357
    %v1393 = vunpack.c.l.b16 %v358
    %v1394 = vunpack.c.l.b16 %v359
    %v1395 = vunpack.c.l.b16 %v360
    %v1396 = vunpack.c.l.b16 %v361
    %v1397 = vunpack.c.l.b16 %v362
    %v1398 = vunpack.c.l.b16 %v363
    %v1399 = vunpack.c.l.b16 %v364
    %v1400 = vunpack.c.l.b16 %v365
    %v1401 = vunpack.c.l.b16 %v366
    %v1402 = vunpack.c.l.b16 %v367
    %v1403 = vunpack.c.l.b16 %v368
    %v1404 = vunpack.c.l.b16 %v369
    %v1405 = vunpack.c.l.b16 %v370
    %v1406 = vunpack.c.l.b16 %v371
    %v1407 = vunpack.c.l.b16 %v372
    %v1408 = vunpack.c.l.b16 %v373
    %v1409 = vunpack.c.l.b16 %v374
    %v1410 = vunpack.c.l.b16 %v375
    %v1411 = vunpack.c.l.b16 %v376
    %v1412 = vunpack.c.l.b16 %v377
    %v1413 = vunpack.c.l.b16 %v378
    %v1414 = vunpack.c.l.b16 %v379
    %v1415 = vunpack.c.l.b16 %v380
    %v1416 = vunpack.c.l.b16 %v381
    %v1417 = vunpack.c.l.b16 %v382
    %v1418 = vunpack.c.l.b16 %v383
    %v1419 = vunpack.c.l.b16 %v384
    %v1420 = vunpack.c.l.b16 %v385
    %v1421 = vunpack.c.l.b16 %v386
    %v1422 = vunpack.c.l.b16 %v387
    %v1423 = vunpack.c.l.b16 %v388
    %v1424 = vunpack.c.l.b16 %v389
    %v1425 = vunpack.c.l.b16 %v390
    %v1426 = vunpack.c.l.b16 %v391
    %v1427 = vunpack.c.l.b16 %v392
    %v1428 = vunpack.c.l.b16 %v393
    %v1429 = vunpack.c.l.b16 %v394
    %v1430 = vunpack.c.l.b16 %v395
    %v1431 = vunpack.c.l.b16 %v396
    %v1432 = vunpack.c.l.b16 %v397
    %v1433 = vunpack.c.l.b16 %v398
    %v1434 = vunpack.c.l.b16 %v399
    %v1435 = vunpack.c.l.b16 %v400
    %v1436 = vunpack.c.l.b16 %v401
    %v1437 = vunpack.c.l.b16 %v402
    %v1438 = vunpack.c.l.b16 %v403
    %v1439 = vunpack.c.l.b16 %v404
    %v1440 = vunpack.c.l.b16 %v405
    %v1441 = vunpack.c.l.b16 %v406
    %v1442 = vunpack.c.l.b16 %v407
    %v1443 = vunpack.c.l.b16 %v408
    %v1444 = vunpack.c.l.b16 %v409
    %v1445 = vunpack.c.l.b16 %v410
    %v1446 = vunpack.c.l.b16 %v411
    %v1447 = vunpack.c.l.b16 %v412
    %v1448 = vunpack.c.l.b16 %v413
    %v1449 = vunpack.c.l.b16 %v414
    %v1450 = vunpack.c.l.b16 %v415
    %v1451 = vunpack.c.l.b16 %v416
    %v1452 = vunpack.c.l.b16 %v417
    %v1453 = vunpack.c.l.b16 %v418
    %v1454 = vunpack.c.l.b16 %v419
    %v1455 = vunpack.c.l.b16 %v420
    %v1456 = vunpack.c.l.b16 %v421
    %v1457 = vunpack.c.l.b16 %v422
    %v1458 = vunpack.c.l.b16 %v423
    %v1459 = vunpack.c.l.b16 %v424
    %v1460 = vunpack.c.l.b16 %v425
    %v1461 = vunpack.c.l.b16 %v426
    %v1462 = vunpack.c.l.b16 %v427
    %v1463 = vunpack.c.l.b16 %v428
    %v1464 = vunpack.c.l.b16 %v429
    %v1465 = vunpack.c.l.b16 %v430
    %v1466 = vunpack.c.l.b16 %v431
    %v1467 = vunpack.c.l.b16 %v432
    %v1468 = vunpack.c.l.b16 %v433
    %v1469 = vunpack.c.l.b16 %v434
    %v1470 = vunpack.c.l.b16 %v435
    %v1471 = vunpack.c.l.b16 %v436
    %v1472 = vunpack.c.l.b16 %v437
    %v1473 = vunpack.c.l.b16 %v438
    %v1474 = vunpack.c.l.b16 %v439
    %v1475 = vunpack.c.l.b16 %v440
    %v1476 = vunpack.c.l.b16 %v441
    %v1477 = vunpack.c.l.b16 %v442
    %v1478 = vunpack.c.l.b16 %v443
    %v1479 = vunpack.c.l.b16 %v444
    %v1480 = vunpack.c.l.b16 %v445
    %v1481 = vunpack.c.l.b16 %v446
    %v1482 = vunpack.c.l.b16 %v447
    %v1483 = vunpack.c.l.b16 %v448
    %v1484 = vunpack.c.l.b16 %v449
    %v1485 = vunpack.c.l.b16 %v450
    %v1486 = vunpack.c.l.b16 %v451
    %v1487 = vunpack.c.l.b16 %v452
    %v1488 = vunpack.c.l.b16 %v453
    %v1489 = vunpack.c.l.b16 %v454
    %v1490 = vunpack.c.l.b16 %v455
    %v1491 = vunpack.c.l.b16 %v456
    %v1492 = vunpack.c.l.b16 %v457
    %v1493 = vunpack.c.l.b16 %v458
    %v1494 = vunpack.c.l.b16 %v459
    %v1495 = vunpack.c.l.b16 %v460
    %v1496 = vunpack.c.l.b16 %v461
    %v1497 = vunpack.c.l.b16 %v462
    %v1498 = vunpack.c.l.b16 %v463
    %v1499 = vunpack.c.l.b16 %v464
    %v1500 = vunpack.c.l.b16 %v465
    %v1501 = vunpack.c.l.b16 %v466
    %v1502 = vunpack.c.l.b16 %v467
    %v1503 = vunpack.c.l.b16 %v468
    %v1504 = vunpack.c.l.b16 %v469
    %v1505 = vunpack.c.l.b16 %v470
    %v1506 = vunpack.c.l.b16 %v471
    %v1507 = vunpack.c.l.b16 %v472
    %v1508 = vunpack.c.l.b16 %v473
    %v1509 = vunpack.c.l.b16 %v474
    %v1510 = vunpack.c.l.b16 %v475
    %v1511 = vunpack.c.l.b16 %v476
    %v1512 = vunpack.c.l.b16 %v477
    %v1513 = vunpack.c.l.b16 %v478
    %v1514 = vunpack.c.l.b16 %v479
    %v1515 = vunpack.c.l.b16 %v480
    %v1516 = vunpack.c.l.b16 %v481
    %v1517 = vunpack.c.l.b16 %v482
    %v1518 = vunpack.c.l.b16 %v483
    %v1519 = vunpack.c.l.b16 %v484
    %v1520 = vunpack.c.l.b16 %v485
    %v1521 = vunpack.c.l.b16 %v486
    %v1522 = vunpack.c.l.b16 %v487
    %v1523 = vunpack.c.l.b16 %v488
    %v1524 = vunpack.c.l.b16 %v489
    %v1525 = vunpack.c.l.b16 %v490
    %v1526 = vunpack.c.l.b16 %v491
    %v1527 = vunpack.c.l.b16 %v492
    %v1528 = vunpack.c.l.b16 %v493
    %v1529 = vunpack.c.l.b16 %v494
    %v1530 = vunpack.c.l.b16 %v495
    %v1531 = vunpack.c.l.b16 %v496
    %v1532 = vunpack.c.l.b16 %v497
    %v1533 = vunpack.c.l.b16 %v498
    %v1534 = vunpack.c.l.b16 %v499
    %v1535 = vunpack.c.l.b16 %v500
    %v1536 = vunpack.c.l.b16 %v501
    %v1537 = vunpack.c.l.b16 %v502
    %v1538 = vunpack.c.l.b16 %v503
    %v1539 = vunpack.c.l.b16 %v504
    %v1540 = vunpack.c.l.b16 %v505
    %v1541 = vunpack.c.l.b16 %v506
    %v1542 = vunpack.c.l.b16 %v507
    %v1543 = vunpack.c.l.b16 %v508
    %v1544 = vunpack.c.l.b16 %v509
    %v1545 = vunpack.c.l.b16 %v510
    %v1546 = vunpack.c.l.b16 %v511
    %v1547 = vunpack.c.l.b16 %v512
    %v1548 = vunpack.c.l.b16 %v513
    %v1549 = vunpack.c.l.b16 %v514
    %v1550 = vunpack.c.l.b16 %v515
    %v1551 = vunpack.c.l.b16 %v516
    %v1552 = vunpack.c.l.b16 %v517
    %v1553 = vunpack.c.l.b16 %v518
    %v1554 = vunpack.c.l.b16 %v519
    %v1555 = vunpack.c.l.b16 %v520
    %v1556 = vunpack.c.l.b16 %v521
    %v1557 = vunpack.c.l.b16 %v522
    %v1558 = vunpack.c.l.b16 %v523
    %v1559 = vunpack.c.l.b16 %v524
    %v1560 = vunpack.c.l.b16 %v525
    %v1561 = vunpack.c.l.b16 %v526
    %v1562 = vunpack.c.l.b16 %v527
    %v1563 = vunpack.c.l.b16 %v528
    %v1564 = vunpack.c.l.b16 %v529
    %v1565 = vunpack.c.l.b16 %v530
    %v1566 = vunpack.c.l.b16 %v531
    %v1567 = vunpack.c.l.b16 %v532
    %v1568 = vunpack.c.l.b16 %v533
    %v1569 = vunpack.c.l.b16 %v534
    %v1570 = vunpack.c.l.b16 %v535
    %v1571 = vunpack.c.l.b16 %v536
    %v1572 = vunpack.c.l.b16 %v537
    %v1573 = vunpack.c.l.b16 %v538
    %v1574 = vunpack.c.l.b16 %v539
    %v1575 = vunpack.c.l.b16 %v540
    %v1576 = vunpack.c.l.b16 %v541
    %v1577 = vunpack.c.l.b16 %v542
    %v1578 = vunpack.c.l.b16 %v543
    %v1579 = vunpack.c.l.b16 %v544
    %v1580 = vunpack.c.l.b16 %v545
    %v1581 = vunpack.c.l.b16 %v546
    %v1582 = vunpack.c.l.b16 %v547
    %v1583 = vunpack.c.l.b16 %v548
    %v1584 = vunpack.c.l.b16 %v549
    %v1585 = vunpack.c.l.b16 %v550
    %v1586 = vunpack.c.l.b16 %v551
    %v1587 = vpack.c.b16 %v1076, %v1075
    %v1588 = vpack.c.b16 %v1078, %v1077
    %v1589 = vpack.c.b16 %v1080, %v1079
    %v1590 = vpack.c.b16 %v1082, %v1081
    %v1591 = vpack.c.b16 %v1084, %v1083
    %v1592 = vpack.c.b16 %v1086, %v1085
    %v1593 = vpack.c.b16 %v1088, %v1087
    %v1594 = vpack.c.b16 %v1090, %v1089
    %v1595 = vpack.c.b16 %v1092, %v1091
    %v1596 = vpack.c.b16 %v1094, %v1093
    %v1597 = vpack.c.b16 %v1096, %v1095
    %v1598 = vpack.c.b16 %v1098, %v1097
    %v1599 = vpack.c.b16 %v1100, %v1099
    %v1600 = vpack.c.b16 %v1102, %v1101
    %v1601 = vpack.c.b16 %v1104, %v1103
    %v1602 = vpack.c.b16 %v1106, %v1105
    %v1603 = vpack.c.b16 %v1108, %v1107
    %v1604 = vpack.c.b16 %v1110, %v1109
    %v1605 = vpack.c.b16 %v1112, %v1111
    %v1606 = vpack.c.b16 %v1114, %v1113
    %v1607 = vpack.c.b16 %v1116, %v1115
    %v1608 = vpack.c.b16 %v1118, %v1117
    %v1609 = vpack.c.b16 %v1120, %v1119
    %v1610 = vpack.c.b16 %v1122, %v1121
    %v1611 = vpack.c.b16 %v1124, %v1123
    %v1612 = vpack.c.b16 %v1126, %v1125
    %v1613 = vpack.c.b16 %v1128, %v1127
    %v1614 = vpack.c.b16 %v1130, %v1129
    %v1615 = vpack.c.b16 %v1132, %v1131
    %v1616 = vpack.c.b16 %v1134, %v1133
    %v1617 = vpack.c.b16 %v1136, %v1135
    %v1618 = vpack.c.b16 %v1138, %v1137
    %v1619 = vpack.c.b16 %v1140, %v1139
    %v1620 = vpack.c.b16 %v1142, %v1141
    %v1621 = vpack.c.b16 %v1144, %v1143
    %v1622 = vpack.c.b16 %v1146, %v1145
    %v1623 = vpack.c.b16 %v1148, %v1147
    %v1624 = vpack.c.b16 %v1150, %v1149
    %v1625 = vpack.c.b16 %v1152, %v1151
    %v1626 = vpack.c.b16 %v1154, %v1153
    %v1627 = vpack.c.b16 %v1156, %v1155
    %v1628 = vpack.c.b16 %v1158, %v1157
    %v1629 = vpack.c.b16 %v1160, %v1159
    %v1630 = vpack.c.b16 %v1162, %v1161
    %v1631 = vpack.c.b16 %v1164, %v1163
    %v1632 = vpack.c.b16 %v1166, %v1165
    %v1633 = vpack.c.b16 %v1168, %v1167
    %v1634 = vpack.c.b16 %v1170, %v1169
    %v1635 = vpack.c.b16 %v1172, %v1171
    %v1636 = vpack.c.b16 %v1174, %v1173
    %v1637 = vpack.c.b16 %v1176, %v1175
    %v1638 = vpack.c.b16 %v1178, %v1177
    %v1639 = vpack.c.b16 %v1180, %v1179
    %v1640 = vpack.c.b16 %v1182, %v1181
    %v1641 = vpack.c.b16 %v1184, %v1183
    %v1642 = vpack.c.b16 %v1186, %v1185
    %v1643 = vpack.c.b16 %v1188, %v1187
    %v1644 = vpack.c.b16 %v1190, %v1189
    %v1645 = vpack.c.b16 %v1192, %v1191
    %v1646 = vpack.c.b16 %v1194, %v1193
    %v1647 = vpack.c.b16 %v1196, %v1195
    %v1648 = vpack.c.b16 %v1198, %v1197
    %v1649 = vpack.c.b16 %v1200, %v1199
    %v1650 = vpack.c.b16 %v1202, %v1201
    %v1651 = vpack.c.b16 %v1204, %v1203
    %v1652 = vpack.c.b16 %v1206, %v1205
    %v1653 = vpack.c.b16 %v1208, %v1207
    %v1654 = vpack.c.b16 %v1210, %v1209
    %v1655 = vpack.c.b16 %v1212, %v1211
    %v1656 = vpack.c.b16 %v1214, %v1213
    %v1657 = vpack.c.b16 %v1216, %v1215
    %v1658 = vpack.c.b16 %v1218, %v1217
    %v1659 = vpack.c.b16 %v1220, %v1219
    %v1660 = vpack.c.b16 %v1222, %v1221
    %v1661 = vpack.c.b16 %v1224, %v1223
    %v1662 = vpack.c.b16 %v1226, %v1225
    %v1663 = vpack.c.b16 %v1228, %v1227
    %v1664 = vpack.c.b16 %v1230, %v1229
    %v1665 = vpack.c.b16 %v1232, %v1231
    %v1666 = vpack.c.b16 %v1234, %v1233
    %v1667 = vpack.c.b16 %v1236, %v1235
    %v1668 = vpack.c.b16 %v1238, %v1237
    %v1669 = vpack.c.b16 %v1240, %v1239
    %v1670 = vpack.c.b16 %v1242, %v1241
    %v1671 = vpack.c.b16 %v1244, %v1243
    %v1672 = vpack.c.b16 %v1246, %v1245
    %v1673 = vpack.c.b16 %v1248, %v1247
    %v1674 = vpack.c.b16 %v1250, %v1249
    %v1675 = vpack.c.b16 %v1252, %v1251
    %v1676 = vpack.c.b16 %v1254, %v1253
    %v1677 = vpack.c.b16 %v1256, %v1255
    %v1678 = vpack.c.b16 %v1258, %v1257
    %v1679 = vpack.c.b16 %v1260, %v1259
    %v1680 = vpack.c.b16 %v1262, %v1261
    %v1681 = vpack.c.b16 %v1264, %v1263
    %v1682 = vpack.c.b16 %v1266, %v1265
    %v1683 = vpack.c.b16 %v1268, %v1267
    %v1684 = vpack.c.b16 %v1270, %v1269
    %v1685 = vpack.c.b16 %v1272, %v1271
    %v1686 = vpack.c.b16 %v1274, %v1273
    %v1687 = vpack.c.b16 %v1276, %v1275
    %v1688 = vpack.c.b16 %v1278, %v1277
    %v1689 = vpack.c.b16 %v1280, %v1279
    %v1690 = vpack.c.b16 %v1282, %v1281
    %v1691 = vpack.c.b16 %v1284, %v1283
    %v1692 = vpack.c.b16 %v1286, %v1285
    %v1693 = vpack.c.b16 %v1288, %v1287
    %v1694 = vpack.c.b16 %v1290, %v1289
    %v1695 = vpack.c.b16 %v1292, %v1291
    %v1696 = vpack.c.b16 %v1294, %v1293
    %v1697 = vpack.c.b16 %v1296, %v1295
    %v1698 = vpack.c.b16 %v1298, %v1297
    %v1699 = vpack.c.b16 %v1300, %v1299
    %v1700 = vpack.c.b16 %v1302, %v1301
    %v1701 = vpack.c.b16 %v1304, %v1303
    %v1702 = vpack.c.b16 %v1306, %v1305
    %v1703 = vpack.c.b16 %v1308, %v1307
    %v1704 = vpack.c.b16 %v1310, %v1309
    %v1705 = vpack.c.b16 %v1312, %v1311
    %v1706 = vpack.c.b16 %v1314, %v1313
    %v1707 = vpack.c.b16 %v1316, %v1315
    %v1708 = vpack.c.b16 %v1318, %v1317
    %v1709 = vpack.c.b16 %v1320, %v1319
    %v1710 = vpack.c.b16 %v1322, %v1321
    %v1711 = vpack.c.b16 %v1324, %v1323
    %v1712 = vpack.c.b16 %v1326, %v1325
    %v1713 = vpack.c.b16 %v1328, %v1327
    %v1714 = vpack.c.b16 %v1330, %v1329
    %v1715 = vpack.c.b16 %v1332, %v1331
    %v1716 = vpack.c.b16 %v1334, %v1333
    %v1717 = vpack.c.b16 %v1336, %v1335
    %v1718 = vpack.c.b16 %v1338, %v1337
    %v1719 = vpack.c.b16 %v1340, %v1339
    %v1720 = vpack.c.b16 %v1342, %v1341
    %v1721 = vpack.c.b16 %v1344, %v1343
    %v1722 = vpack.c.b16 %v1346, %v1345
    %v1723 = vpack.c.b16 %v1348, %v1347
    %v1724 = vpack.c.b16 %v1350, %v1349
    %v1725 = vpack.c.b16 %v1352, %v1351
    %v1726 = vpack.c.b16 %v1354, %v1353
    %v1727 = vpack.c.b16 %v1356, %v1355
    %v1728 = vpack.c.b16 %v1358, %v1357
    %v1729 = vpack.c.b16 %v1360, %v1359
    %v1730 = vpack.c.b16 %v1362, %v1361
    %v1731 = vpack.c.b16 %v1364, %v1363
    %v1732 = vpack.c.b16 %v1366, %v1365
    %v1733 = vpack.c.b16 %v1368, %v1367
    %v1734 = vpack.c.b16 %v1370, %v1369
    %v1735 = vpack.c.b16 %v1372, %v1371
    %v1736 = vpack.c.b16 %v1374, %v1373
    %v1737 = vpack.c.b16 %v1376, %v1375
    %v1738 = vpack.c.b16 %v1378, %v1377
    %v1739 = vpack.c.b16 %v1380, %v1379
    %v1740 = vpack.c.b16 %v1382, %v1381
    %v1741 = vpack.c.b16 %v1384, %v1383
    %v1742 = vpack.c.b16 %v1386, %v1385
    %v1743 = vpack.c.b16 %v1388, %v1387
    %v1744 = vpack.c.b16 %v1390, %v1389
    %v1745 = vpack.c.b16 %v1392, %v1391
    %v1746 = vpack.c.b16 %v1394, %v1393
    %v1747 = vpack.c.b16 %v1396, %v1395
    %v1748 = vpack.c.b16 %v1398, %v1397
    %v1749 = vpack.c.b16 %v1400, %v1399
    %v1750 = vpack.c.b16 %v1402, %v1401
    %v1751 = vpack.c.b16 %v1404, %v1403
    %v1752 = vpack.c.b16 %v1406, %v1405
    %v1753 = vpack.c.b16 %v1408, %v1407
    %v1754 = vpack.c.b16 %v1410, %v1409
    %v1755 = vpack.c.b16 %v1412, %v1411
    %v1756 = vpack.c.b16 %v1414, %v1413
    %v1757 = vpack.c.b16 %v1416, %v1415
    %v1758 = vpack.c.b16 %v1418, %v1417
    %v1759 = vpack.c.b16 %v1420, %v1419
    %v1760 = vpack.c.b16 %v1422, %v1421
    %v1761 = vpack.c.b16 %v1424, %v1423
    %v1762 = vpack.c.b16 %v1426, %v1425
    %v1763 = vpack.c.b16 %v1428, %v1427
    %v1764 = vpack.c.b16 %v1430, %v1429
    %v1765 = vpack.c.b16 %v1432, %v1431
    %v1766 = vpack.c.b16 %v1434, %v1433
    %v1767 = vpack.c.b16 %v1436, %v1435
    %v1768 = vpack.c.b16 %v1438, %v1437
    %v1769 = vpack.c.b16 %v1440, %v1439
    %v1770 = vpack.c.b16 %v1442, %v1441
    %v1771 = vpack.c.b16 %v1444, %v1443
    %v1772 = vpack.c.b16 %v1446, %v1445
    %v1773 = vpack.c.b16 %v1448, %v1447
    %v1774 = vpack.c.b16 %v1450, %v1449
    %v1775 = vpack.c.b16 %v1452, %v1451
    %v1776 = vpack.c.b16 %v1454, %v1453
    %v1777 = vpack.c.b16 %v1456, %v1455
    %v1778 = vpack.c.b16 %v1458, %v1457
    %v1779 = vpack.c.b16 %v1460, %v1459
    %v1780 = vpack.c.b16 %v1462, %v1461
    %v1781 = vpack.c.b16 %v1464, %v1463
    %v1782 = vpack.c.b16 %v1466, %v1465
    %v1783 = vpack.c.b16 %v1468, %v1467
    %v1784 = vpack.c.b16 %v1470, %v1469
    %v1785 = vpack.c.b16 %v1472, %v1471
    %v1786 = vpack.c.b16 %v1474, %v1473
    %v1787 = vpack.c.b16 %v1476, %v1475
    %v1788 = vpack.c.b16 %v1478, %v1477
    %v1789 = vpack.c.b16 %v1480, %v1479
    %v1790 = vpack.c.b16 %v1482, %v1481
    %v1791 = vpack.c.b16 %v1484, %v1483
    %v1792 = vpack.c.b16 %v1486, %v1485
    %v1793 = vpack.c.b16 %v1488, %v1487
    %v1794 = vpack.c.b16 %v1490, %v1489
    %v1795 = vpack.c.b16 %v1492, %v1491
    %v1796 = vpack.c.b16 %v1494, %v1493
    %v1797 = vpack.c.b16 %v1496, %v1495
    %v1798 = vpack.c.b16 %v1498, %v1497
    %v1799 = vpack.c.b16 %v1500, %v1499
    %v1800 = vpack.c.b16 %v1502, %v1501
    %v1801 = vpack.c.b16 %v1504, %v1503
    %v1802 = vpack.c.b16 %v1506, %v1505
    %v1803 = vpack.c.b16 %v1508, %v1507
    %v1804 = vpack.c.b16 %v1510, %v1509
    %v1805 = vpack.c.b16 %v1512, %v1511
    %v1806 = vpack.c.b16 %v1514, %v1513
    %v1807 = vpack.c.b16 %v1516, %v1515
    %v1808 = vpack.c.b16 %v1518, %v1517
    %v1809 = vpack.c.b16 %v1520, %v1519
    %v1810 = vpack.c.b16 %v1522, %v1521
    %v1811 = vpack.c.b16 %v1524, %v1523
    %v1812 = vpack.c.b16 %v1526, %v1525
    %v1813 = vpack.c.b16 %v1528, %v1527
    %v1814 = vpack.c.b16 %v1530, %v1529
    %v1815 = vpack.c.b16 %v1532, %v1531
    %v1816 = vpack.c.b16 %v1534, %v1533
    %v1817 = vpack.c.b16 %v1536, %v1535
    %v1818 = vpack.c.b16 %v1538, %v1537
    %v1819 = vpack.c.b16 %v1540, %v1539
    %v1820 = vpack.c.b16 %v1542, %v1541
    %v1821 = vpack.c.b16 %v1544, %v1543
    %v1822 = vpack.c.b16 %v1546, %v1545
    %v1823 = vpack.c.b16 %v1548, %v1547
    %v1824 = vpack.c.b16 %v1550, %v1549
    %v1825 = vpack.c.b16 %v1552, %v1551
    %v1826 = vpack.c.b16 %v1554, %v1553
    %v1827 = vpack.c.b16 %v1556, %v1555
    %v1828 = vpack.c.b16 %v1558, %v1557
    %v1829 = vpack.c.b16 %v1560, %v1559
    %v1830 = vpack.c.b16 %v1562, %v1561
    %v1831 = vpack.c.b16 %v1564, %v1563
    %v1832 = vpack.c.b16 %v1566, %v1565
    %v1833 = vpack.c.b16 %v1568, %v1567
    %v1834 = vpack.c.b16 %v1570, %v1569
    %v1835 = vpack.c.b16 %v1572, %v1571
    %v1836 = vpack.c.b16 %v1574, %v1573
    %v1837 = vpack.c.b16 %v1576, %v1575
    %v1838 = vpack.c.b16 %v1578, %v1577
    %v1839 = vpack.c.b16 %v1580, %v1579
    %v1840 = vpack.c.b16 %v1582, %v1581
    %v1841 = vpack.c.b16 %v1584, %v1583
    %v1842 = vpack.c.b16 %v1586, %v1585
    %v1847 = vunpack.c.l.b16 %v552
    %v1848 = vunpack.c.l.b16 %v553
    %v1849 = vunpack.c.l.b16 %v554
    %v1850 = vunpack.c.l.b16 %v555
    %v1851 = vpack.c.b16 %v1848, %v1847
    %v1852 = vpack.c.b16 %v1850, %v1849
    %vm1854 = vcmask 220160
    %v1856 = vsel %vm1854, %v1587, 0
    %v1859 = vsel %vm1854, %v1588, 0
    %v1862 = vsel %vm1854, %v1589, 0
    %v1865 = vsel %vm1854, %v1590, 0
    %v1868 = vsel %vm1854, %v1591, 0
    %v1871 = vsel %vm1854, %v1592, 0
    %v1874 = vsel %vm1854, %v1593, 0
    %v1877 = vsel %vm1854, %v1594, 0
    %v1880 = vsel %vm1854, %v1595, 0
    %v1883 = vsel %vm1854, %v1596, 0
    %v1886 = vsel %vm1854, %v1597, 0
    %v1889 = vsel %vm1854, %v1598, 0
    %v1892 = vsel %vm1854, %v1599, 0
    %v1895 = vsel %vm1854, %v1600, 0
    %v1898 = vsel %vm1854, %v1601, 0
    %v1901 = vsel %vm1854, %v1602, 0
    %v1904 = vsel %vm1854, %v1603, 0
    %v1907 = vsel %vm1854, %v1604, 0
    %v1910 = vsel %vm1854, %v1605, 0
    %v1913 = vsel %vm1854, %v1606, 0
    %v1916 = vsel %vm1854, %v1607, 0
    %v1919 = vsel %vm1854, %v1608, 0
    %v1922 = vsel %vm1854, %v1609, 0
    %v1925 = vsel %vm1854, %v1610, 0
    %v1928 = vsel %vm1854, %v1611, 0
    %v1931 = vsel %vm1854, %v1612, 0
    %v1934 = vsel %vm1854, %v1613, 0
    %v1937 = vsel %vm1854, %v1614, 0
    %v1940 = vsel %vm1854, %v1615, 0
    %v1943 = vsel %vm1854, %v1616, 0
    %v1946 = vsel %vm1854, %v1617, 0
    %v1949 = vsel %vm1854, %v1618, 0
    %v1952 = vsel %vm1854, %v1619, 0
    %v1955 = vsel %vm1854, %v1620, 0
    %v1958 = vsel %vm1854, %v1621, 0
    %v1961 = vsel %vm1854, %v1622, 0
    %v1964 = vsel %vm1854, %v1623, 0
    %v1967 = vsel %vm1854, %v1624, 0
    %v1970 = vsel %vm1854, %v1625, 0
    %v1973 = vsel %vm1854, %v1626, 0
    %v1976 = vsel %vm1854, %v1627, 0
    %v1979 = vsel %vm1854, %v1628, 0
    %v1982 = vsel %vm1854, %v1629, 0
    %v1985 = vsel %vm1854, %v1630, 0
    %v1988 = vsel %vm1854, %v1631, 0
    %v1991 = vsel %vm1854, %v1632, 0
    %v1994 = vsel %vm1854, %v1633, 0
    %v1997 = vsel %vm1854, %v1634, 0
    %v2000 = vsel %vm1854, %v1635, 0
    %v2003 = vsel %vm1854, %v1636, 0
    %v2006 = vsel %vm1854, %v1637, 0
    %v2009 = vsel %vm1854, %v1638, 0
    %v2012 = vsel %vm1854, %v1639, 0
    %v2015 = vsel %vm1854, %v1640, 0
    %v2018 = vsel %vm1854, %v1641, 0
    %v2021 = vsel %vm1854, %v1642, 0
    %v2024 = vsel %vm1854, %v1643, 0
    %v2027 = vsel %vm1854, %v1644, 0
    %v2030 = vsel %vm1854, %v1645, 0
    %v2033 = vsel %vm1854, %v1646, 0
    %v2036 = vsel %vm1854, %v1647, 0
    %v2039 = vsel %vm1854, %v1648, 0
    %v2042 = vsel %vm1854, %v1649, 0
    %v2045 = vsel %vm1854, %v1650, 0
    %v2048 = vsel %vm1854, %v1651, 0
    %v2051 = vsel %vm1854, %v1652, 0
    %v2054 = vsel %vm1854, %v1653, 0
    %v2057 = vsel %vm1854, %v1654, 0
    %v2060 = vsel %vm1854, %v1655, 0
    %v2063 = vsel %vm1854, %v1656, 0
    %v2066 = vsel %vm1854, %v1657, 0
    %v2069 = vsel %vm1854, %v1658, 0
    %v2072 = vsel %vm1854, %v1659, 0
    %v2075 = vsel %vm1854, %v1660, 0
    %v2078 = vsel %vm1854, %v1661, 0
    %v2081 = vsel %vm1854, %v1662, 0
    %v2084 = vsel %vm1854, %v1663, 0
    %v2087 = vsel %vm1854, %v1664, 0
    %v2090 = vsel %vm1854, %v1665, 0
    %v2093 = vsel %vm1854, %v1666, 0
    %v2096 = vsel %vm1854, %v1667, 0
    %v2099 = vsel %vm1854, %v1668, 0
    %v2102 = vsel %vm1854, %v1669, 0
    %v2105 = vsel %vm1854, %v1670, 0
    %v2108 = vsel %vm1854, %v1671, 0
    %v2111 = vsel %vm1854, %v1672, 0
    %v2114 = vsel %vm1854, %v1673, 0
    %v2117 = vsel %vm1854, %v1674, 0
    %v2120 = vsel %vm1854, %v1675, 0
    %v2123 = vsel %vm1854, %v1676, 0
    %v2126 = vsel %vm1854, %v1677, 0
    %v2129 = vsel %vm1854, %v1678, 0
    %v2132 = vsel %vm1854, %v1679, 0
    %v2135 = vsel %vm1854, %v1680, 0
    %v2138 = vsel %vm1854, %v1681, 0
    %v2141 = vsel %vm1854, %v1682, 0
    %v2144 = vsel %vm1854, %v1683, 0
    %v2147 = vsel %vm1854, %v1684, 0
    %v2150 = vsel %vm1854, %v1685, 0
    %v2153 = vsel %vm1854, %v1686, 0
    %v2156 = vsel %vm1854, %v1687, 0
    %v2159 = vsel %vm1854, %v1688, 0
    %v2162 = vsel %vm1854, %v1689, 0
    %v2165 = vsel %vm1854, %v1690, 0
    %v2168 = vsel %vm1854, %v1691, 0
    %v2171 = vsel %vm1854, %v1692, 0
    %v2174 = vsel %vm1854, %v1693, 0
    %v2177 = vsel %vm1854, %v1694, 0
    %v2180 = vsel %vm1854, %v1695, 0
    %v2183 = vsel %vm1854, %v1696, 0
    %v2186 = vsel %vm1854, %v1697, 0
    %v2189 = vsel %vm1854, %v1698, 0
    %v2192 = vsel %vm1854, %v1699, 0
    %v2195 = vsel %vm1854, %v1700, 0
    %v2198 = vsel %vm1854, %v1701, 0
    %v2201 = vsel %vm1854, %v1702, 0
    %v2204 = vsel %vm1854, %v1703, 0
    %v2207 = vsel %vm1854, %v1704, 0
    %v2210 = vsel %vm1854, %v1705, 0
    %v2213 = vsel %vm1854, %v1706, 0
    %v2216 = vsel %vm1854, %v1707, 0
    %v2219 = vsel %vm1854, %v1708, 0
    %v2222 = vsel %vm1854, %v1709, 0
    %v2225 = vsel %vm1854, %v1710, 0
    %v2228 = vsel %vm1854, %v1711, 0
    %v2231 = vsel %vm1854, %v1712, 0
    %v2234 = vsel %vm1854, %v1713, 0
    %v2237 = vsel %vm1854, %v1714, 0
    %v2240 = vsel %vm1854, %v1715, 0
    %v2243 = vsel %vm1854, %v1716, 0
    %v2246 = vsel %vm1854, %v1717, 0
    %v2249 = vsel %vm1854, %v1718, 0
    %v2252 = vsel %vm1854, %v1719, 0
    %v2255 = vsel %vm1854, %v1720, 0
    %v2258 = vsel %vm1854, %v1721, 0
    %v2261 = vsel %vm1854, %v1722, 0
    %v2264 = vsel %vm1854, %v1723, 0
    %v2267 = vsel %vm1854, %v1724, 0
    %v2270 = vsel %vm1854, %v1725, 0
    %v2273 = vsel %vm1854, %v1726, 0
    %v2276 = vsel %vm1854, %v1727, 0
    %v2279 = vsel %vm1854, %v1728, 0
    %v2282 = vsel %vm1854, %v1729, 0
    %v2285 = vsel %vm1854, %v1730, 0
    %v2288 = vsel %vm1854, %v1731, 0
    %v2291 = vsel %vm1854, %v1732, 0
    %v2294 = vsel %vm1854, %v1733, 0
    %v2297 = vsel %vm1854, %v1734, 0
    %v2300 = vsel %vm1854, %v1735, 0
    %v2303 = vsel %vm1854, %v1736, 0
    %v2306 = vsel %vm1854, %v1737, 0
    %v2309 = vsel %vm1854, %v1738, 0
    %v2312 = vsel %vm1854, %v1739, 0
    %v2315 = vsel %vm1854, %v1740, 0
    %v2318 = vsel %vm1854, %v1741, 0
    %v2321 = vsel %vm1854, %v1742, 0
    %v2324 = vsel %vm1854, %v1743, 0
    %v2327 = vsel %vm1854, %v1744, 0
    %v2330 = vsel %vm1854, %v1745, 0
    %v2333 = vsel %vm1854, %v1746, 0
    %v2336 = vsel %vm1854, %v1747, 0
    %v2339 = vsel %vm1854, %v1748, 0
    %v2342 = vsel %vm1854, %v1749, 0
    %v2345 = vsel %vm1854, %v1750, 0
    %v2348 = vsel %vm1854, %v1751, 0
    %v2351 = vsel %vm1854, %v1752, 0
    %v2354 = vsel %vm1854, %v1753, 0
    %v2357 = vsel %vm1854, %v1754, 0
    %v2360 = vsel %vm1854, %v1755, 0
    %v2363 = vsel %vm1854, %v1756, 0
    %v2366 = vsel %vm1854, %v1757, 0
    %v2369 = vsel %vm1854, %v1758, 0
    %v2372 = vsel %vm1854, %v1759, 0
    %v2375 = vsel %vm1854, %v1760, 0
    %v2378 = vsel %vm1854, %v1761, 0
    %v2381 = vsel %vm1854, %v1762, 0
    %v2384 = vsel %vm1854, %v1763, 0
    %v2387 = vsel %vm1854, %v1764, 0
    %v2390 = vsel %vm1854, %v1765, 0
    %v2393 = vsel %vm1854, %v1766, 0
    %v2396 = vsel %vm1854, %v1767, 0
    %v2399 = vsel %vm1854, %v1768, 0
    %v2402 = vsel %vm1854, %v1769, 0
    %v2405 = vsel %vm1854, %v1770, 0
    %v2408 = vsel %vm1854, %v1771, 0
    %v2411 = vsel %vm1854, %v1772, 0
    %v2414 = vsel %vm1854, %v1773, 0
    %v2417 = vsel %vm1854, %v1774, 0
    %v2420 = vsel %vm1854, %v1775, 0
    %v2423 = vsel %vm1854, %v1776, 0
    %v2426 = vsel %vm1854, %v1777, 0
    %v2429 = vsel %vm1854, %v1778, 0
    %v2432 = vsel %vm1854, %v1779, 0
    %v2435 = vsel %vm1854, %v1780, 0
    %v2438 = vsel %vm1854, %v1781, 0
    %v2441 = vsel %vm1854, %v1782, 0
    %v2444 = vsel %vm1854, %v1783, 0
    %v2447 = vsel %vm1854, %v1784, 0
    %v2450 = vsel %vm1854, %v1785, 0
    %v2453 = vsel %vm1854, %v1786, 0
    %v2456 = vsel %vm1854, %v1787, 0
    %v2459 = vsel %vm1854, %v1788, 0
    %v2462 = vsel %vm1854, %v1789, 0
    %v2465 = vsel %vm1854, %v1790, 0
    %v2468 = vsel %vm1854, %v1791, 0
    %v2471 = vsel %vm1854, %v1792, 0
    %v2474 = vsel %vm1854, %v1793, 0
    %v2477 = vsel %vm1854, %v1794, 0
    %v2480 = vsel %vm1854, %v1795, 0
    %v2483 = vsel %vm1854, %v1796, 0
    %v2486 = vsel %vm1854, %v1797, 0
    %v2489 = vsel %vm1854, %v1798, 0
    %v2492 = vsel %vm1854, %v1799, 0
    %v2495 = vsel %vm1854, %v1800, 0
    %v2498 = vsel %vm1854, %v1801, 0
    %v2501 = vsel %vm1854, %v1802, 0
    %v2504 = vsel %vm1854, %v1803, 0
    %v2507 = vsel %vm1854, %v1804, 0
    %v2510 = vsel %vm1854, %v1805, 0
    %v2513 = vsel %vm1854, %v1806, 0
    %v2516 = vsel %vm1854, %v1807, 0
    %v2519 = vsel %vm1854, %v1808, 0
    %v2522 = vsel %vm1854, %v1809, 0
    %v2525 = vsel %vm1854, %v1810, 0
    %v2528 = vsel %vm1854, %v1811, 0
    %v2531 = vsel %vm1854, %v1812, 0
    %v2534 = vsel %vm1854, %v1813, 0
    %v2537 = vsel %vm1854, %v1814, 0
    %v2540 = vsel %vm1854, %v1815, 0
    %v2543 = vsel %vm1854, %v1816, 0
    %v2546 = vsel %vm1854, %v1817, 0
    %v2549 = vsel %vm1854, %v1818, 0
    %v2552 = vsel %vm1854, %v1819, 0
    %v2555 = vsel %vm1854, %v1820, 0
    %v2558 = vsel %vm1854, %v1821, 0
    %v2561 = vsel %vm1854, %v1822, 0
    %v2564 = vsel %vm1854, %v1823, 0
    %v2567 = vsel %vm1854, %v1824, 0
    %v2570 = vsel %vm1854, %v1825, 0
    %v2573 = vsel %vm1854, %v1826, 0
    %v2576 = vsel %vm1854, %v1827, 0
    %v2579 = vsel %vm1854, %v1828, 0
    %v2582 = vsel %vm1854, %v1829, 0
    %v2585 = vsel %vm1854, %v1830, 0
    %v2588 = vsel %vm1854, %v1831, 0
    %v2591 = vsel %vm1854, %v1832, 0
    %v2594 = vsel %vm1854, %v1833, 0
    %v2597 = vsel %vm1854, %v1834, 0
    %v2600 = vsel %vm1854, %v1835, 0
    %v2603 = vsel %vm1854, %v1836, 0
    %v2606 = vsel %vm1854, %v1837, 0
    %v2609 = vsel %vm1854, %v1838, 0
    %v2612 = vsel %vm1854, %v1839, 0
    %v2615 = vsel %vm1854, %v1840, 0
    %v2618 = vsel %vm1854, %v1841, 0
    %v2621 = vsel %vm1854, %v1842, 0
    %vm2623 = vcmask 1044480
    %vm2624 = vcmask 1045504
    %v2625 = vsel %vm2623, 4294967295, 65535
    %v2626 = vsel %vm2624, %v2625, 0
    %v2628 = vand.u32 %v1852, %v2626
    %2630 = vmatprep.subr.bf16.mxu0 0
    %2631 = vmatpush1.bf16.msra.mxu0 %v1851
    %2632 = vmatprep.subr.bf16.mxu0 0
    %2633 = vmatpush1.bf16.msra.mxu0 %v2628
    %2634 = vmatprep.subr.bf16.mxu0 0
    %2635 = vmatpush1.bf16.msra.mxu0 0
    %2636 = vmatprep.subr.bf16.mxu0 0
    %2637 = vmatpush1.bf16.msra.mxu0 0
    %2638 = vmatprep.subr.bf16.mxu0 0
    %2639 = vmatpush1.bf16.msra.mxu0 0
    %2640 = vmatprep.subr.bf16.mxu0 0
    %2641 = vmatpush1.bf16.msra.mxu0 0
    %2642 = vmatprep.subr.bf16.mxu0 0
    %2643 = vmatpush1.bf16.msra.mxu0 0
    %2644 = vmatprep.subr.bf16.mxu0 0
    %2645 = vmatpush1.bf16.msra.mxu0 0
    %2646 = vmatprep.subr.bf16.mxu0 0
    %2647 = vmatpush1.bf16.msra.mxu0 0
    %2648 = vmatprep.subr.bf16.mxu0 0
    %2649 = vmatpush1.bf16.msra.mxu0 0
    %2650 = vmatprep.subr.bf16.mxu0 0
    %2651 = vmatpush1.bf16.msra.mxu0 0
    %2652 = vmatprep.subr.bf16.mxu0 0
    %2653 = vmatpush1.bf16.msra.mxu0 0
    %2654 = vmatprep.subr.bf16.mxu0 0
    %2655 = vmatpush1.bf16.msra.mxu0 0
    %2656 = vmatprep.subr.bf16.mxu0 0
    %2657 = vmatpush1.bf16.msra.mxu0 0
    %2658 = vmatprep.subr.bf16.mxu0 0
    %2659 = vmatpush1.bf16.msra.mxu0 0
    %2660 = vmatprep.subr.bf16.mxu0 0
    %2661 = vmatpush1.bf16.msra.mxu0 0
    %2662 = vmatprep.mubr.bf16.mxu0 0
    %2663 = vmatmul.mubr.bf16.gmra.mrb[0].mxu0 %v1856
    %v2664 = vpop.f32.mrb[0].mxu0
    %v2665 = vadd.f32 %v561, %v2664
    %v2666 = vpop.f32.mrb[0].mxu0
    %v2667 = vpop.f32.mrb[0].mxu0
    %v2668 = vadd.f32 %v561, %v2667
    %v2669 = vpop.f32.mrb[0].mxu0
    %2670 = vmatprep.mubr.bf16.mxu0 0
    %2671 = vmatmul.mubr.bf16.gmra.mrb[0].mxu0 %v1859
    %v2672 = vpop.f32.mrb[0].mxu0
    %v2673 = vadd.f32 %v561, %v2672
    %v2674 = vpop.f32.mrb[0].mxu0
    %v2675 = vpop.f32.mrb[0].mxu0
    %v2676 = vadd.f32 %v561, %v2675
    %v2677 = vpop.f32.mrb[0].mxu0
    %2678 = vmatprep.mubr.bf16.mxu0 0
    %2679 = vmatmul.mubr.bf16.gmra.mrb[0].mxu0 %v1862
    %v2680 = vpop.f32.mrb[0].mxu0
    %v2681 = vadd.f32 %v561, %v2680
    %v2682 = vpop.f32.mrb[0].mxu0
    %v2683 = vpop.f32.mrb[0].mxu0
    %v2684 = vadd.f32 %v561, %v2683
    %v2685 = vpop.f32.mrb[0].mxu0
    %2686 = vmatprep.mubr.bf16.mxu0 0
    %2687 = vmatmul.mubr.bf16.gmra.mrb[0].mxu0 %v1865
    %v2688 = vpop.f32.mrb[0].mxu0
    %v2689 = vadd.f32 %v561, %v2688
    %v2690 = vpop.f32.mrb[0].mxu0
    %v2691 = vpop.f32.mrb[0].mxu0
    %v2692 = vadd.f32 %v561, %v2691
    %v2693 = vpop.f32.mrb[0].mxu0
    %2694 = vmatprep.mubr.bf16.mxu0 0
    %2695 = vmatmul.mubr.bf16.gmra.mrb[0].mxu0 %v1868
    %v2696 = vpop.f32.mrb[0].mxu0
    %v2697 = vadd.f32 %v561, %v2696
    %v2698 = vpop.f32.mrb[0].mxu0
    %v2699 = vpop.f32.mrb[0].mxu0
    %v2700 = vadd.f32 %v561, %v2699
    %v2701 = vpop.f32.mrb[0].mxu0
    %2702 = vmatprep.mubr.bf16.mxu0 0
    %2703 = vmatmul.mubr.bf16.gmra.mrb[0].mxu0 %v1871
    %v2704 = vpop.f32.mrb[0].mxu0
    %v2705 = vadd.f32 %v561, %v2704
    %v2706 = vpop.f32.mrb[0].mxu0
    %v2707 = vpop.f32.mrb[0].mxu0
    %v2708 = vadd.f32 %v561, %v2707
    %v2709 = vpop.f32.mrb[0].mxu0
    %2710 = vmatprep.mubr.bf16.mxu0 0
    %2711 = vmatmul.mubr.bf16.gmra.mrb[0].mxu0 %v1874
    %v2712 = vpop.f32.mrb[0].mxu0
    %v2713 = vadd.f32 %v561, %v2712
    %v2714 = vpop.f32.mrb[0].mxu0
    %v2715 = vpop.f32.mrb[0].mxu0
    %v2716 = vadd.f32 %v561, %v2715
    %v2717 = vpop.f32.mrb[0].mxu0
    %2718 = vmatprep.mubr.bf16.mxu0 0
    %2719 = vmatmul.mubr.bf16.gmra.mrb[0].mxu0 %v1877
    %v2720 = vpop.f32.mrb[0].mxu0
    %v2721 = vadd.f32 %v561, %v2720
    %v2722 = vpop.f32.mrb[0].mxu0
    %v2723 = vpop.f32.mrb[0].mxu0
    %v2724 = vadd.f32 %v561, %v2723
    %v2725 = vpop.f32.mrb[0].mxu0
    %2726 = vmatprep.mubr.bf16.mxu0 0
    %2727 = vmatmul.mubr.bf16.gmra.mrb[0].mxu0 %v1880
    %v2728 = vpop.f32.mrb[0].mxu0
    %v2729 = vadd.f32 %v561, %v2728
    %v2730 = vpop.f32.mrb[0].mxu0
    %v2731 = vpop.f32.mrb[0].mxu0
    %v2732 = vadd.f32 %v561, %v2731
    %v2733 = vpop.f32.mrb[0].mxu0
    %2734 = vmatprep.mubr.bf16.mxu0 0
    %2735 = vmatmul.mubr.bf16.gmra.mrb[0].mxu0 %v1883
    %v2736 = vpop.f32.mrb[0].mxu0
    %v2737 = vadd.f32 %v561, %v2736
    %v2738 = vpop.f32.mrb[0].mxu0
    %v2739 = vpop.f32.mrb[0].mxu0
    %v2740 = vadd.f32 %v561, %v2739
    %v2741 = vpop.f32.mrb[0].mxu0
    %2742 = vmatprep.mubr.bf16.mxu0 0
    %2743 = vmatmul.mubr.bf16.gmra.mrb[0].mxu0 %v1886
    %v2744 = vpop.f32.mrb[0].mxu0
    %v2745 = vadd.f32 %v561, %v2744
    %v2746 = vpop.f32.mrb[0].mxu0
    %v2747 = vpop.f32.mrb[0].mxu0
    %v2748 = vadd.f32 %v561, %v2747
    %v2749 = vpop.f32.mrb[0].mxu0
    %2750 = vmatprep.mubr.bf16.mxu0 0
    %2751 = vmatmul.mubr.bf16.gmra.mrb[0].mxu0 %v1889
    %v2752 = vpop.f32.mrb[0].mxu0
    %v2753 = vadd.f32 %v561, %v2752
    %v2754 = vpop.f32.mrb[0].mxu0
    %v2755 = vpop.f32.mrb[0].mxu0
    %v2756 = vadd.f32 %v561, %v2755
    %v2757 = vpop.f32.mrb[0].mxu0
    %2758 = vmatprep.mubr.bf16.mxu0 0
    %2759 = vmatmul.mubr.bf16.gmra.mrb[0].mxu0 %v1892
    %v2760 = vpop.f32.mrb[0].mxu0
    %v2761 = vadd.f32 %v561, %v2760
    %v2762 = vpop.f32.mrb[0].mxu0
    %v2763 = vpop.f32.mrb[0].mxu0
    %v2764 = vadd.f32 %v561, %v2763
    %v2765 = vpop.f32.mrb[0].mxu0
    %2766 = vmatprep.mubr.bf16.mxu0 0
    %2767 = vmatmul.mubr.bf16.gmra.mrb[0].mxu0 %v1895
    %v2768 = vpop.f32.mrb[0].mxu0
    %v2769 = vadd.f32 %v561, %v2768
    %v2770 = vpop.f32.mrb[0].mxu0
    %v2771 = vpop.f32.mrb[0].mxu0
    %v2772 = vadd.f32 %v561, %v2771
    %v2773 = vpop.f32.mrb[0].mxu0
    %2774 = vmatprep.mubr.bf16.mxu0 0
    %2775 = vmatmul.mubr.bf16.gmra.mrb[0].mxu0 %v1898
    %v2776 = vpop.f32.mrb[0].mxu0
    %v2777 = vadd.f32 %v561, %v2776
    %v2778 = vpop.f32.mrb[0].mxu0
    %v2779 = vpop.f32.mrb[0].mxu0
    %v2780 = vadd.f32 %v561, %v2779
    %v2781 = vpop.f32.mrb[0].mxu0
    %2782 = vmatprep.mubr.bf16.mxu0 0
    %2783 = vmatmul.mubr.bf16.gmra.mrb[0].mxu0 %v1901
    %v2784 = vpop.f32.mrb[0].mxu0
    %v2785 = vadd.f32 %v561, %v2784
    %v2786 = vpop.f32.mrb[0].mxu0
    %v2787 = vpop.f32.mrb[0].mxu0
    %v2788 = vadd.f32 %v561, %v2787
    %v2789 = vpop.f32.mrb[0].mxu0
    %2790 = vmatprep.mubr.bf16.mxu0 0
    %2791 = vmatmul.mubr.bf16.gmra.mrb[0].mxu0 %v1904
    %v2792 = vpop.f32.mrb[0].mxu0
    %v2793 = vadd.f32 %v561, %v2792
    %v2794 = vpop.f32.mrb[0].mxu0
    %v2795 = vpop.f32.mrb[0].mxu0
    %v2796 = vadd.f32 %v561, %v2795
    %v2797 = vpop.f32.mrb[0].mxu0
    %2798 = vmatprep.mubr.bf16.mxu0 0
    %2799 = vmatmul.mubr.bf16.gmra.mrb[0].mxu0 %v1907
    %v2800 = vpop.f32.mrb[0].mxu0
    %v2801 = vadd.f32 %v561, %v2800
    %v2802 = vpop.f32.mrb[0].mxu0
    %v2803 = vpop.f32.mrb[0].mxu0
    %v2804 = vadd.f32 %v561, %v2803
    %v2805 = vpop.f32.mrb[0].mxu0
    %2806 = vmatprep.mubr.bf16.mxu0 0
    %2807 = vmatmul.mubr.bf16.gmra.mrb[0].mxu0 %v1910
    %v2808 = vpop.f32.mrb[0].mxu0
    %v2809 = vadd.f32 %v561, %v2808
    %v2810 = vpop.f32.mrb[0].mxu0
    %v2811 = vpop.f32.mrb[0].mxu0
    %v2812 = vadd.f32 %v561, %v2811
    %v2813 = vpop.f32.mrb[0].mxu0
    %2814 = vmatprep.mubr.bf16.mxu0 0
    %2815 = vmatmul.mubr.bf16.gmra.mrb[0].mxu0 %v1913
    %v2816 = vpop.f32.mrb[0].mxu0
    %v2817 = vadd.f32 %v561, %v2816
    %v2818 = vpop.f32.mrb[0].mxu0
    %v2819 = vpop.f32.mrb[0].mxu0
    %v2820 = vadd.f32 %v561, %v2819
    %v2821 = vpop.f32.mrb[0].mxu0
    %2822 = vmatprep.mubr.bf16.mxu0 0
    %2823 = vmatmul.mubr.bf16.gmra.mrb[0].mxu0 %v1916
    %v2824 = vpop.f32.mrb[0].mxu0
    %v2825 = vadd.f32 %v561, %v2824
    %v2826 = vpop.f32.mrb[0].mxu0
    %v2827 = vpop.f32.mrb[0].mxu0
    %v2828 = vadd.f32 %v561, %v2827
    %v2829 = vpop.f32.mrb[0].mxu0
    %2830 = vmatprep.mubr.bf16.mxu0 0
    %2831 = vmatmul.mubr.bf16.gmra.mrb[0].mxu0 %v1919
    %v2832 = vpop.f32.mrb[0].mxu0
    %v2833 = vadd.f32 %v561, %v2832
    %v2834 = vpop.f32.mrb[0].mxu0
    %v2835 = vpop.f32.mrb[0].mxu0
    %v2836 = vadd.f32 %v561, %v2835
    %v2837 = vpop.f32.mrb[0].mxu0
    %2838 = vmatprep.mubr.bf16.mxu0 0
    %2839 = vmatmul.mubr.bf16.gmra.mrb[0].mxu0 %v1922
    %v2840 = vpop.f32.mrb[0].mxu0
    %v2841 = vadd.f32 %v561, %v2840
    %v2842 = vpop.f32.mrb[0].mxu0
    %v2843 = vpop.f32.mrb[0].mxu0
    %v2844 = vadd.f32 %v561, %v2843
    %v2845 = vpop.f32.mrb[0].mxu0
    %2846 = vmatprep.mubr.bf16.mxu0 0
    %2847 = vmatmul.mubr.bf16.gmra.mrb[0].mxu0 %v1925
    %v2848 = vpop.f32.mrb[0].mxu0
    %v2849 = vadd.f32 %v561, %v2848
    %v2850 = vpop.f32.mrb[0].mxu0
    %v2851 = vpop.f32.mrb[0].mxu0
    %v2852 = vadd.f32 %v561, %v2851
    %v2853 = vpop.f32.mrb[0].mxu0
    %2854 = vmatprep.mubr.bf16.mxu0 0
    %2855 = vmatmul.mubr.bf16.gmra.mrb[0].mxu0 %v1928
    %v2856 = vpop.f32.mrb[0].mxu0
    %v2857 = vadd.f32 %v561, %v2856
    %v2858 = vpop.f32.mrb[0].mxu0
    %v2859 = vpop.f32.mrb[0].mxu0
    %v2860 = vadd.f32 %v561, %v2859
    %v2861 = vpop.f32.mrb[0].mxu0
    %2862 = vmatprep.mubr.bf16.mxu0 0
    %2863 = vmatmul.mubr.bf16.gmra.mrb[0].mxu0 %v1931
    %v2864 = vpop.f32.mrb[0].mxu0
    %v2865 = vadd.f32 %v561, %v2864
    %v2866 = vpop.f32.mrb[0].mxu0
    %v2867 = vpop.f32.mrb[0].mxu0
    %v2868 = vadd.f32 %v561, %v2867
    %v2869 = vpop.f32.mrb[0].mxu0
    %2870 = vmatprep.mubr.bf16.mxu0 0
    %2871 = vmatmul.mubr.bf16.gmra.mrb[0].mxu0 %v1934
    %v2872 = vpop.f32.mrb[0].mxu0
    %v2873 = vadd.f32 %v561, %v2872
    %v2874 = vpop.f32.mrb[0].mxu0
    %v2875 = vpop.f32.mrb[0].mxu0
    %v2876 = vadd.f32 %v561, %v2875
    %v2877 = vpop.f32.mrb[0].mxu0
    %2878 = vmatprep.mubr.bf16.mxu0 0
    %2879 = vmatmul.mubr.bf16.gmra.mrb[0].mxu0 %v1937
    %v2880 = vpop.f32.mrb[0].mxu0
    %v2881 = vadd.f32 %v561, %v2880
    %v2882 = vpop.f32.mrb[0].mxu0
    %v2883 = vpop.f32.mrb[0].mxu0
    %v2884 = vadd.f32 %v561, %v2883
    %v2885 = vpop.f32.mrb[0].mxu0
    %2886 = vmatprep.mubr.bf16.mxu0 0
    %2887 = vmatmul.mubr.bf16.gmra.mrb[0].mxu0 %v1940
    %v2888 = vpop.f32.mrb[0].mxu0
    %v2889 = vadd.f32 %v561, %v2888
    %v2890 = vpop.f32.mrb[0].mxu0
    %v2891 = vpop.f32.mrb[0].mxu0
    %v2892 = vadd.f32 %v561, %v2891
    %v2893 = vpop.f32.mrb[0].mxu0
    %2894 = vmatprep.mubr.bf16.mxu0 0
    %2895 = vmatmul.mubr.bf16.gmra.mrb[0].mxu0 %v1943
    %v2896 = vpop.f32.mrb[0].mxu0
    %v2897 = vadd.f32 %v561, %v2896
    %v2898 = vpop.f32.mrb[0].mxu0
    %v2899 = vpop.f32.mrb[0].mxu0
    %v2900 = vadd.f32 %v561, %v2899
    %v2901 = vpop.f32.mrb[0].mxu0
    %2902 = vmatprep.mubr.bf16.mxu0 0
    %2903 = vmatmul.mubr.bf16.gmra.mrb[0].mxu0 %v1946
    %v2904 = vpop.f32.mrb[0].mxu0
    %v2905 = vadd.f32 %v561, %v2904
    %v2906 = vpop.f32.mrb[0].mxu0
    %v2907 = vpop.f32.mrb[0].mxu0
    %v2908 = vadd.f32 %v561, %v2907
    %v2909 = vpop.f32.mrb[0].mxu0
    %2910 = vmatprep.mubr.bf16.mxu0 0
    %2911 = vmatmul.mubr.bf16.gmra.mrb[0].mxu0 %v1949
    %v2912 = vpop.f32.mrb[0].mxu0
    %v2913 = vadd.f32 %v561, %v2912
    %v2914 = vpop.f32.mrb[0].mxu0
    %v2915 = vpop.f32.mrb[0].mxu0
    %v2916 = vadd.f32 %v561, %v2915
    %v2917 = vpop.f32.mrb[0].mxu0
    %2918 = vmatprep.mubr.bf16.mxu0 0
    %2919 = vmatmul.mubr.bf16.gmra.mrb[0].mxu0 %v1952
    %v2920 = vpop.f32.mrb[0].mxu0
    %v2921 = vadd.f32 %v561, %v2920
    %v2922 = vpop.f32.mrb[0].mxu0
    %v2923 = vpop.f32.mrb[0].mxu0
    %v2924 = vadd.f32 %v561, %v2923
    %v2925 = vpop.f32.mrb[0].mxu0
    %2926 = vmatprep.mubr.bf16.mxu0 0
    %2927 = vmatmul.mubr.bf16.gmra.mrb[0].mxu0 %v1955
    %v2928 = vpop.f32.mrb[0].mxu0
    %v2929 = vadd.f32 %v561, %v2928
    %v2930 = vpop.f32.mrb[0].mxu0
    %v2931 = vpop.f32.mrb[0].mxu0
    %v2932 = vadd.f32 %v561, %v2931
    %v2933 = vpop.f32.mrb[0].mxu0
    %2934 = vmatprep.mubr.bf16.mxu0 0
    %2935 = vmatmul.mubr.bf16.gmra.mrb[0].mxu0 %v1958
    %v2936 = vpop.f32.mrb[0].mxu0
    %v2937 = vadd.f32 %v561, %v2936
    %v2938 = vpop.f32.mrb[0].mxu0
    %v2939 = vpop.f32.mrb[0].mxu0
    %v2940 = vadd.f32 %v561, %v2939
    %v2941 = vpop.f32.mrb[0].mxu0
    %2942 = vmatprep.mubr.bf16.mxu0 0
    %2943 = vmatmul.mubr.bf16.gmra.mrb[0].mxu0 %v1961
    %v2944 = vpop.f32.mrb[0].mxu0
    %v2945 = vadd.f32 %v561, %v2944
    %v2946 = vpop.f32.mrb[0].mxu0
    %v2947 = vpop.f32.mrb[0].mxu0
    %v2948 = vadd.f32 %v561, %v2947
    %v2949 = vpop.f32.mrb[0].mxu0
    %2950 = vmatprep.mubr.bf16.mxu0 0
    %2951 = vmatmul.mubr.bf16.gmra.mrb[0].mxu0 %v1964
    %v2952 = vpop.f32.mrb[0].mxu0
    %v2953 = vadd.f32 %v561, %v2952
    %v2954 = vpop.f32.mrb[0].mxu0
    %v2955 = vpop.f32.mrb[0].mxu0
    %v2956 = vadd.f32 %v561, %v2955
    %v2957 = vpop.f32.mrb[0].mxu0
    %2958 = vmatprep.mubr.bf16.mxu0 0
    %2959 = vmatmul.mubr.bf16.gmra.mrb[0].mxu0 %v1967
    %v2960 = vpop.f32.mrb[0].mxu0
    %v2961 = vadd.f32 %v561, %v2960
    %v2962 = vpop.f32.mrb[0].mxu0
    %v2963 = vpop.f32.mrb[0].mxu0
    %v2964 = vadd.f32 %v561, %v2963
    %v2965 = vpop.f32.mrb[0].mxu0
    %2966 = vmatprep.mubr.bf16.mxu0 0
    %2967 = vmatmul.mubr.bf16.gmra.mrb[0].mxu0 %v1970
    %v2968 = vpop.f32.mrb[0].mxu0
    %v2969 = vadd.f32 %v561, %v2968
    %v2970 = vpop.f32.mrb[0].mxu0
    %v2971 = vpop.f32.mrb[0].mxu0
    %v2972 = vadd.f32 %v561, %v2971
    %v2973 = vpop.f32.mrb[0].mxu0
    %2974 = vmatprep.mubr.bf16.mxu0 0
    %2975 = vmatmul.mubr.bf16.gmra.mrb[0].mxu0 %v1973
    %v2976 = vpop.f32.mrb[0].mxu0
    %v2977 = vadd.f32 %v561, %v2976
    %v2978 = vpop.f32.mrb[0].mxu0
    %v2979 = vpop.f32.mrb[0].mxu0
    %v2980 = vadd.f32 %v561, %v2979
    %v2981 = vpop.f32.mrb[0].mxu0
    %2982 = vmatprep.mubr.bf16.mxu0 0
    %2983 = vmatmul.mubr.bf16.gmra.mrb[0].mxu0 %v1976
    %v2984 = vpop.f32.mrb[0].mxu0
    %v2985 = vadd.f32 %v561, %v2984
    %v2986 = vpop.f32.mrb[0].mxu0
    %v2987 = vpop.f32.mrb[0].mxu0
    %v2988 = vadd.f32 %v561, %v2987
    %v2989 = vpop.f32.mrb[0].mxu0
    %2990 = vmatprep.mubr.bf16.mxu0 0
    %2991 = vmatmul.mubr.bf16.gmra.mrb[0].mxu0 %v1979
    %v2992 = vpop.f32.mrb[0].mxu0
    %v2993 = vadd.f32 %v561, %v2992
    %v2994 = vpop.f32.mrb[0].mxu0
    %v2995 = vpop.f32.mrb[0].mxu0
    %v2996 = vadd.f32 %v561, %v2995
    %v2997 = vpop.f32.mrb[0].mxu0
    %2998 = vmatprep.mubr.bf16.mxu0 0
    %2999 = vmatmul.mubr.bf16.gmra.mrb[0].mxu0 %v1982
    %v3000 = vpop.f32.mrb[0].mxu0
    %v3001 = vadd.f32 %v561, %v3000
    %v3002 = vpop.f32.mrb[0].mxu0
    %v3003 = vpop.f32.mrb[0].mxu0
    %v3004 = vadd.f32 %v561, %v3003
    %v3005 = vpop.f32.mrb[0].mxu0
    %3006 = vmatprep.mubr.bf16.mxu0 0
    %3007 = vmatmul.mubr.bf16.gmra.mrb[0].mxu0 %v1985
    %v3008 = vpop.f32.mrb[0].mxu0
    %v3009 = vadd.f32 %v561, %v3008
    %v3010 = vpop.f32.mrb[0].mxu0
    %v3011 = vpop.f32.mrb[0].mxu0
    %v3012 = vadd.f32 %v561, %v3011
    %v3013 = vpop.f32.mrb[0].mxu0
    %3014 = vmatprep.mubr.bf16.mxu0 0
    %3015 = vmatmul.mubr.bf16.gmra.mrb[0].mxu0 %v1988
    %v3016 = vpop.f32.mrb[0].mxu0
    %v3017 = vadd.f32 %v561, %v3016
    %v3018 = vpop.f32.mrb[0].mxu0
    %v3019 = vpop.f32.mrb[0].mxu0
    %v3020 = vadd.f32 %v561, %v3019
    %v3021 = vpop.f32.mrb[0].mxu0
    %3022 = vmatprep.mubr.bf16.mxu0 0
    %3023 = vmatmul.mubr.bf16.gmra.mrb[0].mxu0 %v1991
    %v3024 = vpop.f32.mrb[0].mxu0
    %v3025 = vadd.f32 %v561, %v3024
    %v3026 = vpop.f32.mrb[0].mxu0
    %v3027 = vpop.f32.mrb[0].mxu0
    %v3028 = vadd.f32 %v561, %v3027
    %v3029 = vpop.f32.mrb[0].mxu0
    %3030 = vmatprep.mubr.bf16.mxu0 0
    %3031 = vmatmul.mubr.bf16.gmra.mrb[0].mxu0 %v1994
    %v3032 = vpop.f32.mrb[0].mxu0
    %v3033 = vadd.f32 %v561, %v3032
    %v3034 = vpop.f32.mrb[0].mxu0
    %v3035 = vpop.f32.mrb[0].mxu0
    %v3036 = vadd.f32 %v561, %v3035
    %v3037 = vpop.f32.mrb[0].mxu0
    %3038 = vmatprep.mubr.bf16.mxu0 0
    %3039 = vmatmul.mubr.bf16.gmra.mrb[0].mxu0 %v1997
    %v3040 = vpop.f32.mrb[0].mxu0
    %v3041 = vadd.f32 %v561, %v3040
    %v3042 = vpop.f32.mrb[0].mxu0
    %v3043 = vpop.f32.mrb[0].mxu0
    %v3044 = vadd.f32 %v561, %v3043
    %v3045 = vpop.f32.mrb[0].mxu0
    %3046 = vmatprep.mubr.bf16.mxu0 0
    %3047 = vmatmul.mubr.bf16.gmra.mrb[0].mxu0 %v2000
    %v3048 = vpop.f32.mrb[0].mxu0
    %v3049 = vadd.f32 %v561, %v3048
    %v3050 = vpop.f32.mrb[0].mxu0
    %v3051 = vpop.f32.mrb[0].mxu0
    %v3052 = vadd.f32 %v561, %v3051
    %v3053 = vpop.f32.mrb[0].mxu0
    %3054 = vmatprep.mubr.bf16.mxu0 0
    %3055 = vmatmul.mubr.bf16.gmra.mrb[0].mxu0 %v2003
    %v3056 = vpop.f32.mrb[0].mxu0
    %v3057 = vadd.f32 %v561, %v3056
    %v3058 = vpop.f32.mrb[0].mxu0
    %v3059 = vpop.f32.mrb[0].mxu0
    %v3060 = vadd.f32 %v561, %v3059
    %v3061 = vpop.f32.mrb[0].mxu0
    %3062 = vmatprep.mubr.bf16.mxu0 0
    %3063 = vmatmul.mubr.bf16.gmra.mrb[0].mxu0 %v2006
    %v3064 = vpop.f32.mrb[0].mxu0
    %v3065 = vadd.f32 %v561, %v3064
    %v3066 = vpop.f32.mrb[0].mxu0
    %v3067 = vpop.f32.mrb[0].mxu0
    %v3068 = vadd.f32 %v561, %v3067
    %v3069 = vpop.f32.mrb[0].mxu0
    %3070 = vmatprep.mubr.bf16.mxu0 0
    %3071 = vmatmul.mubr.bf16.gmra.mrb[0].mxu0 %v2009
    %v3072 = vpop.f32.mrb[0].mxu0
    %v3073 = vadd.f32 %v561, %v3072
    %v3074 = vpop.f32.mrb[0].mxu0
    %v3075 = vpop.f32.mrb[0].mxu0
    %v3076 = vadd.f32 %v561, %v3075
    %v3077 = vpop.f32.mrb[0].mxu0
    %3078 = vmatprep.mubr.bf16.mxu0 0
    %3079 = vmatmul.mubr.bf16.gmra.mrb[0].mxu0 %v2012
    %v3080 = vpop.f32.mrb[0].mxu0
    %v3081 = vadd.f32 %v561, %v3080
    %v3082 = vpop.f32.mrb[0].mxu0
    %v3083 = vpop.f32.mrb[0].mxu0
    %v3084 = vadd.f32 %v561, %v3083
    %v3085 = vpop.f32.mrb[0].mxu0
    %3086 = vmatprep.mubr.bf16.mxu0 0
    %3087 = vmatmul.mubr.bf16.gmra.mrb[0].mxu0 %v2015
    %v3088 = vpop.f32.mrb[0].mxu0
    %v3089 = vadd.f32 %v561, %v3088
    %v3090 = vpop.f32.mrb[0].mxu0
    %v3091 = vpop.f32.mrb[0].mxu0
    %v3092 = vadd.f32 %v561, %v3091
    %v3093 = vpop.f32.mrb[0].mxu0
    %3094 = vmatprep.mubr.bf16.mxu0 0
    %3095 = vmatmul.mubr.bf16.gmra.mrb[0].mxu0 %v2018
    %v3096 = vpop.f32.mrb[0].mxu0
    %v3097 = vadd.f32 %v561, %v3096
    %v3098 = vpop.f32.mrb[0].mxu0
    %v3099 = vpop.f32.mrb[0].mxu0
    %v3100 = vadd.f32 %v561, %v3099
    %v3101 = vpop.f32.mrb[0].mxu0
    %3102 = vmatprep.mubr.bf16.mxu0 0
    %3103 = vmatmul.mubr.bf16.gmra.mrb[0].mxu0 %v2021
    %v3104 = vpop.f32.mrb[0].mxu0
    %v3105 = vadd.f32 %v561, %v3104
    %v3106 = vpop.f32.mrb[0].mxu0
    %v3107 = vpop.f32.mrb[0].mxu0
    %v3108 = vadd.f32 %v561, %v3107
    %v3109 = vpop.f32.mrb[0].mxu0
    %3110 = vmatprep.mubr.bf16.mxu0 0
    %3111 = vmatmul.mubr.bf16.gmra.mrb[0].mxu0 %v2024
    %v3112 = vpop.f32.mrb[0].mxu0
    %v3113 = vadd.f32 %v561, %v3112
    %v3114 = vpop.f32.mrb[0].mxu0
    %v3115 = vpop.f32.mrb[0].mxu0
    %v3116 = vadd.f32 %v561, %v3115
    %v3117 = vpop.f32.mrb[0].mxu0
    %3118 = vmatprep.mubr.bf16.mxu0 0
    %3119 = vmatmul.mubr.bf16.gmra.mrb[0].mxu0 %v2027
    %v3120 = vpop.f32.mrb[0].mxu0
    %v3121 = vadd.f32 %v561, %v3120
    %v3122 = vpop.f32.mrb[0].mxu0
    %v3123 = vpop.f32.mrb[0].mxu0
    %v3124 = vadd.f32 %v561, %v3123
    %v3125 = vpop.f32.mrb[0].mxu0
    %3126 = vmatprep.mubr.bf16.mxu0 0
    %3127 = vmatmul.mubr.bf16.gmra.mrb[0].mxu0 %v2030
    %v3128 = vpop.f32.mrb[0].mxu0
    %v3129 = vadd.f32 %v561, %v3128
    %v3130 = vpop.f32.mrb[0].mxu0
    %v3131 = vpop.f32.mrb[0].mxu0
    %v3132 = vadd.f32 %v561, %v3131
    %v3133 = vpop.f32.mrb[0].mxu0
    %3134 = vmatprep.mubr.bf16.mxu0 0
    %3135 = vmatmul.mubr.bf16.gmra.mrb[0].mxu0 %v2033
    %v3136 = vpop.f32.mrb[0].mxu0
    %v3137 = vadd.f32 %v561, %v3136
    %v3138 = vpop.f32.mrb[0].mxu0
    %v3139 = vpop.f32.mrb[0].mxu0
    %v3140 = vadd.f32 %v561, %v3139
    %v3141 = vpop.f32.mrb[0].mxu0
    %3142 = vmatprep.mubr.bf16.mxu0 0
    %3143 = vmatmul.mubr.bf16.gmra.mrb[0].mxu0 %v2036
    %v3144 = vpop.f32.mrb[0].mxu0
    %v3145 = vadd.f32 %v561, %v3144
    %v3146 = vpop.f32.mrb[0].mxu0
    %v3147 = vpop.f32.mrb[0].mxu0
    %v3148 = vadd.f32 %v561, %v3147
    %v3149 = vpop.f32.mrb[0].mxu0
    %3150 = vmatprep.mubr.bf16.mxu0 0
    %3151 = vmatmul.mubr.bf16.gmra.mrb[0].mxu0 %v2039
    %v3152 = vpop.f32.mrb[0].mxu0
    %v3153 = vadd.f32 %v561, %v3152
    %v3154 = vpop.f32.mrb[0].mxu0
    %v3155 = vpop.f32.mrb[0].mxu0
    %v3156 = vadd.f32 %v561, %v3155
    %v3157 = vpop.f32.mrb[0].mxu0
    %3158 = vmatprep.mubr.bf16.mxu0 0
    %3159 = vmatmul.mubr.bf16.gmra.mrb[0].mxu0 %v2042
    %v3160 = vpop.f32.mrb[0].mxu0
    %v3161 = vadd.f32 %v561, %v3160
    %v3162 = vpop.f32.mrb[0].mxu0
    %v3163 = vpop.f32.mrb[0].mxu0
    %v3164 = vadd.f32 %v561, %v3163
    %v3165 = vpop.f32.mrb[0].mxu0
    %3166 = vmatprep.mubr.bf16.mxu0 0
    %3167 = vmatmul.mubr.bf16.gmra.mrb[0].mxu0 %v2045
    %v3168 = vpop.f32.mrb[0].mxu0
    %v3169 = vadd.f32 %v561, %v3168
    %v3170 = vpop.f32.mrb[0].mxu0
    %v3171 = vpop.f32.mrb[0].mxu0
    %v3172 = vadd.f32 %v561, %v3171
    %v3173 = vpop.f32.mrb[0].mxu0
    %3174 = vmatprep.mubr.bf16.mxu0 0
    %3175 = vmatmul.mubr.bf16.gmra.mrb[0].mxu0 %v2048
    %v3176 = vpop.f32.mrb[0].mxu0
    %v3177 = vadd.f32 %v561, %v3176
    %v3178 = vpop.f32.mrb[0].mxu0
    %v3179 = vpop.f32.mrb[0].mxu0
    %v3180 = vadd.f32 %v561, %v3179
    %v3181 = vpop.f32.mrb[0].mxu0
    %3182 = vmatprep.mubr.bf16.mxu0 0
    %3183 = vmatmul.mubr.bf16.gmra.mrb[0].mxu0 %v2051
    %v3184 = vpop.f32.mrb[0].mxu0
    %v3185 = vadd.f32 %v561, %v3184
    %v3186 = vpop.f32.mrb[0].mxu0
    %v3187 = vpop.f32.mrb[0].mxu0
    %v3188 = vadd.f32 %v561, %v3187
    %v3189 = vpop.f32.mrb[0].mxu0
    %3190 = vmatprep.mubr.bf16.mxu0 0
    %3191 = vmatmul.mubr.bf16.gmra.mrb[0].mxu0 %v2054
    %v3192 = vpop.f32.mrb[0].mxu0
    %v3193 = vadd.f32 %v561, %v3192
    %v3194 = vpop.f32.mrb[0].mxu0
    %v3195 = vpop.f32.mrb[0].mxu0
    %v3196 = vadd.f32 %v561, %v3195
    %v3197 = vpop.f32.mrb[0].mxu0
    %3198 = vmatprep.mubr.bf16.mxu0 0
    %3199 = vmatmul.mubr.bf16.gmra.mrb[0].mxu0 %v2057
    %v3200 = vpop.f32.mrb[0].mxu0
    %v3201 = vadd.f32 %v561, %v3200
    %v3202 = vpop.f32.mrb[0].mxu0
    %v3203 = vpop.f32.mrb[0].mxu0
    %v3204 = vadd.f32 %v561, %v3203
    %v3205 = vpop.f32.mrb[0].mxu0
    %3206 = vmatprep.mubr.bf16.mxu0 0
    %3207 = vmatmul.mubr.bf16.gmra.mrb[0].mxu0 %v2060
    %v3208 = vpop.f32.mrb[0].mxu0
    %v3209 = vadd.f32 %v561, %v3208
    %v3210 = vpop.f32.mrb[0].mxu0
    %v3211 = vpop.f32.mrb[0].mxu0
    %v3212 = vadd.f32 %v561, %v3211
    %v3213 = vpop.f32.mrb[0].mxu0
    %3214 = vmatprep.mubr.bf16.mxu0 0
    %3215 = vmatmul.mubr.bf16.gmra.mrb[0].mxu0 %v2063
    %v3216 = vpop.f32.mrb[0].mxu0
    %v3217 = vadd.f32 %v561, %v3216
    %v3218 = vpop.f32.mrb[0].mxu0
    %v3219 = vpop.f32.mrb[0].mxu0
    %v3220 = vadd.f32 %v561, %v3219
    %v3221 = vpop.f32.mrb[0].mxu0
    %3222 = vmatprep.mubr.bf16.mxu0 0
    %3223 = vmatmul.mubr.bf16.gmra.mrb[0].mxu0 %v2066
    %v3224 = vpop.f32.mrb[0].mxu0
    %v3225 = vadd.f32 %v561, %v3224
    %v3226 = vpop.f32.mrb[0].mxu0
    %v3227 = vpop.f32.mrb[0].mxu0
    %v3228 = vadd.f32 %v561, %v3227
    %v3229 = vpop.f32.mrb[0].mxu0
    %3230 = vmatprep.mubr.bf16.mxu0 0
    %3231 = vmatmul.mubr.bf16.gmra.mrb[0].mxu0 %v2069
    %v3232 = vpop.f32.mrb[0].mxu0
    %v3233 = vadd.f32 %v561, %v3232
    %v3234 = vpop.f32.mrb[0].mxu0
    %v3235 = vpop.f32.mrb[0].mxu0
    %v3236 = vadd.f32 %v561, %v3235
    %v3237 = vpop.f32.mrb[0].mxu0
    %3238 = vmatprep.mubr.bf16.mxu0 0
    %3239 = vmatmul.mubr.bf16.gmra.mrb[0].mxu0 %v2072
    %v3240 = vpop.f32.mrb[0].mxu0
    %v3241 = vadd.f32 %v561, %v3240
    %v3242 = vpop.f32.mrb[0].mxu0
    %v3243 = vpop.f32.mrb[0].mxu0
    %v3244 = vadd.f32 %v561, %v3243
    %v3245 = vpop.f32.mrb[0].mxu0
    %3246 = vmatprep.mubr.bf16.mxu0 0
    %3247 = vmatmul.mubr.bf16.gmra.mrb[0].mxu0 %v2075
    %v3248 = vpop.f32.mrb[0].mxu0
    %v3249 = vadd.f32 %v561, %v3248
    %v3250 = vpop.f32.mrb[0].mxu0
    %v3251 = vpop.f32.mrb[0].mxu0
    %v3252 = vadd.f32 %v561, %v3251
    %v3253 = vpop.f32.mrb[0].mxu0
    %3254 = vmatprep.mubr.bf16.mxu0 0
    %3255 = vmatmul.mubr.bf16.gmra.mrb[0].mxu0 %v2078
    %v3256 = vpop.f32.mrb[0].mxu0
    %v3257 = vadd.f32 %v561, %v3256
    %v3258 = vpop.f32.mrb[0].mxu0
    %v3259 = vpop.f32.mrb[0].mxu0
    %v3260 = vadd.f32 %v561, %v3259
    %v3261 = vpop.f32.mrb[0].mxu0
    %3262 = vmatprep.mubr.bf16.mxu0 0
    %3263 = vmatmul.mubr.bf16.gmra.mrb[0].mxu0 %v2081
    %v3264 = vpop.f32.mrb[0].mxu0
    %v3265 = vadd.f32 %v561, %v3264
    %v3266 = vpop.f32.mrb[0].mxu0
    %v3267 = vpop.f32.mrb[0].mxu0
    %v3268 = vadd.f32 %v561, %v3267
    %v3269 = vpop.f32.mrb[0].mxu0
    %3270 = vmatprep.mubr.bf16.mxu0 0
    %3271 = vmatmul.mubr.bf16.gmra.mrb[0].mxu0 %v2084
    %v3272 = vpop.f32.mrb[0].mxu0
    %v3273 = vadd.f32 %v561, %v3272
    %v3274 = vpop.f32.mrb[0].mxu0
    %v3275 = vpop.f32.mrb[0].mxu0
    %v3276 = vadd.f32 %v561, %v3275
    %v3277 = vpop.f32.mrb[0].mxu0
    %3278 = vmatprep.mubr.bf16.mxu0 0
    %3279 = vmatmul.mubr.bf16.gmra.mrb[0].mxu0 %v2087
    %v3280 = vpop.f32.mrb[0].mxu0
    %v3281 = vadd.f32 %v561, %v3280
    %v3282 = vpop.f32.mrb[0].mxu0
    %v3283 = vpop.f32.mrb[0].mxu0
    %v3284 = vadd.f32 %v561, %v3283
    %v3285 = vpop.f32.mrb[0].mxu0
    %3286 = vmatprep.mubr.bf16.mxu0 0
    %3287 = vmatmul.mubr.bf16.gmra.mrb[0].mxu0 %v2090
    %v3288 = vpop.f32.mrb[0].mxu0
    %v3289 = vadd.f32 %v561, %v3288
    %v3290 = vpop.f32.mrb[0].mxu0
    %v3291 = vpop.f32.mrb[0].mxu0
    %v3292 = vadd.f32 %v561, %v3291
    %v3293 = vpop.f32.mrb[0].mxu0
    %3294 = vmatprep.mubr.bf16.mxu0 0
    %3295 = vmatmul.mubr.bf16.gmra.mrb[0].mxu0 %v2093
    %v3296 = vpop.f32.mrb[0].mxu0
    %v3297 = vadd.f32 %v561, %v3296
    %v3298 = vpop.f32.mrb[0].mxu0
    %v3299 = vpop.f32.mrb[0].mxu0
    %v3300 = vadd.f32 %v561, %v3299
    %v3301 = vpop.f32.mrb[0].mxu0
    %3302 = vmatprep.mubr.bf16.mxu0 0
    %3303 = vmatmul.mubr.bf16.gmra.mrb[0].mxu0 %v2096
    %v3304 = vpop.f32.mrb[0].mxu0
    %v3305 = vadd.f32 %v561, %v3304
    %v3306 = vpop.f32.mrb[0].mxu0
    %v3307 = vpop.f32.mrb[0].mxu0
    %v3308 = vadd.f32 %v561, %v3307
    %v3309 = vpop.f32.mrb[0].mxu0
    %3310 = vmatprep.mubr.bf16.mxu0 0
    %3311 = vmatmul.mubr.bf16.gmra.mrb[0].mxu0 %v2099
    %v3312 = vpop.f32.mrb[0].mxu0
    %v3313 = vadd.f32 %v561, %v3312
    %v3314 = vpop.f32.mrb[0].mxu0
    %v3315 = vpop.f32.mrb[0].mxu0
    %v3316 = vadd.f32 %v561, %v3315
    %v3317 = vpop.f32.mrb[0].mxu0
    %3318 = vmatprep.mubr.bf16.mxu0 0
    %3319 = vmatmul.mubr.bf16.gmra.mrb[0].mxu0 %v2102
    %v3320 = vpop.f32.mrb[0].mxu0
    %v3321 = vadd.f32 %v561, %v3320
    %v3322 = vpop.f32.mrb[0].mxu0
    %v3323 = vpop.f32.mrb[0].mxu0
    %v3324 = vadd.f32 %v561, %v3323
    %v3325 = vpop.f32.mrb[0].mxu0
    %3326 = vmatprep.mubr.bf16.mxu0 0
    %3327 = vmatmul.mubr.bf16.gmra.mrb[0].mxu0 %v2105
    %v3328 = vpop.f32.mrb[0].mxu0
    %v3329 = vadd.f32 %v561, %v3328
    %v3330 = vpop.f32.mrb[0].mxu0
    %v3331 = vpop.f32.mrb[0].mxu0
    %v3332 = vadd.f32 %v561, %v3331
    %v3333 = vpop.f32.mrb[0].mxu0
    %3334 = vmatprep.mubr.bf16.mxu0 0
    %3335 = vmatmul.mubr.bf16.gmra.mrb[0].mxu0 %v2108
    %v3336 = vpop.f32.mrb[0].mxu0
    %v3337 = vadd.f32 %v561, %v3336
    %v3338 = vpop.f32.mrb[0].mxu0
    %v3339 = vpop.f32.mrb[0].mxu0
    %v3340 = vadd.f32 %v561, %v3339
    %v3341 = vpop.f32.mrb[0].mxu0
    %3342 = vmatprep.mubr.bf16.mxu0 0
    %3343 = vmatmul.mubr.bf16.gmra.mrb[0].mxu0 %v2111
    %v3344 = vpop.f32.mrb[0].mxu0
    %v3345 = vadd.f32 %v561, %v3344
    %v3346 = vpop.f32.mrb[0].mxu0
    %v3347 = vpop.f32.mrb[0].mxu0
    %v3348 = vadd.f32 %v561, %v3347
    %v3349 = vpop.f32.mrb[0].mxu0
    %3350 = vmatprep.mubr.bf16.mxu0 0
    %3351 = vmatmul.mubr.bf16.gmra.mrb[0].mxu0 %v2114
    %v3352 = vpop.f32.mrb[0].mxu0
    %v3353 = vadd.f32 %v561, %v3352
    %v3354 = vpop.f32.mrb[0].mxu0
    %v3355 = vpop.f32.mrb[0].mxu0
    %v3356 = vadd.f32 %v561, %v3355
    %v3357 = vpop.f32.mrb[0].mxu0
    %3358 = vmatprep.mubr.bf16.mxu0 0
    %3359 = vmatmul.mubr.bf16.gmra.mrb[0].mxu0 %v2117
    %v3360 = vpop.f32.mrb[0].mxu0
    %v3361 = vadd.f32 %v561, %v3360
    %v3362 = vpop.f32.mrb[0].mxu0
    %v3363 = vpop.f32.mrb[0].mxu0
    %v3364 = vadd.f32 %v561, %v3363
    %v3365 = vpop.f32.mrb[0].mxu0
    %3366 = vmatprep.mubr.bf16.mxu0 0
    %3367 = vmatmul.mubr.bf16.gmra.mrb[0].mxu0 %v2120
    %v3368 = vpop.f32.mrb[0].mxu0
    %v3369 = vadd.f32 %v561, %v3368
    %v3370 = vpop.f32.mrb[0].mxu0
    %v3371 = vpop.f32.mrb[0].mxu0
    %v3372 = vadd.f32 %v561, %v3371
    %v3373 = vpop.f32.mrb[0].mxu0
    %3374 = vmatprep.mubr.bf16.mxu0 0
    %3375 = vmatmul.mubr.bf16.gmra.mrb[0].mxu0 %v2123
    %v3376 = vpop.f32.mrb[0].mxu0
    %v3377 = vadd.f32 %v561, %v3376
    %v3378 = vpop.f32.mrb[0].mxu0
    %v3379 = vpop.f32.mrb[0].mxu0
    %v3380 = vadd.f32 %v561, %v3379
    %v3381 = vpop.f32.mrb[0].mxu0
    %3382 = vmatprep.mubr.bf16.mxu0 0
    %3383 = vmatmul.mubr.bf16.gmra.mrb[0].mxu0 %v2126
    %v3384 = vpop.f32.mrb[0].mxu0
    %v3385 = vadd.f32 %v561, %v3384
    %v3386 = vpop.f32.mrb[0].mxu0
    %v3387 = vpop.f32.mrb[0].mxu0
    %v3388 = vadd.f32 %v561, %v3387
    %v3389 = vpop.f32.mrb[0].mxu0
    %3390 = vmatprep.mubr.bf16.mxu0 0
    %3391 = vmatmul.mubr.bf16.gmra.mrb[0].mxu0 %v2129
    %v3392 = vpop.f32.mrb[0].mxu0
    %v3393 = vadd.f32 %v561, %v3392
    %v3394 = vpop.f32.mrb[0].mxu0
    %v3395 = vpop.f32.mrb[0].mxu0
    %v3396 = vadd.f32 %v561, %v3395
    %v3397 = vpop.f32.mrb[0].mxu0
    %3398 = vmatprep.mubr.bf16.mxu0 0
    %3399 = vmatmul.mubr.bf16.gmra.mrb[0].mxu0 %v2132
    %v3400 = vpop.f32.mrb[0].mxu0
    %v3401 = vadd.f32 %v561, %v3400
    %v3402 = vpop.f32.mrb[0].mxu0
    %v3403 = vpop.f32.mrb[0].mxu0
    %v3404 = vadd.f32 %v561, %v3403
    %v3405 = vpop.f32.mrb[0].mxu0
    %3406 = vmatprep.mubr.bf16.mxu0 0
    %3407 = vmatmul.mubr.bf16.gmra.mrb[0].mxu0 %v2135
    %v3408 = vpop.f32.mrb[0].mxu0
    %v3409 = vadd.f32 %v561, %v3408
    %v3410 = vpop.f32.mrb[0].mxu0
    %v3411 = vpop.f32.mrb[0].mxu0
    %v3412 = vadd.f32 %v561, %v3411
    %v3413 = vpop.f32.mrb[0].mxu0
    %3414 = vmatprep.mubr.bf16.mxu0 0
    %3415 = vmatmul.mubr.bf16.gmra.mrb[0].mxu0 %v2138
    %v3416 = vpop.f32.mrb[0].mxu0
    %v3417 = vadd.f32 %v561, %v3416
    %v3418 = vpop.f32.mrb[0].mxu0
    %v3419 = vpop.f32.mrb[0].mxu0
    %v3420 = vadd.f32 %v561, %v3419
    %v3421 = vpop.f32.mrb[0].mxu0
    %3422 = vmatprep.mubr.bf16.mxu0 0
    %3423 = vmatmul.mubr.bf16.gmra.mrb[0].mxu0 %v2141
    %v3424 = vpop.f32.mrb[0].mxu0
    %v3425 = vadd.f32 %v561, %v3424
    %v3426 = vpop.f32.mrb[0].mxu0
    %v3427 = vpop.f32.mrb[0].mxu0
    %v3428 = vadd.f32 %v561, %v3427
    %v3429 = vpop.f32.mrb[0].mxu0
    %3430 = vmatprep.mubr.bf16.mxu0 0
    %3431 = vmatmul.mubr.bf16.gmra.mrb[0].mxu0 %v2144
    %v3432 = vpop.f32.mrb[0].mxu0
    %v3433 = vadd.f32 %v561, %v3432
    %v3434 = vpop.f32.mrb[0].mxu0
    %v3435 = vpop.f32.mrb[0].mxu0
    %v3436 = vadd.f32 %v561, %v3435
    %v3437 = vpop.f32.mrb[0].mxu0
    %3438 = vmatprep.mubr.bf16.mxu0 0
    %3439 = vmatmul.mubr.bf16.gmra.mrb[0].mxu0 %v2147
    %v3440 = vpop.f32.mrb[0].mxu0
    %v3441 = vadd.f32 %v561, %v3440
    %v3442 = vpop.f32.mrb[0].mxu0
    %v3443 = vpop.f32.mrb[0].mxu0
    %v3444 = vadd.f32 %v561, %v3443
    %v3445 = vpop.f32.mrb[0].mxu0
    %3446 = vmatprep.mubr.bf16.mxu0 0
    %3447 = vmatmul.mubr.bf16.gmra.mrb[0].mxu0 %v2150
    %v3448 = vpop.f32.mrb[0].mxu0
    %v3449 = vadd.f32 %v561, %v3448
    %v3450 = vpop.f32.mrb[0].mxu0
    %v3451 = vpop.f32.mrb[0].mxu0
    %v3452 = vadd.f32 %v561, %v3451
    %v3453 = vpop.f32.mrb[0].mxu0
    %3454 = vmatprep.mubr.bf16.mxu0 0
    %3455 = vmatmul.mubr.bf16.gmra.mrb[0].mxu0 %v2153
    %v3456 = vpop.f32.mrb[0].mxu0
    %v3457 = vadd.f32 %v561, %v3456
    %v3458 = vpop.f32.mrb[0].mxu0
    %v3459 = vpop.f32.mrb[0].mxu0
    %v3460 = vadd.f32 %v561, %v3459
    %v3461 = vpop.f32.mrb[0].mxu0
    %3462 = vmatprep.mubr.bf16.mxu0 0
    %3463 = vmatmul.mubr.bf16.gmra.mrb[0].mxu0 %v2156
    %v3464 = vpop.f32.mrb[0].mxu0
    %v3465 = vadd.f32 %v561, %v3464
    %v3466 = vpop.f32.mrb[0].mxu0
    %v3467 = vpop.f32.mrb[0].mxu0
    %v3468 = vadd.f32 %v561, %v3467
    %v3469 = vpop.f32.mrb[0].mxu0
    %3470 = vmatprep.mubr.bf16.mxu0 0
    %3471 = vmatmul.mubr.bf16.gmra.mrb[0].mxu0 %v2159
    %v3472 = vpop.f32.mrb[0].mxu0
    %v3473 = vadd.f32 %v561, %v3472
    %v3474 = vpop.f32.mrb[0].mxu0
    %v3475 = vpop.f32.mrb[0].mxu0
    %v3476 = vadd.f32 %v561, %v3475
    %v3477 = vpop.f32.mrb[0].mxu0
    %3478 = vmatprep.mubr.bf16.mxu0 0
    %3479 = vmatmul.mubr.bf16.gmra.mrb[0].mxu0 %v2162
    %v3480 = vpop.f32.mrb[0].mxu0
    %v3481 = vadd.f32 %v561, %v3480
    %v3482 = vpop.f32.mrb[0].mxu0
    %v3483 = vpop.f32.mrb[0].mxu0
    %v3484 = vadd.f32 %v561, %v3483
    %v3485 = vpop.f32.mrb[0].mxu0
    %3486 = vmatprep.mubr.bf16.mxu0 0
    %3487 = vmatmul.mubr.bf16.gmra.mrb[0].mxu0 %v2165
    %v3488 = vpop.f32.mrb[0].mxu0
    %v3489 = vadd.f32 %v561, %v3488
    %v3490 = vpop.f32.mrb[0].mxu0
    %v3491 = vpop.f32.mrb[0].mxu0
    %v3492 = vadd.f32 %v561, %v3491
    %v3493 = vpop.f32.mrb[0].mxu0
    %3494 = vmatprep.mubr.bf16.mxu0 0
    %3495 = vmatmul.mubr.bf16.gmra.mrb[0].mxu0 %v2168
    %v3496 = vpop.f32.mrb[0].mxu0
    %v3497 = vadd.f32 %v561, %v3496
    %v3498 = vpop.f32.mrb[0].mxu0
    %v3499 = vpop.f32.mrb[0].mxu0
    %v3500 = vadd.f32 %v561, %v3499
    %v3501 = vpop.f32.mrb[0].mxu0
    %3502 = vmatprep.mubr.bf16.mxu0 0
    %3503 = vmatmul.mubr.bf16.gmra.mrb[0].mxu0 %v2171
    %v3504 = vpop.f32.mrb[0].mxu0
    %v3505 = vadd.f32 %v561, %v3504
    %v3506 = vpop.f32.mrb[0].mxu0
    %v3507 = vpop.f32.mrb[0].mxu0
    %v3508 = vadd.f32 %v561, %v3507
    %v3509 = vpop.f32.mrb[0].mxu0
    %3510 = vmatprep.mubr.bf16.mxu0 0
    %3511 = vmatmul.mubr.bf16.gmra.mrb[0].mxu0 %v2174
    %v3512 = vpop.f32.mrb[0].mxu0
    %v3513 = vadd.f32 %v561, %v3512
    %v3514 = vpop.f32.mrb[0].mxu0
    %v3515 = vpop.f32.mrb[0].mxu0
    %v3516 = vadd.f32 %v561, %v3515
    %v3517 = vpop.f32.mrb[0].mxu0
    %3518 = vmatprep.mubr.bf16.mxu0 0
    %3519 = vmatmul.mubr.bf16.gmra.mrb[0].mxu0 %v2177
    %v3520 = vpop.f32.mrb[0].mxu0
    %v3521 = vadd.f32 %v561, %v3520
    %v3522 = vpop.f32.mrb[0].mxu0
    %v3523 = vpop.f32.mrb[0].mxu0
    %v3524 = vadd.f32 %v561, %v3523
    %v3525 = vpop.f32.mrb[0].mxu0
    %3526 = vmatprep.mubr.bf16.mxu0 0
    %3527 = vmatmul.mubr.bf16.gmra.mrb[0].mxu0 %v2180
    %v3528 = vpop.f32.mrb[0].mxu0
    %v3529 = vadd.f32 %v561, %v3528
    %v3530 = vpop.f32.mrb[0].mxu0
    %v3531 = vpop.f32.mrb[0].mxu0
    %v3532 = vadd.f32 %v561, %v3531
    %v3533 = vpop.f32.mrb[0].mxu0
    %3534 = vmatprep.mubr.bf16.mxu0 0
    %3535 = vmatmul.mubr.bf16.gmra.mrb[0].mxu0 %v2183
    %v3536 = vpop.f32.mrb[0].mxu0
    %v3537 = vadd.f32 %v561, %v3536
    %v3538 = vpop.f32.mrb[0].mxu0
    %v3539 = vpop.f32.mrb[0].mxu0
    %v3540 = vadd.f32 %v561, %v3539
    %v3541 = vpop.f32.mrb[0].mxu0
    %3542 = vmatprep.mubr.bf16.mxu0 0
    %3543 = vmatmul.mubr.bf16.gmra.mrb[0].mxu0 %v2186
    %v3544 = vpop.f32.mrb[0].mxu0
    %v3545 = vadd.f32 %v561, %v3544
    %v3546 = vpop.f32.mrb[0].mxu0
    %v3547 = vpop.f32.mrb[0].mxu0
    %v3548 = vadd.f32 %v561, %v3547
    %v3549 = vpop.f32.mrb[0].mxu0
    %3550 = vmatprep.mubr.bf16.mxu0 0
    %3551 = vmatmul.mubr.bf16.gmra.mrb[0].mxu0 %v2189
    %v3552 = vpop.f32.mrb[0].mxu0
    %v3553 = vadd.f32 %v561, %v3552
    %v3554 = vpop.f32.mrb[0].mxu0
    %v3555 = vpop.f32.mrb[0].mxu0
    %v3556 = vadd.f32 %v561, %v3555
    %v3557 = vpop.f32.mrb[0].mxu0
    %3558 = vmatprep.mubr.bf16.mxu0 0
    %3559 = vmatmul.mubr.bf16.gmra.mrb[0].mxu0 %v2192
    %v3560 = vpop.f32.mrb[0].mxu0
    %v3561 = vadd.f32 %v561, %v3560
    %v3562 = vpop.f32.mrb[0].mxu0
    %v3563 = vpop.f32.mrb[0].mxu0
    %v3564 = vadd.f32 %v561, %v3563
    %v3565 = vpop.f32.mrb[0].mxu0
    %3566 = vmatprep.mubr.bf16.mxu0 0
    %3567 = vmatmul.mubr.bf16.gmra.mrb[0].mxu0 %v2195
    %v3568 = vpop.f32.mrb[0].mxu0
    %v3569 = vadd.f32 %v561, %v3568
    %v3570 = vpop.f32.mrb[0].mxu0
    %v3571 = vpop.f32.mrb[0].mxu0
    %v3572 = vadd.f32 %v561, %v3571
    %v3573 = vpop.f32.mrb[0].mxu0
    %3574 = vmatprep.mubr.bf16.mxu0 0
    %3575 = vmatmul.mubr.bf16.gmra.mrb[0].mxu0 %v2198
    %v3576 = vpop.f32.mrb[0].mxu0
    %v3577 = vadd.f32 %v561, %v3576
    %v3578 = vpop.f32.mrb[0].mxu0
    %v3579 = vpop.f32.mrb[0].mxu0
    %v3580 = vadd.f32 %v561, %v3579
    %v3581 = vpop.f32.mrb[0].mxu0
    %3582 = vmatprep.mubr.bf16.mxu0 0
    %3583 = vmatmul.mubr.bf16.gmra.mrb[0].mxu0 %v2201
    %v3584 = vpop.f32.mrb[0].mxu0
    %v3585 = vadd.f32 %v561, %v3584
    %v3586 = vpop.f32.mrb[0].mxu0
    %v3587 = vpop.f32.mrb[0].mxu0
    %v3588 = vadd.f32 %v561, %v3587
    %v3589 = vpop.f32.mrb[0].mxu0
    %3590 = vmatprep.mubr.bf16.mxu0 0
    %3591 = vmatmul.mubr.bf16.gmra.mrb[0].mxu0 %v2204
    %v3592 = vpop.f32.mrb[0].mxu0
    %v3593 = vadd.f32 %v561, %v3592
    %v3594 = vpop.f32.mrb[0].mxu0
    %v3595 = vpop.f32.mrb[0].mxu0
    %v3596 = vadd.f32 %v561, %v3595
    %v3597 = vpop.f32.mrb[0].mxu0
    %3598 = vmatprep.mubr.bf16.mxu0 0
    %3599 = vmatmul.mubr.bf16.gmra.mrb[0].mxu0 %v2207
    %v3600 = vpop.f32.mrb[0].mxu0
    %v3601 = vadd.f32 %v561, %v3600
    %v3602 = vpop.f32.mrb[0].mxu0
    %v3603 = vpop.f32.mrb[0].mxu0
    %v3604 = vadd.f32 %v561, %v3603
    %v3605 = vpop.f32.mrb[0].mxu0
    %3606 = vmatprep.mubr.bf16.mxu0 0
    %3607 = vmatmul.mubr.bf16.gmra.mrb[0].mxu0 %v2210
    %v3608 = vpop.f32.mrb[0].mxu0
    %v3609 = vadd.f32 %v561, %v3608
    %v3610 = vpop.f32.mrb[0].mxu0
    %v3611 = vpop.f32.mrb[0].mxu0
    %v3612 = vadd.f32 %v561, %v3611
    %v3613 = vpop.f32.mrb[0].mxu0
    %3614 = vmatprep.mubr.bf16.mxu0 0
    %3615 = vmatmul.mubr.bf16.gmra.mrb[0].mxu0 %v2213
    %v3616 = vpop.f32.mrb[0].mxu0
    %v3617 = vadd.f32 %v561, %v3616
    %v3618 = vpop.f32.mrb[0].mxu0
    %v3619 = vpop.f32.mrb[0].mxu0
    %v3620 = vadd.f32 %v561, %v3619
    %v3621 = vpop.f32.mrb[0].mxu0
    %3622 = vmatprep.mubr.bf16.mxu0 0
    %3623 = vmatmul.mubr.bf16.gmra.mrb[0].mxu0 %v2216
    %v3624 = vpop.f32.mrb[0].mxu0
    %v3625 = vadd.f32 %v561, %v3624
    %v3626 = vpop.f32.mrb[0].mxu0
    %v3627 = vpop.f32.mrb[0].mxu0
    %v3628 = vadd.f32 %v561, %v3627
    %v3629 = vpop.f32.mrb[0].mxu0
    %3630 = vmatprep.mubr.bf16.mxu0 0
    %3631 = vmatmul.mubr.bf16.gmra.mrb[0].mxu0 %v2219
    %v3632 = vpop.f32.mrb[0].mxu0
    %v3633 = vadd.f32 %v561, %v3632
    %v3634 = vpop.f32.mrb[0].mxu0
    %v3635 = vpop.f32.mrb[0].mxu0
    %v3636 = vadd.f32 %v561, %v3635
    %v3637 = vpop.f32.mrb[0].mxu0
    %3638 = vmatprep.mubr.bf16.mxu0 0
    %3639 = vmatmul.mubr.bf16.gmra.mrb[0].mxu0 %v2222
    %v3640 = vpop.f32.mrb[0].mxu0
    %v3641 = vadd.f32 %v561, %v3640
    %v3642 = vpop.f32.mrb[0].mxu0
    %v3643 = vpop.f32.mrb[0].mxu0
    %v3644 = vadd.f32 %v561, %v3643
    %v3645 = vpop.f32.mrb[0].mxu0
    %3646 = vmatprep.mubr.bf16.mxu0 0
    %3647 = vmatmul.mubr.bf16.gmra.mrb[0].mxu0 %v2225
    %v3648 = vpop.f32.mrb[0].mxu0
    %v3649 = vadd.f32 %v561, %v3648
    %v3650 = vpop.f32.mrb[0].mxu0
    %v3651 = vpop.f32.mrb[0].mxu0
    %v3652 = vadd.f32 %v561, %v3651
    %v3653 = vpop.f32.mrb[0].mxu0
    %3654 = vmatprep.mubr.bf16.mxu0 0
    %3655 = vmatmul.mubr.bf16.gmra.mrb[0].mxu0 %v2228
    %v3656 = vpop.f32.mrb[0].mxu0
    %v3657 = vadd.f32 %v561, %v3656
    %v3658 = vpop.f32.mrb[0].mxu0
    %v3659 = vpop.f32.mrb[0].mxu0
    %v3660 = vadd.f32 %v561, %v3659
    %v3661 = vpop.f32.mrb[0].mxu0
    %3662 = vmatprep.mubr.bf16.mxu0 0
    %3663 = vmatmul.mubr.bf16.gmra.mrb[0].mxu0 %v2231
    %v3664 = vpop.f32.mrb[0].mxu0
    %v3665 = vadd.f32 %v561, %v3664
    %v3666 = vpop.f32.mrb[0].mxu0
    %v3667 = vpop.f32.mrb[0].mxu0
    %v3668 = vadd.f32 %v561, %v3667
    %v3669 = vpop.f32.mrb[0].mxu0
    %3670 = vmatprep.mubr.bf16.mxu0 0
    %3671 = vmatmul.mubr.bf16.gmra.mrb[0].mxu0 %v2234
    %v3672 = vpop.f32.mrb[0].mxu0
    %v3673 = vadd.f32 %v561, %v3672
    %v3674 = vpop.f32.mrb[0].mxu0
    %v3675 = vpop.f32.mrb[0].mxu0
    %v3676 = vadd.f32 %v561, %v3675
    %v3677 = vpop.f32.mrb[0].mxu0
    %3678 = vmatprep.mubr.bf16.mxu0 0
    %3679 = vmatmul.mubr.bf16.gmra.mrb[0].mxu0 %v2237
    %v3680 = vpop.f32.mrb[0].mxu0
    %v3681 = vadd.f32 %v561, %v3680
    %v3682 = vpop.f32.mrb[0].mxu0
    %v3683 = vpop.f32.mrb[0].mxu0
    %v3684 = vadd.f32 %v561, %v3683
    %v3685 = vpop.f32.mrb[0].mxu0
    %3686 = vmatprep.mubr.bf16.mxu0 0
    %3687 = vmatmul.mubr.bf16.gmra.mrb[0].mxu0 %v2240
    %v3688 = vpop.f32.mrb[0].mxu0
    %v3689 = vadd.f32 %v561, %v3688
    %v3690 = vpop.f32.mrb[0].mxu0
    %v3691 = vpop.f32.mrb[0].mxu0
    %v3692 = vadd.f32 %v561, %v3691
    %v3693 = vpop.f32.mrb[0].mxu0
    %3694 = vmatprep.mubr.bf16.mxu0 0
    %3695 = vmatmul.mubr.bf16.gmra.mrb[0].mxu0 %v2243
    %v3696 = vpop.f32.mrb[0].mxu0
    %v3697 = vadd.f32 %v561, %v3696
    %v3698 = vpop.f32.mrb[0].mxu0
    %v3699 = vpop.f32.mrb[0].mxu0
    %v3700 = vadd.f32 %v561, %v3699
    %v3701 = vpop.f32.mrb[0].mxu0
    %3702 = vmatprep.mubr.bf16.mxu0 0
    %3703 = vmatmul.mubr.bf16.gmra.mrb[0].mxu0 %v2246
    %v3704 = vpop.f32.mrb[0].mxu0
    %v3705 = vadd.f32 %v561, %v3704
    %v3706 = vpop.f32.mrb[0].mxu0
    %v3707 = vpop.f32.mrb[0].mxu0
    %v3708 = vadd.f32 %v561, %v3707
    %v3709 = vpop.f32.mrb[0].mxu0
    %3710 = vmatprep.mubr.bf16.mxu0 0
    %3711 = vmatmul.mubr.bf16.gmra.mrb[0].mxu0 %v2249
    %v3712 = vpop.f32.mrb[0].mxu0
    %v3713 = vadd.f32 %v561, %v3712
    %v3714 = vpop.f32.mrb[0].mxu0
    %v3715 = vpop.f32.mrb[0].mxu0
    %v3716 = vadd.f32 %v561, %v3715
    %v3717 = vpop.f32.mrb[0].mxu0
    %3718 = vmatprep.mubr.bf16.mxu0 0
    %3719 = vmatmul.mubr.bf16.gmra.mrb[0].mxu0 %v2252
    %v3720 = vpop.f32.mrb[0].mxu0
    %v3721 = vadd.f32 %v561, %v3720
    %v3722 = vpop.f32.mrb[0].mxu0
    %v3723 = vpop.f32.mrb[0].mxu0
    %v3724 = vadd.f32 %v561, %v3723
    %v3725 = vpop.f32.mrb[0].mxu0
    %3726 = vmatprep.mubr.bf16.mxu0 0
    %3727 = vmatmul.mubr.bf16.gmra.mrb[0].mxu0 %v2255
    %v3728 = vpop.f32.mrb[0].mxu0
    %v3729 = vadd.f32 %v561, %v3728
    %v3730 = vpop.f32.mrb[0].mxu0
    %v3731 = vpop.f32.mrb[0].mxu0
    %v3732 = vadd.f32 %v561, %v3731
    %v3733 = vpop.f32.mrb[0].mxu0
    %3734 = vmatprep.mubr.bf16.mxu0 0
    %3735 = vmatmul.mubr.bf16.gmra.mrb[0].mxu0 %v2258
    %v3736 = vpop.f32.mrb[0].mxu0
    %v3737 = vadd.f32 %v561, %v3736
    %v3738 = vpop.f32.mrb[0].mxu0
    %v3739 = vpop.f32.mrb[0].mxu0
    %v3740 = vadd.f32 %v561, %v3739
    %v3741 = vpop.f32.mrb[0].mxu0
    %3742 = vmatprep.mubr.bf16.mxu0 0
    %3743 = vmatmul.mubr.bf16.gmra.mrb[0].mxu0 %v2261
    %v3744 = vpop.f32.mrb[0].mxu0
    %v3745 = vadd.f32 %v561, %v3744
    %v3746 = vpop.f32.mrb[0].mxu0
    %v3747 = vpop.f32.mrb[0].mxu0
    %v3748 = vadd.f32 %v561, %v3747
    %v3749 = vpop.f32.mrb[0].mxu0
    %3750 = vmatprep.mubr.bf16.mxu0 0
    %3751 = vmatmul.mubr.bf16.gmra.mrb[0].mxu0 %v2264
    %v3752 = vpop.f32.mrb[0].mxu0
    %v3753 = vadd.f32 %v561, %v3752
    %v3754 = vpop.f32.mrb[0].mxu0
    %v3755 = vpop.f32.mrb[0].mxu0
    %v3756 = vadd.f32 %v561, %v3755
    %v3757 = vpop.f32.mrb[0].mxu0
    %3758 = vmatprep.mubr.bf16.mxu0 0
    %3759 = vmatmul.mubr.bf16.gmra.mrb[0].mxu0 %v2267
    %v3760 = vpop.f32.mrb[0].mxu0
    %v3761 = vadd.f32 %v561, %v3760
    %v3762 = vpop.f32.mrb[0].mxu0
    %v3763 = vpop.f32.mrb[0].mxu0
    %v3764 = vadd.f32 %v561, %v3763
    %v3765 = vpop.f32.mrb[0].mxu0
    %3766 = vmatprep.mubr.bf16.mxu0 0
    %3767 = vmatmul.mubr.bf16.gmra.mrb[0].mxu0 %v2270
    %v3768 = vpop.f32.mrb[0].mxu0
    %v3769 = vadd.f32 %v561, %v3768
    %v3770 = vpop.f32.mrb[0].mxu0
    %v3771 = vpop.f32.mrb[0].mxu0
    %v3772 = vadd.f32 %v561, %v3771
    %v3773 = vpop.f32.mrb[0].mxu0
    %3774 = vmatprep.mubr.bf16.mxu0 0
    %3775 = vmatmul.mubr.bf16.gmra.mrb[0].mxu0 %v2273
    %v3776 = vpop.f32.mrb[0].mxu0
    %v3777 = vadd.f32 %v561, %v3776
    %v3778 = vpop.f32.mrb[0].mxu0
    %v3779 = vpop.f32.mrb[0].mxu0
    %v3780 = vadd.f32 %v561, %v3779
    %v3781 = vpop.f32.mrb[0].mxu0
    %3782 = vmatprep.mubr.bf16.mxu0 0
    %3783 = vmatmul.mubr.bf16.gmra.mrb[0].mxu0 %v2276
    %v3784 = vpop.f32.mrb[0].mxu0
    %v3785 = vadd.f32 %v561, %v3784
    %v3786 = vpop.f32.mrb[0].mxu0
    %v3787 = vpop.f32.mrb[0].mxu0
    %v3788 = vadd.f32 %v561, %v3787
    %v3789 = vpop.f32.mrb[0].mxu0
    %3790 = vmatprep.mubr.bf16.mxu0 0
    %3791 = vmatmul.mubr.bf16.gmra.mrb[0].mxu0 %v2279
    %v3792 = vpop.f32.mrb[0].mxu0
    %v3793 = vadd.f32 %v561, %v3792
    %v3794 = vpop.f32.mrb[0].mxu0
    %v3795 = vpop.f32.mrb[0].mxu0
    %v3796 = vadd.f32 %v561, %v3795
    %v3797 = vpop.f32.mrb[0].mxu0
    %3798 = vmatprep.mubr.bf16.mxu0 0
    %3799 = vmatmul.mubr.bf16.gmra.mrb[0].mxu0 %v2282
    %v3800 = vpop.f32.mrb[0].mxu0
    %v3801 = vadd.f32 %v561, %v3800
    %v3802 = vpop.f32.mrb[0].mxu0
    %v3803 = vpop.f32.mrb[0].mxu0
    %v3804 = vadd.f32 %v561, %v3803
    %v3805 = vpop.f32.mrb[0].mxu0
    %3806 = vmatprep.mubr.bf16.mxu0 0
    %3807 = vmatmul.mubr.bf16.gmra.mrb[0].mxu0 %v2285
    %v3808 = vpop.f32.mrb[0].mxu0
    %v3809 = vadd.f32 %v561, %v3808
    %v3810 = vpop.f32.mrb[0].mxu0
    %v3811 = vpop.f32.mrb[0].mxu0
    %v3812 = vadd.f32 %v561, %v3811
    %v3813 = vpop.f32.mrb[0].mxu0
    %3814 = vmatprep.mubr.bf16.mxu0 0
    %3815 = vmatmul.mubr.bf16.gmra.mrb[0].mxu0 %v2288
    %v3816 = vpop.f32.mrb[0].mxu0
    %v3817 = vadd.f32 %v561, %v3816
    %v3818 = vpop.f32.mrb[0].mxu0
    %v3819 = vpop.f32.mrb[0].mxu0
    %v3820 = vadd.f32 %v561, %v3819
    %v3821 = vpop.f32.mrb[0].mxu0
    %3822 = vmatprep.mubr.bf16.mxu0 0
    %3823 = vmatmul.mubr.bf16.gmra.mrb[0].mxu0 %v2291
    %v3824 = vpop.f32.mrb[0].mxu0
    %v3825 = vadd.f32 %v561, %v3824
    %v3826 = vpop.f32.mrb[0].mxu0
    %v3827 = vpop.f32.mrb[0].mxu0
    %v3828 = vadd.f32 %v561, %v3827
    %v3829 = vpop.f32.mrb[0].mxu0
    %3830 = vmatprep.mubr.bf16.mxu0 0
    %3831 = vmatmul.mubr.bf16.gmra.mrb[0].mxu0 %v2294
    %v3832 = vpop.f32.mrb[0].mxu0
    %v3833 = vadd.f32 %v561, %v3832
    %v3834 = vpop.f32.mrb[0].mxu0
    %v3835 = vpop.f32.mrb[0].mxu0
    %v3836 = vadd.f32 %v561, %v3835
    %v3837 = vpop.f32.mrb[0].mxu0
    %3838 = vmatprep.mubr.bf16.mxu0 0
    %3839 = vmatmul.mubr.bf16.gmra.mrb[0].mxu0 %v2297
    %v3840 = vpop.f32.mrb[0].mxu0
    %v3841 = vadd.f32 %v561, %v3840
    %v3842 = vpop.f32.mrb[0].mxu0
    %v3843 = vpop.f32.mrb[0].mxu0
    %v3844 = vadd.f32 %v561, %v3843
    %v3845 = vpop.f32.mrb[0].mxu0
    %3846 = vmatprep.mubr.bf16.mxu0 0
    %3847 = vmatmul.mubr.bf16.gmra.mrb[0].mxu0 %v2300
    %v3848 = vpop.f32.mrb[0].mxu0
    %v3849 = vadd.f32 %v561, %v3848
    %v3850 = vpop.f32.mrb[0].mxu0
    %v3851 = vpop.f32.mrb[0].mxu0
    %v3852 = vadd.f32 %v561, %v3851
    %v3853 = vpop.f32.mrb[0].mxu0
    %3854 = vmatprep.mubr.bf16.mxu0 0
    %3855 = vmatmul.mubr.bf16.gmra.mrb[0].mxu0 %v2303
    %v3856 = vpop.f32.mrb[0].mxu0
    %v3857 = vadd.f32 %v561, %v3856
    %v3858 = vpop.f32.mrb[0].mxu0
    %v3859 = vpop.f32.mrb[0].mxu0
    %v3860 = vadd.f32 %v561, %v3859
    %v3861 = vpop.f32.mrb[0].mxu0
    %3862 = vmatprep.mubr.bf16.mxu0 0
    %3863 = vmatmul.mubr.bf16.gmra.mrb[0].mxu0 %v2306
    %v3864 = vpop.f32.mrb[0].mxu0
    %v3865 = vadd.f32 %v561, %v3864
    %v3866 = vpop.f32.mrb[0].mxu0
    %v3867 = vpop.f32.mrb[0].mxu0
    %v3868 = vadd.f32 %v561, %v3867
    %v3869 = vpop.f32.mrb[0].mxu0
    %3870 = vmatprep.mubr.bf16.mxu0 0
    %3871 = vmatmul.mubr.bf16.gmra.mrb[0].mxu0 %v2309
    %v3872 = vpop.f32.mrb[0].mxu0
    %v3873 = vadd.f32 %v561, %v3872
    %v3874 = vpop.f32.mrb[0].mxu0
    %v3875 = vpop.f32.mrb[0].mxu0
    %v3876 = vadd.f32 %v561, %v3875
    %v3877 = vpop.f32.mrb[0].mxu0
    %3878 = vmatprep.mubr.bf16.mxu0 0
    %3879 = vmatmul.mubr.bf16.gmra.mrb[0].mxu0 %v2312
    %v3880 = vpop.f32.mrb[0].mxu0
    %v3881 = vadd.f32 %v561, %v3880
    %v3882 = vpop.f32.mrb[0].mxu0
    %v3883 = vpop.f32.mrb[0].mxu0
    %v3884 = vadd.f32 %v561, %v3883
    %v3885 = vpop.f32.mrb[0].mxu0
    %3886 = vmatprep.mubr.bf16.mxu0 0
    %3887 = vmatmul.mubr.bf16.gmra.mrb[0].mxu0 %v2315
    %v3888 = vpop.f32.mrb[0].mxu0
    %v3889 = vadd.f32 %v561, %v3888
    %v3890 = vpop.f32.mrb[0].mxu0
    %v3891 = vpop.f32.mrb[0].mxu0
    %v3892 = vadd.f32 %v561, %v3891
    %v3893 = vpop.f32.mrb[0].mxu0
    %3894 = vmatprep.mubr.bf16.mxu0 0
    %3895 = vmatmul.mubr.bf16.gmra.mrb[0].mxu0 %v2318
    %v3896 = vpop.f32.mrb[0].mxu0
    %v3897 = vadd.f32 %v561, %v3896
    %v3898 = vpop.f32.mrb[0].mxu0
    %v3899 = vpop.f32.mrb[0].mxu0
    %v3900 = vadd.f32 %v561, %v3899
    %v3901 = vpop.f32.mrb[0].mxu0
    %3902 = vmatprep.mubr.bf16.mxu0 0
    %3903 = vmatmul.mubr.bf16.gmra.mrb[0].mxu0 %v2321
    %v3904 = vpop.f32.mrb[0].mxu0
    %v3905 = vadd.f32 %v561, %v3904
    %v3906 = vpop.f32.mrb[0].mxu0
    %v3907 = vpop.f32.mrb[0].mxu0
    %v3908 = vadd.f32 %v561, %v3907
    %v3909 = vpop.f32.mrb[0].mxu0
    %3910 = vmatprep.mubr.bf16.mxu0 0
    %3911 = vmatmul.mubr.bf16.gmra.mrb[0].mxu0 %v2324
    %v3912 = vpop.f32.mrb[0].mxu0
    %v3913 = vadd.f32 %v561, %v3912
    %v3914 = vpop.f32.mrb[0].mxu0
    %v3915 = vpop.f32.mrb[0].mxu0
    %v3916 = vadd.f32 %v561, %v3915
    %v3917 = vpop.f32.mrb[0].mxu0
    %3918 = vmatprep.mubr.bf16.mxu0 0
    %3919 = vmatmul.mubr.bf16.gmra.mrb[0].mxu0 %v2327
    %v3920 = vpop.f32.mrb[0].mxu0
    %v3921 = vadd.f32 %v561, %v3920
    %v3922 = vpop.f32.mrb[0].mxu0
    %v3923 = vpop.f32.mrb[0].mxu0
    %v3924 = vadd.f32 %v561, %v3923
    %v3925 = vpop.f32.mrb[0].mxu0
    %3926 = vmatprep.mubr.bf16.mxu0 0
    %3927 = vmatmul.mubr.bf16.gmra.mrb[0].mxu0 %v2330
    %v3928 = vpop.f32.mrb[0].mxu0
    %v3929 = vadd.f32 %v561, %v3928
    %v3930 = vpop.f32.mrb[0].mxu0
    %v3931 = vpop.f32.mrb[0].mxu0
    %v3932 = vadd.f32 %v561, %v3931
    %v3933 = vpop.f32.mrb[0].mxu0
    %3934 = vmatprep.mubr.bf16.mxu0 0
    %3935 = vmatmul.mubr.bf16.gmra.mrb[0].mxu0 %v2333
    %v3936 = vpop.f32.mrb[0].mxu0
    %v3937 = vadd.f32 %v561, %v3936
    %v3938 = vpop.f32.mrb[0].mxu0
    %v3939 = vpop.f32.mrb[0].mxu0
    %v3940 = vadd.f32 %v561, %v3939
    %v3941 = vpop.f32.mrb[0].mxu0
    %3942 = vmatprep.mubr.bf16.mxu0 0
    %3943 = vmatmul.mubr.bf16.gmra.mrb[0].mxu0 %v2336
    %v3944 = vpop.f32.mrb[0].mxu0
    %v3945 = vadd.f32 %v561, %v3944
    %v3946 = vpop.f32.mrb[0].mxu0
    %v3947 = vpop.f32.mrb[0].mxu0
    %v3948 = vadd.f32 %v561, %v3947
    %v3949 = vpop.f32.mrb[0].mxu0
    %3950 = vmatprep.mubr.bf16.mxu0 0
    %3951 = vmatmul.mubr.bf16.gmra.mrb[0].mxu0 %v2339
    %v3952 = vpop.f32.mrb[0].mxu0
    %v3953 = vadd.f32 %v561, %v3952
    %v3954 = vpop.f32.mrb[0].mxu0
    %v3955 = vpop.f32.mrb[0].mxu0
    %v3956 = vadd.f32 %v561, %v3955
    %v3957 = vpop.f32.mrb[0].mxu0
    %3958 = vmatprep.mubr.bf16.mxu0 0
    %3959 = vmatmul.mubr.bf16.gmra.mrb[0].mxu0 %v2342
    %v3960 = vpop.f32.mrb[0].mxu0
    %v3961 = vadd.f32 %v561, %v3960
    %v3962 = vpop.f32.mrb[0].mxu0
    %v3963 = vpop.f32.mrb[0].mxu0
    %v3964 = vadd.f32 %v561, %v3963
    %v3965 = vpop.f32.mrb[0].mxu0
    %3966 = vmatprep.mubr.bf16.mxu0 0
    %3967 = vmatmul.mubr.bf16.gmra.mrb[0].mxu0 %v2345
    %v3968 = vpop.f32.mrb[0].mxu0
    %v3969 = vadd.f32 %v561, %v3968
    %v3970 = vpop.f32.mrb[0].mxu0
    %v3971 = vpop.f32.mrb[0].mxu0
    %v3972 = vadd.f32 %v561, %v3971
    %v3973 = vpop.f32.mrb[0].mxu0
    %3974 = vmatprep.mubr.bf16.mxu0 0
    %3975 = vmatmul.mubr.bf16.gmra.mrb[0].mxu0 %v2348
    %v3976 = vpop.f32.mrb[0].mxu0
    %v3977 = vadd.f32 %v561, %v3976
    %v3978 = vpop.f32.mrb[0].mxu0
    %v3979 = vpop.f32.mrb[0].mxu0
    %v3980 = vadd.f32 %v561, %v3979
    %v3981 = vpop.f32.mrb[0].mxu0
    %3982 = vmatprep.mubr.bf16.mxu0 0
    %3983 = vmatmul.mubr.bf16.gmra.mrb[0].mxu0 %v2351
    %v3984 = vpop.f32.mrb[0].mxu0
    %v3985 = vadd.f32 %v561, %v3984
    %v3986 = vpop.f32.mrb[0].mxu0
    %v3987 = vpop.f32.mrb[0].mxu0
    %v3988 = vadd.f32 %v561, %v3987
    %v3989 = vpop.f32.mrb[0].mxu0
    %3990 = vmatprep.mubr.bf16.mxu0 0
    %3991 = vmatmul.mubr.bf16.gmra.mrb[0].mxu0 %v2354
    %v3992 = vpop.f32.mrb[0].mxu0
    %v3993 = vadd.f32 %v561, %v3992
    %v3994 = vpop.f32.mrb[0].mxu0
    %v3995 = vpop.f32.mrb[0].mxu0
    %v3996 = vadd.f32 %v561, %v3995
    %v3997 = vpop.f32.mrb[0].mxu0
    %3998 = vmatprep.mubr.bf16.mxu0 0
    %3999 = vmatmul.mubr.bf16.gmra.mrb[0].mxu0 %v2357
    %v4000 = vpop.f32.mrb[0].mxu0
    %v4001 = vadd.f32 %v561, %v4000
    %v4002 = vpop.f32.mrb[0].mxu0
    %v4003 = vpop.f32.mrb[0].mxu0
    %v4004 = vadd.f32 %v561, %v4003
    %v4005 = vpop.f32.mrb[0].mxu0
    %4006 = vmatprep.mubr.bf16.mxu0 0
    %4007 = vmatmul.mubr.bf16.gmra.mrb[0].mxu0 %v2360
    %v4008 = vpop.f32.mrb[0].mxu0
    %v4009 = vadd.f32 %v561, %v4008
    %v4010 = vpop.f32.mrb[0].mxu0
    %v4011 = vpop.f32.mrb[0].mxu0
    %v4012 = vadd.f32 %v561, %v4011
    %v4013 = vpop.f32.mrb[0].mxu0
    %4014 = vmatprep.mubr.bf16.mxu0 0
    %4015 = vmatmul.mubr.bf16.gmra.mrb[0].mxu0 %v2363
    %v4016 = vpop.f32.mrb[0].mxu0
    %v4017 = vadd.f32 %v561, %v4016
    %v4018 = vpop.f32.mrb[0].mxu0
    %v4019 = vpop.f32.mrb[0].mxu0
    %v4020 = vadd.f32 %v561, %v4019
    %v4021 = vpop.f32.mrb[0].mxu0
    %4022 = vmatprep.mubr.bf16.mxu0 0
    %4023 = vmatmul.mubr.bf16.gmra.mrb[0].mxu0 %v2366
    %v4024 = vpop.f32.mrb[0].mxu0
    %v4025 = vadd.f32 %v561, %v4024
    %v4026 = vpop.f32.mrb[0].mxu0
    %v4027 = vpop.f32.mrb[0].mxu0
    %v4028 = vadd.f32 %v561, %v4027
    %v4029 = vpop.f32.mrb[0].mxu0
    %4030 = vmatprep.mubr.bf16.mxu0 0
    %4031 = vmatmul.mubr.bf16.gmra.mrb[0].mxu0 %v2369
    %v4032 = vpop.f32.mrb[0].mxu0
    %v4033 = vadd.f32 %v561, %v4032
    %v4034 = vpop.f32.mrb[0].mxu0
    %v4035 = vpop.f32.mrb[0].mxu0
    %v4036 = vadd.f32 %v561, %v4035
    %v4037 = vpop.f32.mrb[0].mxu0
    %4038 = vmatprep.mubr.bf16.mxu0 0
    %4039 = vmatmul.mubr.bf16.gmra.mrb[0].mxu0 %v2372
    %v4040 = vpop.f32.mrb[0].mxu0
    %v4041 = vadd.f32 %v561, %v4040
    %v4042 = vpop.f32.mrb[0].mxu0
    %v4043 = vpop.f32.mrb[0].mxu0
    %v4044 = vadd.f32 %v561, %v4043
    %v4045 = vpop.f32.mrb[0].mxu0
    %4046 = vmatprep.mubr.bf16.mxu0 0
    %4047 = vmatmul.mubr.bf16.gmra.mrb[0].mxu0 %v2375
    %v4048 = vpop.f32.mrb[0].mxu0
    %v4049 = vadd.f32 %v561, %v4048
    %v4050 = vpop.f32.mrb[0].mxu0
    %v4051 = vpop.f32.mrb[0].mxu0
    %v4052 = vadd.f32 %v561, %v4051
    %v4053 = vpop.f32.mrb[0].mxu0
    %4054 = vmatprep.mubr.bf16.mxu0 0
    %4055 = vmatmul.mubr.bf16.gmra.mrb[0].mxu0 %v2378
    %v4056 = vpop.f32.mrb[0].mxu0
    %v4057 = vadd.f32 %v561, %v4056
    %v4058 = vpop.f32.mrb[0].mxu0
    %v4059 = vpop.f32.mrb[0].mxu0
    %v4060 = vadd.f32 %v561, %v4059
    %v4061 = vpop.f32.mrb[0].mxu0
    %4062 = vmatprep.mubr.bf16.mxu0 0
    %4063 = vmatmul.mubr.bf16.gmra.mrb[0].mxu0 %v2381
    %v4064 = vpop.f32.mrb[0].mxu0
    %v4065 = vadd.f32 %v561, %v4064
    %v4066 = vpop.f32.mrb[0].mxu0
    %v4067 = vpop.f32.mrb[0].mxu0
    %v4068 = vadd.f32 %v561, %v4067
    %v4069 = vpop.f32.mrb[0].mxu0
    %4070 = vmatprep.mubr.bf16.mxu0 0
    %4071 = vmatmul.mubr.bf16.gmra.mrb[0].mxu0 %v2384
    %v4072 = vpop.f32.mrb[0].mxu0
    %v4073 = vadd.f32 %v561, %v4072
    %v4074 = vpop.f32.mrb[0].mxu0
    %v4075 = vpop.f32.mrb[0].mxu0
    %v4076 = vadd.f32 %v561, %v4075
    %v4077 = vpop.f32.mrb[0].mxu0
    %4078 = vmatprep.mubr.bf16.mxu0 0
    %4079 = vmatmul.mubr.bf16.gmra.mrb[0].mxu0 %v2387
    %v4080 = vpop.f32.mrb[0].mxu0
    %v4081 = vadd.f32 %v561, %v4080
    %v4082 = vpop.f32.mrb[0].mxu0
    %v4083 = vpop.f32.mrb[0].mxu0
    %v4084 = vadd.f32 %v561, %v4083
    %v4085 = vpop.f32.mrb[0].mxu0
    %4086 = vmatprep.mubr.bf16.mxu0 0
    %4087 = vmatmul.mubr.bf16.gmra.mrb[0].mxu0 %v2390
    %v4088 = vpop.f32.mrb[0].mxu0
    %v4089 = vadd.f32 %v561, %v4088
    %v4090 = vpop.f32.mrb[0].mxu0
    %v4091 = vpop.f32.mrb[0].mxu0
    %v4092 = vadd.f32 %v561, %v4091
    %v4093 = vpop.f32.mrb[0].mxu0
    %4094 = vmatprep.mubr.bf16.mxu0 0
    %4095 = vmatmul.mubr.bf16.gmra.mrb[0].mxu0 %v2393
    %v4096 = vpop.f32.mrb[0].mxu0
    %v4097 = vadd.f32 %v561, %v4096
    %v4098 = vpop.f32.mrb[0].mxu0
    %v4099 = vpop.f32.mrb[0].mxu0
    %v4100 = vadd.f32 %v561, %v4099
    %v4101 = vpop.f32.mrb[0].mxu0
    %4102 = vmatprep.mubr.bf16.mxu0 0
    %4103 = vmatmul.mubr.bf16.gmra.mrb[0].mxu0 %v2396
    %v4104 = vpop.f32.mrb[0].mxu0
    %v4105 = vadd.f32 %v561, %v4104
    %v4106 = vpop.f32.mrb[0].mxu0
    %v4107 = vpop.f32.mrb[0].mxu0
    %v4108 = vadd.f32 %v561, %v4107
    %v4109 = vpop.f32.mrb[0].mxu0
    %4110 = vmatprep.mubr.bf16.mxu0 0
    %4111 = vmatmul.mubr.bf16.gmra.mrb[0].mxu0 %v2399
    %v4112 = vpop.f32.mrb[0].mxu0
    %v4113 = vadd.f32 %v561, %v4112
    %v4114 = vpop.f32.mrb[0].mxu0
    %v4115 = vpop.f32.mrb[0].mxu0
    %v4116 = vadd.f32 %v561, %v4115
    %v4117 = vpop.f32.mrb[0].mxu0
    %4118 = vmatprep.mubr.bf16.mxu0 0
    %4119 = vmatmul.mubr.bf16.gmra.mrb[0].mxu0 %v2402
    %v4120 = vpop.f32.mrb[0].mxu0
    %v4121 = vadd.f32 %v561, %v4120
    %v4122 = vpop.f32.mrb[0].mxu0
    %v4123 = vpop.f32.mrb[0].mxu0
    %v4124 = vadd.f32 %v561, %v4123
    %v4125 = vpop.f32.mrb[0].mxu0
    %4126 = vmatprep.mubr.bf16.mxu0 0
    %4127 = vmatmul.mubr.bf16.gmra.mrb[0].mxu0 %v2405
    %v4128 = vpop.f32.mrb[0].mxu0
    %v4129 = vadd.f32 %v561, %v4128
    %v4130 = vpop.f32.mrb[0].mxu0
    %v4131 = vpop.f32.mrb[0].mxu0
    %v4132 = vadd.f32 %v561, %v4131
    %v4133 = vpop.f32.mrb[0].mxu0
    %4134 = vmatprep.mubr.bf16.mxu0 0
    %4135 = vmatmul.mubr.bf16.gmra.mrb[0].mxu0 %v2408
    %v4136 = vpop.f32.mrb[0].mxu0
    %v4137 = vadd.f32 %v561, %v4136
    %v4138 = vpop.f32.mrb[0].mxu0
    %v4139 = vpop.f32.mrb[0].mxu0
    %v4140 = vadd.f32 %v561, %v4139
    %v4141 = vpop.f32.mrb[0].mxu0
    %4142 = vmatprep.mubr.bf16.mxu0 0
    %4143 = vmatmul.mubr.bf16.gmra.mrb[0].mxu0 %v2411
    %v4144 = vpop.f32.mrb[0].mxu0
    %v4145 = vadd.f32 %v561, %v4144
    %v4146 = vpop.f32.mrb[0].mxu0
    %v4147 = vpop.f32.mrb[0].mxu0
    %v4148 = vadd.f32 %v561, %v4147
    %v4149 = vpop.f32.mrb[0].mxu0
    %4150 = vmatprep.mubr.bf16.mxu0 0
    %4151 = vmatmul.mubr.bf16.gmra.mrb[0].mxu0 %v2414
    %v4152 = vpop.f32.mrb[0].mxu0
    %v4153 = vadd.f32 %v561, %v4152
    %v4154 = vpop.f32.mrb[0].mxu0
    %v4155 = vpop.f32.mrb[0].mxu0
    %v4156 = vadd.f32 %v561, %v4155
    %v4157 = vpop.f32.mrb[0].mxu0
    %4158 = vmatprep.mubr.bf16.mxu0 0
    %4159 = vmatmul.mubr.bf16.gmra.mrb[0].mxu0 %v2417
    %v4160 = vpop.f32.mrb[0].mxu0
    %v4161 = vadd.f32 %v561, %v4160
    %v4162 = vpop.f32.mrb[0].mxu0
    %v4163 = vpop.f32.mrb[0].mxu0
    %v4164 = vadd.f32 %v561, %v4163
    %v4165 = vpop.f32.mrb[0].mxu0
    %4166 = vmatprep.mubr.bf16.mxu0 0
    %4167 = vmatmul.mubr.bf16.gmra.mrb[0].mxu0 %v2420
    %v4168 = vpop.f32.mrb[0].mxu0
    %v4169 = vadd.f32 %v561, %v4168
    %v4170 = vpop.f32.mrb[0].mxu0
    %v4171 = vpop.f32.mrb[0].mxu0
    %v4172 = vadd.f32 %v561, %v4171
    %v4173 = vpop.f32.mrb[0].mxu0
    %4174 = vmatprep.mubr.bf16.mxu0 0
    %4175 = vmatmul.mubr.bf16.gmra.mrb[0].mxu0 %v2423
    %v4176 = vpop.f32.mrb[0].mxu0
    %v4177 = vadd.f32 %v561, %v4176
    %v4178 = vpop.f32.mrb[0].mxu0
    %v4179 = vpop.f32.mrb[0].mxu0
    %v4180 = vadd.f32 %v561, %v4179
    %v4181 = vpop.f32.mrb[0].mxu0
    %4182 = vmatprep.mubr.bf16.mxu0 0
    %4183 = vmatmul.mubr.bf16.gmra.mrb[0].mxu0 %v2426
    %v4184 = vpop.f32.mrb[0].mxu0
    %v4185 = vadd.f32 %v561, %v4184
    %v4186 = vpop.f32.mrb[0].mxu0
    %v4187 = vpop.f32.mrb[0].mxu0
    %v4188 = vadd.f32 %v561, %v4187
    %v4189 = vpop.f32.mrb[0].mxu0
    %4190 = vmatprep.mubr.bf16.mxu0 0
    %4191 = vmatmul.mubr.bf16.gmra.mrb[0].mxu0 %v2429
    %v4192 = vpop.f32.mrb[0].mxu0
    %v4193 = vadd.f32 %v561, %v4192
    %v4194 = vpop.f32.mrb[0].mxu0
    %v4195 = vpop.f32.mrb[0].mxu0
    %v4196 = vadd.f32 %v561, %v4195
    %v4197 = vpop.f32.mrb[0].mxu0
    %4198 = vmatprep.mubr.bf16.mxu0 0
    %4199 = vmatmul.mubr.bf16.gmra.mrb[0].mxu0 %v2432
    %v4200 = vpop.f32.mrb[0].mxu0
    %v4201 = vadd.f32 %v561, %v4200
    %v4202 = vpop.f32.mrb[0].mxu0
    %v4203 = vpop.f32.mrb[0].mxu0
    %v4204 = vadd.f32 %v561, %v4203
    %v4205 = vpop.f32.mrb[0].mxu0
    %4206 = vmatprep.mubr.bf16.mxu0 0
    %4207 = vmatmul.mubr.bf16.gmra.mrb[0].mxu0 %v2435
    %v4208 = vpop.f32.mrb[0].mxu0
    %v4209 = vadd.f32 %v561, %v4208
    %v4210 = vpop.f32.mrb[0].mxu0
    %v4211 = vpop.f32.mrb[0].mxu0
    %v4212 = vadd.f32 %v561, %v4211
    %v4213 = vpop.f32.mrb[0].mxu0
    %4214 = vmatprep.mubr.bf16.mxu0 0
    %4215 = vmatmul.mubr.bf16.gmra.mrb[0].mxu0 %v2438
    %v4216 = vpop.f32.mrb[0].mxu0
    %v4217 = vadd.f32 %v561, %v4216
    %v4218 = vpop.f32.mrb[0].mxu0
    %v4219 = vpop.f32.mrb[0].mxu0
    %v4220 = vadd.f32 %v561, %v4219
    %v4221 = vpop.f32.mrb[0].mxu0
    %4222 = vmatprep.mubr.bf16.mxu0 0
    %4223 = vmatmul.mubr.bf16.gmra.mrb[0].mxu0 %v2441
    %v4224 = vpop.f32.mrb[0].mxu0
    %v4225 = vadd.f32 %v561, %v4224
    %v4226 = vpop.f32.mrb[0].mxu0
    %v4227 = vpop.f32.mrb[0].mxu0
    %v4228 = vadd.f32 %v561, %v4227
    %v4229 = vpop.f32.mrb[0].mxu0
    %4230 = vmatprep.mubr.bf16.mxu0 0
    %4231 = vmatmul.mubr.bf16.gmra.mrb[0].mxu0 %v2444
    %v4232 = vpop.f32.mrb[0].mxu0
    %v4233 = vadd.f32 %v561, %v4232
    %v4234 = vpop.f32.mrb[0].mxu0
    %v4235 = vpop.f32.mrb[0].mxu0
    %v4236 = vadd.f32 %v561, %v4235
    %v4237 = vpop.f32.mrb[0].mxu0
    %4238 = vmatprep.mubr.bf16.mxu0 0
    %4239 = vmatmul.mubr.bf16.gmra.mrb[0].mxu0 %v2447
    %v4240 = vpop.f32.mrb[0].mxu0
    %v4241 = vadd.f32 %v561, %v4240
    %v4242 = vpop.f32.mrb[0].mxu0
    %v4243 = vpop.f32.mrb[0].mxu0
    %v4244 = vadd.f32 %v561, %v4243
    %v4245 = vpop.f32.mrb[0].mxu0
    %4246 = vmatprep.mubr.bf16.mxu0 0
    %4247 = vmatmul.mubr.bf16.gmra.mrb[0].mxu0 %v2450
    %v4248 = vpop.f32.mrb[0].mxu0
    %v4249 = vadd.f32 %v561, %v4248
    %v4250 = vpop.f32.mrb[0].mxu0
    %v4251 = vpop.f32.mrb[0].mxu0
    %v4252 = vadd.f32 %v561, %v4251
    %v4253 = vpop.f32.mrb[0].mxu0
    %4254 = vmatprep.mubr.bf16.mxu0 0
    %4255 = vmatmul.mubr.bf16.gmra.mrb[0].mxu0 %v2453
    %v4256 = vpop.f32.mrb[0].mxu0
    %v4257 = vadd.f32 %v561, %v4256
    %v4258 = vpop.f32.mrb[0].mxu0
    %v4259 = vpop.f32.mrb[0].mxu0
    %v4260 = vadd.f32 %v561, %v4259
    %v4261 = vpop.f32.mrb[0].mxu0
    %4262 = vmatprep.mubr.bf16.mxu0 0
    %4263 = vmatmul.mubr.bf16.gmra.mrb[0].mxu0 %v2456
    %v4264 = vpop.f32.mrb[0].mxu0
    %v4265 = vadd.f32 %v561, %v4264
    %v4266 = vpop.f32.mrb[0].mxu0
    %v4267 = vpop.f32.mrb[0].mxu0
    %v4268 = vadd.f32 %v561, %v4267
    %v4269 = vpop.f32.mrb[0].mxu0
    %4270 = vmatprep.mubr.bf16.mxu0 0
    %4271 = vmatmul.mubr.bf16.gmra.mrb[0].mxu0 %v2459
    %v4272 = vpop.f32.mrb[0].mxu0
    %v4273 = vadd.f32 %v561, %v4272
    %v4274 = vpop.f32.mrb[0].mxu0
    %v4275 = vpop.f32.mrb[0].mxu0
    %v4276 = vadd.f32 %v561, %v4275
    %v4277 = vpop.f32.mrb[0].mxu0
    %4278 = vmatprep.mubr.bf16.mxu0 0
    %4279 = vmatmul.mubr.bf16.gmra.mrb[0].mxu0 %v2462
    %v4280 = vpop.f32.mrb[0].mxu0
    %v4281 = vadd.f32 %v561, %v4280
    %v4282 = vpop.f32.mrb[0].mxu0
    %v4283 = vpop.f32.mrb[0].mxu0
    %v4284 = vadd.f32 %v561, %v4283
    %v4285 = vpop.f32.mrb[0].mxu0
    %4286 = vmatprep.mubr.bf16.mxu0 0
    %4287 = vmatmul.mubr.bf16.gmra.mrb[0].mxu0 %v2465
    %v4288 = vpop.f32.mrb[0].mxu0
    %v4289 = vadd.f32 %v561, %v4288
    %v4290 = vpop.f32.mrb[0].mxu0
    %v4291 = vpop.f32.mrb[0].mxu0
    %v4292 = vadd.f32 %v561, %v4291
    %v4293 = vpop.f32.mrb[0].mxu0
    %4294 = vmatprep.mubr.bf16.mxu0 0
    %4295 = vmatmul.mubr.bf16.gmra.mrb[0].mxu0 %v2468
    %v4296 = vpop.f32.mrb[0].mxu0
    %v4297 = vadd.f32 %v561, %v4296
    %v4298 = vpop.f32.mrb[0].mxu0
    %v4299 = vpop.f32.mrb[0].mxu0
    %v4300 = vadd.f32 %v561, %v4299
    %v4301 = vpop.f32.mrb[0].mxu0
    %4302 = vmatprep.mubr.bf16.mxu0 0
    %4303 = vmatmul.mubr.bf16.gmra.mrb[0].mxu0 %v2471
    %v4304 = vpop.f32.mrb[0].mxu0
    %v4305 = vadd.f32 %v561, %v4304
    %v4306 = vpop.f32.mrb[0].mxu0
    %v4307 = vpop.f32.mrb[0].mxu0
    %v4308 = vadd.f32 %v561, %v4307
    %v4309 = vpop.f32.mrb[0].mxu0
    %4310 = vmatprep.mubr.bf16.mxu0 0
    %4311 = vmatmul.mubr.bf16.gmra.mrb[0].mxu0 %v2474
    %v4312 = vpop.f32.mrb[0].mxu0
    %v4313 = vadd.f32 %v561, %v4312
    %v4314 = vpop.f32.mrb[0].mxu0
    %v4315 = vpop.f32.mrb[0].mxu0
    %v4316 = vadd.f32 %v561, %v4315
    %v4317 = vpop.f32.mrb[0].mxu0
    %4318 = vmatprep.mubr.bf16.mxu0 0
    %4319 = vmatmul.mubr.bf16.gmra.mrb[0].mxu0 %v2477
    %v4320 = vpop.f32.mrb[0].mxu0
    %v4321 = vadd.f32 %v561, %v4320
    %v4322 = vpop.f32.mrb[0].mxu0
    %v4323 = vpop.f32.mrb[0].mxu0
    %v4324 = vadd.f32 %v561, %v4323
    %v4325 = vpop.f32.mrb[0].mxu0
    %4326 = vmatprep.mubr.bf16.mxu0 0
    %4327 = vmatmul.mubr.bf16.gmra.mrb[0].mxu0 %v2480
    %v4328 = vpop.f32.mrb[0].mxu0
    %v4329 = vadd.f32 %v561, %v4328
    %v4330 = vpop.f32.mrb[0].mxu0
    %v4331 = vpop.f32.mrb[0].mxu0
    %v4332 = vadd.f32 %v561, %v4331
    %v4333 = vpop.f32.mrb[0].mxu0
    %4334 = vmatprep.mubr.bf16.mxu0 0
    %4335 = vmatmul.mubr.bf16.gmra.mrb[0].mxu0 %v2483
    %v4336 = vpop.f32.mrb[0].mxu0
    %v4337 = vadd.f32 %v561, %v4336
    %v4338 = vpop.f32.mrb[0].mxu0
    %v4339 = vpop.f32.mrb[0].mxu0
    %v4340 = vadd.f32 %v561, %v4339
    %v4341 = vpop.f32.mrb[0].mxu0
    %4342 = vmatprep.mubr.bf16.mxu0 0
    %4343 = vmatmul.mubr.bf16.gmra.mrb[0].mxu0 %v2486
    %v4344 = vpop.f32.mrb[0].mxu0
    %v4345 = vadd.f32 %v561, %v4344
    %v4346 = vpop.f32.mrb[0].mxu0
    %v4347 = vpop.f32.mrb[0].mxu0
    %v4348 = vadd.f32 %v561, %v4347
    %v4349 = vpop.f32.mrb[0].mxu0
    %4350 = vmatprep.mubr.bf16.mxu0 0
    %4351 = vmatmul.mubr.bf16.gmra.mrb[0].mxu0 %v2489
    %v4352 = vpop.f32.mrb[0].mxu0
    %v4353 = vadd.f32 %v561, %v4352
    %v4354 = vpop.f32.mrb[0].mxu0
    %v4355 = vpop.f32.mrb[0].mxu0
    %v4356 = vadd.f32 %v561, %v4355
    %v4357 = vpop.f32.mrb[0].mxu0
    %4358 = vmatprep.mubr.bf16.mxu0 0
    %4359 = vmatmul.mubr.bf16.gmra.mrb[0].mxu0 %v2492
    %v4360 = vpop.f32.mrb[0].mxu0
    %v4361 = vadd.f32 %v561, %v4360
    %v4362 = vpop.f32.mrb[0].mxu0
    %v4363 = vpop.f32.mrb[0].mxu0
    %v4364 = vadd.f32 %v561, %v4363
    %v4365 = vpop.f32.mrb[0].mxu0
    %4366 = vmatprep.mubr.bf16.mxu0 0
    %4367 = vmatmul.mubr.bf16.gmra.mrb[0].mxu0 %v2495
    %v4368 = vpop.f32.mrb[0].mxu0
    %v4369 = vadd.f32 %v561, %v4368
    %v4370 = vpop.f32.mrb[0].mxu0
    %v4371 = vpop.f32.mrb[0].mxu0
    %v4372 = vadd.f32 %v561, %v4371
    %v4373 = vpop.f32.mrb[0].mxu0
    %4374 = vmatprep.mubr.bf16.mxu0 0
    %4375 = vmatmul.mubr.bf16.gmra.mrb[0].mxu0 %v2498
    %v4376 = vpop.f32.mrb[0].mxu0
    %v4377 = vadd.f32 %v561, %v4376
    %v4378 = vpop.f32.mrb[0].mxu0
    %v4379 = vpop.f32.mrb[0].mxu0
    %v4380 = vadd.f32 %v561, %v4379
    %v4381 = vpop.f32.mrb[0].mxu0
    %4382 = vmatprep.mubr.bf16.mxu0 0
    %4383 = vmatmul.mubr.bf16.gmra.mrb[0].mxu0 %v2501
    %v4384 = vpop.f32.mrb[0].mxu0
    %v4385 = vadd.f32 %v561, %v4384
    %v4386 = vpop.f32.mrb[0].mxu0
    %v4387 = vpop.f32.mrb[0].mxu0
    %v4388 = vadd.f32 %v561, %v4387
    %v4389 = vpop.f32.mrb[0].mxu0
    %4390 = vmatprep.mubr.bf16.mxu0 0
    %4391 = vmatmul.mubr.bf16.gmra.mrb[0].mxu0 %v2504
    %v4392 = vpop.f32.mrb[0].mxu0
    %v4393 = vadd.f32 %v561, %v4392
    %v4394 = vpop.f32.mrb[0].mxu0
    %v4395 = vpop.f32.mrb[0].mxu0
    %v4396 = vadd.f32 %v561, %v4395
    %v4397 = vpop.f32.mrb[0].mxu0
    %4398 = vmatprep.mubr.bf16.mxu0 0
    %4399 = vmatmul.mubr.bf16.gmra.mrb[0].mxu0 %v2507
    %v4400 = vpop.f32.mrb[0].mxu0
    %v4401 = vadd.f32 %v561, %v4400
    %v4402 = vpop.f32.mrb[0].mxu0
    %v4403 = vpop.f32.mrb[0].mxu0
    %v4404 = vadd.f32 %v561, %v4403
    %v4405 = vpop.f32.mrb[0].mxu0
    %4406 = vmatprep.mubr.bf16.mxu0 0
    %4407 = vmatmul.mubr.bf16.gmra.mrb[0].mxu0 %v2510
    %v4408 = vpop.f32.mrb[0].mxu0
    %v4409 = vadd.f32 %v561, %v4408
    %v4410 = vpop.f32.mrb[0].mxu0
    %v4411 = vpop.f32.mrb[0].mxu0
    %v4412 = vadd.f32 %v561, %v4411
    %v4413 = vpop.f32.mrb[0].mxu0
    %4414 = vmatprep.mubr.bf16.mxu0 0
    %4415 = vmatmul.mubr.bf16.gmra.mrb[0].mxu0 %v2513
    %v4416 = vpop.f32.mrb[0].mxu0
    %v4417 = vadd.f32 %v561, %v4416
    %v4418 = vpop.f32.mrb[0].mxu0
    %v4419 = vpop.f32.mrb[0].mxu0
    %v4420 = vadd.f32 %v561, %v4419
    %v4421 = vpop.f32.mrb[0].mxu0
    %4422 = vmatprep.mubr.bf16.mxu0 0
    %4423 = vmatmul.mubr.bf16.gmra.mrb[0].mxu0 %v2516
    %v4424 = vpop.f32.mrb[0].mxu0
    %v4425 = vadd.f32 %v561, %v4424
    %v4426 = vpop.f32.mrb[0].mxu0
    %v4427 = vpop.f32.mrb[0].mxu0
    %v4428 = vadd.f32 %v561, %v4427
    %v4429 = vpop.f32.mrb[0].mxu0
    %4430 = vmatprep.mubr.bf16.mxu0 0
    %4431 = vmatmul.mubr.bf16.gmra.mrb[0].mxu0 %v2519
    %v4432 = vpop.f32.mrb[0].mxu0
    %v4433 = vadd.f32 %v561, %v4432
    %v4434 = vpop.f32.mrb[0].mxu0
    %v4435 = vpop.f32.mrb[0].mxu0
    %v4436 = vadd.f32 %v561, %v4435
    %v4437 = vpop.f32.mrb[0].mxu0
    %4438 = vmatprep.mubr.bf16.mxu0 0
    %4439 = vmatmul.mubr.bf16.gmra.mrb[0].mxu0 %v2522
    %v4440 = vpop.f32.mrb[0].mxu0
    %v4441 = vadd.f32 %v561, %v4440
    %v4442 = vpop.f32.mrb[0].mxu0
    %v4443 = vpop.f32.mrb[0].mxu0
    %v4444 = vadd.f32 %v561, %v4443
    %v4445 = vpop.f32.mrb[0].mxu0
    %4446 = vmatprep.mubr.bf16.mxu0 0
    %4447 = vmatmul.mubr.bf16.gmra.mrb[0].mxu0 %v2525
    %v4448 = vpop.f32.mrb[0].mxu0
    %v4449 = vadd.f32 %v561, %v4448
    %v4450 = vpop.f32.mrb[0].mxu0
    %v4451 = vpop.f32.mrb[0].mxu0
    %v4452 = vadd.f32 %v561, %v4451
    %v4453 = vpop.f32.mrb[0].mxu0
    %4454 = vmatprep.mubr.bf16.mxu0 0
    %4455 = vmatmul.mubr.bf16.gmra.mrb[0].mxu0 %v2528
    %v4456 = vpop.f32.mrb[0].mxu0
    %v4457 = vadd.f32 %v561, %v4456
    %v4458 = vpop.f32.mrb[0].mxu0
    %v4459 = vpop.f32.mrb[0].mxu0
    %v4460 = vadd.f32 %v561, %v4459
    %v4461 = vpop.f32.mrb[0].mxu0
    %4462 = vmatprep.mubr.bf16.mxu0 0
    %4463 = vmatmul.mubr.bf16.gmra.mrb[0].mxu0 %v2531
    %v4464 = vpop.f32.mrb[0].mxu0
    %v4465 = vadd.f32 %v561, %v4464
    %v4466 = vpop.f32.mrb[0].mxu0
    %v4467 = vpop.f32.mrb[0].mxu0
    %v4468 = vadd.f32 %v561, %v4467
    %v4469 = vpop.f32.mrb[0].mxu0
    %4470 = vmatprep.mubr.bf16.mxu0 0
    %4471 = vmatmul.mubr.bf16.gmra.mrb[0].mxu0 %v2534
    %v4472 = vpop.f32.mrb[0].mxu0
    %v4473 = vadd.f32 %v561, %v4472
    %v4474 = vpop.f32.mrb[0].mxu0
    %v4475 = vpop.f32.mrb[0].mxu0
    %v4476 = vadd.f32 %v561, %v4475
    %v4477 = vpop.f32.mrb[0].mxu0
    %4478 = vmatprep.mubr.bf16.mxu0 0
    %4479 = vmatmul.mubr.bf16.gmra.mrb[0].mxu0 %v2537
    %v4480 = vpop.f32.mrb[0].mxu0
    %v4481 = vadd.f32 %v561, %v4480
    %v4482 = vpop.f32.mrb[0].mxu0
    %v4483 = vpop.f32.mrb[0].mxu0
    %v4484 = vadd.f32 %v561, %v4483
    %v4485 = vpop.f32.mrb[0].mxu0
    %4486 = vmatprep.mubr.bf16.mxu0 0
    %4487 = vmatmul.mubr.bf16.gmra.mrb[0].mxu0 %v2540
    %v4488 = vpop.f32.mrb[0].mxu0
    %v4489 = vadd.f32 %v561, %v4488
    %v4490 = vpop.f32.mrb[0].mxu0
    %v4491 = vpop.f32.mrb[0].mxu0
    %v4492 = vadd.f32 %v561, %v4491
    %v4493 = vpop.f32.mrb[0].mxu0
    %4494 = vmatprep.mubr.bf16.mxu0 0
    %4495 = vmatmul.mubr.bf16.gmra.mrb[0].mxu0 %v2543
    %v4496 = vpop.f32.mrb[0].mxu0
    %v4497 = vadd.f32 %v561, %v4496
    %v4498 = vpop.f32.mrb[0].mxu0
    %v4499 = vpop.f32.mrb[0].mxu0
    %v4500 = vadd.f32 %v561, %v4499
    %v4501 = vpop.f32.mrb[0].mxu0
    %4502 = vmatprep.mubr.bf16.mxu0 0
    %4503 = vmatmul.mubr.bf16.gmra.mrb[0].mxu0 %v2546
    %v4504 = vpop.f32.mrb[0].mxu0
    %v4505 = vadd.f32 %v561, %v4504
    %v4506 = vpop.f32.mrb[0].mxu0
    %v4507 = vpop.f32.mrb[0].mxu0
    %v4508 = vadd.f32 %v561, %v4507
    %v4509 = vpop.f32.mrb[0].mxu0
    %4510 = vmatprep.mubr.bf16.mxu0 0
    %4511 = vmatmul.mubr.bf16.gmra.mrb[0].mxu0 %v2549
    %v4512 = vpop.f32.mrb[0].mxu0
    %v4513 = vadd.f32 %v561, %v4512
    %v4514 = vpop.f32.mrb[0].mxu0
    %v4515 = vpop.f32.mrb[0].mxu0
    %v4516 = vadd.f32 %v561, %v4515
    %v4517 = vpop.f32.mrb[0].mxu0
    %4518 = vmatprep.mubr.bf16.mxu0 0
    %4519 = vmatmul.mubr.bf16.gmra.mrb[0].mxu0 %v2552
    %v4520 = vpop.f32.mrb[0].mxu0
    %v4521 = vadd.f32 %v561, %v4520
    %v4522 = vpop.f32.mrb[0].mxu0
    %v4523 = vpop.f32.mrb[0].mxu0
    %v4524 = vadd.f32 %v561, %v4523
    %v4525 = vpop.f32.mrb[0].mxu0
    %4526 = vmatprep.mubr.bf16.mxu0 0
    %4527 = vmatmul.mubr.bf16.gmra.mrb[0].mxu0 %v2555
    %v4528 = vpop.f32.mrb[0].mxu0
    %v4529 = vadd.f32 %v561, %v4528
    %v4530 = vpop.f32.mrb[0].mxu0
    %v4531 = vpop.f32.mrb[0].mxu0
    %v4532 = vadd.f32 %v561, %v4531
    %v4533 = vpop.f32.mrb[0].mxu0
    %4534 = vmatprep.mubr.bf16.mxu0 0
    %4535 = vmatmul.mubr.bf16.gmra.mrb[0].mxu0 %v2558
    %v4536 = vpop.f32.mrb[0].mxu0
    %v4537 = vadd.f32 %v561, %v4536
    %v4538 = vpop.f32.mrb[0].mxu0
    %v4539 = vpop.f32.mrb[0].mxu0
    %v4540 = vadd.f32 %v561, %v4539
    %v4541 = vpop.f32.mrb[0].mxu0
    %4542 = vmatprep.mubr.bf16.mxu0 0
    %4543 = vmatmul.mubr.bf16.gmra.mrb[0].mxu0 %v2561
    %v4544 = vpop.f32.mrb[0].mxu0
    %v4545 = vadd.f32 %v561, %v4544
    %v4546 = vpop.f32.mrb[0].mxu0
    %v4547 = vpop.f32.mrb[0].mxu0
    %v4548 = vadd.f32 %v561, %v4547
    %v4549 = vpop.f32.mrb[0].mxu0
    %4550 = vmatprep.mubr.bf16.mxu0 0
    %4551 = vmatmul.mubr.bf16.gmra.mrb[0].mxu0 %v2564
    %v4552 = vpop.f32.mrb[0].mxu0
    %v4553 = vadd.f32 %v561, %v4552
    %v4554 = vpop.f32.mrb[0].mxu0
    %v4555 = vpop.f32.mrb[0].mxu0
    %v4556 = vadd.f32 %v561, %v4555
    %v4557 = vpop.f32.mrb[0].mxu0
    %4558 = vmatprep.mubr.bf16.mxu0 0
    %4559 = vmatmul.mubr.bf16.gmra.mrb[0].mxu0 %v2567
    %v4560 = vpop.f32.mrb[0].mxu0
    %v4561 = vadd.f32 %v561, %v4560
    %v4562 = vpop.f32.mrb[0].mxu0
    %v4563 = vpop.f32.mrb[0].mxu0
    %v4564 = vadd.f32 %v561, %v4563
    %v4565 = vpop.f32.mrb[0].mxu0
    %4566 = vmatprep.mubr.bf16.mxu0 0
    %4567 = vmatmul.mubr.bf16.gmra.mrb[0].mxu0 %v2570
    %v4568 = vpop.f32.mrb[0].mxu0
    %v4569 = vadd.f32 %v561, %v4568
    %v4570 = vpop.f32.mrb[0].mxu0
    %v4571 = vpop.f32.mrb[0].mxu0
    %v4572 = vadd.f32 %v561, %v4571
    %v4573 = vpop.f32.mrb[0].mxu0
    %4574 = vmatprep.mubr.bf16.mxu0 0
    %4575 = vmatmul.mubr.bf16.gmra.mrb[0].mxu0 %v2573
    %v4576 = vpop.f32.mrb[0].mxu0
    %v4577 = vadd.f32 %v561, %v4576
    %v4578 = vpop.f32.mrb[0].mxu0
    %v4579 = vpop.f32.mrb[0].mxu0
    %v4580 = vadd.f32 %v561, %v4579
    %v4581 = vpop.f32.mrb[0].mxu0
    %4582 = vmatprep.mubr.bf16.mxu0 0
    %4583 = vmatmul.mubr.bf16.gmra.mrb[0].mxu0 %v2576
    %v4584 = vpop.f32.mrb[0].mxu0
    %v4585 = vadd.f32 %v561, %v4584
    %v4586 = vpop.f32.mrb[0].mxu0
    %v4587 = vpop.f32.mrb[0].mxu0
    %v4588 = vadd.f32 %v561, %v4587
    %v4589 = vpop.f32.mrb[0].mxu0
    %4590 = vmatprep.mubr.bf16.mxu0 0
    %4591 = vmatmul.mubr.bf16.gmra.mrb[0].mxu0 %v2579
    %v4592 = vpop.f32.mrb[0].mxu0
    %v4593 = vadd.f32 %v561, %v4592
    %v4594 = vpop.f32.mrb[0].mxu0
    %v4595 = vpop.f32.mrb[0].mxu0
    %v4596 = vadd.f32 %v561, %v4595
    %v4597 = vpop.f32.mrb[0].mxu0
    %4598 = vmatprep.mubr.bf16.mxu0 0
    %4599 = vmatmul.mubr.bf16.gmra.mrb[0].mxu0 %v2582
    %v4600 = vpop.f32.mrb[0].mxu0
    %v4601 = vadd.f32 %v561, %v4600
    %v4602 = vpop.f32.mrb[0].mxu0
    %v4603 = vpop.f32.mrb[0].mxu0
    %v4604 = vadd.f32 %v561, %v4603
    %v4605 = vpop.f32.mrb[0].mxu0
    %4606 = vmatprep.mubr.bf16.mxu0 0
    %4607 = vmatmul.mubr.bf16.gmra.mrb[0].mxu0 %v2585
    %v4608 = vpop.f32.mrb[0].mxu0
    %v4609 = vadd.f32 %v561, %v4608
    %v4610 = vpop.f32.mrb[0].mxu0
    %v4611 = vpop.f32.mrb[0].mxu0
    %v4612 = vadd.f32 %v561, %v4611
    %v4613 = vpop.f32.mrb[0].mxu0
    %4614 = vmatprep.mubr.bf16.mxu0 0
    %4615 = vmatmul.mubr.bf16.gmra.mrb[0].mxu0 %v2588
    %v4616 = vpop.f32.mrb[0].mxu0
    %v4617 = vadd.f32 %v561, %v4616
    %v4618 = vpop.f32.mrb[0].mxu0
    %v4619 = vpop.f32.mrb[0].mxu0
    %v4620 = vadd.f32 %v561, %v4619
    %v4621 = vpop.f32.mrb[0].mxu0
    %4622 = vmatprep.mubr.bf16.mxu0 0
    %4623 = vmatmul.mubr.bf16.gmra.mrb[0].mxu0 %v2591
    %v4624 = vpop.f32.mrb[0].mxu0
    %v4625 = vadd.f32 %v561, %v4624
    %v4626 = vpop.f32.mrb[0].mxu0
    %v4627 = vpop.f32.mrb[0].mxu0
    %v4628 = vadd.f32 %v561, %v4627
    %v4629 = vpop.f32.mrb[0].mxu0
    %4630 = vmatprep.mubr.bf16.mxu0 0
    %4631 = vmatmul.mubr.bf16.gmra.mrb[0].mxu0 %v2594
    %v4632 = vpop.f32.mrb[0].mxu0
    %v4633 = vadd.f32 %v561, %v4632
    %v4634 = vpop.f32.mrb[0].mxu0
    %v4635 = vpop.f32.mrb[0].mxu0
    %v4636 = vadd.f32 %v561, %v4635
    %v4637 = vpop.f32.mrb[0].mxu0
    %4638 = vmatprep.mubr.bf16.mxu0 0
    %4639 = vmatmul.mubr.bf16.gmra.mrb[0].mxu0 %v2597
    %v4640 = vpop.f32.mrb[0].mxu0
    %v4641 = vadd.f32 %v561, %v4640
    %v4642 = vpop.f32.mrb[0].mxu0
    %v4643 = vpop.f32.mrb[0].mxu0
    %v4644 = vadd.f32 %v561, %v4643
    %v4645 = vpop.f32.mrb[0].mxu0
    %4646 = vmatprep.mubr.bf16.mxu0 0
    %4647 = vmatmul.mubr.bf16.gmra.mrb[0].mxu0 %v2600
    %v4648 = vpop.f32.mrb[0].mxu0
    %v4649 = vadd.f32 %v561, %v4648
    %v4650 = vpop.f32.mrb[0].mxu0
    %v4651 = vpop.f32.mrb[0].mxu0
    %v4652 = vadd.f32 %v561, %v4651
    %v4653 = vpop.f32.mrb[0].mxu0
    %4654 = vmatprep.mubr.bf16.mxu0 0
    %4655 = vmatmul.mubr.bf16.gmra.mrb[0].mxu0 %v2603
    %v4656 = vpop.f32.mrb[0].mxu0
    %v4657 = vadd.f32 %v561, %v4656
    %v4658 = vpop.f32.mrb[0].mxu0
    %v4659 = vpop.f32.mrb[0].mxu0
    %v4660 = vadd.f32 %v561, %v4659
    %v4661 = vpop.f32.mrb[0].mxu0
    %4662 = vmatprep.mubr.bf16.mxu0 0
    %4663 = vmatmul.mubr.bf16.gmra.mrb[0].mxu0 %v2606
    %v4664 = vpop.f32.mrb[0].mxu0
    %v4665 = vadd.f32 %v561, %v4664
    %v4666 = vpop.f32.mrb[0].mxu0
    %v4667 = vpop.f32.mrb[0].mxu0
    %v4668 = vadd.f32 %v561, %v4667
    %v4669 = vpop.f32.mrb[0].mxu0
    %4670 = vmatprep.mubr.bf16.mxu0 0
    %4671 = vmatmul.mubr.bf16.gmra.mrb[0].mxu0 %v2609
    %v4672 = vpop.f32.mrb[0].mxu0
    %v4673 = vadd.f32 %v561, %v4672
    %v4674 = vpop.f32.mrb[0].mxu0
    %v4675 = vpop.f32.mrb[0].mxu0
    %v4676 = vadd.f32 %v561, %v4675
    %v4677 = vpop.f32.mrb[0].mxu0
    %4678 = vmatprep.mubr.bf16.mxu0 0
    %4679 = vmatmul.mubr.bf16.gmra.mrb[0].mxu0 %v2612
    %v4680 = vpop.f32.mrb[0].mxu0
    %v4681 = vadd.f32 %v561, %v4680
    %v4682 = vpop.f32.mrb[0].mxu0
    %v4683 = vpop.f32.mrb[0].mxu0
    %v4684 = vadd.f32 %v561, %v4683
    %v4685 = vpop.f32.mrb[0].mxu0
    %4686 = vmatprep.mubr.bf16.mxu0 0
    %4687 = vmatmul.mubr.bf16.gmra.mrb[0].mxu0 %v2615
    %v4688 = vpop.f32.mrb[0].mxu0
    %v4689 = vadd.f32 %v561, %v4688
    %v4690 = vpop.f32.mrb[0].mxu0
    %v4691 = vpop.f32.mrb[0].mxu0
    %v4692 = vadd.f32 %v561, %v4691
    %v4693 = vpop.f32.mrb[0].mxu0
    %4694 = vmatprep.mubr.bf16.mxu0 0
    %4695 = vmatmul.mubr.bf16.gmra.mrb[0].mxu0 %v2618
    %v4696 = vpop.f32.mrb[0].mxu0
    %v4697 = vadd.f32 %v561, %v4696
    %v4698 = vpop.f32.mrb[0].mxu0
    %v4699 = vpop.f32.mrb[0].mxu0
    %v4700 = vadd.f32 %v561, %v4699
    %v4701 = vpop.f32.mrb[0].mxu0
    %4702 = vmatprep.mubr.bf16.mxu0 0
    %4703 = vmatmul.mubr.bf16.gmra.mrb[0].mxu0 %v2621
    %v4704 = vpop.f32.mrb[0].mxu0
    %v4705 = vadd.f32 %v561, %v4704
    %v4706 = vpop.f32.mrb[0].mxu0
    %v4707 = vpop.f32.mrb[0].mxu0
    %v4708 = vadd.f32 %v561, %v4707
    %v4709 = vpop.f32.mrb[0].mxu0
    %4710 = vdwg.mxu0
    %v4711 = vmax.f32 %v2665, 0.0
    %v4712 = vmax.f32 %v2668, 0.0
    %v4713 = vmax.f32 %v2673, 0.0
    %v4714 = vmax.f32 %v2676, 0.0
    %v4715 = vmax.f32 %v2681, 0.0
    %v4716 = vmax.f32 %v2684, 0.0
    %v4717 = vmax.f32 %v2689, 0.0
    %v4718 = vmax.f32 %v2692, 0.0
    %v4719 = vmax.f32 %v2697, 0.0
    %v4720 = vmax.f32 %v2700, 0.0
    %v4721 = vmax.f32 %v2705, 0.0
    %v4722 = vmax.f32 %v2708, 0.0
    %v4723 = vmax.f32 %v2713, 0.0
    %v4724 = vmax.f32 %v2716, 0.0
    %v4725 = vmax.f32 %v2721, 0.0
    %v4726 = vmax.f32 %v2724, 0.0
    %v4727 = vmax.f32 %v2729, 0.0
    %v4728 = vmax.f32 %v2732, 0.0
    %v4729 = vmax.f32 %v2737, 0.0
    %v4730 = vmax.f32 %v2740, 0.0
    %v4731 = vmax.f32 %v2745, 0.0
    %v4732 = vmax.f32 %v2748, 0.0
    %v4733 = vmax.f32 %v2753, 0.0
    %v4734 = vmax.f32 %v2756, 0.0
    %v4735 = vmax.f32 %v2761, 0.0
    %v4736 = vmax.f32 %v2764, 0.0
    %v4737 = vmax.f32 %v2769, 0.0
    %v4738 = vmax.f32 %v2772, 0.0
    %v4739 = vmax.f32 %v2777, 0.0
    %v4740 = vmax.f32 %v2780, 0.0
    %v4741 = vmax.f32 %v2785, 0.0
    %v4742 = vmax.f32 %v2788, 0.0
    %v4743 = vmax.f32 %v2793, 0.0
    %v4744 = vmax.f32 %v2796, 0.0
    %v4745 = vmax.f32 %v2801, 0.0
    %v4746 = vmax.f32 %v2804, 0.0
    %v4747 = vmax.f32 %v2809, 0.0
    %v4748 = vmax.f32 %v2812, 0.0
    %v4749 = vmax.f32 %v2817, 0.0
    %v4750 = vmax.f32 %v2820, 0.0
    %v4751 = vmax.f32 %v2825, 0.0
    %v4752 = vmax.f32 %v2828, 0.0
    %v4753 = vmax.f32 %v2833, 0.0
    %v4754 = vmax.f32 %v2836, 0.0
    %v4755 = vmax.f32 %v2841, 0.0
    %v4756 = vmax.f32 %v2844, 0.0
    %v4757 = vmax.f32 %v2849, 0.0
    %v4758 = vmax.f32 %v2852, 0.0
    %v4759 = vmax.f32 %v2857, 0.0
    %v4760 = vmax.f32 %v2860, 0.0
    %v4761 = vmax.f32 %v2865, 0.0
    %v4762 = vmax.f32 %v2868, 0.0
    %v4763 = vmax.f32 %v2873, 0.0
    %v4764 = vmax.f32 %v2876, 0.0
    %v4765 = vmax.f32 %v2881, 0.0
    %v4766 = vmax.f32 %v2884, 0.0
    %v4767 = vmax.f32 %v2889, 0.0
    %v4768 = vmax.f32 %v2892, 0.0
    %v4769 = vmax.f32 %v2897, 0.0
    %v4770 = vmax.f32 %v2900, 0.0
    %v4771 = vmax.f32 %v2905, 0.0
    %v4772 = vmax.f32 %v2908, 0.0
    %v4773 = vmax.f32 %v2913, 0.0
    %v4774 = vmax.f32 %v2916, 0.0
    %v4775 = vmax.f32 %v2921, 0.0
    %v4776 = vmax.f32 %v2924, 0.0
    %v4777 = vmax.f32 %v2929, 0.0
    %v4778 = vmax.f32 %v2932, 0.0
    %v4779 = vmax.f32 %v2937, 0.0
    %v4780 = vmax.f32 %v2940, 0.0
    %v4781 = vmax.f32 %v2945, 0.0
    %v4782 = vmax.f32 %v2948, 0.0
    %v4783 = vmax.f32 %v2953, 0.0
    %v4784 = vmax.f32 %v2956, 0.0
    %v4785 = vmax.f32 %v2961, 0.0
    %v4786 = vmax.f32 %v2964, 0.0
    %v4787 = vmax.f32 %v2969, 0.0
    %v4788 = vmax.f32 %v2972, 0.0
    %v4789 = vmax.f32 %v2977, 0.0
    %v4790 = vmax.f32 %v2980, 0.0
    %v4791 = vmax.f32 %v2985, 0.0
    %v4792 = vmax.f32 %v2988, 0.0
    %v4793 = vmax.f32 %v2993, 0.0
    %v4794 = vmax.f32 %v2996, 0.0
    %v4795 = vmax.f32 %v3001, 0.0
    %v4796 = vmax.f32 %v3004, 0.0
    %v4797 = vmax.f32 %v3009, 0.0
    %v4798 = vmax.f32 %v3012, 0.0
    %v4799 = vmax.f32 %v3017, 0.0
    %v4800 = vmax.f32 %v3020, 0.0
    %v4801 = vmax.f32 %v3025, 0.0
    %v4802 = vmax.f32 %v3028, 0.0
    %v4803 = vmax.f32 %v3033, 0.0
    %v4804 = vmax.f32 %v3036, 0.0
    %v4805 = vmax.f32 %v3041, 0.0
    %v4806 = vmax.f32 %v3044, 0.0
    %v4807 = vmax.f32 %v3049, 0.0
    %v4808 = vmax.f32 %v3052, 0.0
    %v4809 = vmax.f32 %v3057, 0.0
    %v4810 = vmax.f32 %v3060, 0.0
    %v4811 = vmax.f32 %v3065, 0.0
    %v4812 = vmax.f32 %v3068, 0.0
    %v4813 = vmax.f32 %v3073, 0.0
    %v4814 = vmax.f32 %v3076, 0.0
    %v4815 = vmax.f32 %v3081, 0.0
    %v4816 = vmax.f32 %v3084, 0.0
    %v4817 = vmax.f32 %v3089, 0.0
    %v4818 = vmax.f32 %v3092, 0.0
    %v4819 = vmax.f32 %v3097, 0.0
    %v4820 = vmax.f32 %v3100, 0.0
    %v4821 = vmax.f32 %v3105, 0.0
    %v4822 = vmax.f32 %v3108, 0.0
    %v4823 = vmax.f32 %v3113, 0.0
    %v4824 = vmax.f32 %v3116, 0.0
    %v4825 = vmax.f32 %v3121, 0.0
    %v4826 = vmax.f32 %v3124, 0.0
    %v4827 = vmax.f32 %v3129, 0.0
    %v4828 = vmax.f32 %v3132, 0.0
    %v4829 = vmax.f32 %v3137, 0.0
    %v4830 = vmax.f32 %v3140, 0.0
    %v4831 = vmax.f32 %v3145, 0.0
    %v4832 = vmax.f32 %v3148, 0.0
    %v4833 = vmax.f32 %v3153, 0.0
    %v4834 = vmax.f32 %v3156, 0.0
    %v4835 = vmax.f32 %v3161, 0.0
    %v4836 = vmax.f32 %v3164, 0.0
    %v4837 = vmax.f32 %v3169, 0.0
    %v4838 = vmax.f32 %v3172, 0.0
    %v4839 = vmax.f32 %v3177, 0.0
    %v4840 = vmax.f32 %v3180, 0.0
    %v4841 = vmax.f32 %v3185, 0.0
    %v4842 = vmax.f32 %v3188, 0.0
    %v4843 = vmax.f32 %v3193, 0.0
    %v4844 = vmax.f32 %v3196, 0.0
    %v4845 = vmax.f32 %v3201, 0.0
    %v4846 = vmax.f32 %v3204, 0.0
    %v4847 = vmax.f32 %v3209, 0.0
    %v4848 = vmax.f32 %v3212, 0.0
    %v4849 = vmax.f32 %v3217, 0.0
    %v4850 = vmax.f32 %v3220, 0.0
    %v4851 = vmax.f32 %v3225, 0.0
    %v4852 = vmax.f32 %v3228, 0.0
    %v4853 = vmax.f32 %v3233, 0.0
    %v4854 = vmax.f32 %v3236, 0.0
    %v4855 = vmax.f32 %v3241, 0.0
    %v4856 = vmax.f32 %v3244, 0.0
    %v4857 = vmax.f32 %v3249, 0.0
    %v4858 = vmax.f32 %v3252, 0.0
    %v4859 = vmax.f32 %v3257, 0.0
    %v4860 = vmax.f32 %v3260, 0.0
    %v4861 = vmax.f32 %v3265, 0.0
    %v4862 = vmax.f32 %v3268, 0.0
    %v4863 = vmax.f32 %v3273, 0.0
    %v4864 = vmax.f32 %v3276, 0.0
    %v4865 = vmax.f32 %v3281, 0.0
    %v4866 = vmax.f32 %v3284, 0.0
    %v4867 = vmax.f32 %v3289, 0.0
    %v4868 = vmax.f32 %v3292, 0.0
    %v4869 = vmax.f32 %v3297, 0.0
    %v4870 = vmax.f32 %v3300, 0.0
    %v4871 = vmax.f32 %v3305, 0.0
    %v4872 = vmax.f32 %v3308, 0.0
    %v4873 = vmax.f32 %v3313, 0.0
    %v4874 = vmax.f32 %v3316, 0.0
    %v4875 = vmax.f32 %v3321, 0.0
    %v4876 = vmax.f32 %v3324, 0.0
    %v4877 = vmax.f32 %v3329, 0.0
    %v4878 = vmax.f32 %v3332, 0.0
    %v4879 = vmax.f32 %v3337, 0.0
    %v4880 = vmax.f32 %v3340, 0.0
    %v4881 = vmax.f32 %v3345, 0.0
    %v4882 = vmax.f32 %v3348, 0.0
    %v4883 = vmax.f32 %v3353, 0.0
    %v4884 = vmax.f32 %v3356, 0.0
    %v4885 = vmax.f32 %v3361, 0.0
    %v4886 = vmax.f32 %v3364, 0.0
    %v4887 = vmax.f32 %v3369, 0.0
    %v4888 = vmax.f32 %v3372, 0.0
    %v4889 = vmax.f32 %v3377, 0.0
    %v4890 = vmax.f32 %v3380, 0.0
    %v4891 = vmax.f32 %v3385, 0.0
    %v4892 = vmax.f32 %v3388, 0.0
    %v4893 = vmax.f32 %v3393, 0.0
    %v4894 = vmax.f32 %v3396, 0.0
    %v4895 = vmax.f32 %v3401, 0.0
    %v4896 = vmax.f32 %v3404, 0.0
    %v4897 = vmax.f32 %v3409, 0.0
    %v4898 = vmax.f32 %v3412, 0.0
    %v4899 = vmax.f32 %v3417, 0.0
    %v4900 = vmax.f32 %v3420, 0.0
    %v4901 = vmax.f32 %v3425, 0.0
    %v4902 = vmax.f32 %v3428, 0.0
    %v4903 = vmax.f32 %v3433, 0.0
    %v4904 = vmax.f32 %v3436, 0.0
    %v4905 = vmax.f32 %v3441, 0.0
    %v4906 = vmax.f32 %v3444, 0.0
    %v4907 = vmax.f32 %v3449, 0.0
    %v4908 = vmax.f32 %v3452, 0.0
    %v4909 = vmax.f32 %v3457, 0.0
    %v4910 = vmax.f32 %v3460, 0.0
    %v4911 = vmax.f32 %v3465, 0.0
    %v4912 = vmax.f32 %v3468, 0.0
    %v4913 = vmax.f32 %v3473, 0.0
    %v4914 = vmax.f32 %v3476, 0.0
    %v4915 = vmax.f32 %v3481, 0.0
    %v4916 = vmax.f32 %v3484, 0.0
    %v4917 = vmax.f32 %v3489, 0.0
    %v4918 = vmax.f32 %v3492, 0.0
    %v4919 = vmax.f32 %v3497, 0.0
    %v4920 = vmax.f32 %v3500, 0.0
    %v4921 = vmax.f32 %v3505, 0.0
    %v4922 = vmax.f32 %v3508, 0.0
    %v4923 = vmax.f32 %v3513, 0.0
    %v4924 = vmax.f32 %v3516, 0.0
    %v4925 = vmax.f32 %v3521, 0.0
    %v4926 = vmax.f32 %v3524, 0.0
    %v4927 = vmax.f32 %v3529, 0.0
    %v4928 = vmax.f32 %v3532, 0.0
    %v4929 = vmax.f32 %v3537, 0.0
    %v4930 = vmax.f32 %v3540, 0.0
    %v4931 = vmax.f32 %v3545, 0.0
    %v4932 = vmax.f32 %v3548, 0.0
    %v4933 = vmax.f32 %v3553, 0.0
    %v4934 = vmax.f32 %v3556, 0.0
    %v4935 = vmax.f32 %v3561, 0.0
    %v4936 = vmax.f32 %v3564, 0.0
    %v4937 = vmax.f32 %v3569, 0.0
    %v4938 = vmax.f32 %v3572, 0.0
    %v4939 = vmax.f32 %v3577, 0.0
    %v4940 = vmax.f32 %v3580, 0.0
    %v4941 = vmax.f32 %v3585, 0.0
    %v4942 = vmax.f32 %v3588, 0.0
    %v4943 = vmax.f32 %v3593, 0.0
    %v4944 = vmax.f32 %v3596, 0.0
    %v4945 = vmax.f32 %v3601, 0.0
    %v4946 = vmax.f32 %v3604, 0.0
    %v4947 = vmax.f32 %v3609, 0.0
    %v4948 = vmax.f32 %v3612, 0.0
    %v4949 = vmax.f32 %v3617, 0.0
    %v4950 = vmax.f32 %v3620, 0.0
    %v4951 = vmax.f32 %v3625, 0.0
    %v4952 = vmax.f32 %v3628, 0.0
    %v4953 = vmax.f32 %v3633, 0.0
    %v4954 = vmax.f32 %v3636, 0.0
    %v4955 = vmax.f32 %v3641, 0.0
    %v4956 = vmax.f32 %v3644, 0.0
    %v4957 = vmax.f32 %v3649, 0.0
    %v4958 = vmax.f32 %v3652, 0.0
    %v4959 = vmax.f32 %v3657, 0.0
    %v4960 = vmax.f32 %v3660, 0.0
    %v4961 = vmax.f32 %v3665, 0.0
    %v4962 = vmax.f32 %v3668, 0.0
    %v4963 = vmax.f32 %v3673, 0.0
    %v4964 = vmax.f32 %v3676, 0.0
    %v4965 = vmax.f32 %v3681, 0.0
    %v4966 = vmax.f32 %v3684, 0.0
    %v4967 = vmax.f32 %v3689, 0.0
    %v4968 = vmax.f32 %v3692, 0.0
    %v4969 = vmax.f32 %v3697, 0.0
    %v4970 = vmax.f32 %v3700, 0.0
    %v4971 = vmax.f32 %v3705, 0.0
    %v4972 = vmax.f32 %v3708, 0.0
    %v4973 = vmax.f32 %v3713, 0.0
    %v4974 = vmax.f32 %v3716, 0.0
    %v4975 = vmax.f32 %v3721, 0.0
    %v4976 = vmax.f32 %v3724, 0.0
    %v4977 = vmax.f32 %v3729, 0.0
    %v4978 = vmax.f32 %v3732, 0.0
    %v4979 = vmax.f32 %v3737, 0.0
    %v4980 = vmax.f32 %v3740, 0.0
    %v4981 = vmax.f32 %v3745, 0.0
    %v4982 = vmax.f32 %v3748, 0.0
    %v4983 = vmax.f32 %v3753, 0.0
    %v4984 = vmax.f32 %v3756, 0.0
    %v4985 = vmax.f32 %v3761, 0.0
    %v4986 = vmax.f32 %v3764, 0.0
    %v4987 = vmax.f32 %v3769, 0.0
    %v4988 = vmax.f32 %v3772, 0.0
    %v4989 = vmax.f32 %v3777, 0.0
    %v4990 = vmax.f32 %v3780, 0.0
    %v4991 = vmax.f32 %v3785, 0.0
    %v4992 = vmax.f32 %v3788, 0.0
    %v4993 = vmax.f32 %v3793, 0.0
    %v4994 = vmax.f32 %v3796, 0.0
    %v4995 = vmax.f32 %v3801, 0.0
    %v4996 = vmax.f32 %v3804, 0.0
    %v4997 = vmax.f32 %v3809, 0.0
    %v4998 = vmax.f32 %v3812, 0.0
    %v4999 = vmax.f32 %v3817, 0.0
    %v5000 = vmax.f32 %v3820, 0.0
    %v5001 = vmax.f32 %v3825, 0.0
    %v5002 = vmax.f32 %v3828, 0.0
    %v5003 = vmax.f32 %v3833, 0.0
    %v5004 = vmax.f32 %v3836, 0.0
    %v5005 = vmax.f32 %v3841, 0.0
    %v5006 = vmax.f32 %v3844, 0.0
    %v5007 = vmax.f32 %v3849, 0.0
    %v5008 = vmax.f32 %v3852, 0.0
    %v5009 = vmax.f32 %v3857, 0.0
    %v5010 = vmax.f32 %v3860, 0.0
    %v5011 = vmax.f32 %v3865, 0.0
    %v5012 = vmax.f32 %v3868, 0.0
    %v5013 = vmax.f32 %v3873, 0.0
    %v5014 = vmax.f32 %v3876, 0.0
    %v5015 = vmax.f32 %v3881, 0.0
    %v5016 = vmax.f32 %v3884, 0.0
    %v5017 = vmax.f32 %v3889, 0.0
    %v5018 = vmax.f32 %v3892, 0.0
    %v5019 = vmax.f32 %v3897, 0.0
    %v5020 = vmax.f32 %v3900, 0.0
    %v5021 = vmax.f32 %v3905, 0.0
    %v5022 = vmax.f32 %v3908, 0.0
    %v5023 = vmax.f32 %v3913, 0.0
    %v5024 = vmax.f32 %v3916, 0.0
    %v5025 = vmax.f32 %v3921, 0.0
    %v5026 = vmax.f32 %v3924, 0.0
    %v5027 = vmax.f32 %v3929, 0.0
    %v5028 = vmax.f32 %v3932, 0.0
    %v5029 = vmax.f32 %v3937, 0.0
    %v5030 = vmax.f32 %v3940, 0.0
    %v5031 = vmax.f32 %v3945, 0.0
    %v5032 = vmax.f32 %v3948, 0.0
    %v5033 = vmax.f32 %v3953, 0.0
    %v5034 = vmax.f32 %v3956, 0.0
    %v5035 = vmax.f32 %v3961, 0.0
    %v5036 = vmax.f32 %v3964, 0.0
    %v5037 = vmax.f32 %v3969, 0.0
    %v5038 = vmax.f32 %v3972, 0.0
    %v5039 = vmax.f32 %v3977, 0.0
    %v5040 = vmax.f32 %v3980, 0.0
    %v5041 = vmax.f32 %v3985, 0.0
    %v5042 = vmax.f32 %v3988, 0.0
    %v5043 = vmax.f32 %v3993, 0.0
    %v5044 = vmax.f32 %v3996, 0.0
    %v5045 = vmax.f32 %v4001, 0.0
    %v5046 = vmax.f32 %v4004, 0.0
    %v5047 = vmax.f32 %v4009, 0.0
    %v5048 = vmax.f32 %v4012, 0.0
    %v5049 = vmax.f32 %v4017, 0.0
    %v5050 = vmax.f32 %v4020, 0.0
    %v5051 = vmax.f32 %v4025, 0.0
    %v5052 = vmax.f32 %v4028, 0.0
    %v5053 = vmax.f32 %v4033, 0.0
    %v5054 = vmax.f32 %v4036, 0.0
    %v5055 = vmax.f32 %v4041, 0.0
    %v5056 = vmax.f32 %v4044, 0.0
    %v5057 = vmax.f32 %v4049, 0.0
    %v5058 = vmax.f32 %v4052, 0.0
    %v5059 = vmax.f32 %v4057, 0.0
    %v5060 = vmax.f32 %v4060, 0.0
    %v5061 = vmax.f32 %v4065, 0.0
    %v5062 = vmax.f32 %v4068, 0.0
    %v5063 = vmax.f32 %v4073, 0.0
    %v5064 = vmax.f32 %v4076, 0.0
    %v5065 = vmax.f32 %v4081, 0.0
    %v5066 = vmax.f32 %v4084, 0.0
    %v5067 = vmax.f32 %v4089, 0.0
    %v5068 = vmax.f32 %v4092, 0.0
    %v5069 = vmax.f32 %v4097, 0.0
    %v5070 = vmax.f32 %v4100, 0.0
    %v5071 = vmax.f32 %v4105, 0.0
    %v5072 = vmax.f32 %v4108, 0.0
    %v5073 = vmax.f32 %v4113, 0.0
    %v5074 = vmax.f32 %v4116, 0.0
    %v5075 = vmax.f32 %v4121, 0.0
    %v5076 = vmax.f32 %v4124, 0.0
    %v5077 = vmax.f32 %v4129, 0.0
    %v5078 = vmax.f32 %v4132, 0.0
    %v5079 = vmax.f32 %v4137, 0.0
    %v5080 = vmax.f32 %v4140, 0.0
    %v5081 = vmax.f32 %v4145, 0.0
    %v5082 = vmax.f32 %v4148, 0.0
    %v5083 = vmax.f32 %v4153, 0.0
    %v5084 = vmax.f32 %v4156, 0.0
    %v5085 = vmax.f32 %v4161, 0.0
    %v5086 = vmax.f32 %v4164, 0.0
    %v5087 = vmax.f32 %v4169, 0.0
    %v5088 = vmax.f32 %v4172, 0.0
    %v5089 = vmax.f32 %v4177, 0.0
    %v5090 = vmax.f32 %v4180, 0.0
    %v5091 = vmax.f32 %v4185, 0.0
    %v5092 = vmax.f32 %v4188, 0.0
    %v5093 = vmax.f32 %v4193, 0.0
    %v5094 = vmax.f32 %v4196, 0.0
    %v5095 = vmax.f32 %v4201, 0.0
    %v5096 = vmax.f32 %v4204, 0.0
    %v5097 = vmax.f32 %v4209, 0.0
    %v5098 = vmax.f32 %v4212, 0.0
    %v5099 = vmax.f32 %v4217, 0.0
    %v5100 = vmax.f32 %v4220, 0.0
    %v5101 = vmax.f32 %v4225, 0.0
    %v5102 = vmax.f32 %v4228, 0.0
    %v5103 = vmax.f32 %v4233, 0.0
    %v5104 = vmax.f32 %v4236, 0.0
    %v5105 = vmax.f32 %v4241, 0.0
    %v5106 = vmax.f32 %v4244, 0.0
    %v5107 = vmax.f32 %v4249, 0.0
    %v5108 = vmax.f32 %v4252, 0.0
    %v5109 = vmax.f32 %v4257, 0.0
    %v5110 = vmax.f32 %v4260, 0.0
    %v5111 = vmax.f32 %v4265, 0.0
    %v5112 = vmax.f32 %v4268, 0.0
    %v5113 = vmax.f32 %v4273, 0.0
    %v5114 = vmax.f32 %v4276, 0.0
    %v5115 = vmax.f32 %v4281, 0.0
    %v5116 = vmax.f32 %v4284, 0.0
    %v5117 = vmax.f32 %v4289, 0.0
    %v5118 = vmax.f32 %v4292, 0.0
    %v5119 = vmax.f32 %v4297, 0.0
    %v5120 = vmax.f32 %v4300, 0.0
    %v5121 = vmax.f32 %v4305, 0.0
    %v5122 = vmax.f32 %v4308, 0.0
    %v5123 = vmax.f32 %v4313, 0.0
    %v5124 = vmax.f32 %v4316, 0.0
    %v5125 = vmax.f32 %v4321, 0.0
    %v5126 = vmax.f32 %v4324, 0.0
    %v5127 = vmax.f32 %v4329, 0.0
    %v5128 = vmax.f32 %v4332, 0.0
    %v5129 = vmax.f32 %v4337, 0.0
    %v5130 = vmax.f32 %v4340, 0.0
    %v5131 = vmax.f32 %v4345, 0.0
    %v5132 = vmax.f32 %v4348, 0.0
    %v5133 = vmax.f32 %v4353, 0.0
    %v5134 = vmax.f32 %v4356, 0.0
    %v5135 = vmax.f32 %v4361, 0.0
    %v5136 = vmax.f32 %v4364, 0.0
    %v5137 = vmax.f32 %v4369, 0.0
    %v5138 = vmax.f32 %v4372, 0.0
    %v5139 = vmax.f32 %v4377, 0.0
    %v5140 = vmax.f32 %v4380, 0.0
    %v5141 = vmax.f32 %v4385, 0.0
    %v5142 = vmax.f32 %v4388, 0.0
    %v5143 = vmax.f32 %v4393, 0.0
    %v5144 = vmax.f32 %v4396, 0.0
    %v5145 = vmax.f32 %v4401, 0.0
    %v5146 = vmax.f32 %v4404, 0.0
    %v5147 = vmax.f32 %v4409, 0.0
    %v5148 = vmax.f32 %v4412, 0.0
    %v5149 = vmax.f32 %v4417, 0.0
    %v5150 = vmax.f32 %v4420, 0.0
    %v5151 = vmax.f32 %v4425, 0.0
    %v5152 = vmax.f32 %v4428, 0.0
    %v5153 = vmax.f32 %v4433, 0.0
    %v5154 = vmax.f32 %v4436, 0.0
    %v5155 = vmax.f32 %v4441, 0.0
    %v5156 = vmax.f32 %v4444, 0.0
    %v5157 = vmax.f32 %v4449, 0.0
    %v5158 = vmax.f32 %v4452, 0.0
    %v5159 = vmax.f32 %v4457, 0.0
    %v5160 = vmax.f32 %v4460, 0.0
    %v5161 = vmax.f32 %v4465, 0.0
    %v5162 = vmax.f32 %v4468, 0.0
    %v5163 = vmax.f32 %v4473, 0.0
    %v5164 = vmax.f32 %v4476, 0.0
    %v5165 = vmax.f32 %v4481, 0.0
    %v5166 = vmax.f32 %v4484, 0.0
    %v5167 = vmax.f32 %v4489, 0.0
    %v5168 = vmax.f32 %v4492, 0.0
    %v5169 = vmax.f32 %v4497, 0.0
    %v5170 = vmax.f32 %v4500, 0.0
    %v5171 = vmax.f32 %v4505, 0.0
    %v5172 = vmax.f32 %v4508, 0.0
    %v5173 = vmax.f32 %v4513, 0.0
    %v5174 = vmax.f32 %v4516, 0.0
    %v5175 = vmax.f32 %v4521, 0.0
    %v5176 = vmax.f32 %v4524, 0.0
    %v5177 = vmax.f32 %v4529, 0.0
    %v5178 = vmax.f32 %v4532, 0.0
    %v5179 = vmax.f32 %v4537, 0.0
    %v5180 = vmax.f32 %v4540, 0.0
    %v5181 = vmax.f32 %v4545, 0.0
    %v5182 = vmax.f32 %v4548, 0.0
    %v5183 = vmax.f32 %v4553, 0.0
    %v5184 = vmax.f32 %v4556, 0.0
    %v5185 = vmax.f32 %v4561, 0.0
    %v5186 = vmax.f32 %v4564, 0.0
    %v5187 = vmax.f32 %v4569, 0.0
    %v5188 = vmax.f32 %v4572, 0.0
    %v5189 = vmax.f32 %v4577, 0.0
    %v5190 = vmax.f32 %v4580, 0.0
    %v5191 = vmax.f32 %v4585, 0.0
    %v5192 = vmax.f32 %v4588, 0.0
    %v5193 = vmax.f32 %v4593, 0.0
    %v5194 = vmax.f32 %v4596, 0.0
    %v5195 = vmax.f32 %v4601, 0.0
    %v5196 = vmax.f32 %v4604, 0.0
    %v5197 = vmax.f32 %v4609, 0.0
    %v5198 = vmax.f32 %v4612, 0.0
    %v5199 = vmax.f32 %v4617, 0.0
    %v5200 = vmax.f32 %v4620, 0.0
    %v5201 = vmax.f32 %v4625, 0.0
    %v5202 = vmax.f32 %v4628, 0.0
    %v5203 = vmax.f32 %v4633, 0.0
    %v5204 = vmax.f32 %v4636, 0.0
    %v5205 = vmax.f32 %v4641, 0.0
    %v5206 = vmax.f32 %v4644, 0.0
    %v5207 = vmax.f32 %v4649, 0.0
    %v5208 = vmax.f32 %v4652, 0.0
    %v5209 = vmax.f32 %v4657, 0.0
    %v5210 = vmax.f32 %v4660, 0.0
    %v5211 = vmax.f32 %v4665, 0.0
    %v5212 = vmax.f32 %v4668, 0.0
    %v5213 = vmax.f32 %v4673, 0.0
    %v5214 = vmax.f32 %v4676, 0.0
    %v5215 = vmax.f32 %v4681, 0.0
    %v5216 = vmax.f32 %v4684, 0.0
    %v5217 = vmax.f32 %v4689, 0.0
    %v5218 = vmax.f32 %v4692, 0.0
    %v5219 = vmax.f32 %v4697, 0.0
    %v5220 = vmax.f32 %v4700, 0.0
    %v5221 = vmax.f32 %v4705, 0.0
    %v5222 = vmax.f32 %v4708, 0.0
    %v5223 = vadd.f32 %v4711, %v4712
    %v5224 = vadd.f32 %v5223, %v4713
    %v5225 = vadd.f32 %v5224, %v4714
    %v5226 = vadd.f32 %v5225, %v4715
    %v5227 = vadd.f32 %v5226, %v4716
    %v5228 = vadd.f32 %v5227, %v4717
    %v5229 = vadd.f32 %v5228, %v4718
    %v5230 = vadd.f32 %v5229, %v4719
    %v5231 = vadd.f32 %v5230, %v4720
    %v5232 = vadd.f32 %v5231, %v4721
    %v5233 = vadd.f32 %v5232, %v4722
    %v5234 = vadd.f32 %v5233, %v4723
    %v5235 = vadd.f32 %v5234, %v4724
    %v5236 = vadd.f32 %v5235, %v4725
    %v5237 = vadd.f32 %v5236, %v4726
    %v5238 = vadd.f32 %v5237, %v4727
    %v5239 = vadd.f32 %v5238, %v4728
    %v5240 = vadd.f32 %v5239, %v4729
    %v5241 = vadd.f32 %v5240, %v4730
    %v5242 = vadd.f32 %v5241, %v4731
    %v5243 = vadd.f32 %v5242, %v4732
    %v5244 = vadd.f32 %v5243, %v4733
    %v5245 = vadd.f32 %v5244, %v4734
    %v5246 = vadd.f32 %v5245, %v4735
    %v5247 = vadd.f32 %v5246, %v4736
    %v5248 = vadd.f32 %v5247, %v4737
    %v5249 = vadd.f32 %v5248, %v4738
    %v5250 = vadd.f32 %v5249, %v4739
    %v5251 = vadd.f32 %v5250, %v4740
    %v5252 = vadd.f32 %v5251, %v4741
    %v5253 = vadd.f32 %v5252, %v4742
    %v5254 = vrot.slane %v5253, 4
    %v5255 = vadd.f32 %v5253, %v5254
    %v5256 = vrot.slane %v5255, 2
    %v5257 = vadd.f32 %v5255, %v5256
    %v5258 = vrot.slane %v5257, 1
    %v5259 = vadd.f32 %v5257, %v5258
    %v5260 = vadd.f32 %v4743, %v4744
    %v5261 = vadd.f32 %v5260, %v4745
    %v5262 = vadd.f32 %v5261, %v4746
    %v5263 = vadd.f32 %v5262, %v4747
    %v5264 = vadd.f32 %v5263, %v4748
    %v5265 = vadd.f32 %v5264, %v4749
    %v5266 = vadd.f32 %v5265, %v4750
    %v5267 = vadd.f32 %v5266, %v4751
    %v5268 = vadd.f32 %v5267, %v4752
    %v5269 = vadd.f32 %v5268, %v4753
    %v5270 = vadd.f32 %v5269, %v4754
    %v5271 = vadd.f32 %v5270, %v4755
    %v5272 = vadd.f32 %v5271, %v4756
    %v5273 = vadd.f32 %v5272, %v4757
    %v5274 = vadd.f32 %v5273, %v4758
    %v5275 = vadd.f32 %v5274, %v4759
    %v5276 = vadd.f32 %v5275, %v4760
    %v5277 = vadd.f32 %v5276, %v4761
    %v5278 = vadd.f32 %v5277, %v4762
    %v5279 = vadd.f32 %v5278, %v4763
    %v5280 = vadd.f32 %v5279, %v4764
    %v5281 = vadd.f32 %v5280, %v4765
    %v5282 = vadd.f32 %v5281, %v4766
    %v5283 = vadd.f32 %v5282, %v4767
    %v5284 = vadd.f32 %v5283, %v4768
    %v5285 = vadd.f32 %v5284, %v4769
    %v5286 = vadd.f32 %v5285, %v4770
    %v5287 = vadd.f32 %v5286, %v4771
    %v5288 = vadd.f32 %v5287, %v4772
    %v5289 = vadd.f32 %v5288, %v4773
    %v5290 = vadd.f32 %v5289, %v4774
    %v5291 = vrot.slane %v5290, 4
    %v5292 = vadd.f32 %v5290, %v5291
    %v5293 = vrot.slane %v5292, 2
    %v5294 = vadd.f32 %v5292, %v5293
    %v5295 = vrot.slane %v5294, 1
    %v5296 = vadd.f32 %v5294, %v5295
    %v5297 = vadd.f32 %v4775, %v4776
    %v5298 = vadd.f32 %v5297, %v4777
    %v5299 = vadd.f32 %v5298, %v4778
    %v5300 = vadd.f32 %v5299, %v4779
    %v5301 = vadd.f32 %v5300, %v4780
    %v5302 = vadd.f32 %v5301, %v4781
    %v5303 = vadd.f32 %v5302, %v4782
    %v5304 = vadd.f32 %v5303, %v4783
    %v5305 = vadd.f32 %v5304, %v4784
    %v5306 = vadd.f32 %v5305, %v4785
    %v5307 = vadd.f32 %v5306, %v4786
    %v5308 = vadd.f32 %v5307, %v4787
    %v5309 = vadd.f32 %v5308, %v4788
    %v5310 = vadd.f32 %v5309, %v4789
    %v5311 = vadd.f32 %v5310, %v4790
    %v5312 = vadd.f32 %v5311, %v4791
    %v5313 = vadd.f32 %v5312, %v4792
    %v5314 = vadd.f32 %v5313, %v4793
    %v5315 = vadd.f32 %v5314, %v4794
    %v5316 = vadd.f32 %v5315, %v4795
    %v5317 = vadd.f32 %v5316, %v4796
    %v5318 = vadd.f32 %v5317, %v4797
    %v5319 = vadd.f32 %v5318, %v4798
    %v5320 = vadd.f32 %v5319, %v4799
    %v5321 = vadd.f32 %v5320, %v4800
    %v5322 = vadd.f32 %v5321, %v4801
    %v5323 = vadd.f32 %v5322, %v4802
    %v5324 = vadd.f32 %v5323, %v4803
    %v5325 = vadd.f32 %v5324, %v4804
    %v5326 = vadd.f32 %v5325, %v4805
    %v5327 = vadd.f32 %v5326, %v4806
    %v5328 = vrot.slane %v5327, 4
    %v5329 = vadd.f32 %v5327, %v5328
    %v5330 = vrot.slane %v5329, 2
    %v5331 = vadd.f32 %v5329, %v5330
    %v5332 = vrot.slane %v5331, 1
    %v5333 = vadd.f32 %v5331, %v5332
    %v5334 = vadd.f32 %v4807, %v4808
    %v5335 = vadd.f32 %v5334, %v4809
    %v5336 = vadd.f32 %v5335, %v4810
    %v5337 = vadd.f32 %v5336, %v4811
    %v5338 = vadd.f32 %v5337, %v4812
    %v5339 = vadd.f32 %v5338, %v4813
    %v5340 = vadd.f32 %v5339, %v4814
    %v5341 = vadd.f32 %v5340, %v4815
    %v5342 = vadd.f32 %v5341, %v4816
    %v5343 = vadd.f32 %v5342, %v4817
    %v5344 = vadd.f32 %v5343, %v4818
    %v5345 = vadd.f32 %v5344, %v4819
    %v5346 = vadd.f32 %v5345, %v4820
    %v5347 = vadd.f32 %v5346, %v4821
    %v5348 = vadd.f32 %v5347, %v4822
    %v5349 = vadd.f32 %v5348, %v4823
    %v5350 = vadd.f32 %v5349, %v4824
    %v5351 = vadd.f32 %v5350, %v4825
    %v5352 = vadd.f32 %v5351, %v4826
    %v5353 = vadd.f32 %v5352, %v4827
    %v5354 = vadd.f32 %v5353, %v4828
    %v5355 = vadd.f32 %v5354, %v4829
    %v5356 = vadd.f32 %v5355, %v4830
    %v5357 = vadd.f32 %v5356, %v4831
    %v5358 = vadd.f32 %v5357, %v4832
    %v5359 = vadd.f32 %v5358, %v4833
    %v5360 = vadd.f32 %v5359, %v4834
    %v5361 = vadd.f32 %v5360, %v4835
    %v5362 = vadd.f32 %v5361, %v4836
    %v5363 = vadd.f32 %v5362, %v4837
    %v5364 = vadd.f32 %v5363, %v4838
    %v5365 = vrot.slane %v5364, 4
    %v5366 = vadd.f32 %v5364, %v5365
    %v5367 = vrot.slane %v5366, 2
    %v5368 = vadd.f32 %v5366, %v5367
    %v5369 = vrot.slane %v5368, 1
    %v5370 = vadd.f32 %v5368, %v5369
    %v5371 = vadd.f32 %v4839, %v4840
    %v5372 = vadd.f32 %v5371, %v4841
    %v5373 = vadd.f32 %v5372, %v4842
    %v5374 = vadd.f32 %v5373, %v4843
    %v5375 = vadd.f32 %v5374, %v4844
    %v5376 = vadd.f32 %v5375, %v4845
    %v5377 = vadd.f32 %v5376, %v4846
    %v5378 = vadd.f32 %v5377, %v4847
    %v5379 = vadd.f32 %v5378, %v4848
    %v5380 = vadd.f32 %v5379, %v4849
    %v5381 = vadd.f32 %v5380, %v4850
    %v5382 = vadd.f32 %v5381, %v4851
    %v5383 = vadd.f32 %v5382, %v4852
    %v5384 = vadd.f32 %v5383, %v4853
    %v5385 = vadd.f32 %v5384, %v4854
    %v5386 = vadd.f32 %v5385, %v4855
    %v5387 = vadd.f32 %v5386, %v4856
    %v5388 = vadd.f32 %v5387, %v4857
    %v5389 = vadd.f32 %v5388, %v4858
    %v5390 = vadd.f32 %v5389, %v4859
    %v5391 = vadd.f32 %v5390, %v4860
    %v5392 = vadd.f32 %v5391, %v4861
    %v5393 = vadd.f32 %v5392, %v4862
    %v5394 = vadd.f32 %v5393, %v4863
    %v5395 = vadd.f32 %v5394, %v4864
    %v5396 = vadd.f32 %v5395, %v4865
    %v5397 = vadd.f32 %v5396, %v4866
    %v5398 = vadd.f32 %v5397, %v4867
    %v5399 = vadd.f32 %v5398, %v4868
    %v5400 = vadd.f32 %v5399, %v4869
    %v5401 = vadd.f32 %v5400, %v4870
    %v5402 = vrot.slane %v5401, 4
    %v5403 = vadd.f32 %v5401, %v5402
    %v5404 = vrot.slane %v5403, 2
    %v5405 = vadd.f32 %v5403, %v5404
    %v5406 = vrot.slane %v5405, 1
    %v5407 = vadd.f32 %v5405, %v5406
    %v5408 = vadd.f32 %v4871, %v4872
    %v5409 = vadd.f32 %v5408, %v4873
    %v5410 = vadd.f32 %v5409, %v4874
    %v5411 = vadd.f32 %v5410, %v4875
    %v5412 = vadd.f32 %v5411, %v4876
    %v5413 = vadd.f32 %v5412, %v4877
    %v5414 = vadd.f32 %v5413, %v4878
    %v5415 = vadd.f32 %v5414, %v4879
    %v5416 = vadd.f32 %v5415, %v4880
    %v5417 = vadd.f32 %v5416, %v4881
    %v5418 = vadd.f32 %v5417, %v4882
    %v5419 = vadd.f32 %v5418, %v4883
    %v5420 = vadd.f32 %v5419, %v4884
    %v5421 = vadd.f32 %v5420, %v4885
    %v5422 = vadd.f32 %v5421, %v4886
    %v5423 = vadd.f32 %v5422, %v4887
    %v5424 = vadd.f32 %v5423, %v4888
    %v5425 = vadd.f32 %v5424, %v4889
    %v5426 = vadd.f32 %v5425, %v4890
    %v5427 = vadd.f32 %v5426, %v4891
    %v5428 = vadd.f32 %v5427, %v4892
    %v5429 = vadd.f32 %v5428, %v4893
    %v5430 = vadd.f32 %v5429, %v4894
    %v5431 = vadd.f32 %v5430, %v4895
    %v5432 = vadd.f32 %v5431, %v4896
    %v5433 = vadd.f32 %v5432, %v4897
    %v5434 = vadd.f32 %v5433, %v4898
    %v5435 = vadd.f32 %v5434, %v4899
    %v5436 = vadd.f32 %v5435, %v4900
    %v5437 = vadd.f32 %v5436, %v4901
    %v5438 = vadd.f32 %v5437, %v4902
    %v5439 = vrot.slane %v5438, 4
    %v5440 = vadd.f32 %v5438, %v5439
    %v5441 = vrot.slane %v5440, 2
    %v5442 = vadd.f32 %v5440, %v5441
    %v5443 = vrot.slane %v5442, 1
    %v5444 = vadd.f32 %v5442, %v5443
    %v5445 = vadd.f32 %v4903, %v4904
    %v5446 = vadd.f32 %v5445, %v4905
    %v5447 = vadd.f32 %v5446, %v4906
    %v5448 = vadd.f32 %v5447, %v4907
    %v5449 = vadd.f32 %v5448, %v4908
    %v5450 = vadd.f32 %v5449, %v4909
    %v5451 = vadd.f32 %v5450, %v4910
    %v5452 = vadd.f32 %v5451, %v4911
    %v5453 = vadd.f32 %v5452, %v4912
    %v5454 = vadd.f32 %v5453, %v4913
    %v5455 = vadd.f32 %v5454, %v4914
    %v5456 = vadd.f32 %v5455, %v4915
    %v5457 = vadd.f32 %v5456, %v4916
    %v5458 = vadd.f32 %v5457, %v4917
    %v5459 = vadd.f32 %v5458, %v4918
    %v5460 = vadd.f32 %v5459, %v4919
    %v5461 = vadd.f32 %v5460, %v4920
    %v5462 = vadd.f32 %v5461, %v4921
    %v5463 = vadd.f32 %v5462, %v4922
    %v5464 = vadd.f32 %v5463, %v4923
    %v5465 = vadd.f32 %v5464, %v4924
    %v5466 = vadd.f32 %v5465, %v4925
    %v5467 = vadd.f32 %v5466, %v4926
    %v5468 = vadd.f32 %v5467, %v4927
    %v5469 = vadd.f32 %v5468, %v4928
    %v5470 = vadd.f32 %v5469, %v4929
    %v5471 = vadd.f32 %v5470, %v4930
    %v5472 = vadd.f32 %v5471, %v4931
    %v5473 = vadd.f32 %v5472, %v4932
    %v5474 = vadd.f32 %v5473, %v4933
    %v5475 = vadd.f32 %v5474, %v4934
    %v5476 = vrot.slane %v5475, 4
    %v5477 = vadd.f32 %v5475, %v5476
    %v5478 = vrot.slane %v5477, 2
    %v5479 = vadd.f32 %v5477, %v5478
    %v5480 = vrot.slane %v5479, 1
    %v5481 = vadd.f32 %v5479, %v5480
    %v5482 = vadd.f32 %v4935, %v4936
    %v5483 = vadd.f32 %v5482, %v4937
    %v5484 = vadd.f32 %v5483, %v4938
    %v5485 = vadd.f32 %v5484, %v4939
    %v5486 = vadd.f32 %v5485, %v4940
    %v5487 = vadd.f32 %v5486, %v4941
    %v5488 = vadd.f32 %v5487, %v4942
    %v5489 = vadd.f32 %v5488, %v4943
    %v5490 = vadd.f32 %v5489, %v4944
    %v5491 = vadd.f32 %v5490, %v4945
    %v5492 = vadd.f32 %v5491, %v4946
    %v5493 = vadd.f32 %v5492, %v4947
    %v5494 = vadd.f32 %v5493, %v4948
    %v5495 = vadd.f32 %v5494, %v4949
    %v5496 = vadd.f32 %v5495, %v4950
    %v5497 = vadd.f32 %v5496, %v4951
    %v5498 = vadd.f32 %v5497, %v4952
    %v5499 = vadd.f32 %v5498, %v4953
    %v5500 = vadd.f32 %v5499, %v4954
    %v5501 = vadd.f32 %v5500, %v4955
    %v5502 = vadd.f32 %v5501, %v4956
    %v5503 = vadd.f32 %v5502, %v4957
    %v5504 = vadd.f32 %v5503, %v4958
    %v5505 = vadd.f32 %v5504, %v4959
    %v5506 = vadd.f32 %v5505, %v4960
    %v5507 = vadd.f32 %v5506, %v4961
    %v5508 = vadd.f32 %v5507, %v4962
    %v5509 = vadd.f32 %v5508, %v4963
    %v5510 = vadd.f32 %v5509, %v4964
    %v5511 = vadd.f32 %v5510, %v4965
    %v5512 = vadd.f32 %v5511, %v4966
    %v5513 = vrot.slane %v5512, 4
    %v5514 = vadd.f32 %v5512, %v5513
    %v5515 = vrot.slane %v5514, 2
    %v5516 = vadd.f32 %v5514, %v5515
    %v5517 = vrot.slane %v5516, 1
    %v5518 = vadd.f32 %v5516, %v5517
    %v5519 = vadd.f32 %v4967, %v4968
    %v5520 = vadd.f32 %v5519, %v4969
    %v5521 = vadd.f32 %v5520, %v4970
    %v5522 = vadd.f32 %v5521, %v4971
    %v5523 = vadd.f32 %v5522, %v4972
    %v5524 = vadd.f32 %v5523, %v4973
    %v5525 = vadd.f32 %v5524, %v4974
    %v5526 = vadd.f32 %v5525, %v4975
    %v5527 = vadd.f32 %v5526, %v4976
    %v5528 = vadd.f32 %v5527, %v4977
    %v5529 = vadd.f32 %v5528, %v4978
    %v5530 = vadd.f32 %v5529, %v4979
    %v5531 = vadd.f32 %v5530, %v4980
    %v5532 = vadd.f32 %v5531, %v4981
    %v5533 = vadd.f32 %v5532, %v4982
    %v5534 = vadd.f32 %v5533, %v4983
    %v5535 = vadd.f32 %v5534, %v4984
    %v5536 = vadd.f32 %v5535, %v4985
    %v5537 = vadd.f32 %v5536, %v4986
    %v5538 = vadd.f32 %v5537, %v4987
    %v5539 = vadd.f32 %v5538, %v4988
    %v5540 = vadd.f32 %v5539, %v4989
    %v5541 = vadd.f32 %v5540, %v4990
    %v5542 = vadd.f32 %v5541, %v4991
    %v5543 = vadd.f32 %v5542, %v4992
    %v5544 = vadd.f32 %v5543, %v4993
    %v5545 = vadd.f32 %v5544, %v4994
    %v5546 = vadd.f32 %v5545, %v4995
    %v5547 = vadd.f32 %v5546, %v4996
    %v5548 = vadd.f32 %v5547, %v4997
    %v5549 = vadd.f32 %v5548, %v4998
    %v5550 = vrot.slane %v5549, 4
    %v5551 = vadd.f32 %v5549, %v5550
    %v5552 = vrot.slane %v5551, 2
    %v5553 = vadd.f32 %v5551, %v5552
    %v5554 = vrot.slane %v5553, 1
    %v5555 = vadd.f32 %v5553, %v5554
    %v5556 = vadd.f32 %v4999, %v5000
    %v5557 = vadd.f32 %v5556, %v5001
    %v5558 = vadd.f32 %v5557, %v5002
    %v5559 = vadd.f32 %v5558, %v5003
    %v5560 = vadd.f32 %v5559, %v5004
    %v5561 = vadd.f32 %v5560, %v5005
    %v5562 = vadd.f32 %v5561, %v5006
    %v5563 = vadd.f32 %v5562, %v5007
    %v5564 = vadd.f32 %v5563, %v5008
    %v5565 = vadd.f32 %v5564, %v5009
    %v5566 = vadd.f32 %v5565, %v5010
    %v5567 = vadd.f32 %v5566, %v5011
    %v5568 = vadd.f32 %v5567, %v5012
    %v5569 = vadd.f32 %v5568, %v5013
    %v5570 = vadd.f32 %v5569, %v5014
    %v5571 = vadd.f32 %v5570, %v5015
    %v5572 = vadd.f32 %v5571, %v5016
    %v5573 = vadd.f32 %v5572, %v5017
    %v5574 = vadd.f32 %v5573, %v5018
    %v5575 = vadd.f32 %v5574, %v5019
    %v5576 = vadd.f32 %v5575, %v5020
    %v5577 = vadd.f32 %v5576, %v5021
    %v5578 = vadd.f32 %v5577, %v5022
    %v5579 = vadd.f32 %v5578, %v5023
    %v5580 = vadd.f32 %v5579, %v5024
    %v5581 = vadd.f32 %v5580, %v5025
    %v5582 = vadd.f32 %v5581, %v5026
    %v5583 = vadd.f32 %v5582, %v5027
    %v5584 = vadd.f32 %v5583, %v5028
    %v5585 = vadd.f32 %v5584, %v5029
    %v5586 = vadd.f32 %v5585, %v5030
    %v5587 = vrot.slane %v5586, 4
    %v5588 = vadd.f32 %v5586, %v5587
    %v5589 = vrot.slane %v5588, 2
    %v5590 = vadd.f32 %v5588, %v5589
    %v5591 = vrot.slane %v5590, 1
    %v5592 = vadd.f32 %v5590, %v5591
    %v5593 = vadd.f32 %v5031, %v5032
    %v5594 = vadd.f32 %v5593, %v5033
    %v5595 = vadd.f32 %v5594, %v5034
    %v5596 = vadd.f32 %v5595, %v5035
    %v5597 = vadd.f32 %v5596, %v5036
    %v5598 = vadd.f32 %v5597, %v5037
    %v5599 = vadd.f32 %v5598, %v5038
    %v5600 = vadd.f32 %v5599, %v5039
    %v5601 = vadd.f32 %v5600, %v5040
    %v5602 = vadd.f32 %v5601, %v5041
    %v5603 = vadd.f32 %v5602, %v5042
    %v5604 = vadd.f32 %v5603, %v5043
    %v5605 = vadd.f32 %v5604, %v5044
    %v5606 = vadd.f32 %v5605, %v5045
    %v5607 = vadd.f32 %v5606, %v5046
    %v5608 = vadd.f32 %v5607, %v5047
    %v5609 = vadd.f32 %v5608, %v5048
    %v5610 = vadd.f32 %v5609, %v5049
    %v5611 = vadd.f32 %v5610, %v5050
    %v5612 = vadd.f32 %v5611, %v5051
    %v5613 = vadd.f32 %v5612, %v5052
    %v5614 = vadd.f32 %v5613, %v5053
    %v5615 = vadd.f32 %v5614, %v5054
    %v5616 = vadd.f32 %v5615, %v5055
    %v5617 = vadd.f32 %v5616, %v5056
    %v5618 = vadd.f32 %v5617, %v5057
    %v5619 = vadd.f32 %v5618, %v5058
    %v5620 = vadd.f32 %v5619, %v5059
    %v5621 = vadd.f32 %v5620, %v5060
    %v5622 = vadd.f32 %v5621, %v5061
    %v5623 = vadd.f32 %v5622, %v5062
    %v5624 = vrot.slane %v5623, 4
    %v5625 = vadd.f32 %v5623, %v5624
    %v5626 = vrot.slane %v5625, 2
    %v5627 = vadd.f32 %v5625, %v5626
    %v5628 = vrot.slane %v5627, 1
    %v5629 = vadd.f32 %v5627, %v5628
    %v5630 = vadd.f32 %v5063, %v5064
    %v5631 = vadd.f32 %v5630, %v5065
    %v5632 = vadd.f32 %v5631, %v5066
    %v5633 = vadd.f32 %v5632, %v5067
    %v5634 = vadd.f32 %v5633, %v5068
    %v5635 = vadd.f32 %v5634, %v5069
    %v5636 = vadd.f32 %v5635, %v5070
    %v5637 = vadd.f32 %v5636, %v5071
    %v5638 = vadd.f32 %v5637, %v5072
    %v5639 = vadd.f32 %v5638, %v5073
    %v5640 = vadd.f32 %v5639, %v5074
    %v5641 = vadd.f32 %v5640, %v5075
    %v5642 = vadd.f32 %v5641, %v5076
    %v5643 = vadd.f32 %v5642, %v5077
    %v5644 = vadd.f32 %v5643, %v5078
    %v5645 = vadd.f32 %v5644, %v5079
    %v5646 = vadd.f32 %v5645, %v5080
    %v5647 = vadd.f32 %v5646, %v5081
    %v5648 = vadd.f32 %v5647, %v5082
    %v5649 = vadd.f32 %v5648, %v5083
    %v5650 = vadd.f32 %v5649, %v5084
    %v5651 = vadd.f32 %v5650, %v5085
    %v5652 = vadd.f32 %v5651, %v5086
    %v5653 = vadd.f32 %v5652, %v5087
    %v5654 = vadd.f32 %v5653, %v5088
    %v5655 = vadd.f32 %v5654, %v5089
    %v5656 = vadd.f32 %v5655, %v5090
    %v5657 = vadd.f32 %v5656, %v5091
    %v5658 = vadd.f32 %v5657, %v5092
    %v5659 = vadd.f32 %v5658, %v5093
    %v5660 = vadd.f32 %v5659, %v5094
    %v5661 = vrot.slane %v5660, 4
    %v5662 = vadd.f32 %v5660, %v5661
    %v5663 = vrot.slane %v5662, 2
    %v5664 = vadd.f32 %v5662, %v5663
    %v5665 = vrot.slane %v5664, 1
    %v5666 = vadd.f32 %v5664, %v5665
    %v5667 = vadd.f32 %v5095, %v5096
    %v5668 = vadd.f32 %v5667, %v5097
    %v5669 = vadd.f32 %v5668, %v5098
    %v5670 = vadd.f32 %v5669, %v5099
    %v5671 = vadd.f32 %v5670, %v5100
    %v5672 = vadd.f32 %v5671, %v5101
    %v5673 = vadd.f32 %v5672, %v5102
    %v5674 = vadd.f32 %v5673, %v5103
    %v5675 = vadd.f32 %v5674, %v5104
    %v5676 = vadd.f32 %v5675, %v5105
    %v5677 = vadd.f32 %v5676, %v5106
    %v5678 = vadd.f32 %v5677, %v5107
    %v5679 = vadd.f32 %v5678, %v5108
    %v5680 = vadd.f32 %v5679, %v5109
    %v5681 = vadd.f32 %v5680, %v5110
    %v5682 = vadd.f32 %v5681, %v5111
    %v5683 = vadd.f32 %v5682, %v5112
    %v5684 = vadd.f32 %v5683, %v5113
    %v5685 = vadd.f32 %v5684, %v5114
    %v5686 = vadd.f32 %v5685, %v5115
    %v5687 = vadd.f32 %v5686, %v5116
    %v5688 = vadd.f32 %v5687, %v5117
    %v5689 = vadd.f32 %v5688, %v5118
    %v5690 = vadd.f32 %v5689, %v5119
    %v5691 = vadd.f32 %v5690, %v5120
    %v5692 = vadd.f32 %v5691, %v5121
    %v5693 = vadd.f32 %v5692, %v5122
    %v5694 = vadd.f32 %v5693, %v5123
    %v5695 = vadd.f32 %v5694, %v5124
    %v5696 = vadd.f32 %v5695, %v5125
    %v5697 = vadd.f32 %v5696, %v5126
    %v5698 = vrot.slane %v5697, 4
    %v5699 = vadd.f32 %v5697, %v5698
    %v5700 = vrot.slane %v5699, 2
    %v5701 = vadd.f32 %v5699, %v5700
    %v5702 = vrot.slane %v5701, 1
    %v5703 = vadd.f32 %v5701, %v5702
    %v5704 = vadd.f32 %v5127, %v5128
    %v5705 = vadd.f32 %v5704, %v5129
    %v5706 = vadd.f32 %v5705, %v5130
    %v5707 = vadd.f32 %v5706, %v5131
    %v5708 = vadd.f32 %v5707, %v5132
    %v5709 = vadd.f32 %v5708, %v5133
    %v5710 = vadd.f32 %v5709, %v5134
    %v5711 = vadd.f32 %v5710, %v5135
    %v5712 = vadd.f32 %v5711, %v5136
    %v5713 = vadd.f32 %v5712, %v5137
    %v5714 = vadd.f32 %v5713, %v5138
    %v5715 = vadd.f32 %v5714, %v5139
    %v5716 = vadd.f32 %v5715, %v5140
    %v5717 = vadd.f32 %v5716, %v5141
    %v5718 = vadd.f32 %v5717, %v5142
    %v5719 = vadd.f32 %v5718, %v5143
    %v5720 = vadd.f32 %v5719, %v5144
    %v5721 = vadd.f32 %v5720, %v5145
    %v5722 = vadd.f32 %v5721, %v5146
    %v5723 = vadd.f32 %v5722, %v5147
    %v5724 = vadd.f32 %v5723, %v5148
    %v5725 = vadd.f32 %v5724, %v5149
    %v5726 = vadd.f32 %v5725, %v5150
    %v5727 = vadd.f32 %v5726, %v5151
    %v5728 = vadd.f32 %v5727, %v5152
    %v5729 = vadd.f32 %v5728, %v5153
    %v5730 = vadd.f32 %v5729, %v5154
    %v5731 = vadd.f32 %v5730, %v5155
    %v5732 = vadd.f32 %v5731, %v5156
    %v5733 = vadd.f32 %v5732, %v5157
    %v5734 = vadd.f32 %v5733, %v5158
    %v5735 = vrot.slane %v5734, 4
    %v5736 = vadd.f32 %v5734, %v5735
    %v5737 = vrot.slane %v5736, 2
    %v5738 = vadd.f32 %v5736, %v5737
    %v5739 = vrot.slane %v5738, 1
    %v5740 = vadd.f32 %v5738, %v5739
    %v5741 = vadd.f32 %v5159, %v5160
    %v5742 = vadd.f32 %v5741, %v5161
    %v5743 = vadd.f32 %v5742, %v5162
    %v5744 = vadd.f32 %v5743, %v5163
    %v5745 = vadd.f32 %v5744, %v5164
    %v5746 = vadd.f32 %v5745, %v5165
    %v5747 = vadd.f32 %v5746, %v5166
    %v5748 = vadd.f32 %v5747, %v5167
    %v5749 = vadd.f32 %v5748, %v5168
    %v5750 = vadd.f32 %v5749, %v5169
    %v5751 = vadd.f32 %v5750, %v5170
    %v5752 = vadd.f32 %v5751, %v5171
    %v5753 = vadd.f32 %v5752, %v5172
    %v5754 = vadd.f32 %v5753, %v5173
    %v5755 = vadd.f32 %v5754, %v5174
    %v5756 = vadd.f32 %v5755, %v5175
    %v5757 = vadd.f32 %v5756, %v5176
    %v5758 = vadd.f32 %v5757, %v5177
    %v5759 = vadd.f32 %v5758, %v5178
    %v5760 = vadd.f32 %v5759, %v5179
    %v5761 = vadd.f32 %v5760, %v5180
    %v5762 = vadd.f32 %v5761, %v5181
    %v5763 = vadd.f32 %v5762, %v5182
    %v5764 = vadd.f32 %v5763, %v5183
    %v5765 = vadd.f32 %v5764, %v5184
    %v5766 = vadd.f32 %v5765, %v5185
    %v5767 = vadd.f32 %v5766, %v5186
    %v5768 = vadd.f32 %v5767, %v5187
    %v5769 = vadd.f32 %v5768, %v5188
    %v5770 = vadd.f32 %v5769, %v5189
    %v5771 = vadd.f32 %v5770, %v5190
    %v5772 = vrot.slane %v5771, 4
    %v5773 = vadd.f32 %v5771, %v5772
    %v5774 = vrot.slane %v5773, 2
    %v5775 = vadd.f32 %v5773, %v5774
    %v5776 = vrot.slane %v5775, 1
    %v5777 = vadd.f32 %v5775, %v5776
    %v5778 = vadd.f32 %v5191, %v5192
    %v5779 = vadd.f32 %v5778, %v5193
    %v5780 = vadd.f32 %v5779, %v5194
    %v5781 = vadd.f32 %v5780, %v5195
    %v5782 = vadd.f32 %v5781, %v5196
    %v5783 = vadd.f32 %v5782, %v5197
    %v5784 = vadd.f32 %v5783, %v5198
    %v5785 = vadd.f32 %v5784, %v5199
    %v5786 = vadd.f32 %v5785, %v5200
    %v5787 = vadd.f32 %v5786, %v5201
    %v5788 = vadd.f32 %v5787, %v5202
    %v5789 = vadd.f32 %v5788, %v5203
    %v5790 = vadd.f32 %v5789, %v5204
    %v5791 = vadd.f32 %v5790, %v5205
    %v5792 = vadd.f32 %v5791, %v5206
    %v5793 = vadd.f32 %v5792, %v5207
    %v5794 = vadd.f32 %v5793, %v5208
    %v5795 = vadd.f32 %v5794, %v5209
    %v5796 = vadd.f32 %v5795, %v5210
    %v5797 = vadd.f32 %v5796, %v5211
    %v5798 = vadd.f32 %v5797, %v5212
    %v5799 = vadd.f32 %v5798, %v5213
    %v5800 = vadd.f32 %v5799, %v5214
    %v5801 = vadd.f32 %v5800, %v5215
    %v5802 = vadd.f32 %v5801, %v5216
    %v5803 = vadd.f32 %v5802, %v5217
    %v5804 = vadd.f32 %v5803, %v5218
    %v5805 = vadd.f32 %v5804, %v5219
    %v5806 = vadd.f32 %v5805, %v5220
    %v5807 = vadd.f32 %v5806, %v5221
    %v5808 = vadd.f32 %v5807, %v5222
    %v5809 = vrot.slane %v5808, 4
    %v5810 = vadd.f32 %v5808, %v5809
    %v5811 = vrot.slane %v5810, 2
    %v5812 = vadd.f32 %v5810, %v5811
    %v5813 = vrot.slane %v5812, 1
    %v5814 = vadd.f32 %v5812, %v5813
    %v5815 = vrcp.pop 256.0
    %v5816 = vmul.f32 %v5259, %v5815
    %v5817 = vmul.f32 %v5296, %v5815
    %v5818 = vmul.f32 %v5333, %v5815
    %v5819 = vmul.f32 %v5370, %v5815
    %v5820 = vmul.f32 %v5407, %v5815
    %v5821 = vmul.f32 %v5444, %v5815
    %v5822 = vmul.f32 %v5481, %v5815
    %v5823 = vmul.f32 %v5518, %v5815
    %v5824 = vmul.f32 %v5555, %v5815
    %v5825 = vmul.f32 %v5592, %v5815
    %v5826 = vmul.f32 %v5629, %v5815
    %v5827 = vmul.f32 %v5666, %v5815
    %v5828 = vmul.f32 %v5703, %v5815
    %v5829 = vmul.f32 %v5740, %v5815
    %v5830 = vmul.f32 %v5777, %v5815
    %v5831 = vmul.f32 %v5814, %v5815
    %v5832 = vpack.c.bf16 %v5816, %v5816
    %v5833 = vpack.c.bf16 %v5817, %v5817
    %v5834 = vpack.c.bf16 %v5818, %v5818
    %v5835 = vpack.c.bf16 %v5819, %v5819
    %v5836 = vpack.c.bf16 %v5820, %v5820
    %v5837 = vpack.c.bf16 %v5821, %v5821
    %v5838 = vpack.c.bf16 %v5822, %v5822
    %v5839 = vpack.c.bf16 %v5823, %v5823
    %v5840 = vpack.c.bf16 %v5824, %v5824
    %v5841 = vpack.c.bf16 %v5825, %v5825
    %v5842 = vpack.c.bf16 %v5826, %v5826
    %v5843 = vpack.c.bf16 %v5827, %v5827
    %v5844 = vpack.c.bf16 %v5828, %v5828
    %v5845 = vpack.c.bf16 %v5829, %v5829
    %v5846 = vpack.c.bf16 %v5830, %v5830
    %v5847 = vpack.c.bf16 %v5831, %v5831
    %v5848 = vld [vmem:[%s3] sm:$0xf]
    %v5849 = vld [vmem:[%s3 + $0x4] sm:$0xf]
    %v5850 = vld [vmem:[%s3 + $0x8] sm:$0xf]
    %v5851 = vld [vmem:[%s3 + $0xc] sm:$0xf]
    %v5852 = vld [vmem:[%s3 + $0x10] sm:$0xf]
    %v5853 = vld [vmem:[%s3 + $0x14] sm:$0xf]
    %v5854 = vld [vmem:[%s3 + $0x18] sm:$0xf]
    %v5855 = vld [vmem:[%s3 + $0x1c] sm:$0xf]
    %v5856 = vld [vmem:[%s3 + $0x20] sm:$0xf]
    %v5857 = vld [vmem:[%s3 + $0x24] sm:$0xf]
    %v5858 = vld [vmem:[%s3 + $0x28] sm:$0xf]
    %v5859 = vld [vmem:[%s3 + $0x2c] sm:$0xf]
    %v5860 = vld [vmem:[%s3 + $0x30] sm:$0xf]
    %v5861 = vld [vmem:[%s3 + $0x34] sm:$0xf]
    %v5862 = vld [vmem:[%s3 + $0x38] sm:$0xf]
    %v5863 = vld [vmem:[%s3 + $0x3c] sm:$0xf]
    %v5864 = vld [vmem:[%s4] sm:$0x1]
    %v5866 = vlaneseq
    %v5867 = vshrl.u32 %v5866, 7
    %v5868 = vsub.s32 0, %v5867
    %v5869 = vrot.slane %v5864, %v5868
    %v5887 = vunpack.c.l.b16 %v5832
    %v5888 = vunpack.c.l.b16 %v5833
    %v5889 = vunpack.c.l.b16 %v5834
    %v5890 = vunpack.c.l.b16 %v5835
    %v5891 = vunpack.c.l.b16 %v5836
    %v5892 = vunpack.c.l.b16 %v5837
    %v5893 = vunpack.c.l.b16 %v5838
    %v5894 = vunpack.c.l.b16 %v5839
    %v5895 = vunpack.c.l.b16 %v5840
    %v5896 = vunpack.c.l.b16 %v5841
    %v5897 = vunpack.c.l.b16 %v5842
    %v5898 = vunpack.c.l.b16 %v5843
    %v5899 = vunpack.c.l.b16 %v5844
    %v5900 = vunpack.c.l.b16 %v5845
    %v5901 = vunpack.c.l.b16 %v5846
    %v5902 = vunpack.c.l.b16 %v5847
    %vm5903 = vcmask 1041409
    %v5904 = vsel %vm5903, %v5888, %v5887
    %vm5905 = vcmask 1042434
    %v5906 = vsel %vm5905, %v5889, %v5904
    %vm5907 = vcmask 1043459
    %v5908 = vsel %vm5907, %v5890, %v5906
    %vm5909 = vcmask 1044484
    %v5910 = vsel %vm5909, %v5891, %v5908
    %vm5911 = vcmask 1045509
    %v5912 = vsel %vm5911, %v5892, %v5910
    %vm5913 = vcmask 1046534
    %v5914 = vsel %vm5913, %v5893, %v5912
    %vm5915 = vcmask 1047559
    %v5916 = vsel %vm5915, %v5894, %v5914
    %v5917 = vsel %vm5903, %v5896, %v5895
    %v5918 = vsel %vm5905, %v5897, %v5917
    %v5919 = vsel %vm5907, %v5898, %v5918
    %v5920 = vsel %vm5909, %v5899, %v5919
    %v5921 = vsel %vm5911, %v5900, %v5920
    %v5922 = vsel %vm5913, %v5901, %v5921
    %v5923 = vsel %vm5915, %v5902, %v5922
    %v5924 = vpack.c.b16 %v5923, %v5916
    %v5942 = vunpack.c.l.b16 %v5848
    %v5943 = vunpack.c.l.b16 %v5849
    %v5944 = vunpack.c.l.b16 %v5850
    %v5945 = vunpack.c.l.b16 %v5851
    %v5946 = vunpack.c.l.b16 %v5852
    %v5947 = vunpack.c.l.b16 %v5853
    %v5948 = vunpack.c.l.b16 %v5854
    %v5949 = vunpack.c.l.b16 %v5855
    %v5950 = vunpack.c.l.b16 %v5856
    %v5951 = vunpack.c.l.b16 %v5857
    %v5952 = vunpack.c.l.b16 %v5858
    %v5953 = vunpack.c.l.b16 %v5859
    %v5954 = vunpack.c.l.b16 %v5860
    %v5955 = vunpack.c.l.b16 %v5861
    %v5956 = vunpack.c.l.b16 %v5862
    %v5957 = vunpack.c.l.b16 %v5863
    %v5958 = vpack.c.b16 %v5943, %v5942
    %v5959 = vpack.c.b16 %v5945, %v5944
    %v5960 = vpack.c.b16 %v5947, %v5946
    %v5961 = vpack.c.b16 %v5949, %v5948
    %v5962 = vpack.c.b16 %v5951, %v5950
    %v5963 = vpack.c.b16 %v5953, %v5952
    %v5964 = vpack.c.b16 %v5955, %v5954
    %v5965 = vpack.c.b16 %v5957, %v5956
    %5974 = vmatprep.subr.bf16.mxu0 0
    %5975 = vmatpush1.bf16.msra.mxu0 %v5958
    %5976 = vmatprep.subr.bf16.mxu0 0
    %5977 = vmatpush1.bf16.msra.mxu0 %v5959
    %5978 = vmatprep.subr.bf16.mxu0 0
    %5979 = vmatpush1.bf16.msra.mxu0 %v5960
    %5980 = vmatprep.subr.bf16.mxu0 0
    %5981 = vmatpush1.bf16.msra.mxu0 %v5961
    %5982 = vmatprep.subr.bf16.mxu0 0
    %5983 = vmatpush1.bf16.msra.mxu0 %v5962
    %5984 = vmatprep.subr.bf16.mxu0 0
    %5985 = vmatpush1.bf16.msra.mxu0 %v5963
    %5986 = vmatprep.subr.bf16.mxu0 0
    %5987 = vmatpush1.bf16.msra.mxu0 %v5964
    %5988 = vmatprep.subr.bf16.mxu0 0
    %5989 = vmatpush1.bf16.msra.mxu0 %v5965
    %5990 = vmatprep.subr.bf16.mxu0 0
    %5991 = vmatpush1.bf16.msra.mxu0 0
    %5992 = vmatprep.subr.bf16.mxu0 0
    %5993 = vmatpush1.bf16.msra.mxu0 0
    %5994 = vmatprep.subr.bf16.mxu0 0
    %5995 = vmatpush1.bf16.msra.mxu0 0
    %5996 = vmatprep.subr.bf16.mxu0 0
    %5997 = vmatpush1.bf16.msra.mxu0 0
    %5998 = vmatprep.subr.bf16.mxu0 0
    %5999 = vmatpush1.bf16.msra.mxu0 0
    %6000 = vmatprep.subr.bf16.mxu0 0
    %6001 = vmatpush1.bf16.msra.mxu0 0
    %6002 = vmatprep.subr.bf16.mxu0 0
    %6003 = vmatpush1.bf16.msra.mxu0 0
    %6004 = vmatprep.subr.bf16.mxu0 0
    %6005 = vmatpush1.bf16.msra.mxu0 0
    %6006 = vmatprep.mubr.bf16.mxu0 0
    %6007 = vmatmul.mubr.bf16.gmra.mrb[0].mxu0 %v5924
    %v6008 = vpop.f32.mrb[0].mxu0
    %v6009 = vadd.f32 %v5869, %v6008
    %v6010 = vpop.f32.mrb[0].mxu0
    %v6011 = vpop.f32.mrb[0].mxu0
    %v6012 = vadd.f32 %v5869, %v6011
    %v6013 = vpop.f32.mrb[0].mxu0
    %6014 = vdwg.mxu0
    %v6015 = vpack.c.bf16 %v6012, %v6009
    %v6016 = vld [vmem:[%s5] sm:$0xff]
    %v6017 = vld [vmem:[%s5 + $0x8] sm:$0xff]
    %v6018 = vld [vmem:[%s5 + $0x10] sm:$0xff]
    %v6019 = vld [vmem:[%s5 + $0x18] sm:$0xff]
    %v6020 = vld [vmem:[%s5 + $0x20] sm:$0xff]
    %v6021 = vld [vmem:[%s5 + $0x28] sm:$0xff]
    %v6022 = vld [vmem:[%s5 + $0x30] sm:$0xff]
    %v6023 = vld [vmem:[%s5 + $0x38] sm:$0xff]
    %v6024 = vld [vmem:[%s5 + $0x40] sm:$0xff]
    %v6025 = vld [vmem:[%s5 + $0x48] sm:$0xff]
    %v6026 = vld [vmem:[%s5 + $0x50] sm:$0xff]
    %v6027 = vld [vmem:[%s5 + $0x58] sm:$0xff]
    %v6028 = vld [vmem:[%s5 + $0x60] sm:$0xff]
    %v6029 = vld [vmem:[%s5 + $0x68] sm:$0xff]
    %v6030 = vld [vmem:[%s5 + $0x70] sm:$0xff]
    %v6031 = vld [vmem:[%s5 + $0x78] sm:$0xff]
    %v6032 = vld [vmem:[%s5 + $0x80] sm:$0xff]
    %v6033 = vld [vmem:[%s5 + $0x88] sm:$0xff]
    %v6034 = vld [vmem:[%s5 + $0x90] sm:$0xff]
    %v6035 = vld [vmem:[%s5 + $0x98] sm:$0xff]
    %v6036 = vld [vmem:[%s5 + $0xa0] sm:$0xff]
    %v6037 = vld [vmem:[%s5 + $0xa8] sm:$0xff]
    %v6038 = vld [vmem:[%s5 + $0xb0] sm:$0xff]
    %v6039 = vld [vmem:[%s5 + $0xb8] sm:$0xff]
    %v6040 = vld [vmem:[%s5 + $0xc0] sm:$0xff]
    %v6041 = vld [vmem:[%s5 + $0xc8] sm:$0xff]
    %v6042 = vld [vmem:[%s5 + $0xd0] sm:$0xff]
    %v6043 = vld [vmem:[%s5 + $0xd8] sm:$0xff]
    %v6044 = vld [vmem:[%s5 + $0xe0] sm:$0xff]
    %v6045 = vld [vmem:[%s5 + $0xe8] sm:$0xff]
    %v6046 = vld [vmem:[%s5 + $0xf0] sm:$0xff]
    %v6047 = vld [vmem:[%s5 + $0xf8] sm:$0xff]
    %v6048 = vld [vmem:[%s7] sm:$0xf]
    %v6050 = vlaneseq
    %v6051 = vshrl.u32 %v6050, 7
    %v6052 = vsub.s32 0, %v6051
    %v6053 = vrot.slane %v6048, %v6052
    %v6054 = vlaneseq
    %v6055 = vshrl.u32 %v6054, 7
    %v6056 = vsub.s32 1, %v6055
    %v6057 = vrot.slane %v6048, %v6056
    %v6058 = vlaneseq
    %v6059 = vshrl.u32 %v6058, 7
    %v6060 = vsub.s32 2, %v6059
    %v6061 = vrot.slane %v6048, %v6060
    %v6062 = vlaneseq
    %v6063 = vshrl.u32 %v6062, 7
    %v6064 = vsub.s32 3, %v6063
    %v6065 = vrot.slane %v6048, %v6064
    %v6102 = vunpack.c.l.b16 %v6016
    %v6103 = vunpack.c.h.b16 %v6016
    %v6104 = vunpack.c.l.b16 %v6017
    %v6105 = vunpack.c.h.b16 %v6017
    %v6106 = vunpack.c.l.b16 %v6018
    %v6107 = vunpack.c.h.b16 %v6018
    %v6108 = vunpack.c.l.b16 %v6019
    %v6109 = vunpack.c.h.b16 %v6019
    %v6110 = vunpack.c.l.b16 %v6020
    %v6111 = vunpack.c.h.b16 %v6020
    %v6112 = vunpack.c.l.b16 %v6021
    %v6113 = vunpack.c.h.b16 %v6021
    %v6114 = vunpack.c.l.b16 %v6022
    %v6115 = vunpack.c.h.b16 %v6022
    %v6116 = vunpack.c.l.b16 %v6023
    %v6117 = vunpack.c.h.b16 %v6023
    %v6118 = vunpack.c.l.b16 %v6024
    %v6119 = vunpack.c.h.b16 %v6024
    %v6120 = vunpack.c.l.b16 %v6025
    %v6121 = vunpack.c.h.b16 %v6025
    %v6122 = vunpack.c.l.b16 %v6026
    %v6123 = vunpack.c.h.b16 %v6026
    %v6124 = vunpack.c.l.b16 %v6027
    %v6125 = vunpack.c.h.b16 %v6027
    %v6126 = vunpack.c.l.b16 %v6028
    %v6127 = vunpack.c.h.b16 %v6028
    %v6128 = vunpack.c.l.b16 %v6029
    %v6129 = vunpack.c.h.b16 %v6029
    %v6130 = vunpack.c.l.b16 %v6030
    %v6131 = vunpack.c.h.b16 %v6030
    %v6132 = vunpack.c.l.b16 %v6031
    %v6133 = vunpack.c.h.b16 %v6031
    %v6134 = vunpack.c.l.b16 %v6032
    %v6135 = vunpack.c.h.b16 %v6032
    %v6136 = vunpack.c.l.b16 %v6033
    %v6137 = vunpack.c.h.b16 %v6033
    %v6138 = vunpack.c.l.b16 %v6034
    %v6139 = vunpack.c.h.b16 %v6034
    %v6140 = vunpack.c.l.b16 %v6035
    %v6141 = vunpack.c.h.b16 %v6035
    %v6142 = vunpack.c.l.b16 %v6036
    %v6143 = vunpack.c.h.b16 %v6036
    %v6144 = vunpack.c.l.b16 %v6037
    %v6145 = vunpack.c.h.b16 %v6037
    %v6146 = vunpack.c.l.b16 %v6038
    %v6147 = vunpack.c.h.b16 %v6038
    %v6148 = vunpack.c.l.b16 %v6039
    %v6149 = vunpack.c.h.b16 %v6039
    %v6150 = vunpack.c.l.b16 %v6040
    %v6151 = vunpack.c.h.b16 %v6040
    %v6152 = vunpack.c.l.b16 %v6041
    %v6153 = vunpack.c.h.b16 %v6041
    %v6154 = vunpack.c.l.b16 %v6042
    %v6155 = vunpack.c.h.b16 %v6042
    %v6156 = vunpack.c.l.b16 %v6043
    %v6157 = vunpack.c.h.b16 %v6043
    %v6158 = vunpack.c.l.b16 %v6044
    %v6159 = vunpack.c.h.b16 %v6044
    %v6160 = vunpack.c.l.b16 %v6045
    %v6161 = vunpack.c.h.b16 %v6045
    %v6162 = vunpack.c.l.b16 %v6046
    %v6163 = vunpack.c.h.b16 %v6046
    %v6164 = vunpack.c.l.b16 %v6047
    %v6165 = vunpack.c.h.b16 %v6047
    %v6166 = vpack.c.b16 %v6106, %v6102
    %v6167 = vpack.c.b16 %v6107, %v6103
    %v6168 = vpack.c.b16 %v6108, %v6104
    %v6169 = vpack.c.b16 %v6109, %v6105
    %v6170 = vpack.c.b16 %v6114, %v6110
    %v6171 = vpack.c.b16 %v6115, %v6111
    %v6172 = vpack.c.b16 %v6116, %v6112
    %v6173 = vpack.c.b16 %v6117, %v6113
    %v6174 = vpack.c.b16 %v6122, %v6118
    %v6175 = vpack.c.b16 %v6123, %v6119
    %v6176 = vpack.c.b16 %v6124, %v6120
    %v6177 = vpack.c.b16 %v6125, %v6121
    %v6178 = vpack.c.b16 %v6130, %v6126
    %v6179 = vpack.c.b16 %v6131, %v6127
    %v6180 = vpack.c.b16 %v6132, %v6128
    %v6181 = vpack.c.b16 %v6133, %v6129
    %v6182 = vpack.c.b16 %v6138, %v6134
    %v6183 = vpack.c.b16 %v6139, %v6135
    %v6184 = vpack.c.b16 %v6140, %v6136
    %v6185 = vpack.c.b16 %v6141, %v6137
    %v6186 = vpack.c.b16 %v6146, %v6142
    %v6187 = vpack.c.b16 %v6147, %v6143
    %v6188 = vpack.c.b16 %v6148, %v6144
    %v6189 = vpack.c.b16 %v6149, %v6145
    %v6190 = vpack.c.b16 %v6154, %v6150
    %v6191 = vpack.c.b16 %v6155, %v6151
    %v6192 = vpack.c.b16 %v6156, %v6152
    %v6193 = vpack.c.b16 %v6157, %v6153
    %v6194 = vpack.c.b16 %v6162, %v6158
    %v6195 = vpack.c.b16 %v6163, %v6159
    %v6196 = vpack.c.b16 %v6164, %v6160
    %v6197 = vpack.c.b16 %v6165, %v6161
    %6230 = vmatprep.subr.bf16.mxu0 %v6167
    %6231 = vmatpush1.bf16.msra.mxu0 %v6166
    %6232 = vmatprep.subr.bf16.mxu0 %v6171
    %6233 = vmatpush1.bf16.msra.mxu0 %v6170
    %6234 = vmatprep.subr.bf16.mxu0 %v6175
    %6235 = vmatpush1.bf16.msra.mxu0 %v6174
    %6236 = vmatprep.subr.bf16.mxu0 %v6179
    %6237 = vmatpush1.bf16.msra.mxu0 %v6178
    %6238 = vmatprep.subr.bf16.mxu0 %v6183
    %6239 = vmatpush1.bf16.msra.mxu0 %v6182
    %6240 = vmatprep.subr.bf16.mxu0 %v6187
    %6241 = vmatpush1.bf16.msra.mxu0 %v6186
    %6242 = vmatprep.subr.bf16.mxu0 %v6191
    %6243 = vmatpush1.bf16.msra.mxu0 %v6190
    %6244 = vmatprep.subr.bf16.mxu0 %v6195
    %6245 = vmatpush1.bf16.msra.mxu0 %v6194
    %6246 = vmatprep.subr.bf16.mxu0 0
    %6247 = vmatpush1.bf16.msra.mxu0 0
    %6248 = vmatprep.subr.bf16.mxu0 0
    %6249 = vmatpush1.bf16.msra.mxu0 0
    %6250 = vmatprep.subr.bf16.mxu0 0
    %6251 = vmatpush1.bf16.msra.mxu0 0
    %6252 = vmatprep.subr.bf16.mxu0 0
    %6253 = vmatpush1.bf16.msra.mxu0 0
    %6254 = vmatprep.subr.bf16.mxu0 0
    %6255 = vmatpush1.bf16.msra.mxu0 0
    %6256 = vmatprep.subr.bf16.mxu0 0
    %6257 = vmatpush1.bf16.msra.mxu0 0
    %6258 = vmatprep.subr.bf16.mxu0 0
    %6259 = vmatpush1.bf16.msra.mxu0 0
    %6260 = vmatprep.subr.bf16.mxu0 0
    %6261 = vmatpush1.bf16.msra.mxu0 0
    %6262 = vmatprep.mubr.bf16.mxu0 0
    %6263 = vmatmul.mubr.bf16.gmra.mrb[0].mxu0 %v6015
    %v6264 = vpop.f32.mrb[0].mxu0
    %v6265 = vadd.f32 %v6053, %v6264
    %v6266 = vpop.f32.mrb[0].mxu0
    %v6267 = vadd.f32 %v6057, %v6266
    %v6268 = vpop.f32.mrb[0].mxu0
    %v6269 = vadd.f32 %v6053, %v6268
    %v6270 = vpop.f32.mrb[0].mxu0
    %v6271 = vadd.f32 %v6057, %v6270
    %6272 = vdwg.mxu0
    %6273 = vmatprep.subr.bf16.mxu0 %v6169
    %6274 = vmatpush1.bf16.msra.mxu0 %v6168
    %6275 = vmatprep.subr.bf16.mxu0 %v6173
    %6276 = vmatpush1.bf16.msra.mxu0 %v6172
    %6277 = vmatprep.subr.bf16.mxu0 %v6177
    %6278 = vmatpush1.bf16.msra.mxu0 %v6176
    %6279 = vmatprep.subr.bf16.mxu0 %v6181
    %6280 = vmatpush1.bf16.msra.mxu0 %v6180
    %6281 = vmatprep.subr.bf16.mxu0 %v6185
    %6282 = vmatpush1.bf16.msra.mxu0 %v6184
    %6283 = vmatprep.subr.bf16.mxu0 %v6189
    %6284 = vmatpush1.bf16.msra.mxu0 %v6188
    %6285 = vmatprep.subr.bf16.mxu0 %v6193
    %6286 = vmatpush1.bf16.msra.mxu0 %v6192
    %6287 = vmatprep.subr.bf16.mxu0 %v6197
    %6288 = vmatpush1.bf16.msra.mxu0 %v6196
    %6289 = vmatprep.subr.bf16.mxu0 0
    %6290 = vmatpush1.bf16.msra.mxu0 0
    %6291 = vmatprep.subr.bf16.mxu0 0
    %6292 = vmatpush1.bf16.msra.mxu0 0
    %6293 = vmatprep.subr.bf16.mxu0 0
    %6294 = vmatpush1.bf16.msra.mxu0 0
    %6295 = vmatprep.subr.bf16.mxu0 0
    %6296 = vmatpush1.bf16.msra.mxu0 0
    %6297 = vmatprep.subr.bf16.mxu0 0
    %6298 = vmatpush1.bf16.msra.mxu0 0
    %6299 = vmatprep.subr.bf16.mxu0 0
    %6300 = vmatpush1.bf16.msra.mxu0 0
    %6301 = vmatprep.subr.bf16.mxu0 0
    %6302 = vmatpush1.bf16.msra.mxu0 0
    %6303 = vmatprep.subr.bf16.mxu0 0
    %6304 = vmatpush1.bf16.msra.mxu0 0
    %6305 = vmatprep.mubr.bf16.mxu0 0
    %6306 = vmatmul.mubr.bf16.gmra.mrb[0].mxu0 %v6015
    %v6307 = vpop.f32.mrb[0].mxu0
    %v6308 = vadd.f32 %v6061, %v6307
    %v6309 = vpop.f32.mrb[0].mxu0
    %v6310 = vadd.f32 %v6065, %v6309
    %v6311 = vpop.f32.mrb[0].mxu0
    %v6312 = vadd.f32 %v6061, %v6311
    %v6313 = vpop.f32.mrb[0].mxu0
    %v6314 = vadd.f32 %v6065, %v6313
    %6315 = vdwg.mxu0
    %6316 = vst [vmem:[#allocation3] sm:$0xff] %v6265
    %6317 = vst [vmem:[#allocation3 + $0x8] sm:$0xff] %v6267
    %6318 = vst [vmem:[#allocation3 + $0x10] sm:$0xff] %v6308
    %6319 = vst [vmem:[#allocation3 + $0x18] sm:$0xff] %v6310
    %6320 = vst [vmem:[#allocation3 + $0x20] sm:$0xff] %v6269
    %6321 = vst [vmem:[#allocation3 + $0x28] sm:$0xff] %v6271
    %6322 = vst [vmem:[#allocation3 + $0x30] sm:$0xff] %v6312
    %6323 = vst [vmem:[#allocation3 + $0x38] sm:$0xff] %v6314
    %v6324 = vld [vmem:[%s6] sm:$0xff]
    %v6325 = vld [vmem:[%s6 + $0x8] sm:$0xff]
    %v6326 = vld [vmem:[%s6 + $0x10] sm:$0xff]
    %v6327 = vld [vmem:[%s6 + $0x18] sm:$0xff]
    %v6328 = vld [vmem:[%s6 + $0x20] sm:$0xff]
    %v6329 = vld [vmem:[%s6 + $0x28] sm:$0xff]
    %v6330 = vld [vmem:[%s6 + $0x30] sm:$0xff]
    %v6331 = vld [vmem:[%s6 + $0x38] sm:$0xff]
    %v6332 = vld [vmem:[%s6 + $0x40] sm:$0xff]
    %v6333 = vld [vmem:[%s6 + $0x48] sm:$0xff]
    %v6334 = vld [vmem:[%s6 + $0x50] sm:$0xff]
    %v6335 = vld [vmem:[%s6 + $0x58] sm:$0xff]
    %v6336 = vld [vmem:[%s6 + $0x60] sm:$0xff]
    %v6337 = vld [vmem:[%s6 + $0x68] sm:$0xff]
    %v6338 = vld [vmem:[%s6 + $0x70] sm:$0xff]
    %v6339 = vld [vmem:[%s6 + $0x78] sm:$0xff]
    %v6340 = vld [vmem:[%s6 + $0x80] sm:$0xff]
    %v6341 = vld [vmem:[%s6 + $0x88] sm:$0xff]
    %v6342 = vld [vmem:[%s6 + $0x90] sm:$0xff]
    %v6343 = vld [vmem:[%s6 + $0x98] sm:$0xff]
    %v6344 = vld [vmem:[%s6 + $0xa0] sm:$0xff]
    %v6345 = vld [vmem:[%s6 + $0xa8] sm:$0xff]
    %v6346 = vld [vmem:[%s6 + $0xb0] sm:$0xff]
    %v6347 = vld [vmem:[%s6 + $0xb8] sm:$0xff]
    %v6348 = vld [vmem:[%s6 + $0xc0] sm:$0xff]
    %v6349 = vld [vmem:[%s6 + $0xc8] sm:$0xff]
    %v6350 = vld [vmem:[%s6 + $0xd0] sm:$0xff]
    %v6351 = vld [vmem:[%s6 + $0xd8] sm:$0xff]
    %v6352 = vld [vmem:[%s6 + $0xe0] sm:$0xff]
    %v6353 = vld [vmem:[%s6 + $0xe8] sm:$0xff]
    %v6354 = vld [vmem:[%s6 + $0xf0] sm:$0xff]
    %v6355 = vld [vmem:[%s6 + $0xf8] sm:$0xff]
    %v6356 = vld [vmem:[#allocation3] sm:$0x3]
    %v6357 = vld [vmem:[#allocation3 + $0x8] sm:$0x3]
    %v6358 = vld [vmem:[#allocation3 + $0x10] sm:$0x3]
    %v6359 = vld [vmem:[#allocation3 + $0x18] sm:$0x3]
    %v6392 = vunpack.c.l.b16 %v6324
    %v6393 = vunpack.c.h.b16 %v6324
    %v6394 = vunpack.c.l.b16 %v6325
    %v6395 = vunpack.c.h.b16 %v6325
    %v6396 = vunpack.c.l.b16 %v6326
    %v6397 = vunpack.c.h.b16 %v6326
    %v6398 = vunpack.c.l.b16 %v6327
    %v6399 = vunpack.c.h.b16 %v6327
    %v6400 = vunpack.c.l.b16 %v6328
    %v6401 = vunpack.c.h.b16 %v6328
    %v6402 = vunpack.c.l.b16 %v6329
    %v6403 = vunpack.c.h.b16 %v6329
    %v6404 = vunpack.c.l.b16 %v6330
    %v6405 = vunpack.c.h.b16 %v6330
    %v6406 = vunpack.c.l.b16 %v6331
    %v6407 = vunpack.c.h.b16 %v6331
    %v6408 = vunpack.c.l.b16 %v6332
    %v6409 = vunpack.c.h.b16 %v6332
    %v6410 = vunpack.c.l.b16 %v6333
    %v6411 = vunpack.c.h.b16 %v6333
    %v6412 = vunpack.c.l.b16 %v6334
    %v6413 = vunpack.c.h.b16 %v6334
    %v6414 = vunpack.c.l.b16 %v6335
    %v6415 = vunpack.c.h.b16 %v6335
    %v6416 = vunpack.c.l.b16 %v6336
    %v6417 = vunpack.c.h.b16 %v6336
    %v6418 = vunpack.c.l.b16 %v6337
    %v6419 = vunpack.c.h.b16 %v6337
    %v6420 = vunpack.c.l.b16 %v6338
    %v6421 = vunpack.c.h.b16 %v6338
    %v6422 = vunpack.c.l.b16 %v6339
    %v6423 = vunpack.c.h.b16 %v6339
    %v6424 = vunpack.c.l.b16 %v6340
    %v6425 = vunpack.c.h.b16 %v6340
    %v6426 = vunpack.c.l.b16 %v6341
    %v6427 = vunpack.c.h.b16 %v6341
    %v6428 = vunpack.c.l.b16 %v6342
    %v6429 = vunpack.c.h.b16 %v6342
    %v6430 = vunpack.c.l.b16 %v6343
    %v6431 = vunpack.c.h.b16 %v6343
    %v6432 = vunpack.c.l.b16 %v6344
    %v6433 = vunpack.c.h.b16 %v6344
    %v6434 = vunpack.c.l.b16 %v6345
    %v6435 = vunpack.c.h.b16 %v6345
    %v6436 = vunpack.c.l.b16 %v6346
    %v6437 = vunpack.c.h.b16 %v6346
    %v6438 = vunpack.c.l.b16 %v6347
    %v6439 = vunpack.c.h.b16 %v6347
    %v6440 = vunpack.c.l.b16 %v6348
    %v6441 = vunpack.c.h.b16 %v6348
    %v6442 = vunpack.c.l.b16 %v6349
    %v6443 = vunpack.c.h.b16 %v6349
    %v6444 = vunpack.c.l.b16 %v6350
    %v6445 = vunpack.c.h.b16 %v6350
    %v6446 = vunpack.c.l.b16 %v6351
    %v6447 = vunpack.c.h.b16 %v6351
    %v6448 = vunpack.c.l.b16 %v6352
    %v6449 = vunpack.c.h.b16 %v6352
    %v6450 = vunpack.c.l.b16 %v6353
    %v6451 = vunpack.c.h.b16 %v6353
    %v6452 = vunpack.c.l.b16 %v6354
    %v6453 = vunpack.c.h.b16 %v6354
    %v6454 = vunpack.c.l.b16 %v6355
    %v6455 = vunpack.c.h.b16 %v6355
    %v6456 = vpack.c.b16 %v6396, %v6392
    %v6457 = vpack.c.b16 %v6397, %v6393
    %v6458 = vpack.c.b16 %v6398, %v6394
    %v6459 = vpack.c.b16 %v6399, %v6395
    %v6460 = vpack.c.b16 %v6404, %v6400
    %v6461 = vpack.c.b16 %v6405, %v6401
    %v6462 = vpack.c.b16 %v6406, %v6402
    %v6463 = vpack.c.b16 %v6407, %v6403
    %v6464 = vpack.c.b16 %v6412, %v6408
    %v6465 = vpack.c.b16 %v6413, %v6409
    %v6466 = vpack.c.b16 %v6414, %v6410
    %v6467 = vpack.c.b16 %v6415, %v6411
    %v6468 = vpack.c.b16 %v6420, %v6416
    %v6469 = vpack.c.b16 %v6421, %v6417
    %v6470 = vpack.c.b16 %v6422, %v6418
    %v6471 = vpack.c.b16 %v6423, %v6419
    %v6472 = vpack.c.b16 %v6428, %v6424
    %v6473 = vpack.c.b16 %v6429, %v6425
    %v6474 = vpack.c.b16 %v6430, %v6426
    %v6475 = vpack.c.b16 %v6431, %v6427
    %v6476 = vpack.c.b16 %v6436, %v6432
    %v6477 = vpack.c.b16 %v6437, %v6433
    %v6478 = vpack.c.b16 %v6438, %v6434
    %v6479 = vpack.c.b16 %v6439, %v6435
    %v6480 = vpack.c.b16 %v6444, %v6440
    %v6481 = vpack.c.b16 %v6445, %v6441
    %v6482 = vpack.c.b16 %v6446, %v6442
    %v6483 = vpack.c.b16 %v6447, %v6443
    %v6484 = vpack.c.b16 %v6452, %v6448
    %v6485 = vpack.c.b16 %v6453, %v6449
    %v6486 = vpack.c.b16 %v6454, %v6450
    %v6487 = vpack.c.b16 %v6455, %v6451
    %6520 = vmatprep.subr.bf16.mxu0 %v6457
    %6521 = vmatpush1.bf16.msra.mxu0 %v6456
    %6522 = vmatprep.subr.bf16.mxu0 %v6461
    %6523 = vmatpush1.bf16.msra.mxu0 %v6460
    %6524 = vmatprep.subr.bf16.mxu0 %v6465
    %6525 = vmatpush1.bf16.msra.mxu0 %v6464
    %6526 = vmatprep.subr.bf16.mxu0 %v6469
    %6527 = vmatpush1.bf16.msra.mxu0 %v6468
    %6528 = vmatprep.subr.bf16.mxu0 %v6473
    %6529 = vmatpush1.bf16.msra.mxu0 %v6472
    %6530 = vmatprep.subr.bf16.mxu0 %v6477
    %6531 = vmatpush1.bf16.msra.mxu0 %v6476
    %6532 = vmatprep.subr.bf16.mxu0 %v6481
    %6533 = vmatpush1.bf16.msra.mxu0 %v6480
    %6534 = vmatprep.subr.bf16.mxu0 %v6485
    %6535 = vmatpush1.bf16.msra.mxu0 %v6484
    %6536 = vmatprep.subr.bf16.mxu0 0
    %6537 = vmatpush1.bf16.msra.mxu0 0
    %6538 = vmatprep.subr.bf16.mxu0 0
    %6539 = vmatpush1.bf16.msra.mxu0 0
    %6540 = vmatprep.subr.bf16.mxu0 0
    %6541 = vmatpush1.bf16.msra.mxu0 0
    %6542 = vmatprep.subr.bf16.mxu0 0
    %6543 = vmatpush1.bf16.msra.mxu0 0
    %6544 = vmatprep.subr.bf16.mxu0 0
    %6545 = vmatpush1.bf16.msra.mxu0 0
    %6546 = vmatprep.subr.bf16.mxu0 0
    %6547 = vmatpush1.bf16.msra.mxu0 0
    %6548 = vmatprep.subr.bf16.mxu0 0
    %6549 = vmatpush1.bf16.msra.mxu0 0
    %6550 = vmatprep.subr.bf16.mxu0 0
    %6551 = vmatpush1.bf16.msra.mxu0 0
    %6552 = vmatprep.mubr.bf16.mxu0 0
    %6553 = vmatmul.mubr.bf16.gmra.mrb[0].mxu0 0
    %v6554 = vpop.f32.mrb[0].mxu0
    %v6555 = vadd.f32 0.0, %v6554
    %v6556 = vpop.f32.mrb[0].mxu0
    %v6557 = vadd.f32 0.0, %v6556
    %v6558 = vpop.f32.mrb[0].mxu0
    %v6559 = vpop.f32.mrb[0].mxu0
    %6560 = vdwg.mxu0
    %6561 = vmatprep.subr.bf16.mxu0 %v6459
    %6562 = vmatpush1.bf16.msra.mxu0 %v6458
    %6563 = vmatprep.subr.bf16.mxu0 %v6463
    %6564 = vmatpush1.bf16.msra.mxu0 %v6462
    %6565 = vmatprep.subr.bf16.mxu0 %v6467
    %6566 = vmatpush1.bf16.msra.mxu0 %v6466
    %6567 = vmatprep.subr.bf16.mxu0 %v6471
    %6568 = vmatpush1.bf16.msra.mxu0 %v6470
    %6569 = vmatprep.subr.bf16.mxu0 %v6475
    %6570 = vmatpush1.bf16.msra.mxu0 %v6474
    %6571 = vmatprep.subr.bf16.mxu0 %v6479
    %6572 = vmatpush1.bf16.msra.mxu0 %v6478
    %6573 = vmatprep.subr.bf16.mxu0 %v6483
    %6574 = vmatpush1.bf16.msra.mxu0 %v6482
    %6575 = vmatprep.subr.bf16.mxu0 %v6487
    %6576 = vmatpush1.bf16.msra.mxu0 %v6486
    %6577 = vmatprep.subr.bf16.mxu0 0
    %6578 = vmatpush1.bf16.msra.mxu0 0
    %6579 = vmatprep.subr.bf16.mxu0 0
    %6580 = vmatpush1.bf16.msra.mxu0 0
    %6581 = vmatprep.subr.bf16.mxu0 0
    %6582 = vmatpush1.bf16.msra.mxu0 0
    %6583 = vmatprep.subr.bf16.mxu0 0
    %6584 = vmatpush1.bf16.msra.mxu0 0
    %6585 = vmatprep.subr.bf16.mxu0 0
    %6586 = vmatpush1.bf16.msra.mxu0 0
    %6587 = vmatprep.subr.bf16.mxu0 0
    %6588 = vmatpush1.bf16.msra.mxu0 0
    %6589 = vmatprep.subr.bf16.mxu0 0
    %6590 = vmatpush1.bf16.msra.mxu0 0
    %6591 = vmatprep.subr.bf16.mxu0 0
    %6592 = vmatpush1.bf16.msra.mxu0 0
    %6593 = vmatprep.mubr.bf16.mxu0 0
    %6594 = vmatmul.mubr.bf16.gmra.mrb[0].mxu0 0
    %v6595 = vpop.f32.mrb[0].mxu0
    %v6596 = vadd.f32 0.0, %v6595
    %v6597 = vpop.f32.mrb[0].mxu0
    %v6598 = vadd.f32 0.0, %v6597
    %v6599 = vpop.f32.mrb[0].mxu0
    %v6600 = vpop.f32.mrb[0].mxu0
    %6601 = vdwg.mxu0
    %v6602 = vadd.f32 %v6356, %v6555
    %v6603 = vadd.f32 %v6357, %v6557
    %v6604 = vadd.f32 %v6358, %v6596
    %v6605 = vadd.f32 %v6359, %v6598
    %v6606 = vxor.u32 %v6602, 2147483648
    %v6607 = vmul.f32 %v6606, 1.442695
    %v6608 = vpow.pop %v6607
    %v6609 = vadd.f32 %v6608, 1.0
    %v6610 = vrcp.pop %v6609
    %v6611 = vmul.f32 1.0, %v6610
    %v6612 = vxor.u32 %v6603, 2147483648
    %v6613 = vmul.f32 %v6612, 1.442695
    %v6614 = vpow.pop %v6613
    %v6615 = vadd.f32 %v6614, 1.0
    %v6616 = vrcp.pop %v6615
    %v6617 = vmul.f32 1.0, %v6616
    %v6618 = vtanh.pop %v6604
    %v6619 = vxor.u32 %v6605, 2147483648
    %v6620 = vmul.f32 %v6619, 1.442695
    %v6621 = vpow.pop %v6620
    %v6622 = vadd.f32 %v6621, 1.0
    %v6623 = vrcp.pop %v6622
    %v6624 = vmul.f32 1.0, %v6623
    %v6625 = vmul.f32 %v6617, 0.0
    %v6626 = vmul.f32 %v6611, %v6618
    %v6627 = vadd.f32 %v6625, %v6626
    %v6628 = vtanh.pop %v6627
    %v6629 = vmul.f32 %v6624, %v6628
    %6630 = vst [vmem:[#allocation2] sm:$0x3] %v6629
    %v6631 = vld [vmem:[#allocation3] sm:$0xc]
    %v6632 = vld [vmem:[#allocation3 + $0x8] sm:$0xc]
    %v6633 = vld [vmem:[#allocation3 + $0x10] sm:$0xc]
    %v6634 = vld [vmem:[#allocation3 + $0x18] sm:$0xc]
    %v6635 = vpack.c.bf16 %v6629, %v6629
    %6636 = vmatprep.subr.bf16.mxu0 %v6457
    %6637 = vmatpush1.bf16.msra.mxu0 %v6456
    %6638 = vmatprep.subr.bf16.mxu0 %v6461
    %6639 = vmatpush1.bf16.msra.mxu0 %v6460
    %6640 = vmatprep.subr.bf16.mxu0 %v6465
    %6641 = vmatpush1.bf16.msra.mxu0 %v6464
    %6642 = vmatprep.subr.bf16.mxu0 %v6469
    %6643 = vmatpush1.bf16.msra.mxu0 %v6468
    %6644 = vmatprep.subr.bf16.mxu0 %v6473
    %6645 = vmatpush1.bf16.msra.mxu0 %v6472
    %6646 = vmatprep.subr.bf16.mxu0 %v6477
    %6647 = vmatpush1.bf16.msra.mxu0 %v6476
    %6648 = vmatprep.subr.bf16.mxu0 %v6481
    %6649 = vmatpush1.bf16.msra.mxu0 %v6480
    %6650 = vmatprep.subr.bf16.mxu0 %v6485
    %6651 = vmatpush1.bf16.msra.mxu0 %v6484
    %6652 = vmatprep.subr.bf16.mxu0 0
    %6653 = vmatpush1.bf16.msra.mxu0 0
    %6654 = vmatprep.subr.bf16.mxu0 0
    %6655 = vmatpush1.bf16.msra.mxu0 0
    %6656 = vmatprep.subr.bf16.mxu0 0
    %6657 = vmatpush1.bf16.msra.mxu0 0
    %6658 = vmatprep.subr.bf16.mxu0 0
    %6659 = vmatpush1.bf16.msra.mxu0 0
    %6660 = vmatprep.subr.bf16.mxu0 0
    %6661 = vmatpush1.bf16.msra.mxu0 0
    %6662 = vmatprep.subr.bf16.mxu0 0
    %6663 = vmatpush1.bf16.msra.mxu0 0
    %6664 = vmatprep.subr.bf16.mxu0 0
    %6665 = vmatpush1.bf16.msra.mxu0 0
    %6666 = vmatprep.subr.bf16.mxu0 0
    %6667 = vmatpush1.bf16.msra.mxu0 0
    %6668 = vmatprep.mubr.bf16.mxu0 0
    %6669 = vmatmul.mubr.bf16.gmra.mrb[0].mxu0 %v6635
    %v6670 = vpop.f32.mrb[0].mxu0
    %v6671 = vadd.f32 0.0, %v6670
    %v6672 = vpop.f32.mrb[0].mxu0
    %v6673 = vadd.f32 0.0, %v6672
    %v6674 = vpop.f32.mrb[0].mxu0
    %v6675 = vpop.f32.mrb[0].mxu0
    %6676 = vdwg.mxu0
    %6677 = vmatprep.subr.bf16.mxu0 %v6459
    %6678 = vmatpush1.bf16.msra.mxu0 %v6458
    %6679 = vmatprep.subr.bf16.mxu0 %v6463
    %6680 = vmatpush1.bf16.msra.mxu0 %v6462
    %6681 = vmatprep.subr.bf16.mxu0 %v6467
    %6682 = vmatpush1.bf16.msra.mxu0 %v6466
    %6683 = vmatprep.subr.bf16.mxu0 %v6471
    %6684 = vmatpush1.bf16.msra.mxu0 %v6470
    %6685 = vmatprep.subr.bf16.mxu0 %v6475
    %6686 = vmatpush1.bf16.msra.mxu0 %v6474
    %6687 = vmatprep.subr.bf16.mxu0 %v6479
    %6688 = vmatpush1.bf16.msra.mxu0 %v6478
    %6689 = vmatprep.subr.bf16.mxu0 %v6483
    %6690 = vmatpush1.bf16.msra.mxu0 %v6482
    %6691 = vmatprep.subr.bf16.mxu0 %v6487
    %6692 = vmatpush1.bf16.msra.mxu0 %v6486
    %6693 = vmatprep.subr.bf16.mxu0 0
    %6694 = vmatpush1.bf16.msra.mxu0 0
    %6695 = vmatprep.subr.bf16.mxu0 0
    %6696 = vmatpush1.bf16.msra.mxu0 0
    %6697 = vmatprep.subr.bf16.mxu0 0
    %6698 = vmatpush1.bf16.msra.mxu0 0
    %6699 = vmatprep.subr.bf16.mxu0 0
    %6700 = vmatpush1.bf16.msra.mxu0 0
    %6701 = vmatprep.subr.bf16.mxu0 0
    %6702 = vmatpush1.bf16.msra.mxu0 0
    %6703 = vmatprep.subr.bf16.mxu0 0
    %6704 = vmatpush1.bf16.msra.mxu0 0
    %6705 = vmatprep.subr.bf16.mxu0 0
    %6706 = vmatpush1.bf16.msra.mxu0 0
    %6707 = vmatprep.subr.bf16.mxu0 0
    %6708 = vmatpush1.bf16.msra.mxu0 0
    %6709 = vmatprep.mubr.bf16.mxu0 0
    %6710 = vmatmul.mubr.bf16.gmra.mrb[0].mxu0 %v6635
    %v6711 = vpop.f32.mrb[0].mxu0
    %v6712 = vadd.f32 0.0, %v6711
    %v6713 = vpop.f32.mrb[0].mxu0
    %v6714 = vadd.f32 0.0, %v6713
    %v6715 = vpop.f32.mrb[0].mxu0
    %v6716 = vpop.f32.mrb[0].mxu0
    %6717 = vdwg.mxu0
    %v6722 = vrot.slane %v6671, 6
    %v6723 = vrot.slane %v6673, 6
    %v6724 = vrot.slane %v6712, 6
    %v6725 = vrot.slane %v6714, 6
    %v6730 = vadd.f32 %v6631, %v6722
    %v6731 = vadd.f32 %v6632, %v6723
    %v6732 = vadd.f32 %v6633, %v6724
    %v6733 = vadd.f32 %v6634, %v6725
    %v6734 = vxor.u32 %v6730, 2147483648
    %v6735 = vmul.f32 %v6734, 1.442695
    %v6736 = vpow.pop %v6735
    %v6737 = vadd.f32 %v6736, 1.0
    %v6738 = vrcp.pop %v6737
    %v6739 = vmul.f32 1.0, %v6738
    %v6740 = vxor.u32 %v6731, 2147483648
    %v6741 = vmul.f32 %v6740, 1.442695
    %v6742 = vpow.pop %v6741
    %v6743 = vadd.f32 %v6742, 1.0
    %v6744 = vrcp.pop %v6743
    %v6745 = vmul.f32 1.0, %v6744
    %v6746 = vtanh.pop %v6732
    %v6747 = vxor.u32 %v6733, 2147483648
    %v6748 = vmul.f32 %v6747, 1.442695
    %v6749 = vpow.pop %v6748
    %v6750 = vadd.f32 %v6749, 1.0
    %v6751 = vrcp.pop %v6750
    %v6752 = vmul.f32 1.0, %v6751
    %v6754 = vrot.slane %v6627, 6
    %v6756 = vmul.f32 %v6745, %v6754
    %v6757 = vmul.f32 %v6739, %v6746
    %v6758 = vadd.f32 %v6756, %v6757
    %v6759 = vtanh.pop %v6758
    %v6760 = vmul.f32 %v6752, %v6759
    %6761 = vst [vmem:[#allocation2] sm:$0xc] %v6760
    %v6762 = vld [vmem:[#allocation3] sm:$0x30]
    %v6763 = vld [vmem:[#allocation3 + $0x8] sm:$0x30]
    %v6764 = vld [vmem:[#allocation3 + $0x10] sm:$0x30]
    %v6765 = vld [vmem:[#allocation3 + $0x18] sm:$0x30]
    %v6766 = vpack.c.bf16 %v6760, %v6760
    %v6768 = vrot.slane %v6766, 1
    %6770 = vmatprep.subr.bf16.mxu0 %v6457
    %6771 = vmatpush1.bf16.msra.mxu0 %v6456
    %6772 = vmatprep.subr.bf16.mxu0 %v6461
    %6773 = vmatpush1.bf16.msra.mxu0 %v6460
    %6774 = vmatprep.subr.bf16.mxu0 %v6465
    %6775 = vmatpush1.bf16.msra.mxu0 %v6464
    %6776 = vmatprep.subr.bf16.mxu0 %v6469
    %6777 = vmatpush1.bf16.msra.mxu0 %v6468
    %6778 = vmatprep.subr.bf16.mxu0 %v6473
    %6779 = vmatpush1.bf16.msra.mxu0 %v6472
    %6780 = vmatprep.subr.bf16.mxu0 %v6477
    %6781 = vmatpush1.bf16.msra.mxu0 %v6476
    %6782 = vmatprep.subr.bf16.mxu0 %v6481
    %6783 = vmatpush1.bf16.msra.mxu0 %v6480
    %6784 = vmatprep.subr.bf16.mxu0 %v6485
    %6785 = vmatpush1.bf16.msra.mxu0 %v6484
    %6786 = vmatprep.subr.bf16.mxu0 0
    %6787 = vmatpush1.bf16.msra.mxu0 0
    %6788 = vmatprep.subr.bf16.mxu0 0
    %6789 = vmatpush1.bf16.msra.mxu0 0
    %6790 = vmatprep.subr.bf16.mxu0 0
    %6791 = vmatpush1.bf16.msra.mxu0 0
    %6792 = vmatprep.subr.bf16.mxu0 0
    %6793 = vmatpush1.bf16.msra.mxu0 0
    %6794 = vmatprep.subr.bf16.mxu0 0
    %6795 = vmatpush1.bf16.msra.mxu0 0
    %6796 = vmatprep.subr.bf16.mxu0 0
    %6797 = vmatpush1.bf16.msra.mxu0 0
    %6798 = vmatprep.subr.bf16.mxu0 0
    %6799 = vmatpush1.bf16.msra.mxu0 0
    %6800 = vmatprep.subr.bf16.mxu0 0
    %6801 = vmatpush1.bf16.msra.mxu0 0
    %6802 = vmatprep.mubr.bf16.mxu0 0
    %6803 = vmatmul.mubr.bf16.gmra.mrb[0].mxu0 %v6768
    %v6804 = vpop.f32.mrb[0].mxu0
    %v6805 = vadd.f32 0.0, %v6804
    %v6806 = vpop.f32.mrb[0].mxu0
    %v6807 = vadd.f32 0.0, %v6806
    %v6808 = vpop.f32.mrb[0].mxu0
    %v6809 = vpop.f32.mrb[0].mxu0
    %6810 = vdwg.mxu0
    %6811 = vmatprep.subr.bf16.mxu0 %v6459
    %6812 = vmatpush1.bf16.msra.mxu0 %v6458
    %6813 = vmatprep.subr.bf16.mxu0 %v6463
    %6814 = vmatpush1.bf16.msra.mxu0 %v6462
    %6815 = vmatprep.subr.bf16.mxu0 %v6467
    %6816 = vmatpush1.bf16.msra.mxu0 %v6466
    %6817 = vmatprep.subr.bf16.mxu0 %v6471
    %6818 = vmatpush1.bf16.msra.mxu0 %v6470
    %6819 = vmatprep.subr.bf16.mxu0 %v6475
    %6820 = vmatpush1.bf16.msra.mxu0 %v6474
    %6821 = vmatprep.subr.bf16.mxu0 %v6479
    %6822 = vmatpush1.bf16.msra.mxu0 %v6478
    %6823 = vmatprep.subr.bf16.mxu0 %v6483
    %6824 = vmatpush1.bf16.msra.mxu0 %v6482
    %6825 = vmatprep.subr.bf16.mxu0 %v6487
    %6826 = vmatpush1.bf16.msra.mxu0 %v6486
    %6827 = vmatprep.subr.bf16.mxu0 0
    %6828 = vmatpush1.bf16.msra.mxu0 0
    %6829 = vmatprep.subr.bf16.mxu0 0
    %6830 = vmatpush1.bf16.msra.mxu0 0
    %6831 = vmatprep.subr.bf16.mxu0 0
    %6832 = vmatpush1.bf16.msra.mxu0 0
    %6833 = vmatprep.subr.bf16.mxu0 0
    %6834 = vmatpush1.bf16.msra.mxu0 0
    %6835 = vmatprep.subr.bf16.mxu0 0
    %6836 = vmatpush1.bf16.msra.mxu0 0
    %6837 = vmatprep.subr.bf16.mxu0 0
    %6838 = vmatpush1.bf16.msra.mxu0 0
    %6839 = vmatprep.subr.bf16.mxu0 0
    %6840 = vmatpush1.bf16.msra.mxu0 0
    %6841 = vmatprep.subr.bf16.mxu0 0
    %6842 = vmatpush1.bf16.msra.mxu0 0
    %6843 = vmatprep.mubr.bf16.mxu0 0
    %6844 = vmatmul.mubr.bf16.gmra.mrb[0].mxu0 %v6768
    %v6845 = vpop.f32.mrb[0].mxu0
    %v6846 = vadd.f32 0.0, %v6845
    %v6847 = vpop.f32.mrb[0].mxu0
    %v6848 = vadd.f32 0.0, %v6847
    %v6849 = vpop.f32.mrb[0].mxu0
    %v6850 = vpop.f32.mrb[0].mxu0
    %6851 = vdwg.mxu0
    %v6856 = vrot.slane %v6805, 4
    %v6857 = vrot.slane %v6807, 4
    %v6858 = vrot.slane %v6846, 4
    %v6859 = vrot.slane %v6848, 4
    %v6864 = vadd.f32 %v6762, %v6856
    %v6865 = vadd.f32 %v6763, %v6857
    %v6866 = vadd.f32 %v6764, %v6858
    %v6867 = vadd.f32 %v6765, %v6859
    %v6868 = vxor.u32 %v6864, 2147483648
    %v6869 = vmul.f32 %v6868, 1.442695
    %v6870 = vpow.pop %v6869
    %v6871 = vadd.f32 %v6870, 1.0
    %v6872 = vrcp.pop %v6871
    %v6873 = vmul.f32 1.0, %v6872
    %v6874 = vxor.u32 %v6865, 2147483648
    %v6875 = vmul.f32 %v6874, 1.442695
    %v6876 = vpow.pop %v6875
    %v6877 = vadd.f32 %v6876, 1.0
    %v6878 = vrcp.pop %v6877
    %v6879 = vmul.f32 1.0, %v6878
    %v6880 = vtanh.pop %v6866
    %v6881 = vxor.u32 %v6867, 2147483648
    %v6882 = vmul.f32 %v6881, 1.442695
    %v6883 = vpow.pop %v6882
    %v6884 = vadd.f32 %v6883, 1.0
    %v6885 = vrcp.pop %v6884
    %v6886 = vmul.f32 1.0, %v6885
    %v6888 = vrot.slane %v6758, 6
    %v6890 = vmul.f32 %v6879, %v6888
    %v6891 = vmul.f32 %v6873, %v6880
    %v6892 = vadd.f32 %v6890, %v6891
    %v6893 = vtanh.pop %v6892
    %v6894 = vmul.f32 %v6886, %v6893
    %6895 = vst [vmem:[#allocation2] sm:$0x30] %v6894
    %v6896 = vld [vmem:[#allocation3] sm:$0xc0]
    %v6897 = vld [vmem:[#allocation3 + $0x8] sm:$0xc0]
    %v6898 = vld [vmem:[#allocation3 + $0x10] sm:$0xc0]
    %v6899 = vld [vmem:[#allocation3 + $0x18] sm:$0xc0]
    %v6900 = vpack.c.bf16 %v6894, %v6894
    %v6902 = vrot.slane %v6900, 2
    %6904 = vmatprep.subr.bf16.mxu0 %v6457
    %6905 = vmatpush1.bf16.msra.mxu0 %v6456
    %6906 = vmatprep.subr.bf16.mxu0 %v6461
    %6907 = vmatpush1.bf16.msra.mxu0 %v6460
    %6908 = vmatprep.subr.bf16.mxu0 %v6465
    %6909 = vmatpush1.bf16.msra.mxu0 %v6464
    %6910 = vmatprep.subr.bf16.mxu0 %v6469
    %6911 = vmatpush1.bf16.msra.mxu0 %v6468
    %6912 = vmatprep.subr.bf16.mxu0 %v6473
    %6913 = vmatpush1.bf16.msra.mxu0 %v6472
    %6914 = vmatprep.subr.bf16.mxu0 %v6477
    %6915 = vmatpush1.bf16.msra.mxu0 %v6476
    %6916 = vmatprep.subr.bf16.mxu0 %v6481
    %6917 = vmatpush1.bf16.msra.mxu0 %v6480
    %6918 = vmatprep.subr.bf16.mxu0 %v6485
    %6919 = vmatpush1.bf16.msra.mxu0 %v6484
    %6920 = vmatprep.subr.bf16.mxu0 0
    %6921 = vmatpush1.bf16.msra.mxu0 0
    %6922 = vmatprep.subr.bf16.mxu0 0
    %6923 = vmatpush1.bf16.msra.mxu0 0
    %6924 = vmatprep.subr.bf16.mxu0 0
    %6925 = vmatpush1.bf16.msra.mxu0 0
    %6926 = vmatprep.subr.bf16.mxu0 0
    %6927 = vmatpush1.bf16.msra.mxu0 0
    %6928 = vmatprep.subr.bf16.mxu0 0
    %6929 = vmatpush1.bf16.msra.mxu0 0
    %6930 = vmatprep.subr.bf16.mxu0 0
    %6931 = vmatpush1.bf16.msra.mxu0 0
    %6932 = vmatprep.subr.bf16.mxu0 0
    %6933 = vmatpush1.bf16.msra.mxu0 0
    %6934 = vmatprep.subr.bf16.mxu0 0
    %6935 = vmatpush1.bf16.msra.mxu0 0
    %6936 = vmatprep.mubr.bf16.mxu0 0
    %6937 = vmatmul.mubr.bf16.gmra.mrb[0].mxu0 %v6902
    %v6938 = vpop.f32.mrb[0].mxu0
    %v6939 = vadd.f32 0.0, %v6938
    %v6940 = vpop.f32.mrb[0].mxu0
    %v6941 = vadd.f32 0.0, %v6940
    %v6942 = vpop.f32.mrb[0].mxu0
    %v6943 = vpop.f32.mrb[0].mxu0
    %6944 = vdwg.mxu0
    %6945 = vmatprep.subr.bf16.mxu0 %v6459
    %6946 = vmatpush1.bf16.msra.mxu0 %v6458
    %6947 = vmatprep.subr.bf16.mxu0 %v6463
    %6948 = vmatpush1.bf16.msra.mxu0 %v6462
    %6949 = vmatprep.subr.bf16.mxu0 %v6467
    %6950 = vmatpush1.bf16.msra.mxu0 %v6466
    %6951 = vmatprep.subr.bf16.mxu0 %v6471
    %6952 = vmatpush1.bf16.msra.mxu0 %v6470
    %6953 = vmatprep.subr.bf16.mxu0 %v6475
    %6954 = vmatpush1.bf16.msra.mxu0 %v6474
    %6955 = vmatprep.subr.bf16.mxu0 %v6479
    %6956 = vmatpush1.bf16.msra.mxu0 %v6478
    %6957 = vmatprep.subr.bf16.mxu0 %v6483
    %6958 = vmatpush1.bf16.msra.mxu0 %v6482
    %6959 = vmatprep.subr.bf16.mxu0 %v6487
    %6960 = vmatpush1.bf16.msra.mxu0 %v6486
    %6961 = vmatprep.subr.bf16.mxu0 0
    %6962 = vmatpush1.bf16.msra.mxu0 0
    %6963 = vmatprep.subr.bf16.mxu0 0
    %6964 = vmatpush1.bf16.msra.mxu0 0
    %6965 = vmatprep.subr.bf16.mxu0 0
    %6966 = vmatpush1.bf16.msra.mxu0 0
    %6967 = vmatprep.subr.bf16.mxu0 0
    %6968 = vmatpush1.bf16.msra.mxu0 0
    %6969 = vmatprep.subr.bf16.mxu0 0
    %6970 = vmatpush1.bf16.msra.mxu0 0
    %6971 = vmatprep.subr.bf16.mxu0 0
    %6972 = vmatpush1.bf16.msra.mxu0 0
    %6973 = vmatprep.subr.bf16.mxu0 0
    %6974 = vmatpush1.bf16.msra.mxu0 0
    %6975 = vmatprep.subr.bf16.mxu0 0
    %6976 = vmatpush1.bf16.msra.mxu0 0
    %6977 = vmatprep.mubr.bf16.mxu0 0
    %6978 = vmatmul.mubr.bf16.gmra.mrb[0].mxu0 %v6902
    %v6979 = vpop.f32.mrb[0].mxu0
    %v6980 = vadd.f32 0.0, %v6979
    %v6981 = vpop.f32.mrb[0].mxu0
    %v6982 = vadd.f32 0.0, %v6981
    %v6983 = vpop.f32.mrb[0].mxu0
    %v6984 = vpop.f32.mrb[0].mxu0
    %6985 = vdwg.mxu0
    %v6990 = vrot.slane %v6939, 2
    %v6991 = vrot.slane %v6941, 2
    %v6992 = vrot.slane %v6980, 2
    %v6993 = vrot.slane %v6982, 2
    %v6998 = vadd.f32 %v6896, %v6990
    %v6999 = vadd.f32 %v6897, %v6991
    %v7000 = vadd.f32 %v6898, %v6992
    %v7001 = vadd.f32 %v6899, %v6993
    %v7002 = vxor.u32 %v6998, 2147483648
    %v7003 = vmul.f32 %v7002, 1.442695
    %v7004 = vpow.pop %v7003
    %v7005 = vadd.f32 %v7004, 1.0
    %v7006 = vrcp.pop %v7005
    %v7007 = vmul.f32 1.0, %v7006
    %v7008 = vxor.u32 %v6999, 2147483648
    %v7009 = vmul.f32 %v7008, 1.442695
    %v7010 = vpow.pop %v7009
    %v7011 = vadd.f32 %v7010, 1.0
    %v7012 = vrcp.pop %v7011
    %v7013 = vmul.f32 1.0, %v7012
    %v7014 = vtanh.pop %v7000
    %v7015 = vxor.u32 %v7001, 2147483648
    %v7016 = vmul.f32 %v7015, 1.442695
    %v7017 = vpow.pop %v7016
    %v7018 = vadd.f32 %v7017, 1.0
    %v7019 = vrcp.pop %v7018
    %v7020 = vmul.f32 1.0, %v7019
    %v7022 = vrot.slane %v6892, 6
    %v7024 = vmul.f32 %v7013, %v7022
    %v7025 = vmul.f32 %v7007, %v7014
    %v7026 = vadd.f32 %v7024, %v7025
    %v7027 = vtanh.pop %v7026
    %v7028 = vmul.f32 %v7020, %v7027
    %7029 = vst [vmem:[#allocation2] sm:$0xc0] %v7028
    %v7030 = vld [vmem:[#allocation3 + $0x20] sm:$0x3]
    %v7031 = vld [vmem:[#allocation3 + $0x28] sm:$0x3]
    %v7032 = vld [vmem:[#allocation3 + $0x30] sm:$0x3]
    %v7033 = vld [vmem:[#allocation3 + $0x38] sm:$0x3]
    %v7034 = vpack.c.bf16 %v7028, %v7028
    %v7036 = vrot.slane %v7034, 3
    %7038 = vmatprep.subr.bf16.mxu0 %v6457
    %7039 = vmatpush1.bf16.msra.mxu0 %v6456
    %7040 = vmatprep.subr.bf16.mxu0 %v6461
    %7041 = vmatpush1.bf16.msra.mxu0 %v6460
    %7042 = vmatprep.subr.bf16.mxu0 %v6465
    %7043 = vmatpush1.bf16.msra.mxu0 %v6464
    %7044 = vmatprep.subr.bf16.mxu0 %v6469
    %7045 = vmatpush1.bf16.msra.mxu0 %v6468
    %7046 = vmatprep.subr.bf16.mxu0 %v6473
    %7047 = vmatpush1.bf16.msra.mxu0 %v6472
    %7048 = vmatprep.subr.bf16.mxu0 %v6477
    %7049 = vmatpush1.bf16.msra.mxu0 %v6476
    %7050 = vmatprep.subr.bf16.mxu0 %v6481
    %7051 = vmatpush1.bf16.msra.mxu0 %v6480
    %7052 = vmatprep.subr.bf16.mxu0 %v6485
    %7053 = vmatpush1.bf16.msra.mxu0 %v6484
    %7054 = vmatprep.subr.bf16.mxu0 0
    %7055 = vmatpush1.bf16.msra.mxu0 0
    %7056 = vmatprep.subr.bf16.mxu0 0
    %7057 = vmatpush1.bf16.msra.mxu0 0
    %7058 = vmatprep.subr.bf16.mxu0 0
    %7059 = vmatpush1.bf16.msra.mxu0 0
    %7060 = vmatprep.subr.bf16.mxu0 0
    %7061 = vmatpush1.bf16.msra.mxu0 0
    %7062 = vmatprep.subr.bf16.mxu0 0
    %7063 = vmatpush1.bf16.msra.mxu0 0
    %7064 = vmatprep.subr.bf16.mxu0 0
    %7065 = vmatpush1.bf16.msra.mxu0 0
    %7066 = vmatprep.subr.bf16.mxu0 0
    %7067 = vmatpush1.bf16.msra.mxu0 0
    %7068 = vmatprep.subr.bf16.mxu0 0
    %7069 = vmatpush1.bf16.msra.mxu0 0
    %7070 = vmatprep.mubr.bf16.mxu0 0
    %7071 = vmatmul.mubr.bf16.gmra.mrb[0].mxu0 %v7036
    %v7072 = vpop.f32.mrb[0].mxu0
    %v7073 = vadd.f32 0.0, %v7072
    %v7074 = vpop.f32.mrb[0].mxu0
    %v7075 = vadd.f32 0.0, %v7074
    %v7076 = vpop.f32.mrb[0].mxu0
    %v7077 = vpop.f32.mrb[0].mxu0
    %7078 = vdwg.mxu0
    %7079 = vmatprep.subr.bf16.mxu0 %v6459
    %7080 = vmatpush1.bf16.msra.mxu0 %v6458
    %7081 = vmatprep.subr.bf16.mxu0 %v6463
    %7082 = vmatpush1.bf16.msra.mxu0 %v6462
    %7083 = vmatprep.subr.bf16.mxu0 %v6467
    %7084 = vmatpush1.bf16.msra.mxu0 %v6466
    %7085 = vmatprep.subr.bf16.mxu0 %v6471
    %7086 = vmatpush1.bf16.msra.mxu0 %v6470
    %7087 = vmatprep.subr.bf16.mxu0 %v6475
    %7088 = vmatpush1.bf16.msra.mxu0 %v6474
    %7089 = vmatprep.subr.bf16.mxu0 %v6479
    %7090 = vmatpush1.bf16.msra.mxu0 %v6478
    %7091 = vmatprep.subr.bf16.mxu0 %v6483
    %7092 = vmatpush1.bf16.msra.mxu0 %v6482
    %7093 = vmatprep.subr.bf16.mxu0 %v6487
    %7094 = vmatpush1.bf16.msra.mxu0 %v6486
    %7095 = vmatprep.subr.bf16.mxu0 0
    %7096 = vmatpush1.bf16.msra.mxu0 0
    %7097 = vmatprep.subr.bf16.mxu0 0
    %7098 = vmatpush1.bf16.msra.mxu0 0
    %7099 = vmatprep.subr.bf16.mxu0 0
    %7100 = vmatpush1.bf16.msra.mxu0 0
    %7101 = vmatprep.subr.bf16.mxu0 0
    %7102 = vmatpush1.bf16.msra.mxu0 0
    %7103 = vmatprep.subr.bf16.mxu0 0
    %7104 = vmatpush1.bf16.msra.mxu0 0
    %7105 = vmatprep.subr.bf16.mxu0 0
    %7106 = vmatpush1.bf16.msra.mxu0 0
    %7107 = vmatprep.subr.bf16.mxu0 0
    %7108 = vmatpush1.bf16.msra.mxu0 0
    %7109 = vmatprep.subr.bf16.mxu0 0
    %7110 = vmatpush1.bf16.msra.mxu0 0
    %7111 = vmatprep.mubr.bf16.mxu0 0
    %7112 = vmatmul.mubr.bf16.gmra.mrb[0].mxu0 %v7036
    %v7113 = vpop.f32.mrb[0].mxu0
    %v7114 = vadd.f32 0.0, %v7113
    %v7115 = vpop.f32.mrb[0].mxu0
    %v7116 = vadd.f32 0.0, %v7115
    %v7117 = vpop.f32.mrb[0].mxu0
    %v7118 = vpop.f32.mrb[0].mxu0
    %7119 = vdwg.mxu0
    %v7120 = vadd.f32 %v7030, %v7073
    %v7121 = vadd.f32 %v7031, %v7075
    %v7122 = vadd.f32 %v7032, %v7114
    %v7123 = vadd.f32 %v7033, %v7116
    %v7124 = vxor.u32 %v7120, 2147483648
    %v7125 = vmul.f32 %v7124, 1.442695
    %v7126 = vpow.pop %v7125
    %v7127 = vadd.f32 %v7126, 1.0
    %v7128 = vrcp.pop %v7127
    %v7129 = vmul.f32 1.0, %v7128
    %v7130 = vxor.u32 %v7121, 2147483648
    %v7131 = vmul.f32 %v7130, 1.442695
    %v7132 = vpow.pop %v7131
    %v7133 = vadd.f32 %v7132, 1.0
    %v7134 = vrcp.pop %v7133
    %v7135 = vmul.f32 1.0, %v7134
    %v7136 = vtanh.pop %v7122
    %v7137 = vxor.u32 %v7123, 2147483648
    %v7138 = vmul.f32 %v7137, 1.442695
    %v7139 = vpow.pop %v7138
    %v7140 = vadd.f32 %v7139, 1.0
    %v7141 = vrcp.pop %v7140
    %v7142 = vmul.f32 1.0, %v7141
    %v7144 = vrot.slane %v7026, 6
    %v7146 = vmul.f32 %v7135, %v7144
    %v7147 = vmul.f32 %v7129, %v7136
    %v7148 = vadd.f32 %v7146, %v7147
    %v7149 = vtanh.pop %v7148
    %v7150 = vmul.f32 %v7142, %v7149
    %7151 = vst [vmem:[#allocation2 + $0x8] sm:$0x3] %v7150
    %v7152 = vld [vmem:[#allocation3 + $0x20] sm:$0xc]
    %v7153 = vld [vmem:[#allocation3 + $0x28] sm:$0xc]
    %v7154 = vld [vmem:[#allocation3 + $0x30] sm:$0xc]
    %v7155 = vld [vmem:[#allocation3 + $0x38] sm:$0xc]
    %v7156 = vpack.c.bf16 %v7150, %v7150
    %7157 = vmatprep.subr.bf16.mxu0 %v6457
    %7158 = vmatpush1.bf16.msra.mxu0 %v6456
    %7159 = vmatprep.subr.bf16.mxu0 %v6461
    %7160 = vmatpush1.bf16.msra.mxu0 %v6460
    %7161 = vmatprep.subr.bf16.mxu0 %v6465
    %7162 = vmatpush1.bf16.msra.mxu0 %v6464
    %7163 = vmatprep.subr.bf16.mxu0 %v6469
    %7164 = vmatpush1.bf16.msra.mxu0 %v6468
    %7165 = vmatprep.subr.bf16.mxu0 %v6473
    %7166 = vmatpush1.bf16.msra.mxu0 %v6472
    %7167 = vmatprep.subr.bf16.mxu0 %v6477
    %7168 = vmatpush1.bf16.msra.mxu0 %v6476
    %7169 = vmatprep.subr.bf16.mxu0 %v6481
    %7170 = vmatpush1.bf16.msra.mxu0 %v6480
    %7171 = vmatprep.subr.bf16.mxu0 %v6485
    %7172 = vmatpush1.bf16.msra.mxu0 %v6484
    %7173 = vmatprep.subr.bf16.mxu0 0
    %7174 = vmatpush1.bf16.msra.mxu0 0
    %7175 = vmatprep.subr.bf16.mxu0 0
    %7176 = vmatpush1.bf16.msra.mxu0 0
    %7177 = vmatprep.subr.bf16.mxu0 0
    %7178 = vmatpush1.bf16.msra.mxu0 0
    %7179 = vmatprep.subr.bf16.mxu0 0
    %7180 = vmatpush1.bf16.msra.mxu0 0
    %7181 = vmatprep.subr.bf16.mxu0 0
    %7182 = vmatpush1.bf16.msra.mxu0 0
    %7183 = vmatprep.subr.bf16.mxu0 0
    %7184 = vmatpush1.bf16.msra.mxu0 0
    %7185 = vmatprep.subr.bf16.mxu0 0
    %7186 = vmatpush1.bf16.msra.mxu0 0
    %7187 = vmatprep.subr.bf16.mxu0 0
    %7188 = vmatpush1.bf16.msra.mxu0 0
    %7189 = vmatprep.mubr.bf16.mxu0 0
    %7190 = vmatmul.mubr.bf16.gmra.mrb[0].mxu0 %v7156
    %v7191 = vpop.f32.mrb[0].mxu0
    %v7192 = vadd.f32 0.0, %v7191
    %v7193 = vpop.f32.mrb[0].mxu0
    %v7194 = vadd.f32 0.0, %v7193
    %v7195 = vpop.f32.mrb[0].mxu0
    %v7196 = vpop.f32.mrb[0].mxu0
    %7197 = vdwg.mxu0
    %7198 = vmatprep.subr.bf16.mxu0 %v6459
    %7199 = vmatpush1.bf16.msra.mxu0 %v6458
    %7200 = vmatprep.subr.bf16.mxu0 %v6463
    %7201 = vmatpush1.bf16.msra.mxu0 %v6462
    %7202 = vmatprep.subr.bf16.mxu0 %v6467
    %7203 = vmatpush1.bf16.msra.mxu0 %v6466
    %7204 = vmatprep.subr.bf16.mxu0 %v6471
    %7205 = vmatpush1.bf16.msra.mxu0 %v6470
    %7206 = vmatprep.subr.bf16.mxu0 %v6475
    %7207 = vmatpush1.bf16.msra.mxu0 %v6474
    %7208 = vmatprep.subr.bf16.mxu0 %v6479
    %7209 = vmatpush1.bf16.msra.mxu0 %v6478
    %7210 = vmatprep.subr.bf16.mxu0 %v6483
    %7211 = vmatpush1.bf16.msra.mxu0 %v6482
    %7212 = vmatprep.subr.bf16.mxu0 %v6487
    %7213 = vmatpush1.bf16.msra.mxu0 %v6486
    %7214 = vmatprep.subr.bf16.mxu0 0
    %7215 = vmatpush1.bf16.msra.mxu0 0
    %7216 = vmatprep.subr.bf16.mxu0 0
    %7217 = vmatpush1.bf16.msra.mxu0 0
    %7218 = vmatprep.subr.bf16.mxu0 0
    %7219 = vmatpush1.bf16.msra.mxu0 0
    %7220 = vmatprep.subr.bf16.mxu0 0
    %7221 = vmatpush1.bf16.msra.mxu0 0
    %7222 = vmatprep.subr.bf16.mxu0 0
    %7223 = vmatpush1.bf16.msra.mxu0 0
    %7224 = vmatprep.subr.bf16.mxu0 0
    %7225 = vmatpush1.bf16.msra.mxu0 0
    %7226 = vmatprep.subr.bf16.mxu0 0
    %7227 = vmatpush1.bf16.msra.mxu0 0
    %7228 = vmatprep.subr.bf16.mxu0 0
    %7229 = vmatpush1.bf16.msra.mxu0 0
    %7230 = vmatprep.mubr.bf16.mxu0 0
    %7231 = vmatmul.mubr.bf16.gmra.mrb[0].mxu0 %v7156
    %v7232 = vpop.f32.mrb[0].mxu0
    %v7233 = vadd.f32 0.0, %v7232
    %v7234 = vpop.f32.mrb[0].mxu0
    %v7235 = vadd.f32 0.0, %v7234
    %v7236 = vpop.f32.mrb[0].mxu0
    %v7237 = vpop.f32.mrb[0].mxu0
    %7238 = vdwg.mxu0
    %v7243 = vrot.slane %v7192, 6
    %v7244 = vrot.slane %v7194, 6
    %v7245 = vrot.slane %v7233, 6
    %v7246 = vrot.slane %v7235, 6
    %v7251 = vadd.f32 %v7152, %v7243
    %v7252 = vadd.f32 %v7153, %v7244
    %v7253 = vadd.f32 %v7154, %v7245
    %v7254 = vadd.f32 %v7155, %v7246
    %v7255 = vxor.u32 %v7251, 2147483648
    %v7256 = vmul.f32 %v7255, 1.442695
    %v7257 = vpow.pop %v7256
    %v7258 = vadd.f32 %v7257, 1.0
    %v7259 = vrcp.pop %v7258
    %v7260 = vmul.f32 1.0, %v7259
    %v7261 = vxor.u32 %v7252, 2147483648
    %v7262 = vmul.f32 %v7261, 1.442695
    %v7263 = vpow.pop %v7262
    %v7264 = vadd.f32 %v7263, 1.0
    %v7265 = vrcp.pop %v7264
    %v7266 = vmul.f32 1.0, %v7265
    %v7267 = vtanh.pop %v7253
    %v7268 = vxor.u32 %v7254, 2147483648
    %v7269 = vmul.f32 %v7268, 1.442695
    %v7270 = vpow.pop %v7269
    %v7271 = vadd.f32 %v7270, 1.0
    %v7272 = vrcp.pop %v7271
    %v7273 = vmul.f32 1.0, %v7272
    %v7275 = vrot.slane %v7148, 6
    %v7277 = vmul.f32 %v7266, %v7275
    %v7278 = vmul.f32 %v7260, %v7267
    %v7279 = vadd.f32 %v7277, %v7278
    %v7280 = vtanh.pop %v7279
    %v7281 = vmul.f32 %v7273, %v7280
    %7282 = vst [vmem:[#allocation2 + $0x8] sm:$0xc] %v7281
    %v7283 = vld [vmem:[#allocation3 + $0x20] sm:$0x30]
    %v7284 = vld [vmem:[#allocation3 + $0x28] sm:$0x30]
    %v7285 = vld [vmem:[#allocation3 + $0x30] sm:$0x30]
    %v7286 = vld [vmem:[#allocation3 + $0x38] sm:$0x30]
    %v7287 = vpack.c.bf16 %v7281, %v7281
    %v7289 = vrot.slane %v7287, 1
    %7291 = vmatprep.subr.bf16.mxu0 %v6457
    %7292 = vmatpush1.bf16.msra.mxu0 %v6456
    %7293 = vmatprep.subr.bf16.mxu0 %v6461
    %7294 = vmatpush1.bf16.msra.mxu0 %v6460
    %7295 = vmatprep.subr.bf16.mxu0 %v6465
    %7296 = vmatpush1.bf16.msra.mxu0 %v6464
    %7297 = vmatprep.subr.bf16.mxu0 %v6469
    %7298 = vmatpush1.bf16.msra.mxu0 %v6468
    %7299 = vmatprep.subr.bf16.mxu0 %v6473
    %7300 = vmatpush1.bf16.msra.mxu0 %v6472
    %7301 = vmatprep.subr.bf16.mxu0 %v6477
    %7302 = vmatpush1.bf16.msra.mxu0 %v6476
    %7303 = vmatprep.subr.bf16.mxu0 %v6481
    %7304 = vmatpush1.bf16.msra.mxu0 %v6480
    %7305 = vmatprep.subr.bf16.mxu0 %v6485
    %7306 = vmatpush1.bf16.msra.mxu0 %v6484
    %7307 = vmatprep.subr.bf16.mxu0 0
    %7308 = vmatpush1.bf16.msra.mxu0 0
    %7309 = vmatprep.subr.bf16.mxu0 0
    %7310 = vmatpush1.bf16.msra.mxu0 0
    %7311 = vmatprep.subr.bf16.mxu0 0
    %7312 = vmatpush1.bf16.msra.mxu0 0
    %7313 = vmatprep.subr.bf16.mxu0 0
    %7314 = vmatpush1.bf16.msra.mxu0 0
    %7315 = vmatprep.subr.bf16.mxu0 0
    %7316 = vmatpush1.bf16.msra.mxu0 0
    %7317 = vmatprep.subr.bf16.mxu0 0
    %7318 = vmatpush1.bf16.msra.mxu0 0
    %7319 = vmatprep.subr.bf16.mxu0 0
    %7320 = vmatpush1.bf16.msra.mxu0 0
    %7321 = vmatprep.subr.bf16.mxu0 0
    %7322 = vmatpush1.bf16.msra.mxu0 0
    %7323 = vmatprep.mubr.bf16.mxu0 0
    %7324 = vmatmul.mubr.bf16.gmra.mrb[0].mxu0 %v7289
    %v7325 = vpop.f32.mrb[0].mxu0
    %v7326 = vadd.f32 0.0, %v7325
    %v7327 = vpop.f32.mrb[0].mxu0
    %v7328 = vadd.f32 0.0, %v7327
    %v7329 = vpop.f32.mrb[0].mxu0
    %v7330 = vpop.f32.mrb[0].mxu0
    %7331 = vdwg.mxu0
    %7332 = vmatprep.subr.bf16.mxu0 %v6459
    %7333 = vmatpush1.bf16.msra.mxu0 %v6458
    %7334 = vmatprep.subr.bf16.mxu0 %v6463
    %7335 = vmatpush1.bf16.msra.mxu0 %v6462
    %7336 = vmatprep.subr.bf16.mxu0 %v6467
    %7337 = vmatpush1.bf16.msra.mxu0 %v6466
    %7338 = vmatprep.subr.bf16.mxu0 %v6471
    %7339 = vmatpush1.bf16.msra.mxu0 %v6470
    %7340 = vmatprep.subr.bf16.mxu0 %v6475
    %7341 = vmatpush1.bf16.msra.mxu0 %v6474
    %7342 = vmatprep.subr.bf16.mxu0 %v6479
    %7343 = vmatpush1.bf16.msra.mxu0 %v6478
    %7344 = vmatprep.subr.bf16.mxu0 %v6483
    %7345 = vmatpush1.bf16.msra.mxu0 %v6482
    %7346 = vmatprep.subr.bf16.mxu0 %v6487
    %7347 = vmatpush1.bf16.msra.mxu0 %v6486
    %7348 = vmatprep.subr.bf16.mxu0 0
    %7349 = vmatpush1.bf16.msra.mxu0 0
    %7350 = vmatprep.subr.bf16.mxu0 0
    %7351 = vmatpush1.bf16.msra.mxu0 0
    %7352 = vmatprep.subr.bf16.mxu0 0
    %7353 = vmatpush1.bf16.msra.mxu0 0
    %7354 = vmatprep.subr.bf16.mxu0 0
    %7355 = vmatpush1.bf16.msra.mxu0 0
    %7356 = vmatprep.subr.bf16.mxu0 0
    %7357 = vmatpush1.bf16.msra.mxu0 0
    %7358 = vmatprep.subr.bf16.mxu0 0
    %7359 = vmatpush1.bf16.msra.mxu0 0
    %7360 = vmatprep.subr.bf16.mxu0 0
    %7361 = vmatpush1.bf16.msra.mxu0 0
    %7362 = vmatprep.subr.bf16.mxu0 0
    %7363 = vmatpush1.bf16.msra.mxu0 0
    %7364 = vmatprep.mubr.bf16.mxu0 0
    %7365 = vmatmul.mubr.bf16.gmra.mrb[0].mxu0 %v7289
    %v7366 = vpop.f32.mrb[0].mxu0
    %v7367 = vadd.f32 0.0, %v7366
    %v7368 = vpop.f32.mrb[0].mxu0
    %v7369 = vadd.f32 0.0, %v7368
    %v7370 = vpop.f32.mrb[0].mxu0
    %v7371 = vpop.f32.mrb[0].mxu0
    %7372 = vdwg.mxu0
    %v7377 = vrot.slane %v7326, 4
    %v7378 = vrot.slane %v7328, 4
    %v7379 = vrot.slane %v7367, 4
    %v7380 = vrot.slane %v7369, 4
    %v7385 = vadd.f32 %v7283, %v7377
    %v7386 = vadd.f32 %v7284, %v7378
    %v7387 = vadd.f32 %v7285, %v7379
    %v7388 = vadd.f32 %v7286, %v7380
    %v7389 = vxor.u32 %v7385, 2147483648
    %v7390 = vmul.f32 %v7389, 1.442695
    %v7391 = vpow.pop %v7390
    %v7392 = vadd.f32 %v7391, 1.0
    %v7393 = vrcp.pop %v7392
    %v7394 = vmul.f32 1.0, %v7393
    %v7395 = vxor.u32 %v7386, 2147483648
    %v7396 = vmul.f32 %v7395, 1.442695
    %v7397 = vpow.pop %v7396
    %v7398 = vadd.f32 %v7397, 1.0
    %v7399 = vrcp.pop %v7398
    %v7400 = vmul.f32 1.0, %v7399
    %v7401 = vtanh.pop %v7387
    %v7402 = vxor.u32 %v7388, 2147483648
    %v7403 = vmul.f32 %v7402, 1.442695
    %v7404 = vpow.pop %v7403
    %v7405 = vadd.f32 %v7404, 1.0
    %v7406 = vrcp.pop %v7405
    %v7407 = vmul.f32 1.0, %v7406
    %v7409 = vrot.slane %v7279, 6
    %v7411 = vmul.f32 %v7400, %v7409
    %v7412 = vmul.f32 %v7394, %v7401
    %v7413 = vadd.f32 %v7411, %v7412
    %v7414 = vtanh.pop %v7413
    %v7415 = vmul.f32 %v7407, %v7414
    %7416 = vst [vmem:[#allocation2 + $0x8] sm:$0x30] %v7415
    %v7417 = vld [vmem:[#allocation3 + $0x20] sm:$0xc0]
    %v7418 = vld [vmem:[#allocation3 + $0x28] sm:$0xc0]
    %v7419 = vld [vmem:[#allocation3 + $0x30] sm:$0xc0]
    %v7420 = vld [vmem:[#allocation3 + $0x38] sm:$0xc0]
    %v7421 = vpack.c.bf16 %v7415, %v7415
    %v7423 = vrot.slane %v7421, 2
    %7425 = vmatprep.subr.bf16.mxu0 %v6457
    %7426 = vmatpush1.bf16.msra.mxu0 %v6456
    %7427 = vmatprep.subr.bf16.mxu0 %v6461
    %7428 = vmatpush1.bf16.msra.mxu0 %v6460
    %7429 = vmatprep.subr.bf16.mxu0 %v6465
    %7430 = vmatpush1.bf16.msra.mxu0 %v6464
    %7431 = vmatprep.subr.bf16.mxu0 %v6469
    %7432 = vmatpush1.bf16.msra.mxu0 %v6468
    %7433 = vmatprep.subr.bf16.mxu0 %v6473
    %7434 = vmatpush1.bf16.msra.mxu0 %v6472
    %7435 = vmatprep.subr.bf16.mxu0 %v6477
    %7436 = vmatpush1.bf16.msra.mxu0 %v6476
    %7437 = vmatprep.subr.bf16.mxu0 %v6481
    %7438 = vmatpush1.bf16.msra.mxu0 %v6480
    %7439 = vmatprep.subr.bf16.mxu0 %v6485
    %7440 = vmatpush1.bf16.msra.mxu0 %v6484
    %7441 = vmatprep.subr.bf16.mxu0 0
    %7442 = vmatpush1.bf16.msra.mxu0 0
    %7443 = vmatprep.subr.bf16.mxu0 0
    %7444 = vmatpush1.bf16.msra.mxu0 0
    %7445 = vmatprep.subr.bf16.mxu0 0
    %7446 = vmatpush1.bf16.msra.mxu0 0
    %7447 = vmatprep.subr.bf16.mxu0 0
    %7448 = vmatpush1.bf16.msra.mxu0 0
    %7449 = vmatprep.subr.bf16.mxu0 0
    %7450 = vmatpush1.bf16.msra.mxu0 0
    %7451 = vmatprep.subr.bf16.mxu0 0
    %7452 = vmatpush1.bf16.msra.mxu0 0
    %7453 = vmatprep.subr.bf16.mxu0 0
    %7454 = vmatpush1.bf16.msra.mxu0 0
    %7455 = vmatprep.subr.bf16.mxu0 0
    %7456 = vmatpush1.bf16.msra.mxu0 0
    %7457 = vmatprep.mubr.bf16.mxu0 0
    %7458 = vmatmul.mubr.bf16.gmra.mrb[0].mxu0 %v7423
    %v7459 = vpop.f32.mrb[0].mxu0
    %v7460 = vadd.f32 0.0, %v7459
    %v7461 = vpop.f32.mrb[0].mxu0
    %v7462 = vadd.f32 0.0, %v7461
    %v7463 = vpop.f32.mrb[0].mxu0
    %v7464 = vpop.f32.mrb[0].mxu0
    %7465 = vdwg.mxu0
    %7466 = vmatprep.subr.bf16.mxu0 %v6459
    %7467 = vmatpush1.bf16.msra.mxu0 %v6458
    %7468 = vmatprep.subr.bf16.mxu0 %v6463
    %7469 = vmatpush1.bf16.msra.mxu0 %v6462
    %7470 = vmatprep.subr.bf16.mxu0 %v6467
    %7471 = vmatpush1.bf16.msra.mxu0 %v6466
    %7472 = vmatprep.subr.bf16.mxu0 %v6471
    %7473 = vmatpush1.bf16.msra.mxu0 %v6470
    %7474 = vmatprep.subr.bf16.mxu0 %v6475
    %7475 = vmatpush1.bf16.msra.mxu0 %v6474
    %7476 = vmatprep.subr.bf16.mxu0 %v6479
    %7477 = vmatpush1.bf16.msra.mxu0 %v6478
    %7478 = vmatprep.subr.bf16.mxu0 %v6483
    %7479 = vmatpush1.bf16.msra.mxu0 %v6482
    %7480 = vmatprep.subr.bf16.mxu0 %v6487
    %7481 = vmatpush1.bf16.msra.mxu0 %v6486
    %7482 = vmatprep.subr.bf16.mxu0 0
    %7483 = vmatpush1.bf16.msra.mxu0 0
    %7484 = vmatprep.subr.bf16.mxu0 0
    %7485 = vmatpush1.bf16.msra.mxu0 0
    %7486 = vmatprep.subr.bf16.mxu0 0
    %7487 = vmatpush1.bf16.msra.mxu0 0
    %7488 = vmatprep.subr.bf16.mxu0 0
    %7489 = vmatpush1.bf16.msra.mxu0 0
    %7490 = vmatprep.subr.bf16.mxu0 0
    %7491 = vmatpush1.bf16.msra.mxu0 0
    %7492 = vmatprep.subr.bf16.mxu0 0
    %7493 = vmatpush1.bf16.msra.mxu0 0
    %7494 = vmatprep.subr.bf16.mxu0 0
    %7495 = vmatpush1.bf16.msra.mxu0 0
    %7496 = vmatprep.subr.bf16.mxu0 0
    %7497 = vmatpush1.bf16.msra.mxu0 0
    %7498 = vmatprep.mubr.bf16.mxu0 0
    %7499 = vmatmul.mubr.bf16.gmra.mrb[0].mxu0 %v7423
    %v7500 = vpop.f32.mrb[0].mxu0
    %v7501 = vadd.f32 0.0, %v7500
    %v7502 = vpop.f32.mrb[0].mxu0
    %v7503 = vadd.f32 0.0, %v7502
    %v7504 = vpop.f32.mrb[0].mxu0
    %v7505 = vpop.f32.mrb[0].mxu0
    %7506 = vdwg.mxu0
    %v7511 = vrot.slane %v7460, 2
    %v7512 = vrot.slane %v7462, 2
    %v7513 = vrot.slane %v7501, 2
    %v7514 = vrot.slane %v7503, 2
    %v7519 = vadd.f32 %v7417, %v7511
    %v7520 = vadd.f32 %v7418, %v7512
    %v7521 = vadd.f32 %v7419, %v7513
    %v7522 = vadd.f32 %v7420, %v7514
    %v7523 = vxor.u32 %v7519, 2147483648
    %v7524 = vmul.f32 %v7523, 1.442695
    %v7525 = vpow.pop %v7524
    %v7526 = vadd.f32 %v7525, 1.0
    %v7527 = vrcp.pop %v7526
    %v7528 = vmul.f32 1.0, %v7527
    %v7529 = vxor.u32 %v7520, 2147483648
    %v7530 = vmul.f32 %v7529, 1.442695
    %v7531 = vpow.pop %v7530
    %v7532 = vadd.f32 %v7531, 1.0
    %v7533 = vrcp.pop %v7532
    %v7534 = vmul.f32 1.0, %v7533
    %v7535 = vtanh.pop %v7521
    %v7536 = vxor.u32 %v7522, 2147483648
    %v7537 = vmul.f32 %v7536, 1.442695
    %v7538 = vpow.pop %v7537
    %v7539 = vadd.f32 %v7538, 1.0
    %v7540 = vrcp.pop %v7539
    %v7541 = vmul.f32 1.0, %v7540
    %v7543 = vrot.slane %v7413, 6
    %v7545 = vmul.f32 %v7534, %v7543
    %v7546 = vmul.f32 %v7528, %v7535
    %v7547 = vadd.f32 %v7545, %v7546
    %v7548 = vtanh.pop %v7547
    %v7549 = vmul.f32 %v7541, %v7548
    %7550 = vst [vmem:[#allocation2 + $0x8] sm:$0xc0] %v7549
    %v7551 = vld [vmem:[#allocation2] sm:$0xff]
    %v7552 = vld [vmem:[#allocation2 + $0x8] sm:$0xff]
    %v7553 = vpack.c.bf16 %v7552, %v7551
    %s7554 = scalar_lea.vmem %s5, 256
    %v7555 = vld [vmem:[%s7554] sm:$0xff]
    %v7556 = vld [vmem:[%s7554 + $0x8] sm:$0xff]
    %v7557 = vld [vmem:[%s7554 + $0x10] sm:$0xff]
    %v7558 = vld [vmem:[%s7554 + $0x18] sm:$0xff]
    %v7559 = vld [vmem:[%s7554 + $0x20] sm:$0xff]
    %v7560 = vld [vmem:[%s7554 + $0x28] sm:$0xff]
    %v7561 = vld [vmem:[%s7554 + $0x30] sm:$0xff]
    %v7562 = vld [vmem:[%s7554 + $0x38] sm:$0xff]
    %v7563 = vld [vmem:[%s7554 + $0x40] sm:$0xff]
    %v7564 = vld [vmem:[%s7554 + $0x48] sm:$0xff]
    %v7565 = vld [vmem:[%s7554 + $0x50] sm:$0xff]
    %v7566 = vld [vmem:[%s7554 + $0x58] sm:$0xff]
    %v7567 = vld [vmem:[%s7554 + $0x60] sm:$0xff]
    %v7568 = vld [vmem:[%s7554 + $0x68] sm:$0xff]
    %v7569 = vld [vmem:[%s7554 + $0x70] sm:$0xff]
    %v7570 = vld [vmem:[%s7554 + $0x78] sm:$0xff]
    %v7571 = vld [vmem:[%s7554 + $0x80] sm:$0xff]
    %v7572 = vld [vmem:[%s7554 + $0x88] sm:$0xff]
    %v7573 = vld [vmem:[%s7554 + $0x90] sm:$0xff]
    %v7574 = vld [vmem:[%s7554 + $0x98] sm:$0xff]
    %v7575 = vld [vmem:[%s7554 + $0xa0] sm:$0xff]
    %v7576 = vld [vmem:[%s7554 + $0xa8] sm:$0xff]
    %v7577 = vld [vmem:[%s7554 + $0xb0] sm:$0xff]
    %v7578 = vld [vmem:[%s7554 + $0xb8] sm:$0xff]
    %v7579 = vld [vmem:[%s7554 + $0xc0] sm:$0xff]
    %v7580 = vld [vmem:[%s7554 + $0xc8] sm:$0xff]
    %v7581 = vld [vmem:[%s7554 + $0xd0] sm:$0xff]
    %v7582 = vld [vmem:[%s7554 + $0xd8] sm:$0xff]
    %v7583 = vld [vmem:[%s7554 + $0xe0] sm:$0xff]
    %v7584 = vld [vmem:[%s7554 + $0xe8] sm:$0xff]
    %v7585 = vld [vmem:[%s7554 + $0xf0] sm:$0xff]
    %v7586 = vld [vmem:[%s7554 + $0xf8] sm:$0xff]
    %s7587 = scalar_lea.vmem %s7, 4
    %v7588 = vld [vmem:[%s7587] sm:$0xf]
    %v7590 = vlaneseq
    %v7591 = vshrl.u32 %v7590, 7
    %v7592 = vsub.s32 0, %v7591
    %v7593 = vrot.slane %v7588, %v7592
    %v7594 = vlaneseq
    %v7595 = vshrl.u32 %v7594, 7
    %v7596 = vsub.s32 1, %v7595
    %v7597 = vrot.slane %v7588, %v7596
    %v7598 = vlaneseq
    %v7599 = vshrl.u32 %v7598, 7
    %v7600 = vsub.s32 2, %v7599
    %v7601 = vrot.slane %v7588, %v7600
    %v7602 = vlaneseq
    %v7603 = vshrl.u32 %v7602, 7
    %v7604 = vsub.s32 3, %v7603
    %v7605 = vrot.slane %v7588, %v7604
    %v7642 = vunpack.c.l.b16 %v7555
    %v7643 = vunpack.c.h.b16 %v7555
    %v7644 = vunpack.c.l.b16 %v7556
    %v7645 = vunpack.c.h.b16 %v7556
    %v7646 = vunpack.c.l.b16 %v7557
    %v7647 = vunpack.c.h.b16 %v7557
    %v7648 = vunpack.c.l.b16 %v7558
    %v7649 = vunpack.c.h.b16 %v7558
    %v7650 = vunpack.c.l.b16 %v7559
    %v7651 = vunpack.c.h.b16 %v7559
    %v7652 = vunpack.c.l.b16 %v7560
    %v7653 = vunpack.c.h.b16 %v7560
    %v7654 = vunpack.c.l.b16 %v7561
    %v7655 = vunpack.c.h.b16 %v7561
    %v7656 = vunpack.c.l.b16 %v7562
    %v7657 = vunpack.c.h.b16 %v7562
    %v7658 = vunpack.c.l.b16 %v7563
    %v7659 = vunpack.c.h.b16 %v7563
    %v7660 = vunpack.c.l.b16 %v7564
    %v7661 = vunpack.c.h.b16 %v7564
    %v7662 = vunpack.c.l.b16 %v7565
    %v7663 = vunpack.c.h.b16 %v7565
    %v7664 = vunpack.c.l.b16 %v7566
    %v7665 = vunpack.c.h.b16 %v7566
    %v7666 = vunpack.c.l.b16 %v7567
    %v7667 = vunpack.c.h.b16 %v7567
    %v7668 = vunpack.c.l.b16 %v7568
    %v7669 = vunpack.c.h.b16 %v7568
    %v7670 = vunpack.c.l.b16 %v7569
    %v7671 = vunpack.c.h.b16 %v7569
    %v7672 = vunpack.c.l.b16 %v7570
    %v7673 = vunpack.c.h.b16 %v7570
    %v7674 = vunpack.c.l.b16 %v7571
    %v7675 = vunpack.c.h.b16 %v7571
    %v7676 = vunpack.c.l.b16 %v7572
    %v7677 = vunpack.c.h.b16 %v7572
    %v7678 = vunpack.c.l.b16 %v7573
    %v7679 = vunpack.c.h.b16 %v7573
    %v7680 = vunpack.c.l.b16 %v7574
    %v7681 = vunpack.c.h.b16 %v7574
    %v7682 = vunpack.c.l.b16 %v7575
    %v7683 = vunpack.c.h.b16 %v7575
    %v7684 = vunpack.c.l.b16 %v7576
    %v7685 = vunpack.c.h.b16 %v7576
    %v7686 = vunpack.c.l.b16 %v7577
    %v7687 = vunpack.c.h.b16 %v7577
    %v7688 = vunpack.c.l.b16 %v7578
    %v7689 = vunpack.c.h.b16 %v7578
    %v7690 = vunpack.c.l.b16 %v7579
    %v7691 = vunpack.c.h.b16 %v7579
    %v7692 = vunpack.c.l.b16 %v7580
    %v7693 = vunpack.c.h.b16 %v7580
    %v7694 = vunpack.c.l.b16 %v7581
    %v7695 = vunpack.c.h.b16 %v7581
    %v7696 = vunpack.c.l.b16 %v7582
    %v7697 = vunpack.c.h.b16 %v7582
    %v7698 = vunpack.c.l.b16 %v7583
    %v7699 = vunpack.c.h.b16 %v7583
    %v7700 = vunpack.c.l.b16 %v7584
    %v7701 = vunpack.c.h.b16 %v7584
    %v7702 = vunpack.c.l.b16 %v7585
    %v7703 = vunpack.c.h.b16 %v7585
    %v7704 = vunpack.c.l.b16 %v7586
    %v7705 = vunpack.c.h.b16 %v7586
    %v7706 = vpack.c.b16 %v7646, %v7642
    %v7707 = vpack.c.b16 %v7647, %v7643
    %v7708 = vpack.c.b16 %v7648, %v7644
    %v7709 = vpack.c.b16 %v7649, %v7645
    %v7710 = vpack.c.b16 %v7654, %v7650
    %v7711 = vpack.c.b16 %v7655, %v7651
    %v7712 = vpack.c.b16 %v7656, %v7652
    %v7713 = vpack.c.b16 %v7657, %v7653
    %v7714 = vpack.c.b16 %v7662, %v7658
    %v7715 = vpack.c.b16 %v7663, %v7659
    %v7716 = vpack.c.b16 %v7664, %v7660
    %v7717 = vpack.c.b16 %v7665, %v7661
    %v7718 = vpack.c.b16 %v7670, %v7666
    %v7719 = vpack.c.b16 %v7671, %v7667
    %v7720 = vpack.c.b16 %v7672, %v7668
    %v7721 = vpack.c.b16 %v7673, %v7669
    %v7722 = vpack.c.b16 %v7678, %v7674
    %v7723 = vpack.c.b16 %v7679, %v7675
    %v7724 = vpack.c.b16 %v7680, %v7676
    %v7725 = vpack.c.b16 %v7681, %v7677
    %v7726 = vpack.c.b16 %v7686, %v7682
    %v7727 = vpack.c.b16 %v7687, %v7683
    %v7728 = vpack.c.b16 %v7688, %v7684
    %v7729 = vpack.c.b16 %v7689, %v7685
    %v7730 = vpack.c.b16 %v7694, %v7690
    %v7731 = vpack.c.b16 %v7695, %v7691
    %v7732 = vpack.c.b16 %v7696, %v7692
    %v7733 = vpack.c.b16 %v7697, %v7693
    %v7734 = vpack.c.b16 %v7702, %v7698
    %v7735 = vpack.c.b16 %v7703, %v7699
    %v7736 = vpack.c.b16 %v7704, %v7700
    %v7737 = vpack.c.b16 %v7705, %v7701
    %7770 = vmatprep.subr.bf16.mxu0 %v7707
    %7771 = vmatpush1.bf16.msra.mxu0 %v7706
    %7772 = vmatprep.subr.bf16.mxu0 %v7711
    %7773 = vmatpush1.bf16.msra.mxu0 %v7710
    %7774 = vmatprep.subr.bf16.mxu0 %v7715
    %7775 = vmatpush1.bf16.msra.mxu0 %v7714
    %7776 = vmatprep.subr.bf16.mxu0 %v7719
    %7777 = vmatpush1.bf16.msra.mxu0 %v7718
    %7778 = vmatprep.subr.bf16.mxu0 %v7723
    %7779 = vmatpush1.bf16.msra.mxu0 %v7722
    %7780 = vmatprep.subr.bf16.mxu0 %v7727
    %7781 = vmatpush1.bf16.msra.mxu0 %v7726
    %7782 = vmatprep.subr.bf16.mxu0 %v7731
    %7783 = vmatpush1.bf16.msra.mxu0 %v7730
    %7784 = vmatprep.subr.bf16.mxu0 %v7735
    %7785 = vmatpush1.bf16.msra.mxu0 %v7734
    %7786 = vmatprep.subr.bf16.mxu0 0
    %7787 = vmatpush1.bf16.msra.mxu0 0
    %7788 = vmatprep.subr.bf16.mxu0 0
    %7789 = vmatpush1.bf16.msra.mxu0 0
    %7790 = vmatprep.subr.bf16.mxu0 0
    %7791 = vmatpush1.bf16.msra.mxu0 0
    %7792 = vmatprep.subr.bf16.mxu0 0
    %7793 = vmatpush1.bf16.msra.mxu0 0
    %7794 = vmatprep.subr.bf16.mxu0 0
    %7795 = vmatpush1.bf16.msra.mxu0 0
    %7796 = vmatprep.subr.bf16.mxu0 0
    %7797 = vmatpush1.bf16.msra.mxu0 0
    %7798 = vmatprep.subr.bf16.mxu0 0
    %7799 = vmatpush1.bf16.msra.mxu0 0
    %7800 = vmatprep.subr.bf16.mxu0 0
    %7801 = vmatpush1.bf16.msra.mxu0 0
    %7802 = vmatprep.mubr.bf16.mxu0 0
    %7803 = vmatmul.mubr.bf16.gmra.mrb[0].mxu0 %v7553
    %v7804 = vpop.f32.mrb[0].mxu0
    %v7805 = vadd.f32 %v7593, %v7804
    %v7806 = vpop.f32.mrb[0].mxu0
    %v7807 = vadd.f32 %v7597, %v7806
    %v7808 = vpop.f32.mrb[0].mxu0
    %v7809 = vadd.f32 %v7593, %v7808
    %v7810 = vpop.f32.mrb[0].mxu0
    %v7811 = vadd.f32 %v7597, %v7810
    %7812 = vdwg.mxu0
    %7813 = vmatprep.subr.bf16.mxu0 %v7709
    %7814 = vmatpush1.bf16.msra.mxu0 %v7708
    %7815 = vmatprep.subr.bf16.mxu0 %v7713
    %7816 = vmatpush1.bf16.msra.mxu0 %v7712
    %7817 = vmatprep.subr.bf16.mxu0 %v7717
    %7818 = vmatpush1.bf16.msra.mxu0 %v7716
    %7819 = vmatprep.subr.bf16.mxu0 %v7721
    %7820 = vmatpush1.bf16.msra.mxu0 %v7720
    %7821 = vmatprep.subr.bf16.mxu0 %v7725
    %7822 = vmatpush1.bf16.msra.mxu0 %v7724
    %7823 = vmatprep.subr.bf16.mxu0 %v7729
    %7824 = vmatpush1.bf16.msra.mxu0 %v7728
    %7825 = vmatprep.subr.bf16.mxu0 %v7733
    %7826 = vmatpush1.bf16.msra.mxu0 %v7732
    %7827 = vmatprep.subr.bf16.mxu0 %v7737
    %7828 = vmatpush1.bf16.msra.mxu0 %v7736
    %7829 = vmatprep.subr.bf16.mxu0 0
    %7830 = vmatpush1.bf16.msra.mxu0 0
    %7831 = vmatprep.subr.bf16.mxu0 0
    %7832 = vmatpush1.bf16.msra.mxu0 0
    %7833 = vmatprep.subr.bf16.mxu0 0
    %7834 = vmatpush1.bf16.msra.mxu0 0
    %7835 = vmatprep.subr.bf16.mxu0 0
    %7836 = vmatpush1.bf16.msra.mxu0 0
    %7837 = vmatprep.subr.bf16.mxu0 0
    %7838 = vmatpush1.bf16.msra.mxu0 0
    %7839 = vmatprep.subr.bf16.mxu0 0
    %7840 = vmatpush1.bf16.msra.mxu0 0
    %7841 = vmatprep.subr.bf16.mxu0 0
    %7842 = vmatpush1.bf16.msra.mxu0 0
    %7843 = vmatprep.subr.bf16.mxu0 0
    %7844 = vmatpush1.bf16.msra.mxu0 0
    %7845 = vmatprep.mubr.bf16.mxu0 0
    %7846 = vmatmul.mubr.bf16.gmra.mrb[0].mxu0 %v7553
    %v7847 = vpop.f32.mrb[0].mxu0
    %v7848 = vadd.f32 %v7601, %v7847
    %v7849 = vpop.f32.mrb[0].mxu0
    %v7850 = vadd.f32 %v7605, %v7849
    %v7851 = vpop.f32.mrb[0].mxu0
    %v7852 = vadd.f32 %v7601, %v7851
    %v7853 = vpop.f32.mrb[0].mxu0
    %v7854 = vadd.f32 %v7605, %v7853
    %7855 = vdwg.mxu0
    %7856 = vst [vmem:[#allocation3] sm:$0xff] %v7805
    %7857 = vst [vmem:[#allocation3 + $0x8] sm:$0xff] %v7807
    %7858 = vst [vmem:[#allocation3 + $0x10] sm:$0xff] %v7848
    %7859 = vst [vmem:[#allocation3 + $0x18] sm:$0xff] %v7850
    %7860 = vst [vmem:[#allocation3 + $0x20] sm:$0xff] %v7809
    %7861 = vst [vmem:[#allocation3 + $0x28] sm:$0xff] %v7811
    %7862 = vst [vmem:[#allocation3 + $0x30] sm:$0xff] %v7852
    %7863 = vst [vmem:[#allocation3 + $0x38] sm:$0xff] %v7854
    %s7864 = scalar_lea.vmem %s6, 256
    %v7865 = vld [vmem:[%s7864] sm:$0xff]
    %v7866 = vld [vmem:[%s7864 + $0x8] sm:$0xff]
    %v7867 = vld [vmem:[%s7864 + $0x10] sm:$0xff]
    %v7868 = vld [vmem:[%s7864 + $0x18] sm:$0xff]
    %v7869 = vld [vmem:[%s7864 + $0x20] sm:$0xff]
    %v7870 = vld [vmem:[%s7864 + $0x28] sm:$0xff]
    %v7871 = vld [vmem:[%s7864 + $0x30] sm:$0xff]
    %v7872 = vld [vmem:[%s7864 + $0x38] sm:$0xff]
    %v7873 = vld [vmem:[%s7864 + $0x40] sm:$0xff]
    %v7874 = vld [vmem:[%s7864 + $0x48] sm:$0xff]
    %v7875 = vld [vmem:[%s7864 + $0x50] sm:$0xff]
    %v7876 = vld [vmem:[%s7864 + $0x58] sm:$0xff]
    %v7877 = vld [vmem:[%s7864 + $0x60] sm:$0xff]
    %v7878 = vld [vmem:[%s7864 + $0x68] sm:$0xff]
    %v7879 = vld [vmem:[%s7864 + $0x70] sm:$0xff]
    %v7880 = vld [vmem:[%s7864 + $0x78] sm:$0xff]
    %v7881 = vld [vmem:[%s7864 + $0x80] sm:$0xff]
    %v7882 = vld [vmem:[%s7864 + $0x88] sm:$0xff]
    %v7883 = vld [vmem:[%s7864 + $0x90] sm:$0xff]
    %v7884 = vld [vmem:[%s7864 + $0x98] sm:$0xff]
    %v7885 = vld [vmem:[%s7864 + $0xa0] sm:$0xff]
    %v7886 = vld [vmem:[%s7864 + $0xa8] sm:$0xff]
    %v7887 = vld [vmem:[%s7864 + $0xb0] sm:$0xff]
    %v7888 = vld [vmem:[%s7864 + $0xb8] sm:$0xff]
    %v7889 = vld [vmem:[%s7864 + $0xc0] sm:$0xff]
    %v7890 = vld [vmem:[%s7864 + $0xc8] sm:$0xff]
    %v7891 = vld [vmem:[%s7864 + $0xd0] sm:$0xff]
    %v7892 = vld [vmem:[%s7864 + $0xd8] sm:$0xff]
    %v7893 = vld [vmem:[%s7864 + $0xe0] sm:$0xff]
    %v7894 = vld [vmem:[%s7864 + $0xe8] sm:$0xff]
    %v7895 = vld [vmem:[%s7864 + $0xf0] sm:$0xff]
    %v7896 = vld [vmem:[%s7864 + $0xf8] sm:$0xff]
    %v7897 = vld [vmem:[#allocation3] sm:$0x3]
    %v7898 = vld [vmem:[#allocation3 + $0x8] sm:$0x3]
    %v7899 = vld [vmem:[#allocation3 + $0x10] sm:$0x3]
    %v7900 = vld [vmem:[#allocation3 + $0x18] sm:$0x3]
    %v7933 = vunpack.c.l.b16 %v7865
    %v7934 = vunpack.c.h.b16 %v7865
    %v7935 = vunpack.c.l.b16 %v7866
    %v7936 = vunpack.c.h.b16 %v7866
    %v7937 = vunpack.c.l.b16 %v7867
    %v7938 = vunpack.c.h.b16 %v7867
    %v7939 = vunpack.c.l.b16 %v7868
    %v7940 = vunpack.c.h.b16 %v7868
    %v7941 = vunpack.c.l.b16 %v7869
    %v7942 = vunpack.c.h.b16 %v7869
    %v7943 = vunpack.c.l.b16 %v7870
    %v7944 = vunpack.c.h.b16 %v7870
    %v7945 = vunpack.c.l.b16 %v7871
    %v7946 = vunpack.c.h.b16 %v7871
    %v7947 = vunpack.c.l.b16 %v7872
    %v7948 = vunpack.c.h.b16 %v7872
    %v7949 = vunpack.c.l.b16 %v7873
    %v7950 = vunpack.c.h.b16 %v7873
    %v7951 = vunpack.c.l.b16 %v7874
    %v7952 = vunpack.c.h.b16 %v7874
    %v7953 = vunpack.c.l.b16 %v7875
    %v7954 = vunpack.c.h.b16 %v7875
    %v7955 = vunpack.c.l.b16 %v7876
    %v7956 = vunpack.c.h.b16 %v7876
    %v7957 = vunpack.c.l.b16 %v7877
    %v7958 = vunpack.c.h.b16 %v7877
    %v7959 = vunpack.c.l.b16 %v7878
    %v7960 = vunpack.c.h.b16 %v7878
    %v7961 = vunpack.c.l.b16 %v7879
    %v7962 = vunpack.c.h.b16 %v7879
    %v7963 = vunpack.c.l.b16 %v7880
    %v7964 = vunpack.c.h.b16 %v7880
    %v7965 = vunpack.c.l.b16 %v7881
    %v7966 = vunpack.c.h.b16 %v7881
    %v7967 = vunpack.c.l.b16 %v7882
    %v7968 = vunpack.c.h.b16 %v7882
    %v7969 = vunpack.c.l.b16 %v7883
    %v7970 = vunpack.c.h.b16 %v7883
    %v7971 = vunpack.c.l.b16 %v7884
    %v7972 = vunpack.c.h.b16 %v7884
    %v7973 = vunpack.c.l.b16 %v7885
    %v7974 = vunpack.c.h.b16 %v7885
    %v7975 = vunpack.c.l.b16 %v7886
    %v7976 = vunpack.c.h.b16 %v7886
    %v7977 = vunpack.c.l.b16 %v7887
    %v7978 = vunpack.c.h.b16 %v7887
    %v7979 = vunpack.c.l.b16 %v7888
    %v7980 = vunpack.c.h.b16 %v7888
    %v7981 = vunpack.c.l.b16 %v7889
    %v7982 = vunpack.c.h.b16 %v7889
    %v7983 = vunpack.c.l.b16 %v7890
    %v7984 = vunpack.c.h.b16 %v7890
    %v7985 = vunpack.c.l.b16 %v7891
    %v7986 = vunpack.c.h.b16 %v7891
    %v7987 = vunpack.c.l.b16 %v7892
    %v7988 = vunpack.c.h.b16 %v7892
    %v7989 = vunpack.c.l.b16 %v7893
    %v7990 = vunpack.c.h.b16 %v7893
    %v7991 = vunpack.c.l.b16 %v7894
    %v7992 = vunpack.c.h.b16 %v7894
    %v7993 = vunpack.c.l.b16 %v7895
    %v7994 = vunpack.c.h.b16 %v7895
    %v7995 = vunpack.c.l.b16 %v7896
    %v7996 = vunpack.c.h.b16 %v7896
    %v7997 = vpack.c.b16 %v7937, %v7933
    %v7998 = vpack.c.b16 %v7938, %v7934
    %v7999 = vpack.c.b16 %v7939, %v7935
    %v8000 = vpack.c.b16 %v7940, %v7936
    %v8001 = vpack.c.b16 %v7945, %v7941
    %v8002 = vpack.c.b16 %v7946, %v7942
    %v8003 = vpack.c.b16 %v7947, %v7943
    %v8004 = vpack.c.b16 %v7948, %v7944
    %v8005 = vpack.c.b16 %v7953, %v7949
    %v8006 = vpack.c.b16 %v7954, %v7950
    %v8007 = vpack.c.b16 %v7955, %v7951
    %v8008 = vpack.c.b16 %v7956, %v7952
    %v8009 = vpack.c.b16 %v7961, %v7957
    %v8010 = vpack.c.b16 %v7962, %v7958
    %v8011 = vpack.c.b16 %v7963, %v7959
    %v8012 = vpack.c.b16 %v7964, %v7960
    %v8013 = vpack.c.b16 %v7969, %v7965
    %v8014 = vpack.c.b16 %v7970, %v7966
    %v8015 = vpack.c.b16 %v7971, %v7967
    %v8016 = vpack.c.b16 %v7972, %v7968
    %v8017 = vpack.c.b16 %v7977, %v7973
    %v8018 = vpack.c.b16 %v7978, %v7974
    %v8019 = vpack.c.b16 %v7979, %v7975
    %v8020 = vpack.c.b16 %v7980, %v7976
    %v8021 = vpack.c.b16 %v7985, %v7981
    %v8022 = vpack.c.b16 %v7986, %v7982
    %v8023 = vpack.c.b16 %v7987, %v7983
    %v8024 = vpack.c.b16 %v7988, %v7984
    %v8025 = vpack.c.b16 %v7993, %v7989
    %v8026 = vpack.c.b16 %v7994, %v7990
    %v8027 = vpack.c.b16 %v7995, %v7991
    %v8028 = vpack.c.b16 %v7996, %v7992
    %8061 = vmatprep.subr.bf16.mxu0 %v7998
    %8062 = vmatpush1.bf16.msra.mxu0 %v7997
    %8063 = vmatprep.subr.bf16.mxu0 %v8002
    %8064 = vmatpush1.bf16.msra.mxu0 %v8001
    %8065 = vmatprep.subr.bf16.mxu0 %v8006
    %8066 = vmatpush1.bf16.msra.mxu0 %v8005
    %8067 = vmatprep.subr.bf16.mxu0 %v8010
    %8068 = vmatpush1.bf16.msra.mxu0 %v8009
    %8069 = vmatprep.subr.bf16.mxu0 %v8014
    %8070 = vmatpush1.bf16.msra.mxu0 %v8013
    %8071 = vmatprep.subr.bf16.mxu0 %v8018
    %8072 = vmatpush1.bf16.msra.mxu0 %v8017
    %8073 = vmatprep.subr.bf16.mxu0 %v8022
    %8074 = vmatpush1.bf16.msra.mxu0 %v8021
    %8075 = vmatprep.subr.bf16.mxu0 %v8026
    %8076 = vmatpush1.bf16.msra.mxu0 %v8025
    %8077 = vmatprep.subr.bf16.mxu0 0
    %8078 = vmatpush1.bf16.msra.mxu0 0
    %8079 = vmatprep.subr.bf16.mxu0 0
    %8080 = vmatpush1.bf16.msra.mxu0 0
    %8081 = vmatprep.subr.bf16.mxu0 0
    %8082 = vmatpush1.bf16.msra.mxu0 0
    %8083 = vmatprep.subr.bf16.mxu0 0
    %8084 = vmatpush1.bf16.msra.mxu0 0
    %8085 = vmatprep.subr.bf16.mxu0 0
    %8086 = vmatpush1.bf16.msra.mxu0 0
    %8087 = vmatprep.subr.bf16.mxu0 0
    %8088 = vmatpush1.bf16.msra.mxu0 0
    %8089 = vmatprep.subr.bf16.mxu0 0
    %8090 = vmatpush1.bf16.msra.mxu0 0
    %8091 = vmatprep.subr.bf16.mxu0 0
    %8092 = vmatpush1.bf16.msra.mxu0 0
    %8093 = vmatprep.mubr.bf16.mxu0 0
    %8094 = vmatmul.mubr.bf16.gmra.mrb[0].mxu0 0
    %v8095 = vpop.f32.mrb[0].mxu0
    %v8096 = vadd.f32 0.0, %v8095
    %v8097 = vpop.f32.mrb[0].mxu0
    %v8098 = vadd.f32 0.0, %v8097
    %v8099 = vpop.f32.mrb[0].mxu0
    %v8100 = vpop.f32.mrb[0].mxu0
    %8101 = vdwg.mxu0
    %8102 = vmatprep.subr.bf16.mxu0 %v8000
    %8103 = vmatpush1.bf16.msra.mxu0 %v7999
    %8104 = vmatprep.subr.bf16.mxu0 %v8004
    %8105 = vmatpush1.bf16.msra.mxu0 %v8003
    %8106 = vmatprep.subr.bf16.mxu0 %v8008
    %8107 = vmatpush1.bf16.msra.mxu0 %v8007
    %8108 = vmatprep.subr.bf16.mxu0 %v8012
    %8109 = vmatpush1.bf16.msra.mxu0 %v8011
    %8110 = vmatprep.subr.bf16.mxu0 %v8016
    %8111 = vmatpush1.bf16.msra.mxu0 %v8015
    %8112 = vmatprep.subr.bf16.mxu0 %v8020
    %8113 = vmatpush1.bf16.msra.mxu0 %v8019
    %8114 = vmatprep.subr.bf16.mxu0 %v8024
    %8115 = vmatpush1.bf16.msra.mxu0 %v8023
    %8116 = vmatprep.subr.bf16.mxu0 %v8028
    %8117 = vmatpush1.bf16.msra.mxu0 %v8027
    %8118 = vmatprep.subr.bf16.mxu0 0
    %8119 = vmatpush1.bf16.msra.mxu0 0
    %8120 = vmatprep.subr.bf16.mxu0 0
    %8121 = vmatpush1.bf16.msra.mxu0 0
    %8122 = vmatprep.subr.bf16.mxu0 0
    %8123 = vmatpush1.bf16.msra.mxu0 0
    %8124 = vmatprep.subr.bf16.mxu0 0
    %8125 = vmatpush1.bf16.msra.mxu0 0
    %8126 = vmatprep.subr.bf16.mxu0 0
    %8127 = vmatpush1.bf16.msra.mxu0 0
    %8128 = vmatprep.subr.bf16.mxu0 0
    %8129 = vmatpush1.bf16.msra.mxu0 0
    %8130 = vmatprep.subr.bf16.mxu0 0
    %8131 = vmatpush1.bf16.msra.mxu0 0
    %8132 = vmatprep.subr.bf16.mxu0 0
    %8133 = vmatpush1.bf16.msra.mxu0 0
    %8134 = vmatprep.mubr.bf16.mxu0 0
    %8135 = vmatmul.mubr.bf16.gmra.mrb[0].mxu0 0
    %v8136 = vpop.f32.mrb[0].mxu0
    %v8137 = vadd.f32 0.0, %v8136
    %v8138 = vpop.f32.mrb[0].mxu0
    %v8139 = vadd.f32 0.0, %v8138
    %v8140 = vpop.f32.mrb[0].mxu0
    %v8141 = vpop.f32.mrb[0].mxu0
    %8142 = vdwg.mxu0
    %v8143 = vadd.f32 %v7897, %v8096
    %v8144 = vadd.f32 %v7898, %v8098
    %v8145 = vadd.f32 %v7899, %v8137
    %v8146 = vadd.f32 %v7900, %v8139
    %v8147 = vxor.u32 %v8143, 2147483648
    %v8148 = vmul.f32 %v8147, 1.442695
    %v8149 = vpow.pop %v8148
    %v8150 = vadd.f32 %v8149, 1.0
    %v8151 = vrcp.pop %v8150
    %v8152 = vmul.f32 1.0, %v8151
    %v8153 = vxor.u32 %v8144, 2147483648
    %v8154 = vmul.f32 %v8153, 1.442695
    %v8155 = vpow.pop %v8154
    %v8156 = vadd.f32 %v8155, 1.0
    %v8157 = vrcp.pop %v8156
    %v8158 = vmul.f32 1.0, %v8157
    %v8159 = vtanh.pop %v8145
    %v8160 = vxor.u32 %v8146, 2147483648
    %v8161 = vmul.f32 %v8160, 1.442695
    %v8162 = vpow.pop %v8161
    %v8163 = vadd.f32 %v8162, 1.0
    %v8164 = vrcp.pop %v8163
    %v8165 = vmul.f32 1.0, %v8164
    %v8166 = vmul.f32 %v8158, 0.0
    %v8167 = vmul.f32 %v8152, %v8159
    %v8168 = vadd.f32 %v8166, %v8167
    %v8169 = vtanh.pop %v8168
    %v8170 = vmul.f32 %v8165, %v8169
    %v8171 = vld [vmem:[#allocation3] sm:$0xc]
    %v8172 = vld [vmem:[#allocation3 + $0x8] sm:$0xc]
    %v8173 = vld [vmem:[#allocation3 + $0x10] sm:$0xc]
    %v8174 = vld [vmem:[#allocation3 + $0x18] sm:$0xc]
    %v8175 = vpack.c.bf16 %v8170, %v8170
    %8176 = vmatprep.subr.bf16.mxu0 %v7998
    %8177 = vmatpush1.bf16.msra.mxu0 %v7997
    %8178 = vmatprep.subr.bf16.mxu0 %v8002
    %8179 = vmatpush1.bf16.msra.mxu0 %v8001
    %8180 = vmatprep.subr.bf16.mxu0 %v8006
    %8181 = vmatpush1.bf16.msra.mxu0 %v8005
    %8182 = vmatprep.subr.bf16.mxu0 %v8010
    %8183 = vmatpush1.bf16.msra.mxu0 %v8009
    %8184 = vmatprep.subr.bf16.mxu0 %v8014
    %8185 = vmatpush1.bf16.msra.mxu0 %v8013
    %8186 = vmatprep.subr.bf16.mxu0 %v8018
    %8187 = vmatpush1.bf16.msra.mxu0 %v8017
    %8188 = vmatprep.subr.bf16.mxu0 %v8022
    %8189 = vmatpush1.bf16.msra.mxu0 %v8021
    %8190 = vmatprep.subr.bf16.mxu0 %v8026
    %8191 = vmatpush1.bf16.msra.mxu0 %v8025
    %8192 = vmatprep.subr.bf16.mxu0 0
    %8193 = vmatpush1.bf16.msra.mxu0 0
    %8194 = vmatprep.subr.bf16.mxu0 0
    %8195 = vmatpush1.bf16.msra.mxu0 0
    %8196 = vmatprep.subr.bf16.mxu0 0
    %8197 = vmatpush1.bf16.msra.mxu0 0
    %8198 = vmatprep.subr.bf16.mxu0 0
    %8199 = vmatpush1.bf16.msra.mxu0 0
    %8200 = vmatprep.subr.bf16.mxu0 0
    %8201 = vmatpush1.bf16.msra.mxu0 0
    %8202 = vmatprep.subr.bf16.mxu0 0
    %8203 = vmatpush1.bf16.msra.mxu0 0
    %8204 = vmatprep.subr.bf16.mxu0 0
    %8205 = vmatpush1.bf16.msra.mxu0 0
    %8206 = vmatprep.subr.bf16.mxu0 0
    %8207 = vmatpush1.bf16.msra.mxu0 0
    %8208 = vmatprep.mubr.bf16.mxu0 0
    %8209 = vmatmul.mubr.bf16.gmra.mrb[0].mxu0 %v8175
    %v8210 = vpop.f32.mrb[0].mxu0
    %v8211 = vadd.f32 0.0, %v8210
    %v8212 = vpop.f32.mrb[0].mxu0
    %v8213 = vadd.f32 0.0, %v8212
    %v8214 = vpop.f32.mrb[0].mxu0
    %v8215 = vpop.f32.mrb[0].mxu0
    %8216 = vdwg.mxu0
    %8217 = vmatprep.subr.bf16.mxu0 %v8000
    %8218 = vmatpush1.bf16.msra.mxu0 %v7999
    %8219 = vmatprep.subr.bf16.mxu0 %v8004
    %8220 = vmatpush1.bf16.msra.mxu0 %v8003
    %8221 = vmatprep.subr.bf16.mxu0 %v8008
    %8222 = vmatpush1.bf16.msra.mxu0 %v8007
    %8223 = vmatprep.subr.bf16.mxu0 %v8012
    %8224 = vmatpush1.bf16.msra.mxu0 %v8011
    %8225 = vmatprep.subr.bf16.mxu0 %v8016
    %8226 = vmatpush1.bf16.msra.mxu0 %v8015
    %8227 = vmatprep.subr.bf16.mxu0 %v8020
    %8228 = vmatpush1.bf16.msra.mxu0 %v8019
    %8229 = vmatprep.subr.bf16.mxu0 %v8024
    %8230 = vmatpush1.bf16.msra.mxu0 %v8023
    %8231 = vmatprep.subr.bf16.mxu0 %v8028
    %8232 = vmatpush1.bf16.msra.mxu0 %v8027
    %8233 = vmatprep.subr.bf16.mxu0 0
    %8234 = vmatpush1.bf16.msra.mxu0 0
    %8235 = vmatprep.subr.bf16.mxu0 0
    %8236 = vmatpush1.bf16.msra.mxu0 0
    %8237 = vmatprep.subr.bf16.mxu0 0
    %8238 = vmatpush1.bf16.msra.mxu0 0
    %8239 = vmatprep.subr.bf16.mxu0 0
    %8240 = vmatpush1.bf16.msra.mxu0 0
    %8241 = vmatprep.subr.bf16.mxu0 0
    %8242 = vmatpush1.bf16.msra.mxu0 0
    %8243 = vmatprep.subr.bf16.mxu0 0
    %8244 = vmatpush1.bf16.msra.mxu0 0
    %8245 = vmatprep.subr.bf16.mxu0 0
    %8246 = vmatpush1.bf16.msra.mxu0 0
    %8247 = vmatprep.subr.bf16.mxu0 0
    %8248 = vmatpush1.bf16.msra.mxu0 0
    %8249 = vmatprep.mubr.bf16.mxu0 0
    %8250 = vmatmul.mubr.bf16.gmra.mrb[0].mxu0 %v8175
    %v8251 = vpop.f32.mrb[0].mxu0
    %v8252 = vadd.f32 0.0, %v8251
    %v8253 = vpop.f32.mrb[0].mxu0
    %v8254 = vadd.f32 0.0, %v8253
    %v8255 = vpop.f32.mrb[0].mxu0
    %v8256 = vpop.f32.mrb[0].mxu0
    %8257 = vdwg.mxu0
    %v8262 = vrot.slane %v8211, 6
    %v8263 = vrot.slane %v8213, 6
    %v8264 = vrot.slane %v8252, 6
    %v8265 = vrot.slane %v8254, 6
    %v8270 = vadd.f32 %v8171, %v8262
    %v8271 = vadd.f32 %v8172, %v8263
    %v8272 = vadd.f32 %v8173, %v8264
    %v8273 = vadd.f32 %v8174, %v8265
    %v8274 = vxor.u32 %v8270, 2147483648
    %v8275 = vmul.f32 %v8274, 1.442695
    %v8276 = vpow.pop %v8275
    %v8277 = vadd.f32 %v8276, 1.0
    %v8278 = vrcp.pop %v8277
    %v8279 = vmul.f32 1.0, %v8278
    %v8280 = vxor.u32 %v8271, 2147483648
    %v8281 = vmul.f32 %v8280, 1.442695
    %v8282 = vpow.pop %v8281
    %v8283 = vadd.f32 %v8282, 1.0
    %v8284 = vrcp.pop %v8283
    %v8285 = vmul.f32 1.0, %v8284
    %v8286 = vtanh.pop %v8272
    %v8287 = vxor.u32 %v8273, 2147483648
    %v8288 = vmul.f32 %v8287, 1.442695
    %v8289 = vpow.pop %v8288
    %v8290 = vadd.f32 %v8289, 1.0
    %v8291 = vrcp.pop %v8290
    %v8292 = vmul.f32 1.0, %v8291
    %v8294 = vrot.slane %v8168, 6
    %v8296 = vmul.f32 %v8285, %v8294
    %v8297 = vmul.f32 %v8279, %v8286
    %v8298 = vadd.f32 %v8296, %v8297
    %v8299 = vtanh.pop %v8298
    %v8300 = vmul.f32 %v8292, %v8299
    %v8301 = vld [vmem:[#allocation3] sm:$0x30]
    %v8302 = vld [vmem:[#allocation3 + $0x8] sm:$0x30]
    %v8303 = vld [vmem:[#allocation3 + $0x10] sm:$0x30]
    %v8304 = vld [vmem:[#allocation3 + $0x18] sm:$0x30]
    %v8305 = vpack.c.bf16 %v8300, %v8300
    %v8307 = vrot.slane %v8305, 1
    %8309 = vmatprep.subr.bf16.mxu0 %v7998
    %8310 = vmatpush1.bf16.msra.mxu0 %v7997
    %8311 = vmatprep.subr.bf16.mxu0 %v8002
    %8312 = vmatpush1.bf16.msra.mxu0 %v8001
    %8313 = vmatprep.subr.bf16.mxu0 %v8006
    %8314 = vmatpush1.bf16.msra.mxu0 %v8005
    %8315 = vmatprep.subr.bf16.mxu0 %v8010
    %8316 = vmatpush1.bf16.msra.mxu0 %v8009
    %8317 = vmatprep.subr.bf16.mxu0 %v8014
    %8318 = vmatpush1.bf16.msra.mxu0 %v8013
    %8319 = vmatprep.subr.bf16.mxu0 %v8018
    %8320 = vmatpush1.bf16.msra.mxu0 %v8017
    %8321 = vmatprep.subr.bf16.mxu0 %v8022
    %8322 = vmatpush1.bf16.msra.mxu0 %v8021
    %8323 = vmatprep.subr.bf16.mxu0 %v8026
    %8324 = vmatpush1.bf16.msra.mxu0 %v8025
    %8325 = vmatprep.subr.bf16.mxu0 0
    %8326 = vmatpush1.bf16.msra.mxu0 0
    %8327 = vmatprep.subr.bf16.mxu0 0
    %8328 = vmatpush1.bf16.msra.mxu0 0
    %8329 = vmatprep.subr.bf16.mxu0 0
    %8330 = vmatpush1.bf16.msra.mxu0 0
    %8331 = vmatprep.subr.bf16.mxu0 0
    %8332 = vmatpush1.bf16.msra.mxu0 0
    %8333 = vmatprep.subr.bf16.mxu0 0
    %8334 = vmatpush1.bf16.msra.mxu0 0
    %8335 = vmatprep.subr.bf16.mxu0 0
    %8336 = vmatpush1.bf16.msra.mxu0 0
    %8337 = vmatprep.subr.bf16.mxu0 0
    %8338 = vmatpush1.bf16.msra.mxu0 0
    %8339 = vmatprep.subr.bf16.mxu0 0
    %8340 = vmatpush1.bf16.msra.mxu0 0
    %8341 = vmatprep.mubr.bf16.mxu0 0
    %8342 = vmatmul.mubr.bf16.gmra.mrb[0].mxu0 %v8307
    %v8343 = vpop.f32.mrb[0].mxu0
    %v8344 = vadd.f32 0.0, %v8343
    %v8345 = vpop.f32.mrb[0].mxu0
    %v8346 = vadd.f32 0.0, %v8345
    %v8347 = vpop.f32.mrb[0].mxu0
    %v8348 = vpop.f32.mrb[0].mxu0
    %8349 = vdwg.mxu0
    %8350 = vmatprep.subr.bf16.mxu0 %v8000
    %8351 = vmatpush1.bf16.msra.mxu0 %v7999
    %8352 = vmatprep.subr.bf16.mxu0 %v8004
    %8353 = vmatpush1.bf16.msra.mxu0 %v8003
    %8354 = vmatprep.subr.bf16.mxu0 %v8008
    %8355 = vmatpush1.bf16.msra.mxu0 %v8007
    %8356 = vmatprep.subr.bf16.mxu0 %v8012
    %8357 = vmatpush1.bf16.msra.mxu0 %v8011
    %8358 = vmatprep.subr.bf16.mxu0 %v8016
    %8359 = vmatpush1.bf16.msra.mxu0 %v8015
    %8360 = vmatprep.subr.bf16.mxu0 %v8020
    %8361 = vmatpush1.bf16.msra.mxu0 %v8019
    %8362 = vmatprep.subr.bf16.mxu0 %v8024
    %8363 = vmatpush1.bf16.msra.mxu0 %v8023
    %8364 = vmatprep.subr.bf16.mxu0 %v8028
    %8365 = vmatpush1.bf16.msra.mxu0 %v8027
    %8366 = vmatprep.subr.bf16.mxu0 0
    %8367 = vmatpush1.bf16.msra.mxu0 0
    %8368 = vmatprep.subr.bf16.mxu0 0
    %8369 = vmatpush1.bf16.msra.mxu0 0
    %8370 = vmatprep.subr.bf16.mxu0 0
    %8371 = vmatpush1.bf16.msra.mxu0 0
    %8372 = vmatprep.subr.bf16.mxu0 0
    %8373 = vmatpush1.bf16.msra.mxu0 0
    %8374 = vmatprep.subr.bf16.mxu0 0
    %8375 = vmatpush1.bf16.msra.mxu0 0
    %8376 = vmatprep.subr.bf16.mxu0 0
    %8377 = vmatpush1.bf16.msra.mxu0 0
    %8378 = vmatprep.subr.bf16.mxu0 0
    %8379 = vmatpush1.bf16.msra.mxu0 0
    %8380 = vmatprep.subr.bf16.mxu0 0
    %8381 = vmatpush1.bf16.msra.mxu0 0
    %8382 = vmatprep.mubr.bf16.mxu0 0
    %8383 = vmatmul.mubr.bf16.gmra.mrb[0].mxu0 %v8307
    %v8384 = vpop.f32.mrb[0].mxu0
    %v8385 = vadd.f32 0.0, %v8384
    %v8386 = vpop.f32.mrb[0].mxu0
    %v8387 = vadd.f32 0.0, %v8386
    %v8388 = vpop.f32.mrb[0].mxu0
    %v8389 = vpop.f32.mrb[0].mxu0
    %8390 = vdwg.mxu0
    %v8395 = vrot.slane %v8344, 4
    %v8396 = vrot.slane %v8346, 4
    %v8397 = vrot.slane %v8385, 4
    %v8398 = vrot.slane %v8387, 4
    %v8403 = vadd.f32 %v8301, %v8395
    %v8404 = vadd.f32 %v8302, %v8396
    %v8405 = vadd.f32 %v8303, %v8397
    %v8406 = vadd.f32 %v8304, %v8398
    %v8407 = vxor.u32 %v8403, 2147483648
    %v8408 = vmul.f32 %v8407, 1.442695
    %v8409 = vpow.pop %v8408
    %v8410 = vadd.f32 %v8409, 1.0
    %v8411 = vrcp.pop %v8410
    %v8412 = vmul.f32 1.0, %v8411
    %v8413 = vxor.u32 %v8404, 2147483648
    %v8414 = vmul.f32 %v8413, 1.442695
    %v8415 = vpow.pop %v8414
    %v8416 = vadd.f32 %v8415, 1.0
    %v8417 = vrcp.pop %v8416
    %v8418 = vmul.f32 1.0, %v8417
    %v8419 = vtanh.pop %v8405
    %v8420 = vxor.u32 %v8406, 2147483648
    %v8421 = vmul.f32 %v8420, 1.442695
    %v8422 = vpow.pop %v8421
    %v8423 = vadd.f32 %v8422, 1.0
    %v8424 = vrcp.pop %v8423
    %v8425 = vmul.f32 1.0, %v8424
    %v8427 = vrot.slane %v8298, 6
    %v8429 = vmul.f32 %v8418, %v8427
    %v8430 = vmul.f32 %v8412, %v8419
    %v8431 = vadd.f32 %v8429, %v8430
    %v8432 = vtanh.pop %v8431
    %v8433 = vmul.f32 %v8425, %v8432
    %v8434 = vld [vmem:[#allocation3] sm:$0xc0]
    %v8435 = vld [vmem:[#allocation3 + $0x8] sm:$0xc0]
    %v8436 = vld [vmem:[#allocation3 + $0x10] sm:$0xc0]
    %v8437 = vld [vmem:[#allocation3 + $0x18] sm:$0xc0]
    %v8438 = vpack.c.bf16 %v8433, %v8433
    %v8440 = vrot.slane %v8438, 2
    %8442 = vmatprep.subr.bf16.mxu0 %v7998
    %8443 = vmatpush1.bf16.msra.mxu0 %v7997
    %8444 = vmatprep.subr.bf16.mxu0 %v8002
    %8445 = vmatpush1.bf16.msra.mxu0 %v8001
    %8446 = vmatprep.subr.bf16.mxu0 %v8006
    %8447 = vmatpush1.bf16.msra.mxu0 %v8005
    %8448 = vmatprep.subr.bf16.mxu0 %v8010
    %8449 = vmatpush1.bf16.msra.mxu0 %v8009
    %8450 = vmatprep.subr.bf16.mxu0 %v8014
    %8451 = vmatpush1.bf16.msra.mxu0 %v8013
    %8452 = vmatprep.subr.bf16.mxu0 %v8018
    %8453 = vmatpush1.bf16.msra.mxu0 %v8017
    %8454 = vmatprep.subr.bf16.mxu0 %v8022
    %8455 = vmatpush1.bf16.msra.mxu0 %v8021
    %8456 = vmatprep.subr.bf16.mxu0 %v8026
    %8457 = vmatpush1.bf16.msra.mxu0 %v8025
    %8458 = vmatprep.subr.bf16.mxu0 0
    %8459 = vmatpush1.bf16.msra.mxu0 0
    %8460 = vmatprep.subr.bf16.mxu0 0
    %8461 = vmatpush1.bf16.msra.mxu0 0
    %8462 = vmatprep.subr.bf16.mxu0 0
    %8463 = vmatpush1.bf16.msra.mxu0 0
    %8464 = vmatprep.subr.bf16.mxu0 0
    %8465 = vmatpush1.bf16.msra.mxu0 0
    %8466 = vmatprep.subr.bf16.mxu0 0
    %8467 = vmatpush1.bf16.msra.mxu0 0
    %8468 = vmatprep.subr.bf16.mxu0 0
    %8469 = vmatpush1.bf16.msra.mxu0 0
    %8470 = vmatprep.subr.bf16.mxu0 0
    %8471 = vmatpush1.bf16.msra.mxu0 0
    %8472 = vmatprep.subr.bf16.mxu0 0
    %8473 = vmatpush1.bf16.msra.mxu0 0
    %8474 = vmatprep.mubr.bf16.mxu0 0
    %8475 = vmatmul.mubr.bf16.gmra.mrb[0].mxu0 %v8440
    %v8476 = vpop.f32.mrb[0].mxu0
    %v8477 = vadd.f32 0.0, %v8476
    %v8478 = vpop.f32.mrb[0].mxu0
    %v8479 = vadd.f32 0.0, %v8478
    %v8480 = vpop.f32.mrb[0].mxu0
    %v8481 = vpop.f32.mrb[0].mxu0
    %8482 = vdwg.mxu0
    %8483 = vmatprep.subr.bf16.mxu0 %v8000
    %8484 = vmatpush1.bf16.msra.mxu0 %v7999
    %8485 = vmatprep.subr.bf16.mxu0 %v8004
    %8486 = vmatpush1.bf16.msra.mxu0 %v8003
    %8487 = vmatprep.subr.bf16.mxu0 %v8008
    %8488 = vmatpush1.bf16.msra.mxu0 %v8007
    %8489 = vmatprep.subr.bf16.mxu0 %v8012
    %8490 = vmatpush1.bf16.msra.mxu0 %v8011
    %8491 = vmatprep.subr.bf16.mxu0 %v8016
    %8492 = vmatpush1.bf16.msra.mxu0 %v8015
    %8493 = vmatprep.subr.bf16.mxu0 %v8020
    %8494 = vmatpush1.bf16.msra.mxu0 %v8019
    %8495 = vmatprep.subr.bf16.mxu0 %v8024
    %8496 = vmatpush1.bf16.msra.mxu0 %v8023
    %8497 = vmatprep.subr.bf16.mxu0 %v8028
    %8498 = vmatpush1.bf16.msra.mxu0 %v8027
    %8499 = vmatprep.subr.bf16.mxu0 0
    %8500 = vmatpush1.bf16.msra.mxu0 0
    %8501 = vmatprep.subr.bf16.mxu0 0
    %8502 = vmatpush1.bf16.msra.mxu0 0
    %8503 = vmatprep.subr.bf16.mxu0 0
    %8504 = vmatpush1.bf16.msra.mxu0 0
    %8505 = vmatprep.subr.bf16.mxu0 0
    %8506 = vmatpush1.bf16.msra.mxu0 0
    %8507 = vmatprep.subr.bf16.mxu0 0
    %8508 = vmatpush1.bf16.msra.mxu0 0
    %8509 = vmatprep.subr.bf16.mxu0 0
    %8510 = vmatpush1.bf16.msra.mxu0 0
    %8511 = vmatprep.subr.bf16.mxu0 0
    %8512 = vmatpush1.bf16.msra.mxu0 0
    %8513 = vmatprep.subr.bf16.mxu0 0
    %8514 = vmatpush1.bf16.msra.mxu0 0
    %8515 = vmatprep.mubr.bf16.mxu0 0
    %8516 = vmatmul.mubr.bf16.gmra.mrb[0].mxu0 %v8440
    %v8517 = vpop.f32.mrb[0].mxu0
    %v8518 = vadd.f32 0.0, %v8517
    %v8519 = vpop.f32.mrb[0].mxu0
    %v8520 = vadd.f32 0.0, %v8519
    %v8521 = vpop.f32.mrb[0].mxu0
    %v8522 = vpop.f32.mrb[0].mxu0
    %8523 = vdwg.mxu0
    %v8528 = vrot.slane %v8477, 2
    %v8529 = vrot.slane %v8479, 2
    %v8530 = vrot.slane %v8518, 2
    %v8531 = vrot.slane %v8520, 2
    %v8536 = vadd.f32 %v8434, %v8528
    %v8537 = vadd.f32 %v8435, %v8529
    %v8538 = vadd.f32 %v8436, %v8530
    %v8539 = vadd.f32 %v8437, %v8531
    %v8540 = vxor.u32 %v8536, 2147483648
    %v8541 = vmul.f32 %v8540, 1.442695
    %v8542 = vpow.pop %v8541
    %v8543 = vadd.f32 %v8542, 1.0
    %v8544 = vrcp.pop %v8543
    %v8545 = vmul.f32 1.0, %v8544
    %v8546 = vxor.u32 %v8537, 2147483648
    %v8547 = vmul.f32 %v8546, 1.442695
    %v8548 = vpow.pop %v8547
    %v8549 = vadd.f32 %v8548, 1.0
    %v8550 = vrcp.pop %v8549
    %v8551 = vmul.f32 1.0, %v8550
    %v8552 = vtanh.pop %v8538
    %v8553 = vxor.u32 %v8539, 2147483648
    %v8554 = vmul.f32 %v8553, 1.442695
    %v8555 = vpow.pop %v8554
    %v8556 = vadd.f32 %v8555, 1.0
    %v8557 = vrcp.pop %v8556
    %v8558 = vmul.f32 1.0, %v8557
    %v8560 = vrot.slane %v8431, 6
    %v8562 = vmul.f32 %v8551, %v8560
    %v8563 = vmul.f32 %v8545, %v8552
    %v8564 = vadd.f32 %v8562, %v8563
    %v8565 = vtanh.pop %v8564
    %v8566 = vmul.f32 %v8558, %v8565
    %v8567 = vld [vmem:[#allocation3 + $0x20] sm:$0x3]
    %v8568 = vld [vmem:[#allocation3 + $0x28] sm:$0x3]
    %v8569 = vld [vmem:[#allocation3 + $0x30] sm:$0x3]
    %v8570 = vld [vmem:[#allocation3 + $0x38] sm:$0x3]
    %v8571 = vpack.c.bf16 %v8566, %v8566
    %v8573 = vrot.slane %v8571, 3
    %8575 = vmatprep.subr.bf16.mxu0 %v7998
    %8576 = vmatpush1.bf16.msra.mxu0 %v7997
    %8577 = vmatprep.subr.bf16.mxu0 %v8002
    %8578 = vmatpush1.bf16.msra.mxu0 %v8001
    %8579 = vmatprep.subr.bf16.mxu0 %v8006
    %8580 = vmatpush1.bf16.msra.mxu0 %v8005
    %8581 = vmatprep.subr.bf16.mxu0 %v8010
    %8582 = vmatpush1.bf16.msra.mxu0 %v8009
    %8583 = vmatprep.subr.bf16.mxu0 %v8014
    %8584 = vmatpush1.bf16.msra.mxu0 %v8013
    %8585 = vmatprep.subr.bf16.mxu0 %v8018
    %8586 = vmatpush1.bf16.msra.mxu0 %v8017
    %8587 = vmatprep.subr.bf16.mxu0 %v8022
    %8588 = vmatpush1.bf16.msra.mxu0 %v8021
    %8589 = vmatprep.subr.bf16.mxu0 %v8026
    %8590 = vmatpush1.bf16.msra.mxu0 %v8025
    %8591 = vmatprep.subr.bf16.mxu0 0
    %8592 = vmatpush1.bf16.msra.mxu0 0
    %8593 = vmatprep.subr.bf16.mxu0 0
    %8594 = vmatpush1.bf16.msra.mxu0 0
    %8595 = vmatprep.subr.bf16.mxu0 0
    %8596 = vmatpush1.bf16.msra.mxu0 0
    %8597 = vmatprep.subr.bf16.mxu0 0
    %8598 = vmatpush1.bf16.msra.mxu0 0
    %8599 = vmatprep.subr.bf16.mxu0 0
    %8600 = vmatpush1.bf16.msra.mxu0 0
    %8601 = vmatprep.subr.bf16.mxu0 0
    %8602 = vmatpush1.bf16.msra.mxu0 0
    %8603 = vmatprep.subr.bf16.mxu0 0
    %8604 = vmatpush1.bf16.msra.mxu0 0
    %8605 = vmatprep.subr.bf16.mxu0 0
    %8606 = vmatpush1.bf16.msra.mxu0 0
    %8607 = vmatprep.mubr.bf16.mxu0 0
    %8608 = vmatmul.mubr.bf16.gmra.mrb[0].mxu0 %v8573
    %v8609 = vpop.f32.mrb[0].mxu0
    %v8610 = vadd.f32 0.0, %v8609
    %v8611 = vpop.f32.mrb[0].mxu0
    %v8612 = vadd.f32 0.0, %v8611
    %v8613 = vpop.f32.mrb[0].mxu0
    %v8614 = vpop.f32.mrb[0].mxu0
    %8615 = vdwg.mxu0
    %8616 = vmatprep.subr.bf16.mxu0 %v8000
    %8617 = vmatpush1.bf16.msra.mxu0 %v7999
    %8618 = vmatprep.subr.bf16.mxu0 %v8004
    %8619 = vmatpush1.bf16.msra.mxu0 %v8003
    %8620 = vmatprep.subr.bf16.mxu0 %v8008
    %8621 = vmatpush1.bf16.msra.mxu0 %v8007
    %8622 = vmatprep.subr.bf16.mxu0 %v8012
    %8623 = vmatpush1.bf16.msra.mxu0 %v8011
    %8624 = vmatprep.subr.bf16.mxu0 %v8016
    %8625 = vmatpush1.bf16.msra.mxu0 %v8015
    %8626 = vmatprep.subr.bf16.mxu0 %v8020
    %8627 = vmatpush1.bf16.msra.mxu0 %v8019
    %8628 = vmatprep.subr.bf16.mxu0 %v8024
    %8629 = vmatpush1.bf16.msra.mxu0 %v8023
    %8630 = vmatprep.subr.bf16.mxu0 %v8028
    %8631 = vmatpush1.bf16.msra.mxu0 %v8027
    %8632 = vmatprep.subr.bf16.mxu0 0
    %8633 = vmatpush1.bf16.msra.mxu0 0
    %8634 = vmatprep.subr.bf16.mxu0 0
    %8635 = vmatpush1.bf16.msra.mxu0 0
    %8636 = vmatprep.subr.bf16.mxu0 0
    %8637 = vmatpush1.bf16.msra.mxu0 0
    %8638 = vmatprep.subr.bf16.mxu0 0
    %8639 = vmatpush1.bf16.msra.mxu0 0
    %8640 = vmatprep.subr.bf16.mxu0 0
    %8641 = vmatpush1.bf16.msra.mxu0 0
    %8642 = vmatprep.subr.bf16.mxu0 0
    %8643 = vmatpush1.bf16.msra.mxu0 0
    %8644 = vmatprep.subr.bf16.mxu0 0
    %8645 = vmatpush1.bf16.msra.mxu0 0
    %8646 = vmatprep.subr.bf16.mxu0 0
    %8647 = vmatpush1.bf16.msra.mxu0 0
    %8648 = vmatprep.mubr.bf16.mxu0 0
    %8649 = vmatmul.mubr.bf16.gmra.mrb[0].mxu0 %v8573
    %v8650 = vpop.f32.mrb[0].mxu0
    %v8651 = vadd.f32 0.0, %v8650
    %v8652 = vpop.f32.mrb[0].mxu0
    %v8653 = vadd.f32 0.0, %v8652
    %v8654 = vpop.f32.mrb[0].mxu0
    %v8655 = vpop.f32.mrb[0].mxu0
    %8656 = vdwg.mxu0
    %v8657 = vadd.f32 %v8567, %v8610
    %v8658 = vadd.f32 %v8568, %v8612
    %v8659 = vadd.f32 %v8569, %v8651
    %v8660 = vadd.f32 %v8570, %v8653
    %v8661 = vxor.u32 %v8657, 2147483648
    %v8662 = vmul.f32 %v8661, 1.442695
    %v8663 = vpow.pop %v8662
    %v8664 = vadd.f32 %v8663, 1.0
    %v8665 = vrcp.pop %v8664
    %v8666 = vmul.f32 1.0, %v8665
    %v8667 = vxor.u32 %v8658, 2147483648
    %v8668 = vmul.f32 %v8667, 1.442695
    %v8669 = vpow.pop %v8668
    %v8670 = vadd.f32 %v8669, 1.0
    %v8671 = vrcp.pop %v8670
    %v8672 = vmul.f32 1.0, %v8671
    %v8673 = vtanh.pop %v8659
    %v8674 = vxor.u32 %v8660, 2147483648
    %v8675 = vmul.f32 %v8674, 1.442695
    %v8676 = vpow.pop %v8675
    %v8677 = vadd.f32 %v8676, 1.0
    %v8678 = vrcp.pop %v8677
    %v8679 = vmul.f32 1.0, %v8678
    %v8681 = vrot.slane %v8564, 6
    %v8683 = vmul.f32 %v8672, %v8681
    %v8684 = vmul.f32 %v8666, %v8673
    %v8685 = vadd.f32 %v8683, %v8684
    %v8686 = vtanh.pop %v8685
    %v8687 = vmul.f32 %v8679, %v8686
    %v8688 = vld [vmem:[#allocation3 + $0x20] sm:$0xc]
    %v8689 = vld [vmem:[#allocation3 + $0x28] sm:$0xc]
    %v8690 = vld [vmem:[#allocation3 + $0x30] sm:$0xc]
    %v8691 = vld [vmem:[#allocation3 + $0x38] sm:$0xc]
    %v8692 = vpack.c.bf16 %v8687, %v8687
    %8693 = vmatprep.subr.bf16.mxu0 %v7998
    %8694 = vmatpush1.bf16.msra.mxu0 %v7997
    %8695 = vmatprep.subr.bf16.mxu0 %v8002
    %8696 = vmatpush1.bf16.msra.mxu0 %v8001
    %8697 = vmatprep.subr.bf16.mxu0 %v8006
    %8698 = vmatpush1.bf16.msra.mxu0 %v8005
    %8699 = vmatprep.subr.bf16.mxu0 %v8010
    %8700 = vmatpush1.bf16.msra.mxu0 %v8009
    %8701 = vmatprep.subr.bf16.mxu0 %v8014
    %8702 = vmatpush1.bf16.msra.mxu0 %v8013
    %8703 = vmatprep.subr.bf16.mxu0 %v8018
    %8704 = vmatpush1.bf16.msra.mxu0 %v8017
    %8705 = vmatprep.subr.bf16.mxu0 %v8022
    %8706 = vmatpush1.bf16.msra.mxu0 %v8021
    %8707 = vmatprep.subr.bf16.mxu0 %v8026
    %8708 = vmatpush1.bf16.msra.mxu0 %v8025
    %8709 = vmatprep.subr.bf16.mxu0 0
    %8710 = vmatpush1.bf16.msra.mxu0 0
    %8711 = vmatprep.subr.bf16.mxu0 0
    %8712 = vmatpush1.bf16.msra.mxu0 0
    %8713 = vmatprep.subr.bf16.mxu0 0
    %8714 = vmatpush1.bf16.msra.mxu0 0
    %8715 = vmatprep.subr.bf16.mxu0 0
    %8716 = vmatpush1.bf16.msra.mxu0 0
    %8717 = vmatprep.subr.bf16.mxu0 0
    %8718 = vmatpush1.bf16.msra.mxu0 0
    %8719 = vmatprep.subr.bf16.mxu0 0
    %8720 = vmatpush1.bf16.msra.mxu0 0
    %8721 = vmatprep.subr.bf16.mxu0 0
    %8722 = vmatpush1.bf16.msra.mxu0 0
    %8723 = vmatprep.subr.bf16.mxu0 0
    %8724 = vmatpush1.bf16.msra.mxu0 0
    %8725 = vmatprep.mubr.bf16.mxu0 0
    %8726 = vmatmul.mubr.bf16.gmra.mrb[0].mxu0 %v8692
    %v8727 = vpop.f32.mrb[0].mxu0
    %v8728 = vadd.f32 0.0, %v8727
    %v8729 = vpop.f32.mrb[0].mxu0
    %v8730 = vadd.f32 0.0, %v8729
    %v8731 = vpop.f32.mrb[0].mxu0
    %v8732 = vpop.f32.mrb[0].mxu0
    %8733 = vdwg.mxu0
    %8734 = vmatprep.subr.bf16.mxu0 %v8000
    %8735 = vmatpush1.bf16.msra.mxu0 %v7999
    %8736 = vmatprep.subr.bf16.mxu0 %v8004
    %8737 = vmatpush1.bf16.msra.mxu0 %v8003
    %8738 = vmatprep.subr.bf16.mxu0 %v8008
    %8739 = vmatpush1.bf16.msra.mxu0 %v8007
    %8740 = vmatprep.subr.bf16.mxu0 %v8012
    %8741 = vmatpush1.bf16.msra.mxu0 %v8011
    %8742 = vmatprep.subr.bf16.mxu0 %v8016
    %8743 = vmatpush1.bf16.msra.mxu0 %v8015
    %8744 = vmatprep.subr.bf16.mxu0 %v8020
    %8745 = vmatpush1.bf16.msra.mxu0 %v8019
    %8746 = vmatprep.subr.bf16.mxu0 %v8024
    %8747 = vmatpush1.bf16.msra.mxu0 %v8023
    %8748 = vmatprep.subr.bf16.mxu0 %v8028
    %8749 = vmatpush1.bf16.msra.mxu0 %v8027
    %8750 = vmatprep.subr.bf16.mxu0 0
    %8751 = vmatpush1.bf16.msra.mxu0 0
    %8752 = vmatprep.subr.bf16.mxu0 0
    %8753 = vmatpush1.bf16.msra.mxu0 0
    %8754 = vmatprep.subr.bf16.mxu0 0
    %8755 = vmatpush1.bf16.msra.mxu0 0
    %8756 = vmatprep.subr.bf16.mxu0 0
    %8757 = vmatpush1.bf16.msra.mxu0 0
    %8758 = vmatprep.subr.bf16.mxu0 0
    %8759 = vmatpush1.bf16.msra.mxu0 0
    %8760 = vmatprep.subr.bf16.mxu0 0
    %8761 = vmatpush1.bf16.msra.mxu0 0
    %8762 = vmatprep.subr.bf16.mxu0 0
    %8763 = vmatpush1.bf16.msra.mxu0 0
    %8764 = vmatprep.subr.bf16.mxu0 0
    %8765 = vmatpush1.bf16.msra.mxu0 0
    %8766 = vmatprep.mubr.bf16.mxu0 0
    %8767 = vmatmul.mubr.bf16.gmra.mrb[0].mxu0 %v8692
    %v8768 = vpop.f32.mrb[0].mxu0
    %v8769 = vadd.f32 0.0, %v8768
    %v8770 = vpop.f32.mrb[0].mxu0
    %v8771 = vadd.f32 0.0, %v8770
    %v8772 = vpop.f32.mrb[0].mxu0
    %v8773 = vpop.f32.mrb[0].mxu0
    %8774 = vdwg.mxu0
    %v8779 = vrot.slane %v8728, 6
    %v8780 = vrot.slane %v8730, 6
    %v8781 = vrot.slane %v8769, 6
    %v8782 = vrot.slane %v8771, 6
    %v8787 = vadd.f32 %v8688, %v8779
    %v8788 = vadd.f32 %v8689, %v8780
    %v8789 = vadd.f32 %v8690, %v8781
    %v8790 = vadd.f32 %v8691, %v8782
    %v8791 = vxor.u32 %v8787, 2147483648
    %v8792 = vmul.f32 %v8791, 1.442695
    %v8793 = vpow.pop %v8792
    %v8794 = vadd.f32 %v8793, 1.0
    %v8795 = vrcp.pop %v8794
    %v8796 = vmul.f32 1.0, %v8795
    %v8797 = vxor.u32 %v8788, 2147483648
    %v8798 = vmul.f32 %v8797, 1.442695
    %v8799 = vpow.pop %v8798
    %v8800 = vadd.f32 %v8799, 1.0
    %v8801 = vrcp.pop %v8800
    %v8802 = vmul.f32 1.0, %v8801
    %v8803 = vtanh.pop %v8789
    %v8804 = vxor.u32 %v8790, 2147483648
    %v8805 = vmul.f32 %v8804, 1.442695
    %v8806 = vpow.pop %v8805
    %v8807 = vadd.f32 %v8806, 1.0
    %v8808 = vrcp.pop %v8807
    %v8809 = vmul.f32 1.0, %v8808
    %v8811 = vrot.slane %v8685, 6
    %v8813 = vmul.f32 %v8802, %v8811
    %v8814 = vmul.f32 %v8796, %v8803
    %v8815 = vadd.f32 %v8813, %v8814
    %v8816 = vtanh.pop %v8815
    %v8817 = vmul.f32 %v8809, %v8816
    %v8818 = vld [vmem:[#allocation3 + $0x20] sm:$0x30]
    %v8819 = vld [vmem:[#allocation3 + $0x28] sm:$0x30]
    %v8820 = vld [vmem:[#allocation3 + $0x30] sm:$0x30]
    %v8821 = vld [vmem:[#allocation3 + $0x38] sm:$0x30]
    %v8822 = vpack.c.bf16 %v8817, %v8817
    %v8824 = vrot.slane %v8822, 1
    %8826 = vmatprep.subr.bf16.mxu0 %v7998
    %8827 = vmatpush1.bf16.msra.mxu0 %v7997
    %8828 = vmatprep.subr.bf16.mxu0 %v8002
    %8829 = vmatpush1.bf16.msra.mxu0 %v8001
    %8830 = vmatprep.subr.bf16.mxu0 %v8006
    %8831 = vmatpush1.bf16.msra.mxu0 %v8005
    %8832 = vmatprep.subr.bf16.mxu0 %v8010
    %8833 = vmatpush1.bf16.msra.mxu0 %v8009
    %8834 = vmatprep.subr.bf16.mxu0 %v8014
    %8835 = vmatpush1.bf16.msra.mxu0 %v8013
    %8836 = vmatprep.subr.bf16.mxu0 %v8018
    %8837 = vmatpush1.bf16.msra.mxu0 %v8017
    %8838 = vmatprep.subr.bf16.mxu0 %v8022
    %8839 = vmatpush1.bf16.msra.mxu0 %v8021
    %8840 = vmatprep.subr.bf16.mxu0 %v8026
    %8841 = vmatpush1.bf16.msra.mxu0 %v8025
    %8842 = vmatprep.subr.bf16.mxu0 0
    %8843 = vmatpush1.bf16.msra.mxu0 0
    %8844 = vmatprep.subr.bf16.mxu0 0
    %8845 = vmatpush1.bf16.msra.mxu0 0
    %8846 = vmatprep.subr.bf16.mxu0 0
    %8847 = vmatpush1.bf16.msra.mxu0 0
    %8848 = vmatprep.subr.bf16.mxu0 0
    %8849 = vmatpush1.bf16.msra.mxu0 0
    %8850 = vmatprep.subr.bf16.mxu0 0
    %8851 = vmatpush1.bf16.msra.mxu0 0
    %8852 = vmatprep.subr.bf16.mxu0 0
    %8853 = vmatpush1.bf16.msra.mxu0 0
    %8854 = vmatprep.subr.bf16.mxu0 0
    %8855 = vmatpush1.bf16.msra.mxu0 0
    %8856 = vmatprep.subr.bf16.mxu0 0
    %8857 = vmatpush1.bf16.msra.mxu0 0
    %8858 = vmatprep.mubr.bf16.mxu0 0
    %8859 = vmatmul.mubr.bf16.gmra.mrb[0].mxu0 %v8824
    %v8860 = vpop.f32.mrb[0].mxu0
    %v8861 = vadd.f32 0.0, %v8860
    %v8862 = vpop.f32.mrb[0].mxu0
    %v8863 = vadd.f32 0.0, %v8862
    %v8864 = vpop.f32.mrb[0].mxu0
    %v8865 = vpop.f32.mrb[0].mxu0
    %8866 = vdwg.mxu0
    %8867 = vmatprep.subr.bf16.mxu0 %v8000
    %8868 = vmatpush1.bf16.msra.mxu0 %v7999
    %8869 = vmatprep.subr.bf16.mxu0 %v8004
    %8870 = vmatpush1.bf16.msra.mxu0 %v8003
    %8871 = vmatprep.subr.bf16.mxu0 %v8008
    %8872 = vmatpush1.bf16.msra.mxu0 %v8007
    %8873 = vmatprep.subr.bf16.mxu0 %v8012
    %8874 = vmatpush1.bf16.msra.mxu0 %v8011
    %8875 = vmatprep.subr.bf16.mxu0 %v8016
    %8876 = vmatpush1.bf16.msra.mxu0 %v8015
    %8877 = vmatprep.subr.bf16.mxu0 %v8020
    %8878 = vmatpush1.bf16.msra.mxu0 %v8019
    %8879 = vmatprep.subr.bf16.mxu0 %v8024
    %8880 = vmatpush1.bf16.msra.mxu0 %v8023
    %8881 = vmatprep.subr.bf16.mxu0 %v8028
    %8882 = vmatpush1.bf16.msra.mxu0 %v8027
    %8883 = vmatprep.subr.bf16.mxu0 0
    %8884 = vmatpush1.bf16.msra.mxu0 0
    %8885 = vmatprep.subr.bf16.mxu0 0
    %8886 = vmatpush1.bf16.msra.mxu0 0
    %8887 = vmatprep.subr.bf16.mxu0 0
    %8888 = vmatpush1.bf16.msra.mxu0 0
    %8889 = vmatprep.subr.bf16.mxu0 0
    %8890 = vmatpush1.bf16.msra.mxu0 0
    %8891 = vmatprep.subr.bf16.mxu0 0
    %8892 = vmatpush1.bf16.msra.mxu0 0
    %8893 = vmatprep.subr.bf16.mxu0 0
    %8894 = vmatpush1.bf16.msra.mxu0 0
    %8895 = vmatprep.subr.bf16.mxu0 0
    %8896 = vmatpush1.bf16.msra.mxu0 0
    %8897 = vmatprep.subr.bf16.mxu0 0
    %8898 = vmatpush1.bf16.msra.mxu0 0
    %8899 = vmatprep.mubr.bf16.mxu0 0
    %8900 = vmatmul.mubr.bf16.gmra.mrb[0].mxu0 %v8824
    %v8901 = vpop.f32.mrb[0].mxu0
    %v8902 = vadd.f32 0.0, %v8901
    %v8903 = vpop.f32.mrb[0].mxu0
    %v8904 = vadd.f32 0.0, %v8903
    %v8905 = vpop.f32.mrb[0].mxu0
    %v8906 = vpop.f32.mrb[0].mxu0
    %8907 = vdwg.mxu0
    %v8912 = vrot.slane %v8861, 4
    %v8913 = vrot.slane %v8863, 4
    %v8914 = vrot.slane %v8902, 4
    %v8915 = vrot.slane %v8904, 4
    %v8920 = vadd.f32 %v8818, %v8912
    %v8921 = vadd.f32 %v8819, %v8913
    %v8922 = vadd.f32 %v8820, %v8914
    %v8923 = vadd.f32 %v8821, %v8915
    %v8924 = vxor.u32 %v8920, 2147483648
    %v8925 = vmul.f32 %v8924, 1.442695
    %v8926 = vpow.pop %v8925
    %v8927 = vadd.f32 %v8926, 1.0
    %v8928 = vrcp.pop %v8927
    %v8929 = vmul.f32 1.0, %v8928
    %v8930 = vxor.u32 %v8921, 2147483648
    %v8931 = vmul.f32 %v8930, 1.442695
    %v8932 = vpow.pop %v8931
    %v8933 = vadd.f32 %v8932, 1.0
    %v8934 = vrcp.pop %v8933
    %v8935 = vmul.f32 1.0, %v8934
    %v8936 = vtanh.pop %v8922
    %v8937 = vxor.u32 %v8923, 2147483648
    %v8938 = vmul.f32 %v8937, 1.442695
    %v8939 = vpow.pop %v8938
    %v8940 = vadd.f32 %v8939, 1.0
    %v8941 = vrcp.pop %v8940
    %v8942 = vmul.f32 1.0, %v8941
    %v8944 = vrot.slane %v8815, 6
    %v8946 = vmul.f32 %v8935, %v8944
    %v8947 = vmul.f32 %v8929, %v8936
    %v8948 = vadd.f32 %v8946, %v8947
    %v8949 = vtanh.pop %v8948
    %v8950 = vmul.f32 %v8942, %v8949
    %v8951 = vld [vmem:[#allocation3 + $0x20] sm:$0xc0]
    %v8952 = vld [vmem:[#allocation3 + $0x28] sm:$0xc0]
    %v8953 = vld [vmem:[#allocation3 + $0x30] sm:$0xc0]
    %v8954 = vld [vmem:[#allocation3 + $0x38] sm:$0xc0]
    %v8955 = vpack.c.bf16 %v8950, %v8950
    %v8957 = vrot.slane %v8955, 2
    %8959 = vmatprep.subr.bf16.mxu0 %v7998
    %8960 = vmatpush1.bf16.msra.mxu0 %v7997
    %8961 = vmatprep.subr.bf16.mxu0 %v8002
    %8962 = vmatpush1.bf16.msra.mxu0 %v8001
    %8963 = vmatprep.subr.bf16.mxu0 %v8006
    %8964 = vmatpush1.bf16.msra.mxu0 %v8005
    %8965 = vmatprep.subr.bf16.mxu0 %v8010
    %8966 = vmatpush1.bf16.msra.mxu0 %v8009
    %8967 = vmatprep.subr.bf16.mxu0 %v8014
    %8968 = vmatpush1.bf16.msra.mxu0 %v8013
    %8969 = vmatprep.subr.bf16.mxu0 %v8018
    %8970 = vmatpush1.bf16.msra.mxu0 %v8017
    %8971 = vmatprep.subr.bf16.mxu0 %v8022
    %8972 = vmatpush1.bf16.msra.mxu0 %v8021
    %8973 = vmatprep.subr.bf16.mxu0 %v8026
    %8974 = vmatpush1.bf16.msra.mxu0 %v8025
    %8975 = vmatprep.subr.bf16.mxu0 0
    %8976 = vmatpush1.bf16.msra.mxu0 0
    %8977 = vmatprep.subr.bf16.mxu0 0
    %8978 = vmatpush1.bf16.msra.mxu0 0
    %8979 = vmatprep.subr.bf16.mxu0 0
    %8980 = vmatpush1.bf16.msra.mxu0 0
    %8981 = vmatprep.subr.bf16.mxu0 0
    %8982 = vmatpush1.bf16.msra.mxu0 0
    %8983 = vmatprep.subr.bf16.mxu0 0
    %8984 = vmatpush1.bf16.msra.mxu0 0
    %8985 = vmatprep.subr.bf16.mxu0 0
    %8986 = vmatpush1.bf16.msra.mxu0 0
    %8987 = vmatprep.subr.bf16.mxu0 0
    %8988 = vmatpush1.bf16.msra.mxu0 0
    %8989 = vmatprep.subr.bf16.mxu0 0
    %8990 = vmatpush1.bf16.msra.mxu0 0
    %8991 = vmatprep.mubr.bf16.mxu0 0
    %8992 = vmatmul.mubr.bf16.gmra.mrb[0].mxu0 %v8957
    %v8993 = vpop.f32.mrb[0].mxu0
    %v8994 = vadd.f32 0.0, %v8993
    %v8995 = vpop.f32.mrb[0].mxu0
    %v8996 = vadd.f32 0.0, %v8995
    %v8997 = vpop.f32.mrb[0].mxu0
    %v8998 = vpop.f32.mrb[0].mxu0
    %8999 = vdwg.mxu0
    %9000 = vmatprep.subr.bf16.mxu0 %v8000
    %9001 = vmatpush1.bf16.msra.mxu0 %v7999
    %9002 = vmatprep.subr.bf16.mxu0 %v8004
    %9003 = vmatpush1.bf16.msra.mxu0 %v8003
    %9004 = vmatprep.subr.bf16.mxu0 %v8008
    %9005 = vmatpush1.bf16.msra.mxu0 %v8007
    %9006 = vmatprep.subr.bf16.mxu0 %v8012
    %9007 = vmatpush1.bf16.msra.mxu0 %v8011
    %9008 = vmatprep.subr.bf16.mxu0 %v8016
    %9009 = vmatpush1.bf16.msra.mxu0 %v8015
    %9010 = vmatprep.subr.bf16.mxu0 %v8020
    %9011 = vmatpush1.bf16.msra.mxu0 %v8019
    %9012 = vmatprep.subr.bf16.mxu0 %v8024
    %9013 = vmatpush1.bf16.msra.mxu0 %v8023
    %9014 = vmatprep.subr.bf16.mxu0 %v8028
    %9015 = vmatpush1.bf16.msra.mxu0 %v8027
    %9016 = vmatprep.subr.bf16.mxu0 0
    %9017 = vmatpush1.bf16.msra.mxu0 0
    %9018 = vmatprep.subr.bf16.mxu0 0
    %9019 = vmatpush1.bf16.msra.mxu0 0
    %9020 = vmatprep.subr.bf16.mxu0 0
    %9021 = vmatpush1.bf16.msra.mxu0 0
    %9022 = vmatprep.subr.bf16.mxu0 0
    %9023 = vmatpush1.bf16.msra.mxu0 0
    %9024 = vmatprep.subr.bf16.mxu0 0
    %9025 = vmatpush1.bf16.msra.mxu0 0
    %9026 = vmatprep.subr.bf16.mxu0 0
    %9027 = vmatpush1.bf16.msra.mxu0 0
    %9028 = vmatprep.subr.bf16.mxu0 0
    %9029 = vmatpush1.bf16.msra.mxu0 0
    %9030 = vmatprep.subr.bf16.mxu0 0
    %9031 = vmatpush1.bf16.msra.mxu0 0
    %9032 = vmatprep.mubr.bf16.mxu0 0
    %9033 = vmatmul.mubr.bf16.gmra.mrb[0].mxu0 %v8957
    %v9034 = vpop.f32.mrb[0].mxu0
    %v9035 = vadd.f32 0.0, %v9034
    %v9036 = vpop.f32.mrb[0].mxu0
    %v9037 = vadd.f32 0.0, %v9036
    %v9038 = vpop.f32.mrb[0].mxu0
    %v9039 = vpop.f32.mrb[0].mxu0
    %9040 = vdwg.mxu0
    %v9045 = vrot.slane %v8994, 2
    %v9046 = vrot.slane %v8996, 2
    %v9047 = vrot.slane %v9035, 2
    %v9048 = vrot.slane %v9037, 2
    %v9053 = vadd.f32 %v8951, %v9045
    %v9054 = vadd.f32 %v8952, %v9046
    %v9055 = vadd.f32 %v8953, %v9047
    %v9056 = vadd.f32 %v8954, %v9048
    %v9057 = vxor.u32 %v9053, 2147483648
    %v9058 = vmul.f32 %v9057, 1.442695
    %v9059 = vpow.pop %v9058
    %v9060 = vadd.f32 %v9059, 1.0
    %v9061 = vrcp.pop %v9060
    %v9062 = vmul.f32 1.0, %v9061
    %v9063 = vxor.u32 %v9054, 2147483648
    %v9064 = vmul.f32 %v9063, 1.442695
    %v9065 = vpow.pop %v9064
    %v9066 = vadd.f32 %v9065, 1.0
    %v9067 = vrcp.pop %v9066
    %v9068 = vmul.f32 1.0, %v9067
    %v9069 = vtanh.pop %v9055
    %v9070 = vxor.u32 %v9056, 2147483648
    %v9071 = vmul.f32 %v9070, 1.442695
    %v9072 = vpow.pop %v9071
    %v9073 = vadd.f32 %v9072, 1.0
    %v9074 = vrcp.pop %v9073
    %v9075 = vmul.f32 1.0, %v9074
    %v9077 = vrot.slane %v8948, 6
    %v9079 = vmul.f32 %v9068, %v9077
    %v9080 = vmul.f32 %v9062, %v9069
    %v9081 = vadd.f32 %v9079, %v9080
    %v9082 = vtanh.pop %v9081
    %v9083 = vmul.f32 %v9075, %v9082
    %v9084 = vpack.c.bf16 %v9083, %v9083
    %v9085 = vld [vmem:[%s8] sm:$0xf]
    %v9086 = vld [vmem:[%s8 + $0x4] sm:$0xf]
    %v9087 = vld [vmem:[%s8 + $0x8] sm:$0xf]
    %v9088 = vld [vmem:[%s8 + $0xc] sm:$0xf]
    %v9089 = vld [vmem:[%s8 + $0x10] sm:$0xf]
    %v9090 = vld [vmem:[%s8 + $0x14] sm:$0xf]
    %v9091 = vld [vmem:[%s8 + $0x18] sm:$0xf]
    %v9092 = vld [vmem:[%s8 + $0x1c] sm:$0xf]
    %v9093 = vld [vmem:[%s8 + $0x20] sm:$0xf]
    %v9094 = vld [vmem:[%s8 + $0x24] sm:$0xf]
    %v9095 = vld [vmem:[%s8 + $0x28] sm:$0xf]
    %v9096 = vld [vmem:[%s8 + $0x2c] sm:$0xf]
    %v9097 = vld [vmem:[%s8 + $0x30] sm:$0xf]
    %v9098 = vld [vmem:[%s8 + $0x34] sm:$0xf]
    %v9099 = vld [vmem:[%s8 + $0x38] sm:$0xf]
    %v9100 = vld [vmem:[%s8 + $0x3c] sm:$0xf]
    %v9101 = vld [vmem:[%s9] sm:$0x1]
    %v9103 = vlaneseq
    %v9104 = vshrl.u32 %v9103, 7
    %v9105 = vsub.s32 0, %v9104
    %v9106 = vrot.slane %v9101, %v9105
    %v9109 = vrot.slane %v9084, 3
    %v9127 = vunpack.c.l.b16 %v9085
    %v9128 = vunpack.c.l.b16 %v9086
    %v9129 = vunpack.c.l.b16 %v9087
    %v9130 = vunpack.c.l.b16 %v9088
    %v9131 = vunpack.c.l.b16 %v9089
    %v9132 = vunpack.c.l.b16 %v9090
    %v9133 = vunpack.c.l.b16 %v9091
    %v9134 = vunpack.c.l.b16 %v9092
    %v9135 = vunpack.c.l.b16 %v9093
    %v9136 = vunpack.c.l.b16 %v9094
    %v9137 = vunpack.c.l.b16 %v9095
    %v9138 = vunpack.c.l.b16 %v9096
    %v9139 = vunpack.c.l.b16 %v9097
    %v9140 = vunpack.c.l.b16 %v9098
    %v9141 = vunpack.c.l.b16 %v9099
    %v9142 = vunpack.c.l.b16 %v9100
    %v9143 = vpack.c.b16 %v9128, %v9127
    %v9144 = vpack.c.b16 %v9130, %v9129
    %v9145 = vpack.c.b16 %v9132, %v9131
    %v9146 = vpack.c.b16 %v9134, %v9133
    %v9147 = vpack.c.b16 %v9136, %v9135
    %v9148 = vpack.c.b16 %v9138, %v9137
    %v9149 = vpack.c.b16 %v9140, %v9139
    %v9150 = vpack.c.b16 %v9142, %v9141
    %9159 = vmatprep.subr.bf16.mxu0 0
    %9160 = vmatpush1.bf16.msra.mxu0 %v9143
    %9161 = vmatprep.subr.bf16.mxu0 0
    %9162 = vmatpush1.bf16.msra.mxu0 %v9144
    %9163 = vmatprep.subr.bf16.mxu0 0
    %9164 = vmatpush1.bf16.msra.mxu0 %v9145
    %9165 = vmatprep.subr.bf16.mxu0 0
    %9166 = vmatpush1.bf16.msra.mxu0 %v9146
    %9167 = vmatprep.subr.bf16.mxu0 0
    %9168 = vmatpush1.bf16.msra.mxu0 %v9147
    %9169 = vmatprep.subr.bf16.mxu0 0
    %9170 = vmatpush1.bf16.msra.mxu0 %v9148
    %9171 = vmatprep.subr.bf16.mxu0 0
    %9172 = vmatpush1.bf16.msra.mxu0 %v9149
    %9173 = vmatprep.subr.bf16.mxu0 0
    %9174 = vmatpush1.bf16.msra.mxu0 %v9150
    %9175 = vmatprep.subr.bf16.mxu0 0
    %9176 = vmatpush1.bf16.msra.mxu0 0
    %9177 = vmatprep.subr.bf16.mxu0 0
    %9178 = vmatpush1.bf16.msra.mxu0 0
    %9179 = vmatprep.subr.bf16.mxu0 0
    %9180 = vmatpush1.bf16.msra.mxu0 0
    %9181 = vmatprep.subr.bf16.mxu0 0
    %9182 = vmatpush1.bf16.msra.mxu0 0
    %9183 = vmatprep.subr.bf16.mxu0 0
    %9184 = vmatpush1.bf16.msra.mxu0 0
    %9185 = vmatprep.subr.bf16.mxu0 0
    %9186 = vmatpush1.bf16.msra.mxu0 0
    %9187 = vmatprep.subr.bf16.mxu0 0
    %9188 = vmatpush1.bf16.msra.mxu0 0
    %9189 = vmatprep.subr.bf16.mxu0 0
    %9190 = vmatpush1.bf16.msra.mxu0 0
    %9191 = vmatprep.mubr.bf16.mxu0 0
    %9192 = vmatmul.mubr.bf16.gmra.mrb[0].mxu0 %v9109
    %v9193 = vpop.f32.mrb[0].mxu0
    %v9194 = vadd.f32 %v9106, %v9193
    %v9195 = vpop.f32.mrb[0].mxu0
    %v9196 = vpop.f32.mrb[0].mxu0
    %v9197 = vpop.f32.mrb[0].mxu0
    %9198 = vdwg.mxu0
    %vm9199 = vcmask 58368
    %9200 = vst.msk [vmem:[#allocation4] sm:$0x3] %vm9199, %v9194
    %v9201 = vsel %vm9199, %v9194, -inf
    %9202 = vmax.xlane.f32.xlu0 %v9201
    %v9203 = vpop.xlane.xlu0 %9202
    %v9204 = vsub.f32 %v9194, %v9203
    %v9205 = vmul.f32 %v9204, 1.442695
    %v9206 = vpow.pop %v9205
    %v9207 = vsel %vm9199, %v9206, 0.0
    %9208 = vadd.xlane.f32.xlu0 %v9207
    %v9209 = vpop.xlane.xlu0 %9208
    %v9210 = vrcp.pop %v9209
    %v9211 = vmul.f32 %v9206, %v9210
    %9212 = vst.msk [vmem:[#allocation6] sm:$0x3] %vm9199, %v9211
    // Predicated region
    $region42: #{cnn_lstm_forward.1} parent=1 // pred_check
      _
    $region43: #{cnn_lstm_forward.1} parent=1 // pred_check_branch
      %9214 = sbr.rel (0) target = $region45
    $region44: #{cnn_lstm_forward.1} parent=1 // pred_region
      %s9216 = ssub.s32 32, 32
      %9217 = vsyncadd [#allocation5], %s9216
      %s9219 = sshll.u32 [#allocation4], 4
      %s9220 = int_to_ptr.vmem [resolvable:$true] %s9219
      %9222 = dma.vmem_to_hbm [thread:$0]  %s9220, 32, %s10, [#allocation5]
    $region45: #{cnn_lstm_forward.1} parent=1 // pred_fallthru
      _
    // Predicated region
    $region46: #{cnn_lstm_forward.1} parent=1 // pred_check
      _
    $region47: #{cnn_lstm_forward.1} parent=1 // pred_check_branch
      %9224 = sbr.rel (0) target = $region49
    $region48: #{cnn_lstm_forward.1} parent=1 // pred_region
      %s9226 = ssub.s32 32, 32
      %9227 = vsyncadd [#allocation7], %s9226
      %s9229 = sshll.u32 [#allocation6], 4
      %s9230 = int_to_ptr.vmem [resolvable:$true] %s9229
      %9232 = dma.vmem_to_hbm [thread:$0]  %s9230, 32, %s11, [#allocation7]
    $region49: #{cnn_lstm_forward.1} parent=1 // pred_fallthru
      _
    // Predicated region
    $region50: #{cnn_lstm_forward.1} parent=1 // pred_check
      _
    $region51: #{cnn_lstm_forward.1} parent=1 // pred_check_branch
      %9234 = sbr.rel (0) target = $region53
    $region52: #{cnn_lstm_forward.1} parent=1 // pred_region
      %9235 = dma.done [#allocation5], 32
    $region53: #{cnn_lstm_forward.1} parent=1 // pred_fallthru
      _
    // Predicated region
    $region54: #{cnn_lstm_forward.1} parent=1 // pred_check
      _
    $region55: #{cnn_lstm_forward.1} parent=1 // pred_check_branch
      %9237 = sbr.rel (0) target = $region57
    $region56: #{cnn_lstm_forward.1} parent=1 // pred_region
      %9238 = dma.done [#allocation7], 32
    $region57: #{cnn_lstm_forward.1} parent=1 // pred_fallthru
      _
    %9239 = vsyncpa [#allocation5], 1
    %9240 = vsyncpa [#allocation7], 1

</llo_original>
